<compile_context>
chip_gen: v6e
topology: v6e:2x2x1
jax: 0.10.0
libtpu: 0.0.40
codegen_flags: <defaults>
</compile_context>

<pallas_src>
from typing import NamedTuple, Any

import jax
import jax.numpy as jnp
from jax.experimental import pallas as pl
from jax.experimental.pallas import tpu as pltpu


# ----------------------------- constants ------------------------------------
C = 64              # backbone channels (n_layers_backbone=1 -> filters=64)
H1 = W1 = 16        # conv1 output spatial extent (32x32 input, stride 2)
HP = WP = 8         # post-maxpool spatial extent
K7_PAD = 64         # conv1 im2col contraction dim (7*7*1 = 49, zero-padded)
K3 = 9 * C          # 3x3 conv im2col contraction dim (576)
COUT_LAST = 128     # combined clf(30)+reg(12) last conv, padded lane-dense
N_CLASSES = 10
N_ANCHOR_SIZES = 3
_PAD_OFF = 8        # 8-aligned sublane offset of the interior in pad scratch


class DigitDetectionModelOutput(NamedTuple):
    anchors: Any
    classification_output: jax.Array
    box_regression_output: jax.Array


# ----------------------------- fused Pallas kernel --------------------------

def _store_interior(pref, x, h, w):
    """Store an (h*w, C) map into the (already zeroed) pad scratch interior at
    an 8-aligned sublane offset.  The zero halo around it is NOT re-written."""
    pref[1:1 + h, _PAD_OFF:_PAD_OFF + w, :] = x.reshape(h, w, C)


def _win_list(pref, h, w, dt):
    """The 9 shifted (h*w, C) windows (3x3 taps, padding=1) of a pad scratch."""
    outs = []
    for kh in range(3):
        for kw in range(3):
            c0 = _PAD_OFF - 1 + kw
            outs.append(pref[kh:kh + h, c0:c0 + w, :].reshape(h * w, C).astype(dt))
    return outs


def _fused_kernel(patch_ref, w1_ref, b1_ref, sel_ref,
                  wblk_ref, bblk_ref, wlast_ref, blast_ref,
                  out_ref, mp_ref, pa_ref, pb_ref):
    """Whole MyNet32 forward for one image, fully VMEM-resident."""
    f32, bf16 = jnp.float32, jnp.bfloat16

    # Zero the pad scratches once per grid step; every later pad load only
    # rewrites the interior, so the halo stays zero for all 3x3 windows.
    mp_ref[...] = jnp.zeros_like(mp_ref)
    pa_ref[...] = jnp.zeros_like(pa_ref)
    pb_ref[...] = jnp.zeros_like(pb_ref)

    # --- conv1 (7x7, stride 2, pad 3; Cin collapsed, BN folded) = one matmul --
    y = jnp.dot(patch_ref[0], w1_ref[...], preferred_element_type=f32)   # (256,64)
    y = jnp.maximum(y + b1_ref[...], 0.0)

    # --- maxpool 3x3 stride 2 pad 1 -------------------------------------------
    # NOTE: the zero halo is only exact because y >= 0 (ReLU precedes the pool);
    # the PyTorch reference pads with -inf.  Do not reorder ReLU/maxpool.
    # Stride-2 subsample folded into one bf16 (64,256)x(256,64) 0/1 selection
    # matmul.
    _store_interior(mp_ref, y, H1, W1)
    wins = _win_list(mp_ref, H1, W1, f32)
    m = wins[0]
    for wv in wins[1:]:
        m = jnp.maximum(m, wv)
    feat = jnp.dot(sel_ref[...], m.astype(bf16), preferred_element_type=f32)  # (64,64)

    def conv3x3(pref, idx):
        # K-concatenated im2col: one (64, 576) @ (576, 64) MXU matmul per conv.
        lhs = jnp.concatenate(_win_list(pref, HP, WP, bf16), axis=-1)
        return jnp.dot(lhs, wblk_ref[idx], preferred_element_type=f32) + bblk_ref[idx]

    # --- layer1: two BasicBlocks (eval BN folded), residual+ReLU fused -------
    for blk in range(2):
        _store_interior(pa_ref, feat, HP, WP)
        h = jnp.maximum(conv3x3(pa_ref, 2 * blk), 0.0)
        _store_interior(pa_ref, h, HP, WP)
        feat = jnp.maximum(conv3x3(pa_ref, 2 * blk + 1) + feat, 0.0)

    # --- classification-head conv block (1 conv + ReLU); reg head has none ---
    _store_interior(pa_ref, feat, HP, WP)
    clf_feat = jnp.maximum(conv3x3(pa_ref, 4), 0.0)

    # --- merged last conv: one (64, 1152) @ (1152, 128) matmul ----------------
    # K rows [0,576) = clf stream (clf_feat), [576,1152) = reg stream (feat);
    # output cols [0,30) = clf, [30,42) = reg, rest zero padding.
    _store_interior(pa_ref, clf_feat, HP, WP)
    _store_interior(pb_ref, feat, HP, WP)
    lhs = jnp.concatenate(_win_list(pa_ref, HP, WP, bf16)
                          + _win_list(pb_ref, HP, WP, bf16), axis=-1)
    out_ref[0] = (jnp.dot(lhs, wlast_ref[...], preferred_element_type=f32)
                  + blast_ref[...])


def _fused_forward_call(N):
    return pl.pallas_call(
        _fused_kernel,
        out_shape=jax.ShapeDtypeStruct((N, HP * WP, COUT_LAST), jnp.float32),
        grid=(N,),
        in_specs=[
            pl.BlockSpec((1, H1 * W1, K7_PAD), lambda n: (n, 0, 0)),      # patches
            pl.BlockSpec((K7_PAD, C), lambda n: (0, 0)),                  # w1
            pl.BlockSpec((1, C), lambda n: (0, 0)),                       # b1
            pl.BlockSpec((HP * WP, H1 * W1), lambda n: (0, 0)),           # sel (bf16)
            pl.BlockSpec((5, K3, C), lambda n: (0, 0, 0)),                # wblk
            pl.BlockSpec((5, 1, C), lambda n: (0, 0, 0)),                 # bblk
            pl.BlockSpec((2 * K3, COUT_LAST), lambda n: (0, 0)),          # wlast
            pl.BlockSpec((1, COUT_LAST), lambda n: (0, 0)),               # blast
        ],
        out_specs=pl.BlockSpec((1, HP * WP, COUT_LAST), lambda n: (n, 0, 0)),
        scratch_shapes=[
            pltpu.VMEM((H1 + 2, _PAD_OFF + W1 + 8, C), jnp.float32),  # maxpool pad
            pltpu.VMEM((HP + 2, _PAD_OFF + WP + 8, C), jnp.float32),  # conv pad A
            pltpu.VMEM((HP + 2, _PAD_OFF + WP + 8, C), jnp.float32),  # conv pad B
        ],
        compiler_params=pltpu.CompilerParams(dimension_semantics=("parallel",)),
    )


# ----------------------------- parameter packing (hoisted) -------------------

def _bn_params(key, c):
    k1, k2, k3, k4 = jax.random.split(key, 4)
    return dict(
        gamma=1.0 + 0.1 * jax.random.normal(k1, (c,), jnp.float32),
        beta=0.1 * jax.random.normal(k2, (c,), jnp.float32),
        mean=0.1 * jax.random.normal(k3, (c,), jnp.float32),
        var=1.0 + 0.1 * jnp.abs(jax.random.normal(k4, (c,), jnp.float32)),
    )


def fold_bn(w, bn, eps=1e-5):
    """Fold eval-mode BatchNorm into the preceding (bias-free) conv."""
    scale = bn["gamma"] / jnp.sqrt(bn["var"] + eps)
    return w * scale, bn["beta"] - bn["mean"] * scale


def init_mynet32_params(key, *, n_layers_backbone, n_layers_clf, n_layers_reg,
                        n_anchor_sizes, n_classes):
    assert n_layers_backbone == 1, "this script instantiates n_layers_backbone=1"
    filters = 64 * (2 ** (n_layers_backbone - 1))
    keys = iter(jax.random.split(key, 64))

    def w(shape, scale=0.05):
        return scale * jax.random.normal(next(keys), shape, jnp.float32)

    # TODO(synk): pretrained resnet18 checkpoint load replaced by synthetic init.
    backbone = dict(
        conv1_w=w((7, 7, 3, 64)),
        bn1=_bn_params(next(keys), 64),
        layer1=[dict(conv1_w=w((3, 3, 64, 64)), bn1=_bn_params(next(keys), 64),
                     conv2_w=w((3, 3, 64, 64)), bn2=_bn_params(next(keys), 64))
                for _ in range(2)],
    )

    def head(n_layers, out_channels):
        return dict(
            conv_block=[(w((3, 3, filters, filters)), w((filters,), 0.01))
                        for _ in range(max(n_layers - 1, 0))],
            last_conv=(w((3, 3, filters, out_channels)), w((out_channels,), 0.01)),
        )

    return dict(
        backbone=backbone,
        clf_head=head(n_layers_clf, n_anchor_sizes * n_classes),
        reg_head=head(n_layers_reg, n_anchor_sizes * 4),
    )


def pack_params(params):
    """One-time BN folding + packing into kernel-friendly (bf16) arrays."""
    bb = params["backbone"]

    # conv1: fold BN, collapse Cin (input is an exact 3x channel tile), pad K.
    w1f, b1 = fold_bn(bb["conv1_w"], bb["bn1"])
    w1_mat = jnp.zeros((K7_PAD, C), jnp.float32).at[:49].set(
        w1f.sum(axis=2).reshape(49, C))

    # 3x3 convs with Cout=64: 4 block convs + the clf-head conv_block conv.
    # Restacked to (576, 64) so each conv is ONE K-concatenated matmul.
    blk_ws, blk_bs = [], []
    for blk in bb["layer1"]:
        for wk, bnk in (("conv1_w", "bn1"), ("conv2_w", "bn2")):
            wf, bf = fold_bn(blk[wk], blk[bnk])
            blk_ws.append(wf.reshape(K3, C))
            blk_bs.append(bf.reshape(1, C))
    assert len(params["clf_head"]["conv_block"]) == 1
    (wc, bc), = params["clf_head"]["conv_block"]
    blk_ws.append(wc.reshape(K3, C))
    blk_bs.append(bc.reshape(1, C))
    wblk = jnp.stack(blk_ws)          # (5, 576, 64)
    bblk = jnp.stack(blk_bs)          # (5, 1, 64)

    # Merged lane-dense last conv: K = [clf im2col | reg im2col] (2*576),
    # output cols clf -> [0,30), reg -> [30,42).
    wlc, blc = params["clf_head"]["last_conv"]     # (3,3,64,30), (30,)
    wlr, blr = params["reg_head"]["last_conv"]     # (3,3,64,12), (12,)
    n_clf = N_ANCHOR_SIZES * N_CLASSES
    n_reg = N_ANCHOR_SIZES * 4
    wlast = jnp.zeros((2 * K3, COUT_LAST), jnp.float32)
    wlast = wlast.at[:K3, :n_clf].set(wlc.reshape(K3, n_clf))
    wlast = wlast.at[K3:, n_clf:n_clf + n_reg].set(wlr.reshape(K3, n_reg))
    blast = jnp.zeros((1, COUT_LAST), jnp.float32)
    blast = blast.at[0, :n_clf].set(blc).at[0, n_clf:n_clf + n_reg].set(blr)

    # maxpool stride-2 selection matrix: row i*8+j picks stride-1 pool (2i, 2j).
    # Exact 0/1 values, so bf16 is lossless on this operand.
    rows = jnp.arange(HP * WP)
    cols = (rows // WP) * (2 * W1) + (rows % WP) * 2
    sel = jnp.zeros((HP * WP, H1 * W1), jnp.float32).at[rows, cols].set(1.0)

    return dict(
        w1=w1_mat.astype(jnp.bfloat16), b1=b1.reshape(1, C),
        sel=sel.astype(jnp.bfloat16),
        wblk=wblk.astype(jnp.bfloat16), bblk=bblk,
        wlast=wlast.astype(jnp.bfloat16), blast=blast,
    )


# ----------------------------- forward wrapper -------------------------------

def _conv1_im2col(x_nchw):
    """(N,1,32,32) -> (N, 256, 64) bf16 stride-2 7x7 im2col (K padded 49->64)."""
    N = x_nchw.shape[0]
    xp = jnp.pad(x_nchw[:, 0], ((0, 0), (3, 3), (3, 3)))            # (N, 38, 38)
    cols = [xp[:, kh:kh + 31:2, kw:kw + 31:2]
            for kh in range(7) for kw in range(7)]                  # 49 x (N,16,16)
    patches = jnp.stack(cols, axis=-1).reshape(N, H1 * W1, 49)
    patches = jnp.pad(patches, ((0, 0), (0, 0), (0, K7_PAD - 49)))
    return patches.astype(jnp.bfloat16)


def mynet32_fused_forward(x_nchw, packed):
    N = x_nchw.shape[0]
    patches = _conv1_im2col(x_nchw)
    head = _fused_forward_call(N)(
        patches, packed["w1"], packed["b1"], packed["sel"],
        packed["wblk"], packed["bblk"], packed["wlast"], packed["blast"])
    n_clf = N_ANCHOR_SIZES * N_CLASSES
    clf = head[:, :, :n_clf].reshape(N, HP * WP * N_ANCHOR_SIZES, N_CLASSES)
    reg = head[:, :, n_clf:n_clf + 4 * N_ANCHOR_SIZES].reshape(
        N, HP * WP * N_ANCHOR_SIZES, 4)
    return clf, reg


# ----------------------------- pure-JAX f32 reference ------------------------

def reference_forward(x_nchw, params):
    bb = params["backbone"]

    def conv(x, w, b, stride, pad):
        y = jax.lax.conv_general_dilated(
            x, w, window_strides=(stride, stride),
            padding=((pad, pad), (pad, pad)),
            dimension_numbers=("NHWC", "HWIO", "NHWC"))
        return y + b

    x = jnp.transpose(x_nchw, (0, 2, 3, 1))
    x = jnp.tile(x, (1, 1, 1, 3))                 # == repeat(1, 3, 1, 1)
    # scale_factor == 1 -> bilinear interpolation branch skipped.
    w1, b1 = fold_bn(bb["conv1_w"], bb["bn1"])
    x = jax.nn.relu(conv(x, w1, b1, 2, 3))
    x = jax.lax.reduce_window(x, -jnp.inf, jax.lax.max,
                              (1, 3, 3, 1), (1, 2, 2, 1),
                              ((0, 0), (1, 1), (1, 1), (0, 0)))
    for blk in bb["layer1"]:
        wa, ba = fold_bn(blk["conv1_w"], blk["bn1"])
        wb, bbb = fold_bn(blk["conv2_w"], blk["bn2"])
        y = jax.nn.relu(conv(x, wa, ba, 1, 1))
        y = conv(y, wb, bbb, 1, 1)
        x = jax.nn.relu(y + x)

    def head(x, hp, last):
        for (w, b) in hp["conv_block"]:
            x = jax.nn.relu(conv(x, w, b, 1, 1))
        w, b = hp["last_conv"]
        x = conv(x, w, b, 1, 1)
        N, H, W, _ = x.shape
        return x.reshape(N, H * W * N_ANCHOR_SIZES, last)

    return head(x, params["clf_head"], N_CLASSES), head(x, params["reg_head"], 4)


# ----------------------------- main -------------------------------------------

if __name__ == "__main__":
    anchors = [("anchor_placeholder", i) for i in range(HP * WP * N_ANCHOR_SIZES)]

    key = jax.random.PRNGKey(0)
    k_params, k_x = jax.random.split(key)
    params = init_mynet32_params(
        k_params, n_layers_backbone=1, n_layers_clf=2, n_layers_reg=1,
        n_anchor_sizes=N_ANCHOR_SIZES, n_classes=N_CLASSES)
    packed = pack_params(params)          # BN fold + weight packing, done once

    x = jax.random.normal(k_x, (2, 1, 32, 32), jnp.float32)   # NCHW like PyTorch

    fwd = jax.jit(mynet32_fused_forward)
    clf, reg = fwd(x, packed)
    jax.block_until_ready((clf, reg))
    out = DigitDetectionModelOutput(anchors=anchors,
                                    classification_output=clf,
                                    box_regression_output=reg)

    assert out.classification_output.shape == (2, HP * WP * N_ANCHOR_SIZES, N_CLASSES)
    assert out.box_regression_output.shape == (2, HP * WP * N_ANCHOR_SIZES, 4)
    assert bool(jnp.all(jnp.isfinite(out.classification_output)))
    assert bool(jnp.all(jnp.isfinite(out.box_regression_output)))

    # Numerical check vs. a pure-JAX f32 reference (bf16 MXU operands in the
    # kernel -> loose tolerance).
    clf_ref, reg_ref = reference_forward(x, params)

    def _close(a, b):
        tol = 5e-2 * (1.0 + float(jnp.max(jnp.abs(b))))
        return float(jnp.max(jnp.abs(a - b))) <= tol

    assert _close(out.classification_output, clf_ref)
    assert _close(out.box_regression_output, reg_ref)

    print("KERNEL_OK")
</pallas_src>

<mosaic_0001>
module attributes {stable_mosaic.version = 11 : i64} {
  func.func @_fused_kernel(%arg0: i32, %arg1: memref<1x256x64xbf16, #tpu.memory_space<vmem>>, %arg2: memref<64x64xbf16, #tpu.memory_space<vmem>>, %arg3: memref<1x64xf32, #tpu.memory_space<vmem>>, %arg4: memref<64x256xbf16, #tpu.memory_space<vmem>>, %arg5: memref<5x576x64xbf16, #tpu.memory_space<vmem>>, %arg6: memref<5x1x64xf32, #tpu.memory_space<vmem>>, %arg7: memref<1152x128xbf16, #tpu.memory_space<vmem>>, %arg8: memref<1x128xf32, #tpu.memory_space<vmem>>, %arg9: memref<1x64x128xf32, #tpu.memory_space<vmem>>, %arg10: memref<18x32x64xf32, #tpu.memory_space<vmem>>, %arg11: memref<10x24x64xf32, #tpu.memory_space<vmem>>, %arg12: memref<10x24x64xf32, #tpu.memory_space<vmem>>) attributes {dimension_semantics = [#tpu.dimension_semantics<parallel>], iteration_bounds = array<i64: 2>, scalar_prefetch = 0 : i64, scratch_operands = 3 : i64, tpu.core_type = #tpu.core_type<tc>, window_params = [{transform_indices = @transform_0, window_bounds = array<i64: 1, 256, 64>}, {pipeline_mode = #tpu.pipeline_mode<synchronous>, transform_indices = @transform_1, window_bounds = array<i64: 64, 64>}, {pipeline_mode = #tpu.pipeline_mode<synchronous>, transform_indices = @transform_2, window_bounds = array<i64: 1, 64>}, {pipeline_mode = #tpu.pipeline_mode<synchronous>, transform_indices = @transform_3, window_bounds = array<i64: 64, 256>}, {pipeline_mode = #tpu.pipeline_mode<synchronous>, transform_indices = @transform_4, window_bounds = array<i64: 5, 576, 64>}, {pipeline_mode = #tpu.pipeline_mode<synchronous>, transform_indices = @transform_5, window_bounds = array<i64: 5, 1, 64>}, {pipeline_mode = #tpu.pipeline_mode<synchronous>, transform_indices = @transform_6, window_bounds = array<i64: 1152, 128>}, {pipeline_mode = #tpu.pipeline_mode<synchronous>, transform_indices = @transform_7, window_bounds = array<i64: 1, 128>}, {transform_indices = @transform_8, window_bounds = array<i64: 1, 64, 128>}]} {
    %cst = arith.constant 0.000000e+00 : f32
    %0 = vector.broadcast %cst : f32 to vector<18x32x64xf32>
    %c0 = arith.constant 0 : index
    %c0_0 = arith.constant 0 : index
    %c0_1 = arith.constant 0 : index
    %1 = vector.load %arg10[%c0, %c0_0, %c0_1] : memref<18x32x64xf32, #tpu.memory_space<vmem>>, vector<18x32x64xf32>
    tpu.vector_store %arg10[%c0, %c0_0, %c0_1], %0 {strides = array<i32>} : memref<18x32x64xf32, #tpu.memory_space<vmem>>, vector<18x32x64xf32>,
    %cst_2 = arith.constant 0.000000e+00 : f32
    %2 = vector.broadcast %cst_2 : f32 to vector<10x24x64xf32>
    %c0_3 = arith.constant 0 : index
    %c0_4 = arith.constant 0 : index
    %c0_5 = arith.constant 0 : index
    %3 = vector.load %arg11[%c0_3, %c0_4, %c0_5] : memref<10x24x64xf32, #tpu.memory_space<vmem>>, vector<10x24x64xf32>
    tpu.vector_store %arg11[%c0_3, %c0_4, %c0_5], %2 {strides = array<i32>} : memref<10x24x64xf32, #tpu.memory_space<vmem>>, vector<10x24x64xf32>,
    %cst_6 = arith.constant 0.000000e+00 : f32
    %4 = vector.broadcast %cst_6 : f32 to vector<10x24x64xf32>
    %c0_7 = arith.constant 0 : index
    %c0_8 = arith.constant 0 : index
    %c0_9 = arith.constant 0 : index
    %5 = vector.load %arg12[%c0_7, %c0_8, %c0_9] : memref<10x24x64xf32, #tpu.memory_space<vmem>>, vector<10x24x64xf32>
    tpu.vector_store %arg12[%c0_7, %c0_8, %c0_9], %4 {strides = array<i32>} : memref<10x24x64xf32, #tpu.memory_space<vmem>>, vector<10x24x64xf32>,
    %c0_10 = arith.constant 0 : index
    %c0_11 = arith.constant 0 : index
    %c0_12 = arith.constant 0 : index
    %6 = vector.load %arg1[%c0_10, %c0_11, %c0_12] : memref<1x256x64xbf16, #tpu.memory_space<vmem>>, vector<1x256x64xbf16>
    %7 = vector.shape_cast %6 : vector<1x256x64xbf16> to vector<256x64xbf16>
    %c0_13 = arith.constant 0 : index
    %c0_14 = arith.constant 0 : index
    %8 = vector.load %arg2[%c0_13, %c0_14] : memref<64x64xbf16, #tpu.memory_space<vmem>>, vector<64x64xbf16>
    %cst_15 = arith.constant dense<0.000000e+00> : vector<256x64xf32>
    %9 = tpu.matmul %7, %8, %cst_15 {dimension_numbers = #tpu.dot_dimension_numbers<[1], [0], [0], [1], [0, 0, 1, 1], [], []>} : vector<256x64xbf16>, vector<64x64xbf16>, vector<256x64xf32> -> vector<256x64xf32>
    %c0_16 = arith.constant 0 : index
    %c0_17 = arith.constant 0 : index
    %10 = vector.load %arg3[%c0_16, %c0_17] : memref<1x64xf32, #tpu.memory_space<vmem>>, vector<1x64xf32>
    %11 = vector.broadcast %10 : vector<1x64xf32> to vector<256x64xf32>
    %12 = arith.addf %9, %11 : vector<256x64xf32>
    %cst_18 = arith.constant 0.000000e+00 : f32
    %13 = vector.broadcast %cst_18 : f32 to vector<256x64xf32>
    %14 = arith.maximumf %12, %13 : vector<256x64xf32>
    %15 = vector.shape_cast %14 : vector<256x64xf32> to vector<16x16x64xf32>
    %c1 = arith.constant 1 : index
    %c8 = arith.constant 8 : index
    %c0_19 = arith.constant 0 : index
    %16 = vector.load %arg10[%c1, %c8, %c0_19] : memref<18x32x64xf32, #tpu.memory_space<vmem>>, vector<16x16x64xf32>
    tpu.vector_store %arg10[%c1, %c8, %c0_19], %15 {strides = array<i32>} : memref<18x32x64xf32, #tpu.memory_space<vmem>>, vector<16x16x64xf32>,
    %c0_20 = arith.constant 0 : index
    %c7 = arith.constant 7 : index
    %c0_21 = arith.constant 0 : index
    %17 = vector.load %arg10[%c0_20, %c7, %c0_21] : memref<18x32x64xf32, #tpu.memory_space<vmem>>, vector<16x16x64xf32>
    %18 = vector.shape_cast %17 : vector<16x16x64xf32> to vector<256x64xf32>
    %c0_22 = arith.constant 0 : index
    %c8_23 = arith.constant 8 : index
    %c0_24 = arith.constant 0 : index
    %19 = vector.load %arg10[%c0_22, %c8_23, %c0_24] : memref<18x32x64xf32, #tpu.memory_space<vmem>>, vector<16x16x64xf32>
    %20 = vector.shape_cast %19 : vector<16x16x64xf32> to vector<256x64xf32>
    %c0_25 = arith.constant 0 : index
    %c9 = arith.constant 9 : index
    %c0_26 = arith.constant 0 : index
    %21 = vector.load %arg10[%c0_25, %c9, %c0_26] : memref<18x32x64xf32, #tpu.memory_space<vmem>>, vector<16x16x64xf32>
    %22 = vector.shape_cast %21 : vector<16x16x64xf32> to vector<256x64xf32>
    %c1_27 = arith.constant 1 : index
    %c7_28 = arith.constant 7 : index
    %c0_29 = arith.constant 0 : index
    %23 = vector.load %arg10[%c1_27, %c7_28, %c0_29] : memref<18x32x64xf32, #tpu.memory_space<vmem>>, vector<16x16x64xf32>
    %24 = vector.shape_cast %23 : vector<16x16x64xf32> to vector<256x64xf32>
    %c1_30 = arith.constant 1 : index
    %c8_31 = arith.constant 8 : index
    %c0_32 = arith.constant 0 : index
    %25 = vector.load %arg10[%c1_30, %c8_31, %c0_32] : memref<18x32x64xf32, #tpu.memory_space<vmem>>, vector<16x16x64xf32>
    %26 = vector.shape_cast %25 : vector<16x16x64xf32> to vector<256x64xf32>
    %c1_33 = arith.constant 1 : index
    %c9_34 = arith.constant 9 : index
    %c0_35 = arith.constant 0 : index
    %27 = vector.load %arg10[%c1_33, %c9_34, %c0_35] : memref<18x32x64xf32, #tpu.memory_space<vmem>>, vector<16x16x64xf32>
    %28 = vector.shape_cast %27 : vector<16x16x64xf32> to vector<256x64xf32>
    %c2 = arith.constant 2 : index
    %c7_36 = arith.constant 7 : index
    %c0_37 = arith.constant 0 : index
    %29 = vector.load %arg10[%c2, %c7_36, %c0_37] : memref<18x32x64xf32, #tpu.memory_space<vmem>>, vector<16x16x64xf32>
    %30 = vector.shape_cast %29 : vector<16x16x64xf32> to vector<256x64xf32>
    %c2_38 = arith.constant 2 : index
    %c8_39 = arith.constant 8 : index
    %c0_40 = arith.constant 0 : index
    %31 = vector.load %arg10[%c2_38, %c8_39, %c0_40] : memref<18x32x64xf32, #tpu.memory_space<vmem>>, vector<16x16x64xf32>
    %32 = vector.shape_cast %31 : vector<16x16x64xf32> to vector<256x64xf32>
    %c2_41 = arith.constant 2 : index
    %c9_42 = arith.constant 9 : index
    %c0_43 = arith.constant 0 : index
    %33 = vector.load %arg10[%c2_41, %c9_42, %c0_43] : memref<18x32x64xf32, #tpu.memory_space<vmem>>, vector<16x16x64xf32>
    %34 = vector.shape_cast %33 : vector<16x16x64xf32> to vector<256x64xf32>
    %35 = arith.maximumf %18, %20 : vector<256x64xf32>
    %36 = arith.maximumf %35, %22 : vector<256x64xf32>
    %37 = arith.maximumf %36, %24 : vector<256x64xf32>
    %38 = arith.maximumf %37, %26 : vector<256x64xf32>
    %39 = arith.maximumf %38, %28 : vector<256x64xf32>
    %40 = arith.maximumf %39, %30 : vector<256x64xf32>
    %41 = arith.maximumf %40, %32 : vector<256x64xf32>
    %42 = arith.maximumf %41, %34 : vector<256x64xf32>
    %c0_44 = arith.constant 0 : index
    %c0_45 = arith.constant 0 : index
    %43 = vector.load %arg4[%c0_44, %c0_45] : memref<64x256xbf16, #tpu.memory_space<vmem>>, vector<64x256xbf16>
    %44 = arith.truncf %42 : vector<256x64xf32> to vector<256x64xbf16>
    %cst_46 = arith.constant dense<0.000000e+00> : vector<64x64xf32>
    %45 = tpu.matmul %43, %44, %cst_46 {dimension_numbers = #tpu.dot_dimension_numbers<[1], [0], [0], [1], [0, 0, 1, 1], [], []>} : vector<64x256xbf16>, vector<256x64xbf16>, vector<64x64xf32> -> vector<64x64xf32>
    %46 = vector.shape_cast %45 : vector<64x64xf32> to vector<8x8x64xf32>
    %c1_47 = arith.constant 1 : index
    %c8_48 = arith.constant 8 : index
    %c0_49 = arith.constant 0 : index
    %47 = vector.load %arg11[%c1_47, %c8_48, %c0_49] : memref<10x24x64xf32, #tpu.memory_space<vmem>>, vector<8x8x64xf32>
    tpu.vector_store %arg11[%c1_47, %c8_48, %c0_49], %46 {strides = array<i32>} : memref<10x24x64xf32, #tpu.memory_space<vmem>>, vector<8x8x64xf32>,
    %c0_50 = arith.constant 0 : index
    %c7_51 = arith.constant 7 : index
    %c0_52 = arith.constant 0 : index
    %48 = vector.load %arg11[%c0_50, %c7_51, %c0_52] : memref<10x24x64xf32, #tpu.memory_space<vmem>>, vector<8x8x64xf32>
    %49 = vector.shape_cast %48 : vector<8x8x64xf32> to vector<64x64xf32>
    %50 = arith.truncf %49 : vector<64x64xf32> to vector<64x64xbf16>
    %c0_53 = arith.constant 0 : index
    %c8_54 = arith.constant 8 : index
    %c0_55 = arith.constant 0 : index
    %51 = vector.load %arg11[%c0_53, %c8_54, %c0_55] : memref<10x24x64xf32, #tpu.memory_space<vmem>>, vector<8x8x64xf32>
    %52 = vector.shape_cast %51 : vector<8x8x64xf32> to vector<64x64xf32>
    %53 = arith.truncf %52 : vector<64x64xf32> to vector<64x64xbf16>
    %c0_56 = arith.constant 0 : index
    %c9_57 = arith.constant 9 : index
    %c0_58 = arith.constant 0 : index
    %54 = vector.load %arg11[%c0_56, %c9_57, %c0_58] : memref<10x24x64xf32, #tpu.memory_space<vmem>>, vector<8x8x64xf32>
    %55 = vector.shape_cast %54 : vector<8x8x64xf32> to vector<64x64xf32>
    %56 = arith.truncf %55 : vector<64x64xf32> to vector<64x64xbf16>
    %c1_59 = arith.constant 1 : index
    %c7_60 = arith.constant 7 : index
    %c0_61 = arith.constant 0 : index
    %57 = vector.load %arg11[%c1_59, %c7_60, %c0_61] : memref<10x24x64xf32, #tpu.memory_space<vmem>>, vector<8x8x64xf32>
    %58 = vector.shape_cast %57 : vector<8x8x64xf32> to vector<64x64xf32>
    %59 = arith.truncf %58 : vector<64x64xf32> to vector<64x64xbf16>
    %c1_62 = arith.constant 1 : index
    %c8_63 = arith.constant 8 : index
    %c0_64 = arith.constant 0 : index
    %60 = vector.load %arg11[%c1_62, %c8_63, %c0_64] : memref<10x24x64xf32, #tpu.memory_space<vmem>>, vector<8x8x64xf32>
    %61 = vector.shape_cast %60 : vector<8x8x64xf32> to vector<64x64xf32>
    %62 = arith.truncf %61 : vector<64x64xf32> to vector<64x64xbf16>
    %c1_65 = arith.constant 1 : index
    %c9_66 = arith.constant 9 : index
    %c0_67 = arith.constant 0 : index
    %63 = vector.load %arg11[%c1_65, %c9_66, %c0_67] : memref<10x24x64xf32, #tpu.memory_space<vmem>>, vector<8x8x64xf32>
    %64 = vector.shape_cast %63 : vector<8x8x64xf32> to vector<64x64xf32>
    %65 = arith.truncf %64 : vector<64x64xf32> to vector<64x64xbf16>
    %c2_68 = arith.constant 2 : index
    %c7_69 = arith.constant 7 : index
    %c0_70 = arith.constant 0 : index
    %66 = vector.load %arg11[%c2_68, %c7_69, %c0_70] : memref<10x24x64xf32, #tpu.memory_space<vmem>>, vector<8x8x64xf32>
    %67 = vector.shape_cast %66 : vector<8x8x64xf32> to vector<64x64xf32>
    %68 = arith.truncf %67 : vector<64x64xf32> to vector<64x64xbf16>
    %c2_71 = arith.constant 2 : index
    %c8_72 = arith.constant 8 : index
    %c0_73 = arith.constant 0 : index
    %69 = vector.load %arg11[%c2_71, %c8_72, %c0_73] : memref<10x24x64xf32, #tpu.memory_space<vmem>>, vector<8x8x64xf32>
    %70 = vector.shape_cast %69 : vector<8x8x64xf32> to vector<64x64xf32>
    %71 = arith.truncf %70 : vector<64x64xf32> to vector<64x64xbf16>
    %c2_74 = arith.constant 2 : index
    %c9_75 = arith.constant 9 : index
    %c0_76 = arith.constant 0 : index
    %72 = vector.load %arg11[%c2_74, %c9_75, %c0_76] : memref<10x24x64xf32, #tpu.memory_space<vmem>>, vector<8x8x64xf32>
    %73 = vector.shape_cast %72 : vector<8x8x64xf32> to vector<64x64xf32>
    %74 = arith.truncf %73 : vector<64x64xf32> to vector<64x64xbf16>
    %75 = tpu.concatenate %50, %53, %56, %59, %62, %65, %68, %71, %74 in 1 : vector<64x64xbf16>, vector<64x64xbf16>, vector<64x64xbf16>, vector<64x64xbf16>, vector<64x64xbf16>, vector<64x64xbf16>, vector<64x64xbf16>, vector<64x64xbf16>, vector<64x64xbf16> -> vector<64x576xbf16>
    %c0_77 = arith.constant 0 : index
    %c0_78 = arith.constant 0 : index
    %c0_79 = arith.constant 0 : index
    %76 = vector.load %arg5[%c0_77, %c0_78, %c0_79] : memref<5x576x64xbf16, #tpu.memory_space<vmem>>, vector<1x576x64xbf16>
    %77 = vector.shape_cast %76 : vector<1x576x64xbf16> to vector<576x64xbf16>
    %cst_80 = arith.constant dense<0.000000e+00> : vector<64x64xf32>
    %78 = tpu.matmul %75, %77, %cst_80 {dimension_numbers = #tpu.dot_dimension_numbers<[1], [0], [0], [1], [0, 0, 1, 1], [], []>} : vector<64x576xbf16>, vector<576x64xbf16>, vector<64x64xf32> -> vector<64x64xf32>
    %c0_81 = arith.constant 0 : index
    %c0_82 = arith.constant 0 : index
    %c0_83 = arith.constant 0 : index
    %79 = vector.load %arg6[%c0_81, %c0_82, %c0_83] : memref<5x1x64xf32, #tpu.memory_space<vmem>>, vector<1x1x64xf32>
    %80 = vector.shape_cast %79 : vector<1x1x64xf32> to vector<1x64xf32>
    %81 = vector.broadcast %80 : vector<1x64xf32> to vector<64x64xf32>
    %82 = arith.addf %78, %81 : vector<64x64xf32>
    %cst_84 = arith.constant 0.000000e+00 : f32
    %83 = vector.broadcast %cst_84 : f32 to vector<64x64xf32>
    %84 = arith.maximumf %82, %83 : vector<64x64xf32>
    %85 = vector.shape_cast %84 : vector<64x64xf32> to vector<8x8x64xf32>
    %c1_85 = arith.constant 1 : index
    %c8_86 = arith.constant 8 : index
    %c0_87 = arith.constant 0 : index
    %86 = vector.load %arg11[%c1_85, %c8_86, %c0_87] : memref<10x24x64xf32, #tpu.memory_space<vmem>>, vector<8x8x64xf32>
    tpu.vector_store %arg11[%c1_85, %c8_86, %c0_87], %85 {strides = array<i32>} : memref<10x24x64xf32, #tpu.memory_space<vmem>>, vector<8x8x64xf32>,
    %c0_88 = arith.constant 0 : index
    %c7_89 = arith.constant 7 : index
    %c0_90 = arith.constant 0 : index
    %87 = vector.load %arg11[%c0_88, %c7_89, %c0_90] : memref<10x24x64xf32, #tpu.memory_space<vmem>>, vector<8x8x64xf32>
    %88 = vector.shape_cast %87 : vector<8x8x64xf32> to vector<64x64xf32>
    %89 = arith.truncf %88 : vector<64x64xf32> to vector<64x64xbf16>
    %c0_91 = arith.constant 0 : index
    %c8_92 = arith.constant 8 : index
    %c0_93 = arith.constant 0 : index
    %90 = vector.load %arg11[%c0_91, %c8_92, %c0_93] : memref<10x24x64xf32, #tpu.memory_space<vmem>>, vector<8x8x64xf32>
    %91 = vector.shape_cast %90 : vector<8x8x64xf32> to vector<64x64xf32>
    %92 = arith.truncf %91 : vector<64x64xf32> to vector<64x64xbf16>
    %c0_94 = arith.constant 0 : index
    %c9_95 = arith.constant 9 : index
    %c0_96 = arith.constant 0 : index
    %93 = vector.load %arg11[%c0_94, %c9_95, %c0_96] : memref<10x24x64xf32, #tpu.memory_space<vmem>>, vector<8x8x64xf32>
    %94 = vector.shape_cast %93 : vector<8x8x64xf32> to vector<64x64xf32>
    %95 = arith.truncf %94 : vector<64x64xf32> to vector<64x64xbf16>
    %c1_97 = arith.constant 1 : index
    %c7_98 = arith.constant 7 : index
    %c0_99 = arith.constant 0 : index
    %96 = vector.load %arg11[%c1_97, %c7_98, %c0_99] : memref<10x24x64xf32, #tpu.memory_space<vmem>>, vector<8x8x64xf32>
    %97 = vector.shape_cast %96 : vector<8x8x64xf32> to vector<64x64xf32>
    %98 = arith.truncf %97 : vector<64x64xf32> to vector<64x64xbf16>
    %c1_100 = arith.constant 1 : index
    %c8_101 = arith.constant 8 : index
    %c0_102 = arith.constant 0 : index
    %99 = vector.load %arg11[%c1_100, %c8_101, %c0_102] : memref<10x24x64xf32, #tpu.memory_space<vmem>>, vector<8x8x64xf32>
    %100 = vector.shape_cast %99 : vector<8x8x64xf32> to vector<64x64xf32>
    %101 = arith.truncf %100 : vector<64x64xf32> to vector<64x64xbf16>
    %c1_103 = arith.constant 1 : index
    %c9_104 = arith.constant 9 : index
    %c0_105 = arith.constant 0 : index
    %102 = vector.load %arg11[%c1_103, %c9_104, %c0_105] : memref<10x24x64xf32, #tpu.memory_space<vmem>>, vector<8x8x64xf32>
    %103 = vector.shape_cast %102 : vector<8x8x64xf32> to vector<64x64xf32>
    %104 = arith.truncf %103 : vector<64x64xf32> to vector<64x64xbf16>
    %c2_106 = arith.constant 2 : index
    %c7_107 = arith.constant 7 : index
    %c0_108 = arith.constant 0 : index
    %105 = vector.load %arg11[%c2_106, %c7_107, %c0_108] : memref<10x24x64xf32, #tpu.memory_space<vmem>>, vector<8x8x64xf32>
    %106 = vector.shape_cast %105 : vector<8x8x64xf32> to vector<64x64xf32>
    %107 = arith.truncf %106 : vector<64x64xf32> to vector<64x64xbf16>
    %c2_109 = arith.constant 2 : index
    %c8_110 = arith.constant 8 : index
    %c0_111 = arith.constant 0 : index
    %108 = vector.load %arg11[%c2_109, %c8_110, %c0_111] : memref<10x24x64xf32, #tpu.memory_space<vmem>>, vector<8x8x64xf32>
    %109 = vector.shape_cast %108 : vector<8x8x64xf32> to vector<64x64xf32>
    %110 = arith.truncf %109 : vector<64x64xf32> to vector<64x64xbf16>
    %c2_112 = arith.constant 2 : index
    %c9_113 = arith.constant 9 : index
    %c0_114 = arith.constant 0 : index
    %111 = vector.load %arg11[%c2_112, %c9_113, %c0_114] : memref<10x24x64xf32, #tpu.memory_space<vmem>>, vector<8x8x64xf32>
    %112 = vector.shape_cast %111 : vector<8x8x64xf32> to vector<64x64xf32>
    %113 = arith.truncf %112 : vector<64x64xf32> to vector<64x64xbf16>
    %114 = tpu.concatenate %89, %92, %95, %98, %101, %104, %107, %110, %113 in 1 : vector<64x64xbf16>, vector<64x64xbf16>, vector<64x64xbf16>, vector<64x64xbf16>, vector<64x64xbf16>, vector<64x64xbf16>, vector<64x64xbf16>, vector<64x64xbf16>, vector<64x64xbf16> -> vector<64x576xbf16>
    %c1_115 = arith.constant 1 : index
    %c0_116 = arith.constant 0 : index
    %c0_117 = arith.constant 0 : index
    %115 = vector.load %arg5[%c1_115, %c0_116, %c0_117] : memref<5x576x64xbf16, #tpu.memory_space<vmem>>, vector<1x576x64xbf16>
    %116 = vector.shape_cast %115 : vector<1x576x64xbf16> to vector<576x64xbf16>
    %cst_118 = arith.constant dense<0.000000e+00> : vector<64x64xf32>
    %117 = tpu.matmul %114, %116, %cst_118 {dimension_numbers = #tpu.dot_dimension_numbers<[1], [0], [0], [1], [0, 0, 1, 1], [], []>} : vector<64x576xbf16>, vector<576x64xbf16>, vector<64x64xf32> -> vector<64x64xf32>
    %c1_119 = arith.constant 1 : index
    %c0_120 = arith.constant 0 : index
    %c0_121 = arith.constant 0 : index
    %118 = vector.load %arg6[%c1_119, %c0_120, %c0_121] : memref<5x1x64xf32, #tpu.memory_space<vmem>>, vector<1x1x64xf32>
    %119 = vector.shape_cast %118 : vector<1x1x64xf32> to vector<1x64xf32>
    %120 = vector.broadcast %119 : vector<1x64xf32> to vector<64x64xf32>
    %121 = arith.addf %117, %120 : vector<64x64xf32>
    %122 = arith.addf %121, %45 : vector<64x64xf32>
    %cst_122 = arith.constant 0.000000e+00 : f32
    %123 = vector.broadcast %cst_122 : f32 to vector<64x64xf32>
    %124 = arith.maximumf %122, %123 : vector<64x64xf32>
    %125 = vector.shape_cast %124 : vector<64x64xf32> to vector<8x8x64xf32>
    %c1_123 = arith.constant 1 : index
    %c8_124 = arith.constant 8 : index
    %c0_125 = arith.constant 0 : index
    %126 = vector.load %arg11[%c1_123, %c8_124, %c0_125] : memref<10x24x64xf32, #tpu.memory_space<vmem>>, vector<8x8x64xf32>
    tpu.vector_store %arg11[%c1_123, %c8_124, %c0_125], %125 {strides = array<i32>} : memref<10x24x64xf32, #tpu.memory_space<vmem>>, vector<8x8x64xf32>,
    %c0_126 = arith.constant 0 : index
    %c7_127 = arith.constant 7 : index
    %c0_128 = arith.constant 0 : index
    %127 = vector.load %arg11[%c0_126, %c7_127, %c0_128] : memref<10x24x64xf32, #tpu.memory_space<vmem>>, vector<8x8x64xf32>
    %128 = vector.shape_cast %127 : vector<8x8x64xf32> to vector<64x64xf32>
    %129 = arith.truncf %128 : vector<64x64xf32> to vector<64x64xbf16>
    %c0_129 = arith.constant 0 : index
    %c8_130 = arith.constant 8 : index
    %c0_131 = arith.constant 0 : index
    %130 = vector.load %arg11[%c0_129, %c8_130, %c0_131] : memref<10x24x64xf32, #tpu.memory_space<vmem>>, vector<8x8x64xf32>
    %131 = vector.shape_cast %130 : vector<8x8x64xf32> to vector<64x64xf32>
    %132 = arith.truncf %131 : vector<64x64xf32> to vector<64x64xbf16>
    %c0_132 = arith.constant 0 : index
    %c9_133 = arith.constant 9 : index
    %c0_134 = arith.constant 0 : index
    %133 = vector.load %arg11[%c0_132, %c9_133, %c0_134] : memref<10x24x64xf32, #tpu.memory_space<vmem>>, vector<8x8x64xf32>
    %134 = vector.shape_cast %133 : vector<8x8x64xf32> to vector<64x64xf32>
    %135 = arith.truncf %134 : vector<64x64xf32> to vector<64x64xbf16>
    %c1_135 = arith.constant 1 : index
    %c7_136 = arith.constant 7 : index
    %c0_137 = arith.constant 0 : index
    %136 = vector.load %arg11[%c1_135, %c7_136, %c0_137] : memref<10x24x64xf32, #tpu.memory_space<vmem>>, vector<8x8x64xf32>
    %137 = vector.shape_cast %136 : vector<8x8x64xf32> to vector<64x64xf32>
    %138 = arith.truncf %137 : vector<64x64xf32> to vector<64x64xbf16>
    %c1_138 = arith.constant 1 : index
    %c8_139 = arith.constant 8 : index
    %c0_140 = arith.constant 0 : index
    %139 = vector.load %arg11[%c1_138, %c8_139, %c0_140] : memref<10x24x64xf32, #tpu.memory_space<vmem>>, vector<8x8x64xf32>
    %140 = vector.shape_cast %139 : vector<8x8x64xf32> to vector<64x64xf32>
    %141 = arith.truncf %140 : vector<64x64xf32> to vector<64x64xbf16>
    %c1_141 = arith.constant 1 : index
    %c9_142 = arith.constant 9 : index
    %c0_143 = arith.constant 0 : index
    %142 = vector.load %arg11[%c1_141, %c9_142, %c0_143] : memref<10x24x64xf32, #tpu.memory_space<vmem>>, vector<8x8x64xf32>
    %143 = vector.shape_cast %142 : vector<8x8x64xf32> to vector<64x64xf32>
    %144 = arith.truncf %143 : vector<64x64xf32> to vector<64x64xbf16>
    %c2_144 = arith.constant 2 : index
    %c7_145 = arith.constant 7 : index
    %c0_146 = arith.constant 0 : index
    %145 = vector.load %arg11[%c2_144, %c7_145, %c0_146] : memref<10x24x64xf32, #tpu.memory_space<vmem>>, vector<8x8x64xf32>
    %146 = vector.shape_cast %145 : vector<8x8x64xf32> to vector<64x64xf32>
    %147 = arith.truncf %146 : vector<64x64xf32> to vector<64x64xbf16>
    %c2_147 = arith.constant 2 : index
    %c8_148 = arith.constant 8 : index
    %c0_149 = arith.constant 0 : index
    %148 = vector.load %arg11[%c2_147, %c8_148, %c0_149] : memref<10x24x64xf32, #tpu.memory_space<vmem>>, vector<8x8x64xf32>
    %149 = vector.shape_cast %148 : vector<8x8x64xf32> to vector<64x64xf32>
    %150 = arith.truncf %149 : vector<64x64xf32> to vector<64x64xbf16>
    %c2_150 = arith.constant 2 : index
    %c9_151 = arith.constant 9 : index
    %c0_152 = arith.constant 0 : index
    %151 = vector.load %arg11[%c2_150, %c9_151, %c0_152] : memref<10x24x64xf32, #tpu.memory_space<vmem>>, vector<8x8x64xf32>
    %152 = vector.shape_cast %151 : vector<8x8x64xf32> to vector<64x64xf32>
    %153 = arith.truncf %152 : vector<64x64xf32> to vector<64x64xbf16>
    %154 = tpu.concatenate %129, %132, %135, %138, %141, %144, %147, %150, %153 in 1 : vector<64x64xbf16>, vector<64x64xbf16>, vector<64x64xbf16>, vector<64x64xbf16>, vector<64x64xbf16>, vector<64x64xbf16>, vector<64x64xbf16>, vector<64x64xbf16>, vector<64x64xbf16> -> vector<64x576xbf16>
    %c2_153 = arith.constant 2 : index
    %c0_154 = arith.constant 0 : index
    %c0_155 = arith.constant 0 : index
    %155 = vector.load %arg5[%c2_153, %c0_154, %c0_155] : memref<5x576x64xbf16, #tpu.memory_space<vmem>>, vector<1x576x64xbf16>
    %156 = vector.shape_cast %155 : vector<1x576x64xbf16> to vector<576x64xbf16>
    %cst_156 = arith.constant dense<0.000000e+00> : vector<64x64xf32>
    %157 = tpu.matmul %154, %156, %cst_156 {dimension_numbers = #tpu.dot_dimension_numbers<[1], [0], [0], [1], [0, 0, 1, 1], [], []>} : vector<64x576xbf16>, vector<576x64xbf16>, vector<64x64xf32> -> vector<64x64xf32>
    %c2_157 = arith.constant 2 : index
    %c0_158 = arith.constant 0 : index
    %c0_159 = arith.constant 0 : index
    %158 = vector.load %arg6[%c2_157, %c0_158, %c0_159] : memref<5x1x64xf32, #tpu.memory_space<vmem>>, vector<1x1x64xf32>
    %159 = vector.shape_cast %158 : vector<1x1x64xf32> to vector<1x64xf32>
    %160 = vector.broadcast %159 : vector<1x64xf32> to vector<64x64xf32>
    %161 = arith.addf %157, %160 : vector<64x64xf32>
    %cst_160 = arith.constant 0.000000e+00 : f32
    %162 = vector.broadcast %cst_160 : f32 to vector<64x64xf32>
    %163 = arith.maximumf %161, %162 : vector<64x64xf32>
    %164 = vector.shape_cast %163 : vector<64x64xf32> to vector<8x8x64xf32>
    %c1_161 = arith.constant 1 : index
    %c8_162 = arith.constant 8 : index
    %c0_163 = arith.constant 0 : index
    %165 = vector.load %arg11[%c1_161, %c8_162, %c0_163] : memref<10x24x64xf32, #tpu.memory_space<vmem>>, vector<8x8x64xf32>
    tpu.vector_store %arg11[%c1_161, %c8_162, %c0_163], %164 {strides = array<i32>} : memref<10x24x64xf32, #tpu.memory_space<vmem>>, vector<8x8x64xf32>,
    %c0_164 = arith.constant 0 : index
    %c7_165 = arith.constant 7 : index
    %c0_166 = arith.constant 0 : index
    %166 = vector.load %arg11[%c0_164, %c7_165, %c0_166] : memref<10x24x64xf32, #tpu.memory_space<vmem>>, vector<8x8x64xf32>
    %167 = vector.shape_cast %166 : vector<8x8x64xf32> to vector<64x64xf32>
    %168 = arith.truncf %167 : vector<64x64xf32> to vector<64x64xbf16>
    %c0_167 = arith.constant 0 : index
    %c8_168 = arith.constant 8 : index
    %c0_169 = arith.constant 0 : index
    %169 = vector.load %arg11[%c0_167, %c8_168, %c0_169] : memref<10x24x64xf32, #tpu.memory_space<vmem>>, vector<8x8x64xf32>
    %170 = vector.shape_cast %169 : vector<8x8x64xf32> to vector<64x64xf32>
    %171 = arith.truncf %170 : vector<64x64xf32> to vector<64x64xbf16>
    %c0_170 = arith.constant 0 : index
    %c9_171 = arith.constant 9 : index
    %c0_172 = arith.constant 0 : index
    %172 = vector.load %arg11[%c0_170, %c9_171, %c0_172] : memref<10x24x64xf32, #tpu.memory_space<vmem>>, vector<8x8x64xf32>
    %173 = vector.shape_cast %172 : vector<8x8x64xf32> to vector<64x64xf32>
    %174 = arith.truncf %173 : vector<64x64xf32> to vector<64x64xbf16>
    %c1_173 = arith.constant 1 : index
    %c7_174 = arith.constant 7 : index
    %c0_175 = arith.constant 0 : index
    %175 = vector.load %arg11[%c1_173, %c7_174, %c0_175] : memref<10x24x64xf32, #tpu.memory_space<vmem>>, vector<8x8x64xf32>
    %176 = vector.shape_cast %175 : vector<8x8x64xf32> to vector<64x64xf32>
    %177 = arith.truncf %176 : vector<64x64xf32> to vector<64x64xbf16>
    %c1_176 = arith.constant 1 : index
    %c8_177 = arith.constant 8 : index
    %c0_178 = arith.constant 0 : index
    %178 = vector.load %arg11[%c1_176, %c8_177, %c0_178] : memref<10x24x64xf32, #tpu.memory_space<vmem>>, vector<8x8x64xf32>
    %179 = vector.shape_cast %178 : vector<8x8x64xf32> to vector<64x64xf32>
    %180 = arith.truncf %179 : vector<64x64xf32> to vector<64x64xbf16>
    %c1_179 = arith.constant 1 : index
    %c9_180 = arith.constant 9 : index
    %c0_181 = arith.constant 0 : index
    %181 = vector.load %arg11[%c1_179, %c9_180, %c0_181] : memref<10x24x64xf32, #tpu.memory_space<vmem>>, vector<8x8x64xf32>
    %182 = vector.shape_cast %181 : vector<8x8x64xf32> to vector<64x64xf32>
    %183 = arith.truncf %182 : vector<64x64xf32> to vector<64x64xbf16>
    %c2_182 = arith.constant 2 : index
    %c7_183 = arith.constant 7 : index
    %c0_184 = arith.constant 0 : index
    %184 = vector.load %arg11[%c2_182, %c7_183, %c0_184] : memref<10x24x64xf32, #tpu.memory_space<vmem>>, vector<8x8x64xf32>
    %185 = vector.shape_cast %184 : vector<8x8x64xf32> to vector<64x64xf32>
    %186 = arith.truncf %185 : vector<64x64xf32> to vector<64x64xbf16>
    %c2_185 = arith.constant 2 : index
    %c8_186 = arith.constant 8 : index
    %c0_187 = arith.constant 0 : index
    %187 = vector.load %arg11[%c2_185, %c8_186, %c0_187] : memref<10x24x64xf32, #tpu.memory_space<vmem>>, vector<8x8x64xf32>
    %188 = vector.shape_cast %187 : vector<8x8x64xf32> to vector<64x64xf32>
    %189 = arith.truncf %188 : vector<64x64xf32> to vector<64x64xbf16>
    %c2_188 = arith.constant 2 : index
    %c9_189 = arith.constant 9 : index
    %c0_190 = arith.constant 0 : index
    %190 = vector.load %arg11[%c2_188, %c9_189, %c0_190] : memref<10x24x64xf32, #tpu.memory_space<vmem>>, vector<8x8x64xf32>
    %191 = vector.shape_cast %190 : vector<8x8x64xf32> to vector<64x64xf32>
    %192 = arith.truncf %191 : vector<64x64xf32> to vector<64x64xbf16>
    %193 = tpu.concatenate %168, %171, %174, %177, %180, %183, %186, %189, %192 in 1 : vector<64x64xbf16>, vector<64x64xbf16>, vector<64x64xbf16>, vector<64x64xbf16>, vector<64x64xbf16>, vector<64x64xbf16>, vector<64x64xbf16>, vector<64x64xbf16>, vector<64x64xbf16> -> vector<64x576xbf16>
    %c3 = arith.constant 3 : index
    %c0_191 = arith.constant 0 : index
    %c0_192 = arith.constant 0 : index
    %194 = vector.load %arg5[%c3, %c0_191, %c0_192] : memref<5x576x64xbf16, #tpu.memory_space<vmem>>, vector<1x576x64xbf16>
    %195 = vector.shape_cast %194 : vector<1x576x64xbf16> to vector<576x64xbf16>
    %cst_193 = arith.constant dense<0.000000e+00> : vector<64x64xf32>
    %196 = tpu.matmul %193, %195, %cst_193 {dimension_numbers = #tpu.dot_dimension_numbers<[1], [0], [0], [1], [0, 0, 1, 1], [], []>} : vector<64x576xbf16>, vector<576x64xbf16>, vector<64x64xf32> -> vector<64x64xf32>
    %c3_194 = arith.constant 3 : index
    %c0_195 = arith.constant 0 : index
    %c0_196 = arith.constant 0 : index
    %197 = vector.load %arg6[%c3_194, %c0_195, %c0_196] : memref<5x1x64xf32, #tpu.memory_space<vmem>>, vector<1x1x64xf32>
    %198 = vector.shape_cast %197 : vector<1x1x64xf32> to vector<1x64xf32>
    %199 = vector.broadcast %198 : vector<1x64xf32> to vector<64x64xf32>
    %200 = arith.addf %196, %199 : vector<64x64xf32>
    %201 = arith.addf %200, %124 : vector<64x64xf32>
    %cst_197 = arith.constant 0.000000e+00 : f32
    %202 = vector.broadcast %cst_197 : f32 to vector<64x64xf32>
    %203 = arith.maximumf %201, %202 : vector<64x64xf32>
    %204 = vector.shape_cast %203 : vector<64x64xf32> to vector<8x8x64xf32>
    %c1_198 = arith.constant 1 : index
    %c8_199 = arith.constant 8 : index
    %c0_200 = arith.constant 0 : index
    %205 = vector.load %arg11[%c1_198, %c8_199, %c0_200] : memref<10x24x64xf32, #tpu.memory_space<vmem>>, vector<8x8x64xf32>
    tpu.vector_store %arg11[%c1_198, %c8_199, %c0_200], %204 {strides = array<i32>} : memref<10x24x64xf32, #tpu.memory_space<vmem>>, vector<8x8x64xf32>,
    %c0_201 = arith.constant 0 : index
    %c7_202 = arith.constant 7 : index
    %c0_203 = arith.constant 0 : index
    %206 = vector.load %arg11[%c0_201, %c7_202, %c0_203] : memref<10x24x64xf32, #tpu.memory_space<vmem>>, vector<8x8x64xf32>
    %207 = vector.shape_cast %206 : vector<8x8x64xf32> to vector<64x64xf32>
    %208 = arith.truncf %207 : vector<64x64xf32> to vector<64x64xbf16>
    %c0_204 = arith.constant 0 : index
    %c8_205 = arith.constant 8 : index
    %c0_206 = arith.constant 0 : index
    %209 = vector.load %arg11[%c0_204, %c8_205, %c0_206] : memref<10x24x64xf32, #tpu.memory_space<vmem>>, vector<8x8x64xf32>
    %210 = vector.shape_cast %209 : vector<8x8x64xf32> to vector<64x64xf32>
    %211 = arith.truncf %210 : vector<64x64xf32> to vector<64x64xbf16>
    %c0_207 = arith.constant 0 : index
    %c9_208 = arith.constant 9 : index
    %c0_209 = arith.constant 0 : index
    %212 = vector.load %arg11[%c0_207, %c9_208, %c0_209] : memref<10x24x64xf32, #tpu.memory_space<vmem>>, vector<8x8x64xf32>
    %213 = vector.shape_cast %212 : vector<8x8x64xf32> to vector<64x64xf32>
    %214 = arith.truncf %213 : vector<64x64xf32> to vector<64x64xbf16>
    %c1_210 = arith.constant 1 : index
    %c7_211 = arith.constant 7 : index
    %c0_212 = arith.constant 0 : index
    %215 = vector.load %arg11[%c1_210, %c7_211, %c0_212] : memref<10x24x64xf32, #tpu.memory_space<vmem>>, vector<8x8x64xf32>
    %216 = vector.shape_cast %215 : vector<8x8x64xf32> to vector<64x64xf32>
    %217 = arith.truncf %216 : vector<64x64xf32> to vector<64x64xbf16>
    %c1_213 = arith.constant 1 : index
    %c8_214 = arith.constant 8 : index
    %c0_215 = arith.constant 0 : index
    %218 = vector.load %arg11[%c1_213, %c8_214, %c0_215] : memref<10x24x64xf32, #tpu.memory_space<vmem>>, vector<8x8x64xf32>
    %219 = vector.shape_cast %218 : vector<8x8x64xf32> to vector<64x64xf32>
    %220 = arith.truncf %219 : vector<64x64xf32> to vector<64x64xbf16>
    %c1_216 = arith.constant 1 : index
    %c9_217 = arith.constant 9 : index
    %c0_218 = arith.constant 0 : index
    %221 = vector.load %arg11[%c1_216, %c9_217, %c0_218] : memref<10x24x64xf32, #tpu.memory_space<vmem>>, vector<8x8x64xf32>
    %222 = vector.shape_cast %221 : vector<8x8x64xf32> to vector<64x64xf32>
    %223 = arith.truncf %222 : vector<64x64xf32> to vector<64x64xbf16>
    %c2_219 = arith.constant 2 : index
    %c7_220 = arith.constant 7 : index
    %c0_221 = arith.constant 0 : index
    %224 = vector.load %arg11[%c2_219, %c7_220, %c0_221] : memref<10x24x64xf32, #tpu.memory_space<vmem>>, vector<8x8x64xf32>
    %225 = vector.shape_cast %224 : vector<8x8x64xf32> to vector<64x64xf32>
    %226 = arith.truncf %225 : vector<64x64xf32> to vector<64x64xbf16>
    %c2_222 = arith.constant 2 : index
    %c8_223 = arith.constant 8 : index
    %c0_224 = arith.constant 0 : index
    %227 = vector.load %arg11[%c2_222, %c8_223, %c0_224] : memref<10x24x64xf32, #tpu.memory_space<vmem>>, vector<8x8x64xf32>
    %228 = vector.shape_cast %227 : vector<8x8x64xf32> to vector<64x64xf32>
    %229 = arith.truncf %228 : vector<64x64xf32> to vector<64x64xbf16>
    %c2_225 = arith.constant 2 : index
    %c9_226 = arith.constant 9 : index
    %c0_227 = arith.constant 0 : index
    %230 = vector.load %arg11[%c2_225, %c9_226, %c0_227] : memref<10x24x64xf32, #tpu.memory_space<vmem>>, vector<8x8x64xf32>
    %231 = vector.shape_cast %230 : vector<8x8x64xf32> to vector<64x64xf32>
    %232 = arith.truncf %231 : vector<64x64xf32> to vector<64x64xbf16>
    %233 = tpu.concatenate %208, %211, %214, %217, %220, %223, %226, %229, %232 in 1 : vector<64x64xbf16>, vector<64x64xbf16>, vector<64x64xbf16>, vector<64x64xbf16>, vector<64x64xbf16>, vector<64x64xbf16>, vector<64x64xbf16>, vector<64x64xbf16>, vector<64x64xbf16> -> vector<64x576xbf16>
    %c4 = arith.constant 4 : index
    %c0_228 = arith.constant 0 : index
    %c0_229 = arith.constant 0 : index
    %234 = vector.load %arg5[%c4, %c0_228, %c0_229] : memref<5x576x64xbf16, #tpu.memory_space<vmem>>, vector<1x576x64xbf16>
    %235 = vector.shape_cast %234 : vector<1x576x64xbf16> to vector<576x64xbf16>
    %cst_230 = arith.constant dense<0.000000e+00> : vector<64x64xf32>
    %236 = tpu.matmul %233, %235, %cst_230 {dimension_numbers = #tpu.dot_dimension_numbers<[1], [0], [0], [1], [0, 0, 1, 1], [], []>} : vector<64x576xbf16>, vector<576x64xbf16>, vector<64x64xf32> -> vector<64x64xf32>
    %c4_231 = arith.constant 4 : index
    %c0_232 = arith.constant 0 : index
    %c0_233 = arith.constant 0 : index
    %237 = vector.load %arg6[%c4_231, %c0_232, %c0_233] : memref<5x1x64xf32, #tpu.memory_space<vmem>>, vector<1x1x64xf32>
    %238 = vector.shape_cast %237 : vector<1x1x64xf32> to vector<1x64xf32>
    %239 = vector.broadcast %238 : vector<1x64xf32> to vector<64x64xf32>
    %240 = arith.addf %236, %239 : vector<64x64xf32>
    %cst_234 = arith.constant 0.000000e+00 : f32
    %241 = vector.broadcast %cst_234 : f32 to vector<64x64xf32>
    %242 = arith.maximumf %240, %241 : vector<64x64xf32>
    %243 = vector.shape_cast %242 : vector<64x64xf32> to vector<8x8x64xf32>
    %c1_235 = arith.constant 1 : index
    %c8_236 = arith.constant 8 : index
    %c0_237 = arith.constant 0 : index
    %244 = vector.load %arg11[%c1_235, %c8_236, %c0_237] : memref<10x24x64xf32, #tpu.memory_space<vmem>>, vector<8x8x64xf32>
    tpu.vector_store %arg11[%c1_235, %c8_236, %c0_237], %243 {strides = array<i32>} : memref<10x24x64xf32, #tpu.memory_space<vmem>>, vector<8x8x64xf32>,
    %245 = vector.shape_cast %203 : vector<64x64xf32> to vector<8x8x64xf32>
    %c1_238 = arith.constant 1 : index
    %c8_239 = arith.constant 8 : index
    %c0_240 = arith.constant 0 : index
    %246 = vector.load %arg12[%c1_238, %c8_239, %c0_240] : memref<10x24x64xf32, #tpu.memory_space<vmem>>, vector<8x8x64xf32>
    tpu.vector_store %arg12[%c1_238, %c8_239, %c0_240], %245 {strides = array<i32>} : memref<10x24x64xf32, #tpu.memory_space<vmem>>, vector<8x8x64xf32>,
    %c0_241 = arith.constant 0 : index
    %c7_242 = arith.constant 7 : index
    %c0_243 = arith.constant 0 : index
    %247 = vector.load %arg11[%c0_241, %c7_242, %c0_243] : memref<10x24x64xf32, #tpu.memory_space<vmem>>, vector<8x8x64xf32>
    %248 = vector.shape_cast %247 : vector<8x8x64xf32> to vector<64x64xf32>
    %249 = arith.truncf %248 : vector<64x64xf32> to vector<64x64xbf16>
    %c0_244 = arith.constant 0 : index
    %c8_245 = arith.constant 8 : index
    %c0_246 = arith.constant 0 : index
    %250 = vector.load %arg11[%c0_244, %c8_245, %c0_246] : memref<10x24x64xf32, #tpu.memory_space<vmem>>, vector<8x8x64xf32>
    %251 = vector.shape_cast %250 : vector<8x8x64xf32> to vector<64x64xf32>
    %252 = arith.truncf %251 : vector<64x64xf32> to vector<64x64xbf16>
    %c0_247 = arith.constant 0 : index
    %c9_248 = arith.constant 9 : index
    %c0_249 = arith.constant 0 : index
    %253 = vector.load %arg11[%c0_247, %c9_248, %c0_249] : memref<10x24x64xf32, #tpu.memory_space<vmem>>, vector<8x8x64xf32>
    %254 = vector.shape_cast %253 : vector<8x8x64xf32> to vector<64x64xf32>
    %255 = arith.truncf %254 : vector<64x64xf32> to vector<64x64xbf16>
    %c1_250 = arith.constant 1 : index
    %c7_251 = arith.constant 7 : index
    %c0_252 = arith.constant 0 : index
    %256 = vector.load %arg11[%c1_250, %c7_251, %c0_252] : memref<10x24x64xf32, #tpu.memory_space<vmem>>, vector<8x8x64xf32>
    %257 = vector.shape_cast %256 : vector<8x8x64xf32> to vector<64x64xf32>
    %258 = arith.truncf %257 : vector<64x64xf32> to vector<64x64xbf16>
    %c1_253 = arith.constant 1 : index
    %c8_254 = arith.constant 8 : index
    %c0_255 = arith.constant 0 : index
    %259 = vector.load %arg11[%c1_253, %c8_254, %c0_255] : memref<10x24x64xf32, #tpu.memory_space<vmem>>, vector<8x8x64xf32>
    %260 = vector.shape_cast %259 : vector<8x8x64xf32> to vector<64x64xf32>
    %261 = arith.truncf %260 : vector<64x64xf32> to vector<64x64xbf16>
    %c1_256 = arith.constant 1 : index
    %c9_257 = arith.constant 9 : index
    %c0_258 = arith.constant 0 : index
    %262 = vector.load %arg11[%c1_256, %c9_257, %c0_258] : memref<10x24x64xf32, #tpu.memory_space<vmem>>, vector<8x8x64xf32>
    %263 = vector.shape_cast %262 : vector<8x8x64xf32> to vector<64x64xf32>
    %264 = arith.truncf %263 : vector<64x64xf32> to vector<64x64xbf16>
    %c2_259 = arith.constant 2 : index
    %c7_260 = arith.constant 7 : index
    %c0_261 = arith.constant 0 : index
    %265 = vector.load %arg11[%c2_259, %c7_260, %c0_261] : memref<10x24x64xf32, #tpu.memory_space<vmem>>, vector<8x8x64xf32>
    %266 = vector.shape_cast %265 : vector<8x8x64xf32> to vector<64x64xf32>
    %267 = arith.truncf %266 : vector<64x64xf32> to vector<64x64xbf16>
    %c2_262 = arith.constant 2 : index
    %c8_263 = arith.constant 8 : index
    %c0_264 = arith.constant 0 : index
    %268 = vector.load %arg11[%c2_262, %c8_263, %c0_264] : memref<10x24x64xf32, #tpu.memory_space<vmem>>, vector<8x8x64xf32>
    %269 = vector.shape_cast %268 : vector<8x8x64xf32> to vector<64x64xf32>
    %270 = arith.truncf %269 : vector<64x64xf32> to vector<64x64xbf16>
    %c2_265 = arith.constant 2 : index
    %c9_266 = arith.constant 9 : index
    %c0_267 = arith.constant 0 : index
    %271 = vector.load %arg11[%c2_265, %c9_266, %c0_267] : memref<10x24x64xf32, #tpu.memory_space<vmem>>, vector<8x8x64xf32>
    %272 = vector.shape_cast %271 : vector<8x8x64xf32> to vector<64x64xf32>
    %273 = arith.truncf %272 : vector<64x64xf32> to vector<64x64xbf16>
    %c0_268 = arith.constant 0 : index
    %c7_269 = arith.constant 7 : index
    %c0_270 = arith.constant 0 : index
    %274 = vector.load %arg12[%c0_268, %c7_269, %c0_270] : memref<10x24x64xf32, #tpu.memory_space<vmem>>, vector<8x8x64xf32>
    %275 = vector.shape_cast %274 : vector<8x8x64xf32> to vector<64x64xf32>
    %276 = arith.truncf %275 : vector<64x64xf32> to vector<64x64xbf16>
    %c0_271 = arith.constant 0 : index
    %c8_272 = arith.constant 8 : index
    %c0_273 = arith.constant 0 : index
    %277 = vector.load %arg12[%c0_271, %c8_272, %c0_273] : memref<10x24x64xf32, #tpu.memory_space<vmem>>, vector<8x8x64xf32>
    %278 = vector.shape_cast %277 : vector<8x8x64xf32> to vector<64x64xf32>
    %279 = arith.truncf %278 : vector<64x64xf32> to vector<64x64xbf16>
    %c0_274 = arith.constant 0 : index
    %c9_275 = arith.constant 9 : index
    %c0_276 = arith.constant 0 : index
    %280 = vector.load %arg12[%c0_274, %c9_275, %c0_276] : memref<10x24x64xf32, #tpu.memory_space<vmem>>, vector<8x8x64xf32>
    %281 = vector.shape_cast %280 : vector<8x8x64xf32> to vector<64x64xf32>
    %282 = arith.truncf %281 : vector<64x64xf32> to vector<64x64xbf16>
    %c1_277 = arith.constant 1 : index
    %c7_278 = arith.constant 7 : index
    %c0_279 = arith.constant 0 : index
    %283 = vector.load %arg12[%c1_277, %c7_278, %c0_279] : memref<10x24x64xf32, #tpu.memory_space<vmem>>, vector<8x8x64xf32>
    %284 = vector.shape_cast %283 : vector<8x8x64xf32> to vector<64x64xf32>
    %285 = arith.truncf %284 : vector<64x64xf32> to vector<64x64xbf16>
    %c1_280 = arith.constant 1 : index
    %c8_281 = arith.constant 8 : index
    %c0_282 = arith.constant 0 : index
    %286 = vector.load %arg12[%c1_280, %c8_281, %c0_282] : memref<10x24x64xf32, #tpu.memory_space<vmem>>, vector<8x8x64xf32>
    %287 = vector.shape_cast %286 : vector<8x8x64xf32> to vector<64x64xf32>
    %288 = arith.truncf %287 : vector<64x64xf32> to vector<64x64xbf16>
    %c1_283 = arith.constant 1 : index
    %c9_284 = arith.constant 9 : index
    %c0_285 = arith.constant 0 : index
    %289 = vector.load %arg12[%c1_283, %c9_284, %c0_285] : memref<10x24x64xf32, #tpu.memory_space<vmem>>, vector<8x8x64xf32>
    %290 = vector.shape_cast %289 : vector<8x8x64xf32> to vector<64x64xf32>
    %291 = arith.truncf %290 : vector<64x64xf32> to vector<64x64xbf16>
    %c2_286 = arith.constant 2 : index
    %c7_287 = arith.constant 7 : index
    %c0_288 = arith.constant 0 : index
    %292 = vector.load %arg12[%c2_286, %c7_287, %c0_288] : memref<10x24x64xf32, #tpu.memory_space<vmem>>, vector<8x8x64xf32>
    %293 = vector.shape_cast %292 : vector<8x8x64xf32> to vector<64x64xf32>
    %294 = arith.truncf %293 : vector<64x64xf32> to vector<64x64xbf16>
    %c2_289 = arith.constant 2 : index
    %c8_290 = arith.constant 8 : index
    %c0_291 = arith.constant 0 : index
    %295 = vector.load %arg12[%c2_289, %c8_290, %c0_291] : memref<10x24x64xf32, #tpu.memory_space<vmem>>, vector<8x8x64xf32>
    %296 = vector.shape_cast %295 : vector<8x8x64xf32> to vector<64x64xf32>
    %297 = arith.truncf %296 : vector<64x64xf32> to vector<64x64xbf16>
    %c2_292 = arith.constant 2 : index
    %c9_293 = arith.constant 9 : index
    %c0_294 = arith.constant 0 : index
    %298 = vector.load %arg12[%c2_292, %c9_293, %c0_294] : memref<10x24x64xf32, #tpu.memory_space<vmem>>, vector<8x8x64xf32>
    %299 = vector.shape_cast %298 : vector<8x8x64xf32> to vector<64x64xf32>
    %300 = arith.truncf %299 : vector<64x64xf32> to vector<64x64xbf16>
    %301 = tpu.concatenate %249, %252, %255, %258, %261, %264, %267, %270, %273, %276, %279, %282, %285, %288, %291, %294 in 1 : vector<64x64xbf16>, vector<64x64xbf16>, vector<64x64xbf16>, vector<64x64xbf16>, vector<64x64xbf16>, vector<64x64xbf16>, vector<64x64xbf16>, vector<64x64xbf16>, vector<64x64xbf16>, vector<64x64xbf16>, vector<64x64xbf16>, vector<64x64xbf16>, vector<64x64xbf16>, vector<64x64xbf16>, vector<64x64xbf16>, vector<64x64xbf16> -> vector<64x1024xbf16>
    %302 = tpu.concatenate %297, %300 in 1 : vector<64x64xbf16>, vector<64x64xbf16> -> vector<64x128xbf16>
    %303 = tpu.concatenate %301, %302 in 1 : vector<64x1024xbf16>, vector<64x128xbf16> -> vector<64x1152xbf16>
    %c0_295 = arith.constant 0 : index
    %c0_296 = arith.constant 0 : index
    %304 = vector.load %arg7[%c0_295, %c0_296] : memref<1152x128xbf16, #tpu.memory_space<vmem>>, vector<1152x128xbf16>
    %cst_297 = arith.constant dense<0.000000e+00> : vector<64x128xf32>
    %305 = tpu.matmul %303, %304, %cst_297 {dimension_numbers = #tpu.dot_dimension_numbers<[1], [0], [0], [1], [0, 0, 1, 1], [], []>} : vector<64x1152xbf16>, vector<1152x128xbf16>, vector<64x128xf32> -> vector<64x128xf32>
    %c0_298 = arith.constant 0 : index
    %c0_299 = arith.constant 0 : index
    %306 = vector.load %arg8[%c0_298, %c0_299] : memref<1x128xf32, #tpu.memory_space<vmem>>, vector<1x128xf32>
    %307 = vector.broadcast %306 : vector<1x128xf32> to vector<64x128xf32>
    %308 = arith.addf %305, %307 : vector<64x128xf32>
    %c0_300 = arith.constant 0 : index
    %c0_301 = arith.constant 0 : index
    %c0_302 = arith.constant 0 : index
    %309 = vector.load %arg9[%c0_300, %c0_301, %c0_302] : memref<1x64x128xf32, #tpu.memory_space<vmem>>, vector<1x64x128xf32>
    %310 = vector.shape_cast %309 : vector<1x64x128xf32> to vector<64x128xf32>
    %311 = vector.shape_cast %308 : vector<64x128xf32> to vector<1x64x128xf32>
    tpu.vector_store %arg9[%c0_300, %c0_301, %c0_302], %311 {strides = array<i32>} : memref<1x64x128xf32, #tpu.memory_space<vmem>>, vector<1x64x128xf32>,
    return
  }
  func.func @transform_0(%arg0: i32) -> (i32, i32, i32) {
    %c0_i32 = arith.constant 0 : i32
    %c0_i32_0 = arith.constant 0 : i32
    %c0_i32_1 = arith.constant 0 : i32
    return %arg0, %c0_i32, %c0_i32_0 : i32, i32, i32
  }
  func.func @transform_1(%arg0: i32) -> (i32, i32) {
    %c0_i32 = arith.constant 0 : i32
    %c0_i32_0 = arith.constant 0 : i32
    %c0_i32_1 = arith.constant 0 : i32
    return %c0_i32, %c0_i32_0 : i32, i32
  }
  func.func @transform_2(%arg0: i32) -> (i32, i32) {
    %c0_i32 = arith.constant 0 : i32
    %c0_i32_0 = arith.constant 0 : i32
    %c0_i32_1 = arith.constant 0 : i32
    return %c0_i32, %c0_i32_0 : i32, i32
  }
  func.func @transform_3(%arg0: i32) -> (i32, i32) {
    %c0_i32 = arith.constant 0 : i32
    %c0_i32_0 = arith.constant 0 : i32
    %c0_i32_1 = arith.constant 0 : i32
    return %c0_i32, %c0_i32_0 : i32, i32
  }
  func.func @transform_4(%arg0: i32) -> (i32, i32, i32) {
    %c0_i32 = arith.constant 0 : i32
    %c0_i32_0 = arith.constant 0 : i32
    %c0_i32_1 = arith.constant 0 : i32
    %c0_i32_2 = arith.constant 0 : i32
    return %c0_i32, %c0_i32_0, %c0_i32_1 : i32, i32, i32
  }
  func.func @transform_5(%arg0: i32) -> (i32, i32, i32) {
    %c0_i32 = arith.constant 0 : i32
    %c0_i32_0 = arith.constant 0 : i32
    %c0_i32_1 = arith.constant 0 : i32
    %c0_i32_2 = arith.constant 0 : i32
    return %c0_i32, %c0_i32_0, %c0_i32_1 : i32, i32, i32
  }
  func.func @transform_6(%arg0: i32) -> (i32, i32) {
    %c0_i32 = arith.constant 0 : i32
    %c0_i32_0 = arith.constant 0 : i32
    %c0_i32_1 = arith.constant 0 : i32
    return %c0_i32, %c0_i32_0 : i32, i32
  }
  func.func @transform_7(%arg0: i32) -> (i32, i32) {
    %c0_i32 = arith.constant 0 : i32
    %c0_i32_0 = arith.constant 0 : i32
    %c0_i32_1 = arith.constant 0 : i32
    return %c0_i32, %c0_i32_0 : i32, i32
  }
  func.func @transform_8(%arg0: i32) -> (i32, i32, i32) {
    %c0_i32 = arith.constant 0 : i32
    %c0_i32_0 = arith.constant 0 : i32
    %c0_i32_1 = arith.constant 0 : i32
    return %arg0, %c0_i32, %c0_i32_0 : i32, i32, i32
  }
}

</mosaic_0001>

<llo_original>
// kernel: mynet32_fused_forward.1
$region0: #{mynet32_fused_forward.1}
  #allocation0 [shape = 'u32[]', space=smem, size = 0x4, offset = 0x4, fixed_abs, tag = 'smem constant byte address 0x4 - core index']
  #allocation1 [shape = 'u32[144,128]{1,0:T(1,128)}', space=vmem, size = 0x12000, scoped, tag = 'internal scratch']
  #allocation2 [shape = 'f32[18,32,64]{2,1,0:T(8,128)}', space=vmem, size = 0x48000, scoped, tag = 'scratch operand']
  #allocation3 [shape = 'f32[10,24,64]{2,1,0:T(8,128)}', space=vmem, size = 0x1e000, scoped, tag = 'scratch operand']
  #allocation4 [shape = 'f32[10,24,64]{2,1,0:T(8,128)}', space=vmem, size = 0x1e000, scoped, tag = 'scratch operand']
  %s0 = inlined_call_operand.vmem [shape: bf16[2,256,64], index: 0, kind: input, shape index: {}]
  %s1 = inlined_call_operand.vmem [shape: bf16[64,64], index: 1, kind: input, shape index: {}]
  %s2 = inlined_call_operand.vmem [shape: f32[1,64], index: 2, kind: input, shape index: {}]
  %s3 = inlined_call_operand.vmem [shape: bf16[64,256], index: 3, kind: input, shape index: {}]
  %s4 = inlined_call_operand.vmem [shape: bf16[5,576,64], index: 4, kind: input, shape index: {}]
  %s5 = inlined_call_operand.vmem [shape: f32[5,1,64], index: 5, kind: input, shape index: {}]
  %s6 = inlined_call_operand.vmem [shape: bf16[1152,128], index: 6, kind: input, shape index: {}]
  %s7 = inlined_call_operand.vmem [shape: f32[1,128], index: 7, kind: input, shape index: {}]
  %s8 = inlined_call_operand.vmem [shape: f32[2,64,128], index: 8, kind: output, shape index: {}]
  %s9 = sld [smem:[#allocation0]]
  $region65: #{mynet32_fused_forward.1} parent=0
    _
  %s11 = ssub.s32 1, %s9
  %s12 = scalar_select 0, %s11, %s9
  loop: start=0, step=1, limit=4
  $region2: #{mynet32_fused_forward.1} parent=0 // loop_pre_header
    _
  $region3: #{mynet32_fused_forward.1} parent=0 // loop_header
    %s14 = sphi 0, %s18
    %p15 = scmp.ge.s32.totalorder %s14, 4
    %s24 = sphi 0, %s26
    %s27 = sphi 0, %s24
    %s28 = sphi 0, %s27
    %s44 = sphi 0, %s28
    %s48 = sphi 0, %s48
    %s50 = sphi 0, %s48
    %s51 = sphi 0, %s50
    %s65 = sphi 0, %s51
    %s69 = sphi 0, %s69
    %s71 = sphi 0, %s69
    %s72 = sphi 0, %s71
    %s86 = sphi 0, %s72
    %s90 = sphi 0, %s90
    %s92 = sphi 0, %s90
    %s93 = sphi 0, %s92
    %s107 = sphi 0, %s93
    %s111 = sphi 0, %s111
    %s113 = sphi 0, %s111
    %s114 = sphi 0, %s113
    %s128 = sphi 0, %s114
    %s132 = sphi 0, %s132
    %s134 = sphi 0, %s132
    %s135 = sphi 0, %s134
    %s149 = sphi 0, %s135
    %s153 = sphi 0, %s153
    %s155 = sphi 0, %s153
    %s156 = sphi 0, %s155
    %s170 = sphi 0, %s156
    %s174 = sphi 0, %s174
    %s176 = sphi 0, %s174
    %s177 = sphi 0, %s176
    %s191 = sphi 0, %s177
    %s197 = sphi 0, %s199
    %s200 = sphi 0, %s197
    %s201 = sphi 0, %s200
    %s217 = sphi 0, %s201
  $region4: #{mynet32_fused_forward.1} parent=0 // loop_header_branch
    %17 = sbr.rel (%p15) target = $region8
  $region5: #{mynet32_fused_forward.1} parent=0 // loop_body
    %s19 = ssub.s32 %s14, 1
    %s20 = ssub.s32 %s14, 2
    %s21 = sadd.s32 %s14, 1
    %s22 = ssub.s32 %s14, %s21
    %p23 = scmp.eq.s32.totalorder %s22, 0
    %s25 = sadd.s32 %s24, 1
    %s26 = scalar_select %p23, %s24, %s25
    %p29 = pneg %p23
    %p30 = scmp.eq.s32.totalorder %s14, 1
    %p31 = por %p29, %p30
    %p32 = scmp.ne.s32.totalorder %s24, %s27
    %p33 = scmp.eq.s32.totalorder %s14, 0
    %p34 = por %p32, %p33
    %p35 = scmp.ne.s32.totalorder %s24, %s27
    %p36 = scmp.eq.s32.totalorder %s19, 1
    %p37 = por %p35, %p36
    %p38 = scmp.ne.s32.totalorder %s27, %s28
    %p39 = scmp.eq.s32.totalorder %s19, 0
    %p40 = por %p38, %p39
    %p41 = scmp.ne.s32.totalorder %s27, %s28
    %p42 = scmp.eq.s32.totalorder %s20, 1
    %p43 = por %p41, %p42
    %p45 = scmp.ne.s32.totalorder %s28, %s44
    %p46 = scmp.eq.s32.totalorder %s20, 0
    %p47 = por %p45, %p46
    %s49 = sadd.s32 %s48, 1
    %p52 = scmp.eq.s32.totalorder %s14, 1
    %p53 = scmp.ne.s32.totalorder %s48, %s50
    %p54 = scmp.eq.s32.totalorder %s14, 0
    %p55 = por %p53, %p54
    %p56 = scmp.ne.s32.totalorder %s48, %s50
    %p57 = scmp.eq.s32.totalorder %s19, 1
    %p58 = por %p56, %p57
    %p59 = scmp.ne.s32.totalorder %s50, %s51
    %p60 = scmp.eq.s32.totalorder %s19, 0
    %p61 = por %p59, %p60
    %p62 = scmp.ne.s32.totalorder %s50, %s51
    %p63 = scmp.eq.s32.totalorder %s20, 1
    %p64 = por %p62, %p63
    %p66 = scmp.ne.s32.totalorder %s51, %s65
    %p67 = scmp.eq.s32.totalorder %s20, 0
    %p68 = por %p66, %p67
    %s70 = sadd.s32 %s69, 1
    %p73 = scmp.eq.s32.totalorder %s14, 1
    %p74 = scmp.ne.s32.totalorder %s69, %s71
    %p75 = scmp.eq.s32.totalorder %s14, 0
    %p76 = por %p74, %p75
    %p77 = scmp.ne.s32.totalorder %s69, %s71
    %p78 = scmp.eq.s32.totalorder %s19, 1
    %p79 = por %p77, %p78
    %p80 = scmp.ne.s32.totalorder %s71, %s72
    %p81 = scmp.eq.s32.totalorder %s19, 0
    %p82 = por %p80, %p81
    %p83 = scmp.ne.s32.totalorder %s71, %s72
    %p84 = scmp.eq.s32.totalorder %s20, 1
    %p85 = por %p83, %p84
    %p87 = scmp.ne.s32.totalorder %s72, %s86
    %p88 = scmp.eq.s32.totalorder %s20, 0
    %p89 = por %p87, %p88
    %s91 = sadd.s32 %s90, 1
    %p94 = scmp.eq.s32.totalorder %s14, 1
    %p95 = scmp.ne.s32.totalorder %s90, %s92
    %p96 = scmp.eq.s32.totalorder %s14, 0
    %p97 = por %p95, %p96
    %p98 = scmp.ne.s32.totalorder %s90, %s92
    %p99 = scmp.eq.s32.totalorder %s19, 1
    %p100 = por %p98, %p99
    %p101 = scmp.ne.s32.totalorder %s92, %s93
    %p102 = scmp.eq.s32.totalorder %s19, 0
    %p103 = por %p101, %p102
    %p104 = scmp.ne.s32.totalorder %s92, %s93
    %p105 = scmp.eq.s32.totalorder %s20, 1
    %p106 = por %p104, %p105
    %p108 = scmp.ne.s32.totalorder %s93, %s107
    %p109 = scmp.eq.s32.totalorder %s20, 0
    %p110 = por %p108, %p109
    %s112 = sadd.s32 %s111, 1
    %p115 = scmp.eq.s32.totalorder %s14, 1
    %p116 = scmp.ne.s32.totalorder %s111, %s113
    %p117 = scmp.eq.s32.totalorder %s14, 0
    %p118 = por %p116, %p117
    %p119 = scmp.ne.s32.totalorder %s111, %s113
    %p120 = scmp.eq.s32.totalorder %s19, 1
    %p121 = por %p119, %p120
    %p122 = scmp.ne.s32.totalorder %s113, %s114
    %p123 = scmp.eq.s32.totalorder %s19, 0
    %p124 = por %p122, %p123
    %p125 = scmp.ne.s32.totalorder %s113, %s114
    %p126 = scmp.eq.s32.totalorder %s20, 1
    %p127 = por %p125, %p126
    %p129 = scmp.ne.s32.totalorder %s114, %s128
    %p130 = scmp.eq.s32.totalorder %s20, 0
    %p131 = por %p129, %p130
    %s133 = sadd.s32 %s132, 1
    %p136 = scmp.eq.s32.totalorder %s14, 1
    %p137 = scmp.ne.s32.totalorder %s132, %s134
    %p138 = scmp.eq.s32.totalorder %s14, 0
    %p139 = por %p137, %p138
    %p140 = scmp.ne.s32.totalorder %s132, %s134
    %p141 = scmp.eq.s32.totalorder %s19, 1
    %p142 = por %p140, %p141
    %p143 = scmp.ne.s32.totalorder %s134, %s135
    %p144 = scmp.eq.s32.totalorder %s19, 0
    %p145 = por %p143, %p144
    %p146 = scmp.ne.s32.totalorder %s134, %s135
    %p147 = scmp.eq.s32.totalorder %s20, 1
    %p148 = por %p146, %p147
    %p150 = scmp.ne.s32.totalorder %s135, %s149
    %p151 = scmp.eq.s32.totalorder %s20, 0
    %p152 = por %p150, %p151
    %s154 = sadd.s32 %s153, 1
    %p157 = scmp.eq.s32.totalorder %s14, 1
    %p158 = scmp.ne.s32.totalorder %s153, %s155
    %p159 = scmp.eq.s32.totalorder %s14, 0
    %p160 = por %p158, %p159
    %p161 = scmp.ne.s32.totalorder %s153, %s155
    %p162 = scmp.eq.s32.totalorder %s19, 1
    %p163 = por %p161, %p162
    %p164 = scmp.ne.s32.totalorder %s155, %s156
    %p165 = scmp.eq.s32.totalorder %s19, 0
    %p166 = por %p164, %p165
    %p167 = scmp.ne.s32.totalorder %s155, %s156
    %p168 = scmp.eq.s32.totalorder %s20, 1
    %p169 = por %p167, %p168
    %p171 = scmp.ne.s32.totalorder %s156, %s170
    %p172 = scmp.eq.s32.totalorder %s20, 0
    %p173 = por %p171, %p172
    %s175 = sadd.s32 %s174, 1
    %p178 = scmp.eq.s32.totalorder %s14, 1
    %p179 = scmp.ne.s32.totalorder %s174, %s176
    %p180 = scmp.eq.s32.totalorder %s14, 0
    %p181 = por %p179, %p180
    %p182 = scmp.ne.s32.totalorder %s174, %s176
    %p183 = scmp.eq.s32.totalorder %s19, 1
    %p184 = por %p182, %p183
    %p185 = scmp.ne.s32.totalorder %s176, %s177
    %p186 = scmp.eq.s32.totalorder %s19, 0
    %p187 = por %p185, %p186
    %p188 = scmp.ne.s32.totalorder %s176, %s177
    %p189 = scmp.eq.s32.totalorder %s20, 1
    %p190 = por %p188, %p189
    %p192 = scmp.ne.s32.totalorder %s177, %s191
    %p193 = scmp.eq.s32.totalorder %s20, 0
    %p194 = por %p192, %p193
    %s195 = ssub.s32 %s14, %s21
    %p196 = scmp.eq.s32.totalorder %s195, 0
    %s198 = sadd.s32 %s197, 1
    %s199 = scalar_select %p196, %s197, %s198
    %p202 = pneg %p196
    %p203 = scmp.eq.s32.totalorder %s14, 1
    %p204 = por %p202, %p203
    %p205 = scmp.ne.s32.totalorder %s197, %s200
    %p206 = scmp.eq.s32.totalorder %s14, 0
    %p207 = por %p205, %p206
    %p208 = scmp.ne.s32.totalorder %s197, %s200
    %p209 = scmp.eq.s32.totalorder %s19, 1
    %p210 = por %p208, %p209
    %p211 = scmp.ne.s32.totalorder %s200, %s201
    %p212 = scmp.eq.s32.totalorder %s19, 0
    %p213 = por %p211, %p212
    %p214 = scmp.ne.s32.totalorder %s200, %s201
    %p215 = scmp.eq.s32.totalorder %s20, 1
    %p216 = por %p214, %p215
    %p218 = scmp.ne.s32.totalorder %s201, %s217
    %p219 = scmp.eq.s32.totalorder %s20, 0
    %p220 = por %p218, %p219
    %p221 = scmp.le.s32.totalorder 1, %s14
    %p222 = scmp.lt.s32.totalorder %s14, 3
    %p223 = pnand %p221, %p222
    %p224 = pneg %p223
    // Predicated region
    $region9: #{mynet32_fused_forward.1} parent=5 // pred_check
      _
    $region10: #{mynet32_fused_forward.1} parent=5 // pred_check_branch
      %226 = sbr.rel (%p223) target = $region12
    $region11: #{mynet32_fused_forward.1} parent=5 // pred_region
      %s227 = ssub.s32 %s14, 1
      // Predicated region
      $region13: #{mynet32_fused_forward.1} parent=11 // pred_check
        %p228 = pneg %p61
      $region14: #{mynet32_fused_forward.1} parent=11 // pred_check_branch
        %230 = sbr.rel (%p228) target = $region16
      $region15: #{mynet32_fused_forward.1} parent=11 // pred_region
        _
      $region16: #{mynet32_fused_forward.1} parent=11 // pred_fallthru
        _
      // Predicated region
      $region17: #{mynet32_fused_forward.1} parent=11 // pred_check
        %p231 = pneg %p82
      $region18: #{mynet32_fused_forward.1} parent=11 // pred_check_branch
        %233 = sbr.rel (%p231) target = $region20
      $region19: #{mynet32_fused_forward.1} parent=11 // pred_region
        _
      $region20: #{mynet32_fused_forward.1} parent=11 // pred_fallthru
        _
      // Predicated region
      $region21: #{mynet32_fused_forward.1} parent=11 // pred_check
        %p234 = pneg %p103
      $region22: #{mynet32_fused_forward.1} parent=11 // pred_check_branch
        %236 = sbr.rel (%p234) target = $region24
      $region23: #{mynet32_fused_forward.1} parent=11 // pred_region
        _
      $region24: #{mynet32_fused_forward.1} parent=11 // pred_fallthru
        _
      // Predicated region
      $region25: #{mynet32_fused_forward.1} parent=11 // pred_check
        %p237 = pneg %p124
      $region26: #{mynet32_fused_forward.1} parent=11 // pred_check_branch
        %239 = sbr.rel (%p237) target = $region28
      $region27: #{mynet32_fused_forward.1} parent=11 // pred_region
        _
      $region28: #{mynet32_fused_forward.1} parent=11 // pred_fallthru
        _
      // Predicated region
      $region29: #{mynet32_fused_forward.1} parent=11 // pred_check
        %p240 = pneg %p145
      $region30: #{mynet32_fused_forward.1} parent=11 // pred_check_branch
        %242 = sbr.rel (%p240) target = $region32
      $region31: #{mynet32_fused_forward.1} parent=11 // pred_region
        _
      $region32: #{mynet32_fused_forward.1} parent=11 // pred_fallthru
        _
      // Predicated region
      $region33: #{mynet32_fused_forward.1} parent=11 // pred_check
        %p243 = pneg %p166
      $region34: #{mynet32_fused_forward.1} parent=11 // pred_check_branch
        %245 = sbr.rel (%p243) target = $region36
      $region35: #{mynet32_fused_forward.1} parent=11 // pred_region
        _
      $region36: #{mynet32_fused_forward.1} parent=11 // pred_fallthru
        _
      // Predicated region
      $region37: #{mynet32_fused_forward.1} parent=11 // pred_check
        %p246 = pneg %p187
      $region38: #{mynet32_fused_forward.1} parent=11 // pred_check_branch
        %248 = sbr.rel (%p246) target = $region40
      $region39: #{mynet32_fused_forward.1} parent=11 // pred_region
        _
      $region40: #{mynet32_fused_forward.1} parent=11 // pred_fallthru
        _
    $region12: #{mynet32_fused_forward.1} parent=5 // pred_fallthru
      _
    %p249 = scmp.lt.s32.totalorder %s14, 2
    // Predicated region
    $region41: #{mynet32_fused_forward.1} parent=5 // pred_check
      %p250 = pneg %p249
    $region42: #{mynet32_fused_forward.1} parent=5 // pred_check_branch
      %252 = sbr.rel (%p250) target = $region44
    $region43: #{mynet32_fused_forward.1} parent=5 // pred_region
      // Predicated region
      $region45: #{mynet32_fused_forward.1} parent=43 // pred_check
        %p253 = pneg %p34
      $region46: #{mynet32_fused_forward.1} parent=43 // pred_check_branch
        %255 = sbr.rel (%p253) target = $region48
      $region47: #{mynet32_fused_forward.1} parent=43 // pred_region
        %p256 = scmp.lt.s32.totalorder %s14, 1
        %s257 = scalar_select %p256, %s14, 1
        %s258 = smul.addr %s257, 32
        %s259 = smul.addr %s258, 4
        %s260 = scalar_lea.vmem %s0, %s259
      $region48: #{mynet32_fused_forward.1} parent=43 // pred_fallthru
        _
    $region44: #{mynet32_fused_forward.1} parent=5 // pred_fallthru
      _
    %p261 = scmp.le.s32.totalorder 1, %s14
    %p262 = scmp.lt.s32.totalorder %s14, 3
    %p263 = pnand %p261, %p262
    %p264 = pneg %p263
    // Predicated region
    $region49: #{mynet32_fused_forward.1} parent=5 // pred_check
      _
    $region50: #{mynet32_fused_forward.1} parent=5 // pred_check_branch
      %266 = sbr.rel (%p263) target = $region52
    $region51: #{mynet32_fused_forward.1} parent=5 // pred_region
      %s267 = ssub.s32 %s14, 1
      %p268 = scmp.lt.s32.totalorder %s19, 1
      %s269 = scalar_select %p268, %s19, 1
      %s270 = smul.addr %s269, 32
      %s271 = smul.addr %s270, 4
      %s272 = scalar_lea.vmem %s0, %s271
      %p273 = pneg %p40
      %p274 = pneg %p37
      %p275 = pneg %p61
      %p276 = pneg %p58
      %p277 = pneg %p82
      %p278 = pneg %p79
      %p279 = pneg %p103
      %p280 = pneg %p100
      %p281 = pneg %p124
      %p282 = pneg %p121
      %p283 = pneg %p145
      %p284 = pneg %p142
      %p285 = pneg %p166
      %p286 = pneg %p163
      %p287 = pneg %p187
      %p288 = pneg %p184
      %p289 = pneg %p213
      %p290 = pneg %p210
      %p291 = scmp.lt.s32.totalorder %s19, 1
      %s292 = scalar_select %p291, %s19, 1
      %s293 = smul.addr %s292, 8
      %s294 = smul.addr %s293, 8
      %s295 = scalar_lea.vmem %s8, %s294
      %p296 = scmp.lt.s32.totalorder %s19, 1
      %s297 = scalar_select %p296, %s19, 1
      %s298 = smul.addr %s297, 32
      %s299 = smul.addr %s298, 4
      %s300 = scalar_lea.vmem %s0, %s299
      %p301 = scmp.lt.s32.totalorder %s19, 1
      %s302 = scalar_select %p301, %s19, 1
      %s303 = smul.addr %s302, 8
      %s304 = smul.addr %s303, 8
      %s305 = scalar_lea.vmem %s8, %s304
      %vm307 = vcmask 523264
      %308 = vst.msk [vmem:[#allocation2] sm:$0xff] %vm307, 0.0
      %309 = vst.msk [vmem:[#allocation2 + $0x8] sm:$0xff] %vm307, 0.0
      %310 = vst.msk [vmem:[#allocation2 + $0x10] sm:$0xff] %vm307, 0.0
      %311 = vst.msk [vmem:[#allocation2 + $0x18] sm:$0xff] %vm307, 0.0
      %312 = vst.msk [vmem:[#allocation2 + $0x20] sm:$0xff] %vm307, 0.0
      %313 = vst.msk [vmem:[#allocation2 + $0x28] sm:$0xff] %vm307, 0.0
      %314 = vst.msk [vmem:[#allocation2 + $0x30] sm:$0xff] %vm307, 0.0
      %315 = vst.msk [vmem:[#allocation2 + $0x38] sm:$0xff] %vm307, 0.0
      %316 = vst.msk [vmem:[#allocation2 + $0x40] sm:$0xff] %vm307, 0.0
      %317 = vst.msk [vmem:[#allocation2 + $0x48] sm:$0xff] %vm307, 0.0
      %318 = vst.msk [vmem:[#allocation2 + $0x50] sm:$0xff] %vm307, 0.0
      %319 = vst.msk [vmem:[#allocation2 + $0x58] sm:$0xff] %vm307, 0.0
      %320 = vst.msk [vmem:[#allocation2 + $0x60] sm:$0xff] %vm307, 0.0
      %321 = vst.msk [vmem:[#allocation2 + $0x68] sm:$0xff] %vm307, 0.0
      %322 = vst.msk [vmem:[#allocation2 + $0x70] sm:$0xff] %vm307, 0.0
      %323 = vst.msk [vmem:[#allocation2 + $0x78] sm:$0xff] %vm307, 0.0
      %324 = vst.msk [vmem:[#allocation2 + $0x80] sm:$0xff] %vm307, 0.0
      %325 = vst.msk [vmem:[#allocation2 + $0x88] sm:$0xff] %vm307, 0.0
      %326 = vst.msk [vmem:[#allocation2 + $0x90] sm:$0xff] %vm307, 0.0
      %327 = vst.msk [vmem:[#allocation2 + $0x98] sm:$0xff] %vm307, 0.0
      %328 = vst.msk [vmem:[#allocation2 + $0xa0] sm:$0xff] %vm307, 0.0
      %329 = vst.msk [vmem:[#allocation2 + $0xa8] sm:$0xff] %vm307, 0.0
      %330 = vst.msk [vmem:[#allocation2 + $0xb0] sm:$0xff] %vm307, 0.0
      %331 = vst.msk [vmem:[#allocation2 + $0xb8] sm:$0xff] %vm307, 0.0
      %332 = vst.msk [vmem:[#allocation2 + $0xc0] sm:$0xff] %vm307, 0.0
      %333 = vst.msk [vmem:[#allocation2 + $0xc8] sm:$0xff] %vm307, 0.0
      %334 = vst.msk [vmem:[#allocation2 + $0xd0] sm:$0xff] %vm307, 0.0
      %335 = vst.msk [vmem:[#allocation2 + $0xd8] sm:$0xff] %vm307, 0.0
      %336 = vst.msk [vmem:[#allocation2 + $0xe0] sm:$0xff] %vm307, 0.0
      %337 = vst.msk [vmem:[#allocation2 + $0xe8] sm:$0xff] %vm307, 0.0
      %338 = vst.msk [vmem:[#allocation2 + $0xf0] sm:$0xff] %vm307, 0.0
      %339 = vst.msk [vmem:[#allocation2 + $0xf8] sm:$0xff] %vm307, 0.0
      %340 = vst.msk [vmem:[#allocation2 + $0x100] sm:$0xff] %vm307, 0.0
      %341 = vst.msk [vmem:[#allocation2 + $0x108] sm:$0xff] %vm307, 0.0
      %342 = vst.msk [vmem:[#allocation2 + $0x110] sm:$0xff] %vm307, 0.0
      %343 = vst.msk [vmem:[#allocation2 + $0x118] sm:$0xff] %vm307, 0.0
      %344 = vst.msk [vmem:[#allocation2 + $0x120] sm:$0xff] %vm307, 0.0
      %345 = vst.msk [vmem:[#allocation2 + $0x128] sm:$0xff] %vm307, 0.0
      %346 = vst.msk [vmem:[#allocation2 + $0x130] sm:$0xff] %vm307, 0.0
      %347 = vst.msk [vmem:[#allocation2 + $0x138] sm:$0xff] %vm307, 0.0
      %348 = vst.msk [vmem:[#allocation2 + $0x140] sm:$0xff] %vm307, 0.0
      %349 = vst.msk [vmem:[#allocation2 + $0x148] sm:$0xff] %vm307, 0.0
      %350 = vst.msk [vmem:[#allocation2 + $0x150] sm:$0xff] %vm307, 0.0
      %351 = vst.msk [vmem:[#allocation2 + $0x158] sm:$0xff] %vm307, 0.0
      %352 = vst.msk [vmem:[#allocation2 + $0x160] sm:$0xff] %vm307, 0.0
      %353 = vst.msk [vmem:[#allocation2 + $0x168] sm:$0xff] %vm307, 0.0
      %354 = vst.msk [vmem:[#allocation2 + $0x170] sm:$0xff] %vm307, 0.0
      %355 = vst.msk [vmem:[#allocation2 + $0x178] sm:$0xff] %vm307, 0.0
      %356 = vst.msk [vmem:[#allocation2 + $0x180] sm:$0xff] %vm307, 0.0
      %357 = vst.msk [vmem:[#allocation2 + $0x188] sm:$0xff] %vm307, 0.0
      %358 = vst.msk [vmem:[#allocation2 + $0x190] sm:$0xff] %vm307, 0.0
      %359 = vst.msk [vmem:[#allocation2 + $0x198] sm:$0xff] %vm307, 0.0
      %360 = vst.msk [vmem:[#allocation2 + $0x1a0] sm:$0xff] %vm307, 0.0
      %361 = vst.msk [vmem:[#allocation2 + $0x1a8] sm:$0xff] %vm307, 0.0
      %362 = vst.msk [vmem:[#allocation2 + $0x1b0] sm:$0xff] %vm307, 0.0
      %363 = vst.msk [vmem:[#allocation2 + $0x1b8] sm:$0xff] %vm307, 0.0
      %364 = vst.msk [vmem:[#allocation2 + $0x1c0] sm:$0xff] %vm307, 0.0
      %365 = vst.msk [vmem:[#allocation2 + $0x1c8] sm:$0xff] %vm307, 0.0
      %366 = vst.msk [vmem:[#allocation2 + $0x1d0] sm:$0xff] %vm307, 0.0
      %367 = vst.msk [vmem:[#allocation2 + $0x1d8] sm:$0xff] %vm307, 0.0
      %368 = vst.msk [vmem:[#allocation2 + $0x1e0] sm:$0xff] %vm307, 0.0
      %369 = vst.msk [vmem:[#allocation2 + $0x1e8] sm:$0xff] %vm307, 0.0
      %370 = vst.msk [vmem:[#allocation2 + $0x1f0] sm:$0xff] %vm307, 0.0
      %371 = vst.msk [vmem:[#allocation2 + $0x1f8] sm:$0xff] %vm307, 0.0
      %372 = vst.msk [vmem:[#allocation2 + $0x200] sm:$0xff] %vm307, 0.0
      %373 = vst.msk [vmem:[#allocation2 + $0x208] sm:$0xff] %vm307, 0.0
      %374 = vst.msk [vmem:[#allocation2 + $0x210] sm:$0xff] %vm307, 0.0
      %375 = vst.msk [vmem:[#allocation2 + $0x218] sm:$0xff] %vm307, 0.0
      %376 = vst.msk [vmem:[#allocation2 + $0x220] sm:$0xff] %vm307, 0.0
      %377 = vst.msk [vmem:[#allocation2 + $0x228] sm:$0xff] %vm307, 0.0
      %378 = vst.msk [vmem:[#allocation2 + $0x230] sm:$0xff] %vm307, 0.0
      %379 = vst.msk [vmem:[#allocation2 + $0x238] sm:$0xff] %vm307, 0.0
      %380 = vst.msk [vmem:[#allocation3] sm:$0xff] %vm307, 0.0
      %381 = vst.msk [vmem:[#allocation3 + $0x8] sm:$0xff] %vm307, 0.0
      %382 = vst.msk [vmem:[#allocation3 + $0x10] sm:$0xff] %vm307, 0.0
      %383 = vst.msk [vmem:[#allocation3 + $0x18] sm:$0xff] %vm307, 0.0
      %384 = vst.msk [vmem:[#allocation3 + $0x20] sm:$0xff] %vm307, 0.0
      %385 = vst.msk [vmem:[#allocation3 + $0x28] sm:$0xff] %vm307, 0.0
      %386 = vst.msk [vmem:[#allocation3 + $0x30] sm:$0xff] %vm307, 0.0
      %387 = vst.msk [vmem:[#allocation3 + $0x38] sm:$0xff] %vm307, 0.0
      %388 = vst.msk [vmem:[#allocation3 + $0x40] sm:$0xff] %vm307, 0.0
      %389 = vst.msk [vmem:[#allocation3 + $0x48] sm:$0xff] %vm307, 0.0
      %390 = vst.msk [vmem:[#allocation3 + $0x50] sm:$0xff] %vm307, 0.0
      %391 = vst.msk [vmem:[#allocation3 + $0x58] sm:$0xff] %vm307, 0.0
      %392 = vst.msk [vmem:[#allocation3 + $0x60] sm:$0xff] %vm307, 0.0
      %393 = vst.msk [vmem:[#allocation3 + $0x68] sm:$0xff] %vm307, 0.0
      %394 = vst.msk [vmem:[#allocation3 + $0x70] sm:$0xff] %vm307, 0.0
      %395 = vst.msk [vmem:[#allocation3 + $0x78] sm:$0xff] %vm307, 0.0
      %396 = vst.msk [vmem:[#allocation3 + $0x80] sm:$0xff] %vm307, 0.0
      %397 = vst.msk [vmem:[#allocation3 + $0x88] sm:$0xff] %vm307, 0.0
      %398 = vst.msk [vmem:[#allocation3 + $0x90] sm:$0xff] %vm307, 0.0
      %399 = vst.msk [vmem:[#allocation3 + $0x98] sm:$0xff] %vm307, 0.0
      %400 = vst.msk [vmem:[#allocation3 + $0xa0] sm:$0xff] %vm307, 0.0
      %401 = vst.msk [vmem:[#allocation3 + $0xa8] sm:$0xff] %vm307, 0.0
      %402 = vst.msk [vmem:[#allocation3 + $0xb0] sm:$0xff] %vm307, 0.0
      %403 = vst.msk [vmem:[#allocation3 + $0xb8] sm:$0xff] %vm307, 0.0
      %404 = vst.msk [vmem:[#allocation3 + $0xc0] sm:$0xff] %vm307, 0.0
      %405 = vst.msk [vmem:[#allocation3 + $0xc8] sm:$0xff] %vm307, 0.0
      %406 = vst.msk [vmem:[#allocation3 + $0xd0] sm:$0xff] %vm307, 0.0
      %407 = vst.msk [vmem:[#allocation3 + $0xd8] sm:$0xff] %vm307, 0.0
      %408 = vst.msk [vmem:[#allocation3 + $0xe0] sm:$0xff] %vm307, 0.0
      %409 = vst.msk [vmem:[#allocation3 + $0xe8] sm:$0xff] %vm307, 0.0
      %410 = vst.msk [vmem:[#allocation4] sm:$0xff] %vm307, 0.0
      %411 = vst.msk [vmem:[#allocation4 + $0x8] sm:$0xff] %vm307, 0.0
      %412 = vst.msk [vmem:[#allocation4 + $0x10] sm:$0xff] %vm307, 0.0
      %413 = vst.msk [vmem:[#allocation4 + $0x18] sm:$0xff] %vm307, 0.0
      %414 = vst.msk [vmem:[#allocation4 + $0x20] sm:$0xff] %vm307, 0.0
      %415 = vst.msk [vmem:[#allocation4 + $0x28] sm:$0xff] %vm307, 0.0
      %416 = vst.msk [vmem:[#allocation4 + $0x30] sm:$0xff] %vm307, 0.0
      %417 = vst.msk [vmem:[#allocation4 + $0x38] sm:$0xff] %vm307, 0.0
      %418 = vst.msk [vmem:[#allocation4 + $0x40] sm:$0xff] %vm307, 0.0
      %419 = vst.msk [vmem:[#allocation4 + $0x48] sm:$0xff] %vm307, 0.0
      %420 = vst.msk [vmem:[#allocation4 + $0x50] sm:$0xff] %vm307, 0.0
      %421 = vst.msk [vmem:[#allocation4 + $0x58] sm:$0xff] %vm307, 0.0
      %422 = vst.msk [vmem:[#allocation4 + $0x60] sm:$0xff] %vm307, 0.0
      %423 = vst.msk [vmem:[#allocation4 + $0x68] sm:$0xff] %vm307, 0.0
      %424 = vst.msk [vmem:[#allocation4 + $0x70] sm:$0xff] %vm307, 0.0
      %425 = vst.msk [vmem:[#allocation4 + $0x78] sm:$0xff] %vm307, 0.0
      %426 = vst.msk [vmem:[#allocation4 + $0x80] sm:$0xff] %vm307, 0.0
      %427 = vst.msk [vmem:[#allocation4 + $0x88] sm:$0xff] %vm307, 0.0
      %428 = vst.msk [vmem:[#allocation4 + $0x90] sm:$0xff] %vm307, 0.0
      %429 = vst.msk [vmem:[#allocation4 + $0x98] sm:$0xff] %vm307, 0.0
      %430 = vst.msk [vmem:[#allocation4 + $0xa0] sm:$0xff] %vm307, 0.0
      %431 = vst.msk [vmem:[#allocation4 + $0xa8] sm:$0xff] %vm307, 0.0
      %432 = vst.msk [vmem:[#allocation4 + $0xb0] sm:$0xff] %vm307, 0.0
      %433 = vst.msk [vmem:[#allocation4 + $0xb8] sm:$0xff] %vm307, 0.0
      %434 = vst.msk [vmem:[#allocation4 + $0xc0] sm:$0xff] %vm307, 0.0
      %435 = vst.msk [vmem:[#allocation4 + $0xc8] sm:$0xff] %vm307, 0.0
      %436 = vst.msk [vmem:[#allocation4 + $0xd0] sm:$0xff] %vm307, 0.0
      %437 = vst.msk [vmem:[#allocation4 + $0xd8] sm:$0xff] %vm307, 0.0
      %438 = vst.msk [vmem:[#allocation4 + $0xe0] sm:$0xff] %vm307, 0.0
      %439 = vst.msk [vmem:[#allocation4 + $0xe8] sm:$0xff] %vm307, 0.0
      %v440 = vld [vmem:[%s300] sm:$0xf]
      %v441 = vld [vmem:[%s300 + $0x4] sm:$0xf]
      %v442 = vld [vmem:[%s300 + $0x8] sm:$0xf]
      %v443 = vld [vmem:[%s300 + $0xc] sm:$0xf]
      %v444 = vld [vmem:[%s300 + $0x10] sm:$0xf]
      %v445 = vld [vmem:[%s300 + $0x14] sm:$0xf]
      %v446 = vld [vmem:[%s300 + $0x18] sm:$0xf]
      %v447 = vld [vmem:[%s300 + $0x1c] sm:$0xf]
      %v448 = vld [vmem:[%s300 + $0x20] sm:$0xf]
      %v449 = vld [vmem:[%s300 + $0x24] sm:$0xf]
      %v450 = vld [vmem:[%s300 + $0x28] sm:$0xf]
      %v451 = vld [vmem:[%s300 + $0x2c] sm:$0xf]
      %v452 = vld [vmem:[%s300 + $0x30] sm:$0xf]
      %v453 = vld [vmem:[%s300 + $0x34] sm:$0xf]
      %v454 = vld [vmem:[%s300 + $0x38] sm:$0xf]
      %v455 = vld [vmem:[%s300 + $0x3c] sm:$0xf]
      %v456 = vld [vmem:[%s300 + $0x40] sm:$0xf]
      %v457 = vld [vmem:[%s300 + $0x44] sm:$0xf]
      %v458 = vld [vmem:[%s300 + $0x48] sm:$0xf]
      %v459 = vld [vmem:[%s300 + $0x4c] sm:$0xf]
      %v460 = vld [vmem:[%s300 + $0x50] sm:$0xf]
      %v461 = vld [vmem:[%s300 + $0x54] sm:$0xf]
      %v462 = vld [vmem:[%s300 + $0x58] sm:$0xf]
      %v463 = vld [vmem:[%s300 + $0x5c] sm:$0xf]
      %v464 = vld [vmem:[%s300 + $0x60] sm:$0xf]
      %v465 = vld [vmem:[%s300 + $0x64] sm:$0xf]
      %v466 = vld [vmem:[%s300 + $0x68] sm:$0xf]
      %v467 = vld [vmem:[%s300 + $0x6c] sm:$0xf]
      %v468 = vld [vmem:[%s300 + $0x70] sm:$0xf]
      %v469 = vld [vmem:[%s300 + $0x74] sm:$0xf]
      %v470 = vld [vmem:[%s300 + $0x78] sm:$0xf]
      %v471 = vld [vmem:[%s300 + $0x7c] sm:$0xf]
      %v472 = vld [vmem:[%s1] sm:$0xf]
      %v473 = vld [vmem:[%s1 + $0x4] sm:$0xf]
      %v474 = vld [vmem:[%s1 + $0x8] sm:$0xf]
      %v475 = vld [vmem:[%s1 + $0xc] sm:$0xf]
      %v476 = vld [vmem:[%s1 + $0x10] sm:$0xf]
      %v477 = vld [vmem:[%s1 + $0x14] sm:$0xf]
      %v478 = vld [vmem:[%s1 + $0x18] sm:$0xf]
      %v479 = vld [vmem:[%s1 + $0x1c] sm:$0xf]
      %v480 = vld [vmem:[%s2] sm:$0x1]
      %v482 = vlaneseq
      %v483 = vshrl.u32 %v482, 7
      %v484 = vsub.s32 0, %v483
      %v485 = vrot.slane %v480, %v484
      %v519 = vunpack.c.l.b16 %v440
      %v520 = vunpack.c.l.b16 %v441
      %v521 = vunpack.c.l.b16 %v442
      %v522 = vunpack.c.l.b16 %v443
      %v523 = vunpack.c.l.b16 %v444
      %v524 = vunpack.c.l.b16 %v445
      %v525 = vunpack.c.l.b16 %v446
      %v526 = vunpack.c.l.b16 %v447
      %v527 = vunpack.c.l.b16 %v448
      %v528 = vunpack.c.l.b16 %v449
      %v529 = vunpack.c.l.b16 %v450
      %v530 = vunpack.c.l.b16 %v451
      %v531 = vunpack.c.l.b16 %v452
      %v532 = vunpack.c.l.b16 %v453
      %v533 = vunpack.c.l.b16 %v454
      %v534 = vunpack.c.l.b16 %v455
      %v535 = vunpack.c.l.b16 %v456
      %v536 = vunpack.c.l.b16 %v457
      %v537 = vunpack.c.l.b16 %v458
      %v538 = vunpack.c.l.b16 %v459
      %v539 = vunpack.c.l.b16 %v460
      %v540 = vunpack.c.l.b16 %v461
      %v541 = vunpack.c.l.b16 %v462
      %v542 = vunpack.c.l.b16 %v463
      %v543 = vunpack.c.l.b16 %v464
      %v544 = vunpack.c.l.b16 %v465
      %v545 = vunpack.c.l.b16 %v466
      %v546 = vunpack.c.l.b16 %v467
      %v547 = vunpack.c.l.b16 %v468
      %v548 = vunpack.c.l.b16 %v469
      %v549 = vunpack.c.l.b16 %v470
      %v550 = vunpack.c.l.b16 %v471
      %v551 = vpack.c.b16 %v520, %v519
      %v552 = vpack.c.b16 %v522, %v521
      %v553 = vpack.c.b16 %v524, %v523
      %v554 = vpack.c.b16 %v526, %v525
      %v555 = vpack.c.b16 %v528, %v527
      %v556 = vpack.c.b16 %v530, %v529
      %v557 = vpack.c.b16 %v532, %v531
      %v558 = vpack.c.b16 %v534, %v533
      %v559 = vpack.c.b16 %v536, %v535
      %v560 = vpack.c.b16 %v538, %v537
      %v561 = vpack.c.b16 %v540, %v539
      %v562 = vpack.c.b16 %v542, %v541
      %v563 = vpack.c.b16 %v544, %v543
      %v564 = vpack.c.b16 %v546, %v545
      %v565 = vpack.c.b16 %v548, %v547
      %v566 = vpack.c.b16 %v550, %v549
      %v575 = vunpack.c.l.b16 %v472
      %v576 = vunpack.c.l.b16 %v473
      %v577 = vunpack.c.l.b16 %v474
      %v578 = vunpack.c.l.b16 %v475
      %v579 = vunpack.c.l.b16 %v476
      %v580 = vunpack.c.l.b16 %v477
      %v581 = vunpack.c.l.b16 %v478
      %v582 = vunpack.c.l.b16 %v479
      %v583 = vpack.c.b16 %v576, %v575
      %v584 = vpack.c.b16 %v578, %v577
      %v585 = vpack.c.b16 %v580, %v579
      %v586 = vpack.c.b16 %v582, %v581
      %v592 = vsel %vm307, %v551, 0
      %v595 = vsel %vm307, %v552, 0
      %v598 = vsel %vm307, %v553, 0
      %v601 = vsel %vm307, %v554, 0
      %v604 = vsel %vm307, %v555, 0
      %v607 = vsel %vm307, %v556, 0
      %v610 = vsel %vm307, %v557, 0
      %v613 = vsel %vm307, %v558, 0
      %v616 = vsel %vm307, %v559, 0
      %v619 = vsel %vm307, %v560, 0
      %v622 = vsel %vm307, %v561, 0
      %v625 = vsel %vm307, %v562, 0
      %v628 = vsel %vm307, %v563, 0
      %v631 = vsel %vm307, %v564, 0
      %v634 = vsel %vm307, %v565, 0
      %v637 = vsel %vm307, %v566, 0
      %639 = vmatprep.subr.bf16.mxu0 0
      %640 = vmatpush1.bf16.msra.mxu0 0
      %641 = vmatprep.subr.bf16.mxu0 0
      %642 = vmatpush1.bf16.msra.mxu0 0
      %643 = vmatprep.subr.bf16.mxu0 0
      %644 = vmatpush1.bf16.msra.mxu0 0
      %645 = vmatprep.subr.bf16.mxu0 0
      %646 = vmatpush1.bf16.msra.mxu0 0
      %647 = vmatprep.subr.bf16.mxu0 0
      %648 = vmatpush1.bf16.msra.mxu0 %v586
      %649 = vmatprep.subr.bf16.mxu0 0
      %650 = vmatpush1.bf16.msra.mxu0 %v585
      %651 = vmatprep.subr.bf16.mxu0 0
      %652 = vmatpush1.bf16.msra.mxu0 %v584
      %653 = vmatprep.subr.bf16.mxu0 0
      %654 = vmatpush1.bf16.msra.mxu0 %v583
      %655 = vmatprep.subr.bf16.mxu0 0
      %656 = vmatpush2.bf16.msra.mxu0 0
      %657 = vmatprep.subr.bf16.mxu0 0
      %658 = vmatpush2.bf16.msra.mxu0 0
      %659 = vmatprep.subr.bf16.mxu0 0
      %660 = vmatpush2.bf16.msra.mxu0 0
      %661 = vmatprep.subr.bf16.mxu0 0
      %662 = vmatpush2.bf16.msra.mxu0 0
      %663 = vmatprep.subr.bf16.mxu0 0
      %664 = vmatpush2.bf16.msra.mxu0 0
      %665 = vmatprep.subr.bf16.mxu0 0
      %666 = vmatpush2.bf16.msra.mxu0 0
      %667 = vmatprep.subr.bf16.mxu0 0
      %668 = vmatpush2.bf16.msra.mxu0 0
      %669 = vmatprep.subr.bf16.mxu0 0
      %670 = vmatpush2.bf16.msra.mxu0 0
      %671 = vmatprep.mubr.bf16.mxu0 0
      %672 = vmatmul.mubr.bf16.gmra.mxu0 %v592
      %v673 = vpop.f32.mrf.mxu0
      %v674 = vadd.f32 %v485, %v673
      %v675 = vpop.f32.mrf.mxu0
      %v676 = vpop.f32.mrf.mxu0
      %v677 = vadd.f32 %v485, %v676
      %v678 = vpop.f32.mrf.mxu0
      %679 = vmatprep.mubr.bf16.mxu0 0
      %680 = vmatmul.mubr.bf16.gmra.mxu0 %v595
      %v681 = vpop.f32.mrf.mxu0
      %v682 = vadd.f32 %v485, %v681
      %v683 = vpop.f32.mrf.mxu0
      %v684 = vpop.f32.mrf.mxu0
      %v685 = vadd.f32 %v485, %v684
      %v686 = vpop.f32.mrf.mxu0
      %687 = vmatprep.mubr.bf16.mxu0 0
      %688 = vmatmul.mubr.bf16.gmra.mxu0 %v598
      %v689 = vpop.f32.mrf.mxu0
      %v690 = vadd.f32 %v485, %v689
      %v691 = vpop.f32.mrf.mxu0
      %v692 = vpop.f32.mrf.mxu0
      %v693 = vadd.f32 %v485, %v692
      %v694 = vpop.f32.mrf.mxu0
      %695 = vmatprep.mubr.bf16.mxu0 0
      %696 = vmatmul.mubr.bf16.gmra.mxu0 %v601
      %v697 = vpop.f32.mrf.mxu0
      %v698 = vadd.f32 %v485, %v697
      %v699 = vpop.f32.mrf.mxu0
      %v700 = vpop.f32.mrf.mxu0
      %v701 = vadd.f32 %v485, %v700
      %v702 = vpop.f32.mrf.mxu0
      %703 = vmatprep.mubr.bf16.mxu0 0
      %704 = vmatmul.mubr.bf16.gmra.mxu0 %v604
      %v705 = vpop.f32.mrf.mxu0
      %v706 = vadd.f32 %v485, %v705
      %v707 = vpop.f32.mrf.mxu0
      %v708 = vpop.f32.mrf.mxu0
      %v709 = vadd.f32 %v485, %v708
      %v710 = vpop.f32.mrf.mxu0
      %711 = vmatprep.mubr.bf16.mxu0 0
      %712 = vmatmul.mubr.bf16.gmra.mxu0 %v607
      %v713 = vpop.f32.mrf.mxu0
      %v714 = vadd.f32 %v485, %v713
      %v715 = vpop.f32.mrf.mxu0
      %v716 = vpop.f32.mrf.mxu0
      %v717 = vadd.f32 %v485, %v716
      %v718 = vpop.f32.mrf.mxu0
      %719 = vmatprep.mubr.bf16.mxu0 0
      %720 = vmatmul.mubr.bf16.gmra.mxu0 %v610
      %v721 = vpop.f32.mrf.mxu0
      %v722 = vadd.f32 %v485, %v721
      %v723 = vpop.f32.mrf.mxu0
      %v724 = vpop.f32.mrf.mxu0
      %v725 = vadd.f32 %v485, %v724
      %v726 = vpop.f32.mrf.mxu0
      %727 = vmatprep.mubr.bf16.mxu0 0
      %728 = vmatmul.mubr.bf16.gmra.mxu0 %v613
      %v729 = vpop.f32.mrf.mxu0
      %v730 = vadd.f32 %v485, %v729
      %v731 = vpop.f32.mrf.mxu0
      %v732 = vpop.f32.mrf.mxu0
      %v733 = vadd.f32 %v485, %v732
      %v734 = vpop.f32.mrf.mxu0
      %735 = vmatprep.mubr.bf16.mxu0 0
      %736 = vmatmul.mubr.bf16.gmra.mxu0 %v616
      %v737 = vpop.f32.mrf.mxu0
      %v738 = vadd.f32 %v485, %v737
      %v739 = vpop.f32.mrf.mxu0
      %v740 = vpop.f32.mrf.mxu0
      %v741 = vadd.f32 %v485, %v740
      %v742 = vpop.f32.mrf.mxu0
      %743 = vmatprep.mubr.bf16.mxu0 0
      %744 = vmatmul.mubr.bf16.gmra.mxu0 %v619
      %v745 = vpop.f32.mrf.mxu0
      %v746 = vadd.f32 %v485, %v745
      %v747 = vpop.f32.mrf.mxu0
      %v748 = vpop.f32.mrf.mxu0
      %v749 = vadd.f32 %v485, %v748
      %v750 = vpop.f32.mrf.mxu0
      %751 = vmatprep.mubr.bf16.mxu0 0
      %752 = vmatmul.mubr.bf16.gmra.mxu0 %v622
      %v753 = vpop.f32.mrf.mxu0
      %v754 = vadd.f32 %v485, %v753
      %v755 = vpop.f32.mrf.mxu0
      %v756 = vpop.f32.mrf.mxu0
      %v757 = vadd.f32 %v485, %v756
      %v758 = vpop.f32.mrf.mxu0
      %759 = vmatprep.mubr.bf16.mxu0 0
      %760 = vmatmul.mubr.bf16.gmra.mxu0 %v625
      %v761 = vpop.f32.mrf.mxu0
      %v762 = vadd.f32 %v485, %v761
      %v763 = vpop.f32.mrf.mxu0
      %v764 = vpop.f32.mrf.mxu0
      %v765 = vadd.f32 %v485, %v764
      %v766 = vpop.f32.mrf.mxu0
      %767 = vmatprep.mubr.bf16.mxu0 0
      %768 = vmatmul.mubr.bf16.gmra.mxu0 %v628
      %v769 = vpop.f32.mrf.mxu0
      %v770 = vadd.f32 %v485, %v769
      %v771 = vpop.f32.mrf.mxu0
      %v772 = vpop.f32.mrf.mxu0
      %v773 = vadd.f32 %v485, %v772
      %v774 = vpop.f32.mrf.mxu0
      %775 = vmatprep.mubr.bf16.mxu0 0
      %776 = vmatmul.mubr.bf16.gmra.mxu0 %v631
      %v777 = vpop.f32.mrf.mxu0
      %v778 = vadd.f32 %v485, %v777
      %v779 = vpop.f32.mrf.mxu0
      %v780 = vpop.f32.mrf.mxu0
      %v781 = vadd.f32 %v485, %v780
      %v782 = vpop.f32.mrf.mxu0
      %783 = vmatprep.mubr.bf16.mxu0 0
      %784 = vmatmul.mubr.bf16.gmra.mxu0 %v634
      %v785 = vpop.f32.mrf.mxu0
      %v786 = vadd.f32 %v485, %v785
      %v787 = vpop.f32.mrf.mxu0
      %v788 = vpop.f32.mrf.mxu0
      %v789 = vadd.f32 %v485, %v788
      %v790 = vpop.f32.mrf.mxu0
      %791 = vmatprep.mubr.bf16.mxu0 0
      %792 = vmatmul.mubr.bf16.gmra.mxu0 %v637
      %v793 = vpop.f32.mrf.mxu0
      %v794 = vadd.f32 %v485, %v793
      %v795 = vpop.f32.mrf.mxu0
      %v796 = vpop.f32.mrf.mxu0
      %v797 = vadd.f32 %v485, %v796
      %v798 = vpop.f32.mrf.mxu0
      %799 = vdwg.mxu0
      %v800 = vmax.f32 %v674, 0.0
      %v801 = vmax.f32 %v677, 0.0
      %v802 = vmax.f32 %v682, 0.0
      %v803 = vmax.f32 %v685, 0.0
      %v804 = vmax.f32 %v690, 0.0
      %v805 = vmax.f32 %v693, 0.0
      %v806 = vmax.f32 %v698, 0.0
      %v807 = vmax.f32 %v701, 0.0
      %v808 = vmax.f32 %v706, 0.0
      %v809 = vmax.f32 %v709, 0.0
      %v810 = vmax.f32 %v714, 0.0
      %v811 = vmax.f32 %v717, 0.0
      %v812 = vmax.f32 %v722, 0.0
      %v813 = vmax.f32 %v725, 0.0
      %v814 = vmax.f32 %v730, 0.0
      %v815 = vmax.f32 %v733, 0.0
      %v816 = vmax.f32 %v738, 0.0
      %v817 = vmax.f32 %v741, 0.0
      %v818 = vmax.f32 %v746, 0.0
      %v819 = vmax.f32 %v749, 0.0
      %v820 = vmax.f32 %v754, 0.0
      %v821 = vmax.f32 %v757, 0.0
      %v822 = vmax.f32 %v762, 0.0
      %v823 = vmax.f32 %v765, 0.0
      %v824 = vmax.f32 %v770, 0.0
      %v825 = vmax.f32 %v773, 0.0
      %v826 = vmax.f32 %v778, 0.0
      %v827 = vmax.f32 %v781, 0.0
      %v828 = vmax.f32 %v786, 0.0
      %v829 = vmax.f32 %v789, 0.0
      %v830 = vmax.f32 %v794, 0.0
      %v831 = vmax.f32 %v797, 0.0
      %s832 = scalar_lea.vmem [#allocation2], 32
      %833 = vst.msk [vmem:[%s832 + $0x8] sm:$0xff] %vm307, %v800
      %834 = vst.msk [vmem:[%s832 + $0x10] sm:$0xff] %vm307, %v801
      %835 = vst.msk [vmem:[%s832 + $0x28] sm:$0xff] %vm307, %v802
      %836 = vst.msk [vmem:[%s832 + $0x30] sm:$0xff] %vm307, %v803
      %837 = vst.msk [vmem:[%s832 + $0x48] sm:$0xff] %vm307, %v804
      %838 = vst.msk [vmem:[%s832 + $0x50] sm:$0xff] %vm307, %v805
      %839 = vst.msk [vmem:[%s832 + $0x68] sm:$0xff] %vm307, %v806
      %840 = vst.msk [vmem:[%s832 + $0x70] sm:$0xff] %vm307, %v807
      %841 = vst.msk [vmem:[%s832 + $0x88] sm:$0xff] %vm307, %v808
      %842 = vst.msk [vmem:[%s832 + $0x90] sm:$0xff] %vm307, %v809
      %843 = vst.msk [vmem:[%s832 + $0xa8] sm:$0xff] %vm307, %v810
      %844 = vst.msk [vmem:[%s832 + $0xb0] sm:$0xff] %vm307, %v811
      %845 = vst.msk [vmem:[%s832 + $0xc8] sm:$0xff] %vm307, %v812
      %846 = vst.msk [vmem:[%s832 + $0xd0] sm:$0xff] %vm307, %v813
      %847 = vst.msk [vmem:[%s832 + $0xe8] sm:$0xff] %vm307, %v814
      %848 = vst.msk [vmem:[%s832 + $0xf0] sm:$0xff] %vm307, %v815
      %849 = vst.msk [vmem:[%s832 + $0x108] sm:$0xff] %vm307, %v816
      %850 = vst.msk [vmem:[%s832 + $0x110] sm:$0xff] %vm307, %v817
      %851 = vst.msk [vmem:[%s832 + $0x128] sm:$0xff] %vm307, %v818
      %852 = vst.msk [vmem:[%s832 + $0x130] sm:$0xff] %vm307, %v819
      %853 = vst.msk [vmem:[%s832 + $0x148] sm:$0xff] %vm307, %v820
      %854 = vst.msk [vmem:[%s832 + $0x150] sm:$0xff] %vm307, %v821
      %855 = vst.msk [vmem:[%s832 + $0x168] sm:$0xff] %vm307, %v822
      %856 = vst.msk [vmem:[%s832 + $0x170] sm:$0xff] %vm307, %v823
      %857 = vst.msk [vmem:[%s832 + $0x188] sm:$0xff] %vm307, %v824
      %858 = vst.msk [vmem:[%s832 + $0x190] sm:$0xff] %vm307, %v825
      %859 = vst.msk [vmem:[%s832 + $0x1a8] sm:$0xff] %vm307, %v826
      %860 = vst.msk [vmem:[%s832 + $0x1b0] sm:$0xff] %vm307, %v827
      %861 = vst.msk [vmem:[%s832 + $0x1c8] sm:$0xff] %vm307, %v828
      %862 = vst.msk [vmem:[%s832 + $0x1d0] sm:$0xff] %vm307, %v829
      %863 = vst.msk [vmem:[%s832 + $0x1e8] sm:$0xff] %vm307, %v830
      %864 = vst.msk [vmem:[%s832 + $0x1f0] sm:$0xff] %vm307, %v831
      %v865 = vld [vmem:[#allocation2 + $0x7] sm:$0xff]
      %v866 = vld [vmem:[#allocation2 + $0xf] sm:$0xff]
      %v867 = vld [vmem:[#allocation2 + $0x27] sm:$0xff]
      %v868 = vld [vmem:[#allocation2 + $0x2f] sm:$0xff]
      %v869 = vld [vmem:[#allocation2 + $0x47] sm:$0xff]
      %v870 = vld [vmem:[#allocation2 + $0x4f] sm:$0xff]
      %v871 = vld [vmem:[#allocation2 + $0x67] sm:$0xff]
      %v872 = vld [vmem:[#allocation2 + $0x6f] sm:$0xff]
      %v873 = vld [vmem:[#allocation2 + $0x87] sm:$0xff]
      %v874 = vld [vmem:[#allocation2 + $0x8f] sm:$0xff]
      %v875 = vld [vmem:[#allocation2 + $0xa7] sm:$0xff]
      %v876 = vld [vmem:[#allocation2 + $0xaf] sm:$0xff]
      %v877 = vld [vmem:[#allocation2 + $0xc7] sm:$0xff]
      %v878 = vld [vmem:[#allocation2 + $0xcf] sm:$0xff]
      %v879 = vld [vmem:[#allocation2 + $0xe7] sm:$0xff]
      %v880 = vld [vmem:[#allocation2 + $0xef] sm:$0xff]
      %v881 = vld [vmem:[#allocation2 + $0x107] sm:$0xff]
      %v882 = vld [vmem:[#allocation2 + $0x10f] sm:$0xff]
      %v883 = vld [vmem:[#allocation2 + $0x127] sm:$0xff]
      %v884 = vld [vmem:[#allocation2 + $0x12f] sm:$0xff]
      %v885 = vld [vmem:[#allocation2 + $0x147] sm:$0xff]
      %v886 = vld [vmem:[#allocation2 + $0x14f] sm:$0xff]
      %v887 = vld [vmem:[#allocation2 + $0x167] sm:$0xff]
      %v888 = vld [vmem:[#allocation2 + $0x16f] sm:$0xff]
      %v889 = vld [vmem:[#allocation2 + $0x187] sm:$0xff]
      %v890 = vld [vmem:[#allocation2 + $0x18f] sm:$0xff]
      %v891 = vld [vmem:[#allocation2 + $0x1a7] sm:$0xff]
      %v892 = vld [vmem:[#allocation2 + $0x1af] sm:$0xff]
      %v893 = vld [vmem:[#allocation2 + $0x1c7] sm:$0xff]
      %v894 = vld [vmem:[#allocation2 + $0x1cf] sm:$0xff]
      %v895 = vld [vmem:[#allocation2 + $0x1e7] sm:$0xff]
      %v896 = vld [vmem:[#allocation2 + $0x1ef] sm:$0xff]
      %v897 = vld [vmem:[#allocation2 + $0x8] sm:$0xff]
      %v898 = vld [vmem:[#allocation2 + $0x10] sm:$0xff]
      %v899 = vld [vmem:[#allocation2 + $0x28] sm:$0xff]
      %v900 = vld [vmem:[#allocation2 + $0x30] sm:$0xff]
      %v901 = vld [vmem:[#allocation2 + $0x48] sm:$0xff]
      %v902 = vld [vmem:[#allocation2 + $0x50] sm:$0xff]
      %v903 = vld [vmem:[#allocation2 + $0x68] sm:$0xff]
      %v904 = vld [vmem:[#allocation2 + $0x70] sm:$0xff]
      %v905 = vld [vmem:[#allocation2 + $0x88] sm:$0xff]
      %v906 = vld [vmem:[#allocation2 + $0x90] sm:$0xff]
      %v907 = vld [vmem:[#allocation2 + $0xa8] sm:$0xff]
      %v908 = vld [vmem:[#allocation2 + $0xb0] sm:$0xff]
      %v909 = vld [vmem:[#allocation2 + $0xc8] sm:$0xff]
      %v910 = vld [vmem:[#allocation2 + $0xd0] sm:$0xff]
      %v911 = vld [vmem:[#allocation2 + $0xe8] sm:$0xff]
      %v912 = vld [vmem:[#allocation2 + $0xf0] sm:$0xff]
      %v913 = vld [vmem:[#allocation2 + $0x108] sm:$0xff]
      %v914 = vld [vmem:[#allocation2 + $0x110] sm:$0xff]
      %v915 = vld [vmem:[#allocation2 + $0x128] sm:$0xff]
      %v916 = vld [vmem:[#allocation2 + $0x130] sm:$0xff]
      %v917 = vld [vmem:[#allocation2 + $0x148] sm:$0xff]
      %v918 = vld [vmem:[#allocation2 + $0x150] sm:$0xff]
      %v919 = vld [vmem:[#allocation2 + $0x168] sm:$0xff]
      %v920 = vld [vmem:[#allocation2 + $0x170] sm:$0xff]
      %v921 = vld [vmem:[#allocation2 + $0x188] sm:$0xff]
      %v922 = vld [vmem:[#allocation2 + $0x190] sm:$0xff]
      %v923 = vld [vmem:[#allocation2 + $0x1a8] sm:$0xff]
      %v924 = vld [vmem:[#allocation2 + $0x1b0] sm:$0xff]
      %v925 = vld [vmem:[#allocation2 + $0x1c8] sm:$0xff]
      %v926 = vld [vmem:[#allocation2 + $0x1d0] sm:$0xff]
      %v927 = vld [vmem:[#allocation2 + $0x1e8] sm:$0xff]
      %v928 = vld [vmem:[#allocation2 + $0x1f0] sm:$0xff]
      %v929 = vld [vmem:[#allocation2 + $0x9] sm:$0xff]
      %v930 = vld [vmem:[#allocation2 + $0x11] sm:$0xff]
      %v931 = vld [vmem:[#allocation2 + $0x29] sm:$0xff]
      %v932 = vld [vmem:[#allocation2 + $0x31] sm:$0xff]
      %v933 = vld [vmem:[#allocation2 + $0x49] sm:$0xff]
      %v934 = vld [vmem:[#allocation2 + $0x51] sm:$0xff]
      %v935 = vld [vmem:[#allocation2 + $0x69] sm:$0xff]
      %v936 = vld [vmem:[#allocation2 + $0x71] sm:$0xff]
      %v937 = vld [vmem:[#allocation2 + $0x89] sm:$0xff]
      %v938 = vld [vmem:[#allocation2 + $0x91] sm:$0xff]
      %v939 = vld [vmem:[#allocation2 + $0xa9] sm:$0xff]
      %v940 = vld [vmem:[#allocation2 + $0xb1] sm:$0xff]
      %v941 = vld [vmem:[#allocation2 + $0xc9] sm:$0xff]
      %v942 = vld [vmem:[#allocation2 + $0xd1] sm:$0xff]
      %v943 = vld [vmem:[#allocation2 + $0xe9] sm:$0xff]
      %v944 = vld [vmem:[#allocation2 + $0xf1] sm:$0xff]
      %v945 = vld [vmem:[#allocation2 + $0x109] sm:$0xff]
      %v946 = vld [vmem:[#allocation2 + $0x111] sm:$0xff]
      %v947 = vld [vmem:[#allocation2 + $0x129] sm:$0xff]
      %v948 = vld [vmem:[#allocation2 + $0x131] sm:$0xff]
      %v949 = vld [vmem:[#allocation2 + $0x149] sm:$0xff]
      %v950 = vld [vmem:[#allocation2 + $0x151] sm:$0xff]
      %v951 = vld [vmem:[#allocation2 + $0x169] sm:$0xff]
      %v952 = vld [vmem:[#allocation2 + $0x171] sm:$0xff]
      %v953 = vld [vmem:[#allocation2 + $0x189] sm:$0xff]
      %v954 = vld [vmem:[#allocation2 + $0x191] sm:$0xff]
      %v955 = vld [vmem:[#allocation2 + $0x1a9] sm:$0xff]
      %v956 = vld [vmem:[#allocation2 + $0x1b1] sm:$0xff]
      %v957 = vld [vmem:[#allocation2 + $0x1c9] sm:$0xff]
      %v958 = vld [vmem:[#allocation2 + $0x1d1] sm:$0xff]
      %v959 = vld [vmem:[#allocation2 + $0x1e9] sm:$0xff]
      %v960 = vld [vmem:[#allocation2 + $0x1f1] sm:$0xff]
      %v961 = vld [vmem:[%s832 + $0x7] sm:$0xff]
      %v962 = vld [vmem:[%s832 + $0xf] sm:$0xff]
      %v963 = vld [vmem:[%s832 + $0x27] sm:$0xff]
      %v964 = vld [vmem:[%s832 + $0x2f] sm:$0xff]
      %v965 = vld [vmem:[%s832 + $0x47] sm:$0xff]
      %v966 = vld [vmem:[%s832 + $0x4f] sm:$0xff]
      %v967 = vld [vmem:[%s832 + $0x67] sm:$0xff]
      %v968 = vld [vmem:[%s832 + $0x6f] sm:$0xff]
      %v969 = vld [vmem:[%s832 + $0x87] sm:$0xff]
      %v970 = vld [vmem:[%s832 + $0x8f] sm:$0xff]
      %v971 = vld [vmem:[%s832 + $0xa7] sm:$0xff]
      %v972 = vld [vmem:[%s832 + $0xaf] sm:$0xff]
      %v973 = vld [vmem:[%s832 + $0xc7] sm:$0xff]
      %v974 = vld [vmem:[%s832 + $0xcf] sm:$0xff]
      %v975 = vld [vmem:[%s832 + $0xe7] sm:$0xff]
      %v976 = vld [vmem:[%s832 + $0xef] sm:$0xff]
      %v977 = vld [vmem:[%s832 + $0x107] sm:$0xff]
      %v978 = vld [vmem:[%s832 + $0x10f] sm:$0xff]
      %v979 = vld [vmem:[%s832 + $0x127] sm:$0xff]
      %v980 = vld [vmem:[%s832 + $0x12f] sm:$0xff]
      %v981 = vld [vmem:[%s832 + $0x147] sm:$0xff]
      %v982 = vld [vmem:[%s832 + $0x14f] sm:$0xff]
      %v983 = vld [vmem:[%s832 + $0x167] sm:$0xff]
      %v984 = vld [vmem:[%s832 + $0x16f] sm:$0xff]
      %v985 = vld [vmem:[%s832 + $0x187] sm:$0xff]
      %v986 = vld [vmem:[%s832 + $0x18f] sm:$0xff]
      %v987 = vld [vmem:[%s832 + $0x1a7] sm:$0xff]
      %v988 = vld [vmem:[%s832 + $0x1af] sm:$0xff]
      %v989 = vld [vmem:[%s832 + $0x1c7] sm:$0xff]
      %v990 = vld [vmem:[%s832 + $0x1cf] sm:$0xff]
      %v991 = vld [vmem:[%s832 + $0x1e7] sm:$0xff]
      %v992 = vld [vmem:[%s832 + $0x1ef] sm:$0xff]
      %v993 = vld [vmem:[%s832 + $0x8] sm:$0xff]
      %v994 = vld [vmem:[%s832 + $0x10] sm:$0xff]
      %v995 = vld [vmem:[%s832 + $0x28] sm:$0xff]
      %v996 = vld [vmem:[%s832 + $0x30] sm:$0xff]
      %v997 = vld [vmem:[%s832 + $0x48] sm:$0xff]
      %v998 = vld [vmem:[%s832 + $0x50] sm:$0xff]
      %v999 = vld [vmem:[%s832 + $0x68] sm:$0xff]
      %v1000 = vld [vmem:[%s832 + $0x70] sm:$0xff]
      %v1001 = vld [vmem:[%s832 + $0x88] sm:$0xff]
      %v1002 = vld [vmem:[%s832 + $0x90] sm:$0xff]
      %v1003 = vld [vmem:[%s832 + $0xa8] sm:$0xff]
      %v1004 = vld [vmem:[%s832 + $0xb0] sm:$0xff]
      %v1005 = vld [vmem:[%s832 + $0xc8] sm:$0xff]
      %v1006 = vld [vmem:[%s832 + $0xd0] sm:$0xff]
      %v1007 = vld [vmem:[%s832 + $0xe8] sm:$0xff]
      %v1008 = vld [vmem:[%s832 + $0xf0] sm:$0xff]
      %v1009 = vld [vmem:[%s832 + $0x108] sm:$0xff]
      %v1010 = vld [vmem:[%s832 + $0x110] sm:$0xff]
      %v1011 = vld [vmem:[%s832 + $0x128] sm:$0xff]
      %v1012 = vld [vmem:[%s832 + $0x130] sm:$0xff]
      %v1013 = vld [vmem:[%s832 + $0x148] sm:$0xff]
      %v1014 = vld [vmem:[%s832 + $0x150] sm:$0xff]
      %v1015 = vld [vmem:[%s832 + $0x168] sm:$0xff]
      %v1016 = vld [vmem:[%s832 + $0x170] sm:$0xff]
      %v1017 = vld [vmem:[%s832 + $0x188] sm:$0xff]
      %v1018 = vld [vmem:[%s832 + $0x190] sm:$0xff]
      %v1019 = vld [vmem:[%s832 + $0x1a8] sm:$0xff]
      %v1020 = vld [vmem:[%s832 + $0x1b0] sm:$0xff]
      %v1021 = vld [vmem:[%s832 + $0x1c8] sm:$0xff]
      %v1022 = vld [vmem:[%s832 + $0x1d0] sm:$0xff]
      %v1023 = vld [vmem:[%s832 + $0x1e8] sm:$0xff]
      %v1024 = vld [vmem:[%s832 + $0x1f0] sm:$0xff]
      %v1025 = vld [vmem:[%s832 + $0x9] sm:$0xff]
      %v1026 = vld [vmem:[%s832 + $0x11] sm:$0xff]
      %v1027 = vld [vmem:[%s832 + $0x29] sm:$0xff]
      %v1028 = vld [vmem:[%s832 + $0x31] sm:$0xff]
      %v1029 = vld [vmem:[%s832 + $0x49] sm:$0xff]
      %v1030 = vld [vmem:[%s832 + $0x51] sm:$0xff]
      %v1031 = vld [vmem:[%s832 + $0x69] sm:$0xff]
      %v1032 = vld [vmem:[%s832 + $0x71] sm:$0xff]
      %v1033 = vld [vmem:[%s832 + $0x89] sm:$0xff]
      %v1034 = vld [vmem:[%s832 + $0x91] sm:$0xff]
      %v1035 = vld [vmem:[%s832 + $0xa9] sm:$0xff]
      %v1036 = vld [vmem:[%s832 + $0xb1] sm:$0xff]
      %v1037 = vld [vmem:[%s832 + $0xc9] sm:$0xff]
      %v1038 = vld [vmem:[%s832 + $0xd1] sm:$0xff]
      %v1039 = vld [vmem:[%s832 + $0xe9] sm:$0xff]
      %v1040 = vld [vmem:[%s832 + $0xf1] sm:$0xff]
      %v1041 = vld [vmem:[%s832 + $0x109] sm:$0xff]
      %v1042 = vld [vmem:[%s832 + $0x111] sm:$0xff]
      %v1043 = vld [vmem:[%s832 + $0x129] sm:$0xff]
      %v1044 = vld [vmem:[%s832 + $0x131] sm:$0xff]
      %v1045 = vld [vmem:[%s832 + $0x149] sm:$0xff]
      %v1046 = vld [vmem:[%s832 + $0x151] sm:$0xff]
      %v1047 = vld [vmem:[%s832 + $0x169] sm:$0xff]
      %v1048 = vld [vmem:[%s832 + $0x171] sm:$0xff]
      %v1049 = vld [vmem:[%s832 + $0x189] sm:$0xff]
      %v1050 = vld [vmem:[%s832 + $0x191] sm:$0xff]
      %v1051 = vld [vmem:[%s832 + $0x1a9] sm:$0xff]
      %v1052 = vld [vmem:[%s832 + $0x1b1] sm:$0xff]
      %v1053 = vld [vmem:[%s832 + $0x1c9] sm:$0xff]
      %v1054 = vld [vmem:[%s832 + $0x1d1] sm:$0xff]
      %v1055 = vld [vmem:[%s832 + $0x1e9] sm:$0xff]
      %v1056 = vld [vmem:[%s832 + $0x1f1] sm:$0xff]
      %s1057 = scalar_lea.vmem [#allocation2], 64
      %v1058 = vld [vmem:[%s1057 + $0x7] sm:$0xff]
      %v1059 = vld [vmem:[%s1057 + $0xf] sm:$0xff]
      %v1060 = vld [vmem:[%s1057 + $0x27] sm:$0xff]
      %v1061 = vld [vmem:[%s1057 + $0x2f] sm:$0xff]
      %v1062 = vld [vmem:[%s1057 + $0x47] sm:$0xff]
      %v1063 = vld [vmem:[%s1057 + $0x4f] sm:$0xff]
      %v1064 = vld [vmem:[%s1057 + $0x67] sm:$0xff]
      %v1065 = vld [vmem:[%s1057 + $0x6f] sm:$0xff]
      %v1066 = vld [vmem:[%s1057 + $0x87] sm:$0xff]
      %v1067 = vld [vmem:[%s1057 + $0x8f] sm:$0xff]
      %v1068 = vld [vmem:[%s1057 + $0xa7] sm:$0xff]
      %v1069 = vld [vmem:[%s1057 + $0xaf] sm:$0xff]
      %v1070 = vld [vmem:[%s1057 + $0xc7] sm:$0xff]
      %v1071 = vld [vmem:[%s1057 + $0xcf] sm:$0xff]
      %v1072 = vld [vmem:[%s1057 + $0xe7] sm:$0xff]
      %v1073 = vld [vmem:[%s1057 + $0xef] sm:$0xff]
      %v1074 = vld [vmem:[%s1057 + $0x107] sm:$0xff]
      %v1075 = vld [vmem:[%s1057 + $0x10f] sm:$0xff]
      %v1076 = vld [vmem:[%s1057 + $0x127] sm:$0xff]
      %v1077 = vld [vmem:[%s1057 + $0x12f] sm:$0xff]
      %v1078 = vld [vmem:[%s1057 + $0x147] sm:$0xff]
      %v1079 = vld [vmem:[%s1057 + $0x14f] sm:$0xff]
      %v1080 = vld [vmem:[%s1057 + $0x167] sm:$0xff]
      %v1081 = vld [vmem:[%s1057 + $0x16f] sm:$0xff]
      %v1082 = vld [vmem:[%s1057 + $0x187] sm:$0xff]
      %v1083 = vld [vmem:[%s1057 + $0x18f] sm:$0xff]
      %v1084 = vld [vmem:[%s1057 + $0x1a7] sm:$0xff]
      %v1085 = vld [vmem:[%s1057 + $0x1af] sm:$0xff]
      %v1086 = vld [vmem:[%s1057 + $0x1c7] sm:$0xff]
      %v1087 = vld [vmem:[%s1057 + $0x1cf] sm:$0xff]
      %v1088 = vld [vmem:[%s1057 + $0x1e7] sm:$0xff]
      %v1089 = vld [vmem:[%s1057 + $0x1ef] sm:$0xff]
      %v1090 = vld [vmem:[%s1057 + $0x8] sm:$0xff]
      %v1091 = vld [vmem:[%s1057 + $0x10] sm:$0xff]
      %v1092 = vld [vmem:[%s1057 + $0x28] sm:$0xff]
      %v1093 = vld [vmem:[%s1057 + $0x30] sm:$0xff]
      %v1094 = vld [vmem:[%s1057 + $0x48] sm:$0xff]
      %v1095 = vld [vmem:[%s1057 + $0x50] sm:$0xff]
      %v1096 = vld [vmem:[%s1057 + $0x68] sm:$0xff]
      %v1097 = vld [vmem:[%s1057 + $0x70] sm:$0xff]
      %v1098 = vld [vmem:[%s1057 + $0x88] sm:$0xff]
      %v1099 = vld [vmem:[%s1057 + $0x90] sm:$0xff]
      %v1100 = vld [vmem:[%s1057 + $0xa8] sm:$0xff]
      %v1101 = vld [vmem:[%s1057 + $0xb0] sm:$0xff]
      %v1102 = vld [vmem:[%s1057 + $0xc8] sm:$0xff]
      %v1103 = vld [vmem:[%s1057 + $0xd0] sm:$0xff]
      %v1104 = vld [vmem:[%s1057 + $0xe8] sm:$0xff]
      %v1105 = vld [vmem:[%s1057 + $0xf0] sm:$0xff]
      %v1106 = vld [vmem:[%s1057 + $0x108] sm:$0xff]
      %v1107 = vld [vmem:[%s1057 + $0x110] sm:$0xff]
      %v1108 = vld [vmem:[%s1057 + $0x128] sm:$0xff]
      %v1109 = vld [vmem:[%s1057 + $0x130] sm:$0xff]
      %v1110 = vld [vmem:[%s1057 + $0x148] sm:$0xff]
      %v1111 = vld [vmem:[%s1057 + $0x150] sm:$0xff]
      %v1112 = vld [vmem:[%s1057 + $0x168] sm:$0xff]
      %v1113 = vld [vmem:[%s1057 + $0x170] sm:$0xff]
      %v1114 = vld [vmem:[%s1057 + $0x188] sm:$0xff]
      %v1115 = vld [vmem:[%s1057 + $0x190] sm:$0xff]
      %v1116 = vld [vmem:[%s1057 + $0x1a8] sm:$0xff]
      %v1117 = vld [vmem:[%s1057 + $0x1b0] sm:$0xff]
      %v1118 = vld [vmem:[%s1057 + $0x1c8] sm:$0xff]
      %v1119 = vld [vmem:[%s1057 + $0x1d0] sm:$0xff]
      %v1120 = vld [vmem:[%s1057 + $0x1e8] sm:$0xff]
      %v1121 = vld [vmem:[%s1057 + $0x1f0] sm:$0xff]
      %v1122 = vld [vmem:[%s1057 + $0x9] sm:$0xff]
      %v1123 = vld [vmem:[%s1057 + $0x11] sm:$0xff]
      %v1124 = vld [vmem:[%s1057 + $0x29] sm:$0xff]
      %v1125 = vld [vmem:[%s1057 + $0x31] sm:$0xff]
      %v1126 = vld [vmem:[%s1057 + $0x49] sm:$0xff]
      %v1127 = vld [vmem:[%s1057 + $0x51] sm:$0xff]
      %v1128 = vld [vmem:[%s1057 + $0x69] sm:$0xff]
      %v1129 = vld [vmem:[%s1057 + $0x71] sm:$0xff]
      %v1130 = vld [vmem:[%s1057 + $0x89] sm:$0xff]
      %v1131 = vld [vmem:[%s1057 + $0x91] sm:$0xff]
      %v1132 = vld [vmem:[%s1057 + $0xa9] sm:$0xff]
      %v1133 = vld [vmem:[%s1057 + $0xb1] sm:$0xff]
      %v1134 = vld [vmem:[%s1057 + $0xc9] sm:$0xff]
      %v1135 = vld [vmem:[%s1057 + $0xd1] sm:$0xff]
      %v1136 = vld [vmem:[%s1057 + $0xe9] sm:$0xff]
      %v1137 = vld [vmem:[%s1057 + $0xf1] sm:$0xff]
      %v1138 = vld [vmem:[%s1057 + $0x109] sm:$0xff]
      %v1139 = vld [vmem:[%s1057 + $0x111] sm:$0xff]
      %v1140 = vld [vmem:[%s1057 + $0x129] sm:$0xff]
      %v1141 = vld [vmem:[%s1057 + $0x131] sm:$0xff]
      %v1142 = vld [vmem:[%s1057 + $0x149] sm:$0xff]
      %v1143 = vld [vmem:[%s1057 + $0x151] sm:$0xff]
      %v1144 = vld [vmem:[%s1057 + $0x169] sm:$0xff]
      %v1145 = vld [vmem:[%s1057 + $0x171] sm:$0xff]
      %v1146 = vld [vmem:[%s1057 + $0x189] sm:$0xff]
      %v1147 = vld [vmem:[%s1057 + $0x191] sm:$0xff]
      %v1148 = vld [vmem:[%s1057 + $0x1a9] sm:$0xff]
      %v1149 = vld [vmem:[%s1057 + $0x1b1] sm:$0xff]
      %v1150 = vld [vmem:[%s1057 + $0x1c9] sm:$0xff]
      %v1151 = vld [vmem:[%s1057 + $0x1d1] sm:$0xff]
      %v1152 = vld [vmem:[%s1057 + $0x1e9] sm:$0xff]
      %v1153 = vld [vmem:[%s1057 + $0x1f1] sm:$0xff]
      %v1154 = vmax.f32 %v865, %v897
      %v1155 = vmax.f32 %v866, %v898
      %v1156 = vmax.f32 %v867, %v899
      %v1157 = vmax.f32 %v868, %v900
      %v1158 = vmax.f32 %v869, %v901
      %v1159 = vmax.f32 %v870, %v902
      %v1160 = vmax.f32 %v871, %v903
      %v1161 = vmax.f32 %v872, %v904
      %v1162 = vmax.f32 %v873, %v905
      %v1163 = vmax.f32 %v874, %v906
      %v1164 = vmax.f32 %v875, %v907
      %v1165 = vmax.f32 %v876, %v908
      %v1166 = vmax.f32 %v877, %v909
      %v1167 = vmax.f32 %v878, %v910
      %v1168 = vmax.f32 %v879, %v911
      %v1169 = vmax.f32 %v880, %v912
      %v1170 = vmax.f32 %v881, %v913
      %v1171 = vmax.f32 %v882, %v914
      %v1172 = vmax.f32 %v883, %v915
      %v1173 = vmax.f32 %v884, %v916
      %v1174 = vmax.f32 %v885, %v917
      %v1175 = vmax.f32 %v886, %v918
      %v1176 = vmax.f32 %v887, %v919
      %v1177 = vmax.f32 %v888, %v920
      %v1178 = vmax.f32 %v889, %v921
      %v1179 = vmax.f32 %v890, %v922
      %v1180 = vmax.f32 %v891, %v923
      %v1181 = vmax.f32 %v892, %v924
      %v1182 = vmax.f32 %v893, %v925
      %v1183 = vmax.f32 %v894, %v926
      %v1184 = vmax.f32 %v895, %v927
      %v1185 = vmax.f32 %v896, %v928
      %v1186 = vmax.f32 %v1154, %v929
      %v1187 = vmax.f32 %v1155, %v930
      %v1188 = vmax.f32 %v1156, %v931
      %v1189 = vmax.f32 %v1157, %v932
      %v1190 = vmax.f32 %v1158, %v933
      %v1191 = vmax.f32 %v1159, %v934
      %v1192 = vmax.f32 %v1160, %v935
      %v1193 = vmax.f32 %v1161, %v936
      %v1194 = vmax.f32 %v1162, %v937
      %v1195 = vmax.f32 %v1163, %v938
      %v1196 = vmax.f32 %v1164, %v939
      %v1197 = vmax.f32 %v1165, %v940
      %v1198 = vmax.f32 %v1166, %v941
      %v1199 = vmax.f32 %v1167, %v942
      %v1200 = vmax.f32 %v1168, %v943
      %v1201 = vmax.f32 %v1169, %v944
      %v1202 = vmax.f32 %v1170, %v945
      %v1203 = vmax.f32 %v1171, %v946
      %v1204 = vmax.f32 %v1172, %v947
      %v1205 = vmax.f32 %v1173, %v948
      %v1206 = vmax.f32 %v1174, %v949
      %v1207 = vmax.f32 %v1175, %v950
      %v1208 = vmax.f32 %v1176, %v951
      %v1209 = vmax.f32 %v1177, %v952
      %v1210 = vmax.f32 %v1178, %v953
      %v1211 = vmax.f32 %v1179, %v954
      %v1212 = vmax.f32 %v1180, %v955
      %v1213 = vmax.f32 %v1181, %v956
      %v1214 = vmax.f32 %v1182, %v957
      %v1215 = vmax.f32 %v1183, %v958
      %v1216 = vmax.f32 %v1184, %v959
      %v1217 = vmax.f32 %v1185, %v960
      %v1218 = vmax.f32 %v1186, %v961
      %v1219 = vmax.f32 %v1187, %v962
      %v1220 = vmax.f32 %v1188, %v963
      %v1221 = vmax.f32 %v1189, %v964
      %v1222 = vmax.f32 %v1190, %v965
      %v1223 = vmax.f32 %v1191, %v966
      %v1224 = vmax.f32 %v1192, %v967
      %v1225 = vmax.f32 %v1193, %v968
      %v1226 = vmax.f32 %v1194, %v969
      %v1227 = vmax.f32 %v1195, %v970
      %v1228 = vmax.f32 %v1196, %v971
      %v1229 = vmax.f32 %v1197, %v972
      %v1230 = vmax.f32 %v1198, %v973
      %v1231 = vmax.f32 %v1199, %v974
      %v1232 = vmax.f32 %v1200, %v975
      %v1233 = vmax.f32 %v1201, %v976
      %v1234 = vmax.f32 %v1202, %v977
      %v1235 = vmax.f32 %v1203, %v978
      %v1236 = vmax.f32 %v1204, %v979
      %v1237 = vmax.f32 %v1205, %v980
      %v1238 = vmax.f32 %v1206, %v981
      %v1239 = vmax.f32 %v1207, %v982
      %v1240 = vmax.f32 %v1208, %v983
      %v1241 = vmax.f32 %v1209, %v984
      %v1242 = vmax.f32 %v1210, %v985
      %v1243 = vmax.f32 %v1211, %v986
      %v1244 = vmax.f32 %v1212, %v987
      %v1245 = vmax.f32 %v1213, %v988
      %v1246 = vmax.f32 %v1214, %v989
      %v1247 = vmax.f32 %v1215, %v990
      %v1248 = vmax.f32 %v1216, %v991
      %v1249 = vmax.f32 %v1217, %v992
      %v1250 = vmax.f32 %v1218, %v993
      %v1251 = vmax.f32 %v1219, %v994
      %v1252 = vmax.f32 %v1220, %v995
      %v1253 = vmax.f32 %v1221, %v996
      %v1254 = vmax.f32 %v1222, %v997
      %v1255 = vmax.f32 %v1223, %v998
      %v1256 = vmax.f32 %v1224, %v999
      %v1257 = vmax.f32 %v1225, %v1000
      %v1258 = vmax.f32 %v1226, %v1001
      %v1259 = vmax.f32 %v1227, %v1002
      %v1260 = vmax.f32 %v1228, %v1003
      %v1261 = vmax.f32 %v1229, %v1004
      %v1262 = vmax.f32 %v1230, %v1005
      %v1263 = vmax.f32 %v1231, %v1006
      %v1264 = vmax.f32 %v1232, %v1007
      %v1265 = vmax.f32 %v1233, %v1008
      %v1266 = vmax.f32 %v1234, %v1009
      %v1267 = vmax.f32 %v1235, %v1010
      %v1268 = vmax.f32 %v1236, %v1011
      %v1269 = vmax.f32 %v1237, %v1012
      %v1270 = vmax.f32 %v1238, %v1013
      %v1271 = vmax.f32 %v1239, %v1014
      %v1272 = vmax.f32 %v1240, %v1015
      %v1273 = vmax.f32 %v1241, %v1016
      %v1274 = vmax.f32 %v1242, %v1017
      %v1275 = vmax.f32 %v1243, %v1018
      %v1276 = vmax.f32 %v1244, %v1019
      %v1277 = vmax.f32 %v1245, %v1020
      %v1278 = vmax.f32 %v1246, %v1021
      %v1279 = vmax.f32 %v1247, %v1022
      %v1280 = vmax.f32 %v1248, %v1023
      %v1281 = vmax.f32 %v1249, %v1024
      %v1282 = vmax.f32 %v1250, %v1025
      %v1283 = vmax.f32 %v1251, %v1026
      %v1284 = vmax.f32 %v1252, %v1027
      %v1285 = vmax.f32 %v1253, %v1028
      %v1286 = vmax.f32 %v1254, %v1029
      %v1287 = vmax.f32 %v1255, %v1030
      %v1288 = vmax.f32 %v1256, %v1031
      %v1289 = vmax.f32 %v1257, %v1032
      %v1290 = vmax.f32 %v1258, %v1033
      %v1291 = vmax.f32 %v1259, %v1034
      %v1292 = vmax.f32 %v1260, %v1035
      %v1293 = vmax.f32 %v1261, %v1036
      %v1294 = vmax.f32 %v1262, %v1037
      %v1295 = vmax.f32 %v1263, %v1038
      %v1296 = vmax.f32 %v1264, %v1039
      %v1297 = vmax.f32 %v1265, %v1040
      %v1298 = vmax.f32 %v1266, %v1041
      %v1299 = vmax.f32 %v1267, %v1042
      %v1300 = vmax.f32 %v1268, %v1043
      %v1301 = vmax.f32 %v1269, %v1044
      %v1302 = vmax.f32 %v1270, %v1045
      %v1303 = vmax.f32 %v1271, %v1046
      %v1304 = vmax.f32 %v1272, %v1047
      %v1305 = vmax.f32 %v1273, %v1048
      %v1306 = vmax.f32 %v1274, %v1049
      %v1307 = vmax.f32 %v1275, %v1050
      %v1308 = vmax.f32 %v1276, %v1051
      %v1309 = vmax.f32 %v1277, %v1052
      %v1310 = vmax.f32 %v1278, %v1053
      %v1311 = vmax.f32 %v1279, %v1054
      %v1312 = vmax.f32 %v1280, %v1055
      %v1313 = vmax.f32 %v1281, %v1056
      %v1314 = vmax.f32 %v1282, %v1058
      %v1315 = vmax.f32 %v1283, %v1059
      %v1316 = vmax.f32 %v1284, %v1060
      %v1317 = vmax.f32 %v1285, %v1061
      %v1318 = vmax.f32 %v1286, %v1062
      %v1319 = vmax.f32 %v1287, %v1063
      %v1320 = vmax.f32 %v1288, %v1064
      %v1321 = vmax.f32 %v1289, %v1065
      %v1322 = vmax.f32 %v1290, %v1066
      %v1323 = vmax.f32 %v1291, %v1067
      %v1324 = vmax.f32 %v1292, %v1068
      %v1325 = vmax.f32 %v1293, %v1069
      %v1326 = vmax.f32 %v1294, %v1070
      %v1327 = vmax.f32 %v1295, %v1071
      %v1328 = vmax.f32 %v1296, %v1072
      %v1329 = vmax.f32 %v1297, %v1073
      %v1330 = vmax.f32 %v1298, %v1074
      %v1331 = vmax.f32 %v1299, %v1075
      %v1332 = vmax.f32 %v1300, %v1076
      %v1333 = vmax.f32 %v1301, %v1077
      %v1334 = vmax.f32 %v1302, %v1078
      %v1335 = vmax.f32 %v1303, %v1079
      %v1336 = vmax.f32 %v1304, %v1080
      %v1337 = vmax.f32 %v1305, %v1081
      %v1338 = vmax.f32 %v1306, %v1082
      %v1339 = vmax.f32 %v1307, %v1083
      %v1340 = vmax.f32 %v1308, %v1084
      %v1341 = vmax.f32 %v1309, %v1085
      %v1342 = vmax.f32 %v1310, %v1086
      %v1343 = vmax.f32 %v1311, %v1087
      %v1344 = vmax.f32 %v1312, %v1088
      %v1345 = vmax.f32 %v1313, %v1089
      %v1346 = vmax.f32 %v1314, %v1090
      %v1347 = vmax.f32 %v1315, %v1091
      %v1348 = vmax.f32 %v1316, %v1092
      %v1349 = vmax.f32 %v1317, %v1093
      %v1350 = vmax.f32 %v1318, %v1094
      %v1351 = vmax.f32 %v1319, %v1095
      %v1352 = vmax.f32 %v1320, %v1096
      %v1353 = vmax.f32 %v1321, %v1097
      %v1354 = vmax.f32 %v1322, %v1098
      %v1355 = vmax.f32 %v1323, %v1099
      %v1356 = vmax.f32 %v1324, %v1100
      %v1357 = vmax.f32 %v1325, %v1101
      %v1358 = vmax.f32 %v1326, %v1102
      %v1359 = vmax.f32 %v1327, %v1103
      %v1360 = vmax.f32 %v1328, %v1104
      %v1361 = vmax.f32 %v1329, %v1105
      %v1362 = vmax.f32 %v1330, %v1106
      %v1363 = vmax.f32 %v1331, %v1107
      %v1364 = vmax.f32 %v1332, %v1108
      %v1365 = vmax.f32 %v1333, %v1109
      %v1366 = vmax.f32 %v1334, %v1110
      %v1367 = vmax.f32 %v1335, %v1111
      %v1368 = vmax.f32 %v1336, %v1112
      %v1369 = vmax.f32 %v1337, %v1113
      %v1370 = vmax.f32 %v1338, %v1114
      %v1371 = vmax.f32 %v1339, %v1115
      %v1372 = vmax.f32 %v1340, %v1116
      %v1373 = vmax.f32 %v1341, %v1117
      %v1374 = vmax.f32 %v1342, %v1118
      %v1375 = vmax.f32 %v1343, %v1119
      %v1376 = vmax.f32 %v1344, %v1120
      %v1377 = vmax.f32 %v1345, %v1121
      %v1378 = vmax.f32 %v1346, %v1122
      %v1379 = vmax.f32 %v1347, %v1123
      %v1380 = vmax.f32 %v1348, %v1124
      %v1381 = vmax.f32 %v1349, %v1125
      %v1382 = vmax.f32 %v1350, %v1126
      %v1383 = vmax.f32 %v1351, %v1127
      %v1384 = vmax.f32 %v1352, %v1128
      %v1385 = vmax.f32 %v1353, %v1129
      %v1386 = vmax.f32 %v1354, %v1130
      %v1387 = vmax.f32 %v1355, %v1131
      %v1388 = vmax.f32 %v1356, %v1132
      %v1389 = vmax.f32 %v1357, %v1133
      %v1390 = vmax.f32 %v1358, %v1134
      %v1391 = vmax.f32 %v1359, %v1135
      %v1392 = vmax.f32 %v1360, %v1136
      %v1393 = vmax.f32 %v1361, %v1137
      %v1394 = vmax.f32 %v1362, %v1138
      %v1395 = vmax.f32 %v1363, %v1139
      %v1396 = vmax.f32 %v1364, %v1140
      %v1397 = vmax.f32 %v1365, %v1141
      %v1398 = vmax.f32 %v1366, %v1142
      %v1399 = vmax.f32 %v1367, %v1143
      %v1400 = vmax.f32 %v1368, %v1144
      %v1401 = vmax.f32 %v1369, %v1145
      %v1402 = vmax.f32 %v1370, %v1146
      %v1403 = vmax.f32 %v1371, %v1147
      %v1404 = vmax.f32 %v1372, %v1148
      %v1405 = vmax.f32 %v1373, %v1149
      %v1406 = vmax.f32 %v1374, %v1150
      %v1407 = vmax.f32 %v1375, %v1151
      %v1408 = vmax.f32 %v1376, %v1152
      %v1409 = vmax.f32 %v1377, %v1153
      %v1410 = vld [vmem:[%s3] sm:$0xff]
      %v1411 = vld [vmem:[%s3 + $0x8] sm:$0xff]
      %v1412 = vld [vmem:[%s3 + $0x10] sm:$0xff]
      %v1413 = vld [vmem:[%s3 + $0x18] sm:$0xff]
      %v1414 = vld [vmem:[%s3 + $0x20] sm:$0xff]
      %v1415 = vld [vmem:[%s3 + $0x28] sm:$0xff]
      %v1416 = vld [vmem:[%s3 + $0x30] sm:$0xff]
      %v1417 = vld [vmem:[%s3 + $0x38] sm:$0xff]
      %v1418 = vpack.c.bf16 %v1379, %v1378
      %v1419 = vpack.c.bf16 %v1381, %v1380
      %v1420 = vpack.c.bf16 %v1383, %v1382
      %v1421 = vpack.c.bf16 %v1385, %v1384
      %v1422 = vpack.c.bf16 %v1387, %v1386
      %v1423 = vpack.c.bf16 %v1389, %v1388
      %v1424 = vpack.c.bf16 %v1391, %v1390
      %v1425 = vpack.c.bf16 %v1393, %v1392
      %v1426 = vpack.c.bf16 %v1395, %v1394
      %v1427 = vpack.c.bf16 %v1397, %v1396
      %v1428 = vpack.c.bf16 %v1399, %v1398
      %v1429 = vpack.c.bf16 %v1401, %v1400
      %v1430 = vpack.c.bf16 %v1403, %v1402
      %v1431 = vpack.c.bf16 %v1405, %v1404
      %v1432 = vpack.c.bf16 %v1407, %v1406
      %v1433 = vpack.c.bf16 %v1409, %v1408
      %v1442 = vunpack.c.l.b16 %v1410
      %v1443 = vunpack.c.h.b16 %v1410
      %v1444 = vunpack.c.l.b16 %v1411
      %v1445 = vunpack.c.h.b16 %v1411
      %v1446 = vunpack.c.l.b16 %v1412
      %v1447 = vunpack.c.h.b16 %v1412
      %v1448 = vunpack.c.l.b16 %v1413
      %v1449 = vunpack.c.h.b16 %v1413
      %v1450 = vunpack.c.l.b16 %v1414
      %v1451 = vunpack.c.h.b16 %v1414
      %v1452 = vunpack.c.l.b16 %v1415
      %v1453 = vunpack.c.h.b16 %v1415
      %v1454 = vunpack.c.l.b16 %v1416
      %v1455 = vunpack.c.h.b16 %v1416
      %v1456 = vunpack.c.l.b16 %v1417
      %v1457 = vunpack.c.h.b16 %v1417
      %v1458 = vpack.c.b16 %v1444, %v1442
      %v1459 = vpack.c.b16 %v1445, %v1443
      %v1460 = vpack.c.b16 %v1448, %v1446
      %v1461 = vpack.c.b16 %v1449, %v1447
      %v1462 = vpack.c.b16 %v1452, %v1450
      %v1463 = vpack.c.b16 %v1453, %v1451
      %v1464 = vpack.c.b16 %v1456, %v1454
      %v1465 = vpack.c.b16 %v1457, %v1455
      %1474 = vmatprep.subr.bf16.mxu0 0
      %1475 = vmatpush1.bf16.msra.mxu0 %v1425
      %1476 = vmatprep.subr.bf16.mxu0 0
      %1477 = vmatpush1.bf16.msra.mxu0 %v1424
      %1478 = vmatprep.subr.bf16.mxu0 0
      %1479 = vmatpush1.bf16.msra.mxu0 %v1423
      %1480 = vmatprep.subr.bf16.mxu0 0
      %1481 = vmatpush1.bf16.msra.mxu0 %v1422
      %1482 = vmatprep.subr.bf16.mxu0 0
      %1483 = vmatpush1.bf16.msra.mxu0 %v1421
      %1484 = vmatprep.subr.bf16.mxu0 0
      %1485 = vmatpush1.bf16.msra.mxu0 %v1420
      %1486 = vmatprep.subr.bf16.mxu0 0
      %1487 = vmatpush1.bf16.msra.mxu0 %v1419
      %1488 = vmatprep.subr.bf16.mxu0 0
      %1489 = vmatpush1.bf16.msra.mxu0 %v1418
      %1490 = vmatprep.subr.bf16.mxu0 0
      %1491 = vmatpush2.bf16.msra.mxu0 %v1433
      %1492 = vmatprep.subr.bf16.mxu0 0
      %1493 = vmatpush2.bf16.msra.mxu0 %v1432
      %1494 = vmatprep.subr.bf16.mxu0 0
      %1495 = vmatpush2.bf16.msra.mxu0 %v1431
      %1496 = vmatprep.subr.bf16.mxu0 0
      %1497 = vmatpush2.bf16.msra.mxu0 %v1430
      %1498 = vmatprep.subr.bf16.mxu0 0
      %1499 = vmatpush2.bf16.msra.mxu0 %v1429
      %1500 = vmatprep.subr.bf16.mxu0 0
      %1501 = vmatpush2.bf16.msra.mxu0 %v1428
      %1502 = vmatprep.subr.bf16.mxu0 0
      %1503 = vmatpush2.bf16.msra.mxu0 %v1427
      %1504 = vmatprep.subr.bf16.mxu0 0
      %1505 = vmatpush2.bf16.msra.mxu0 %v1426
      %1506 = vmatprep.mubr.bf16.mxu0 %v1459
      %1507 = vmatmul.mubr.bf16.gmra.mxu0 %v1458
      %v1508 = vpop.f32.mrf.mxu0
      %v1509 = vadd.f32 0.0, %v1508
      %v1510 = vpop.f32.mrf.mxu0
      %v1511 = vpop.f32.mrf.mxu0
      %v1512 = vadd.f32 0.0, %v1511
      %v1513 = vpop.f32.mrf.mxu0
      %1514 = vmatprep.mubr.bf16.mxu0 %v1461
      %1515 = vmatmul.mubr.bf16.gmra.mxu0 %v1460
      %v1516 = vpop.f32.mrf.mxu0
      %v1517 = vadd.f32 0.0, %v1516
      %v1518 = vpop.f32.mrf.mxu0
      %v1519 = vpop.f32.mrf.mxu0
      %v1520 = vadd.f32 0.0, %v1519
      %v1521 = vpop.f32.mrf.mxu0
      %1522 = vmatprep.mubr.bf16.mxu0 %v1463
      %1523 = vmatmul.mubr.bf16.gmra.mxu0 %v1462
      %v1524 = vpop.f32.mrf.mxu0
      %v1525 = vadd.f32 0.0, %v1524
      %v1526 = vpop.f32.mrf.mxu0
      %v1527 = vpop.f32.mrf.mxu0
      %v1528 = vadd.f32 0.0, %v1527
      %v1529 = vpop.f32.mrf.mxu0
      %1530 = vmatprep.mubr.bf16.mxu0 %v1465
      %1531 = vmatmul.mubr.bf16.gmra.mxu0 %v1464
      %v1532 = vpop.f32.mrf.mxu0
      %v1533 = vadd.f32 0.0, %v1532
      %v1534 = vpop.f32.mrf.mxu0
      %v1535 = vpop.f32.mrf.mxu0
      %v1536 = vadd.f32 0.0, %v1535
      %v1537 = vpop.f32.mrf.mxu0
      %1538 = vdwg.mxu0
      %s1539 = scalar_lea.vmem [#allocation3], 24
      %1540 = vst.msk [vmem:[%s1539 + $0x8] sm:$0xff] %vm307, %v1509
      %1541 = vst.msk [vmem:[%s1539 + $0x20] sm:$0xff] %vm307, %v1512
      %1542 = vst.msk [vmem:[%s1539 + $0x38] sm:$0xff] %vm307, %v1517
      %1543 = vst.msk [vmem:[%s1539 + $0x50] sm:$0xff] %vm307, %v1520
      %1544 = vst.msk [vmem:[%s1539 + $0x68] sm:$0xff] %vm307, %v1525
      %1545 = vst.msk [vmem:[%s1539 + $0x80] sm:$0xff] %vm307, %v1528
      %1546 = vst.msk [vmem:[%s1539 + $0x98] sm:$0xff] %vm307, %v1533
      %1547 = vst.msk [vmem:[%s1539 + $0xb0] sm:$0xff] %vm307, %v1536
      %v1548 = vld [vmem:[#allocation3 + $0x7] sm:$0xff]
      %v1549 = vld [vmem:[#allocation3 + $0x1f] sm:$0xff]
      %v1550 = vld [vmem:[#allocation3 + $0x37] sm:$0xff]
      %v1551 = vld [vmem:[#allocation3 + $0x4f] sm:$0xff]
      %v1552 = vld [vmem:[#allocation3 + $0x67] sm:$0xff]
      %v1553 = vld [vmem:[#allocation3 + $0x7f] sm:$0xff]
      %v1554 = vld [vmem:[#allocation3 + $0x97] sm:$0xff]
      %v1555 = vld [vmem:[#allocation3 + $0xaf] sm:$0xff]
      %v1556 = vpack.c.bf16 %v1549, %v1548
      %v1557 = vpack.c.bf16 %v1551, %v1550
      %v1558 = vpack.c.bf16 %v1553, %v1552
      %v1559 = vpack.c.bf16 %v1555, %v1554
      %v1560 = vld [vmem:[#allocation3 + $0x8] sm:$0xff]
      %v1561 = vld [vmem:[#allocation3 + $0x20] sm:$0xff]
      %v1562 = vld [vmem:[#allocation3 + $0x38] sm:$0xff]
      %v1563 = vld [vmem:[#allocation3 + $0x50] sm:$0xff]
      %v1564 = vld [vmem:[#allocation3 + $0x68] sm:$0xff]
      %v1565 = vld [vmem:[#allocation3 + $0x80] sm:$0xff]
      %v1566 = vld [vmem:[#allocation3 + $0x98] sm:$0xff]
      %v1567 = vld [vmem:[#allocation3 + $0xb0] sm:$0xff]
      %v1568 = vpack.c.bf16 %v1561, %v1560
      %v1569 = vpack.c.bf16 %v1563, %v1562
      %v1570 = vpack.c.bf16 %v1565, %v1564
      %v1571 = vpack.c.bf16 %v1567, %v1566
      %v1572 = vld [vmem:[#allocation3 + $0x9] sm:$0xff]
      %v1573 = vld [vmem:[#allocation3 + $0x21] sm:$0xff]
      %v1574 = vld [vmem:[#allocation3 + $0x39] sm:$0xff]
      %v1575 = vld [vmem:[#allocation3 + $0x51] sm:$0xff]
      %v1576 = vld [vmem:[#allocation3 + $0x69] sm:$0xff]
      %v1577 = vld [vmem:[#allocation3 + $0x81] sm:$0xff]
      %v1578 = vld [vmem:[#allocation3 + $0x99] sm:$0xff]
      %v1579 = vld [vmem:[#allocation3 + $0xb1] sm:$0xff]
      %v1580 = vpack.c.bf16 %v1573, %v1572
      %v1581 = vpack.c.bf16 %v1575, %v1574
      %v1582 = vpack.c.bf16 %v1577, %v1576
      %v1583 = vpack.c.bf16 %v1579, %v1578
      %v1584 = vld [vmem:[%s1539 + $0x7] sm:$0xff]
      %v1585 = vld [vmem:[%s1539 + $0x1f] sm:$0xff]
      %v1586 = vld [vmem:[%s1539 + $0x37] sm:$0xff]
      %v1587 = vld [vmem:[%s1539 + $0x4f] sm:$0xff]
      %v1588 = vld [vmem:[%s1539 + $0x67] sm:$0xff]
      %v1589 = vld [vmem:[%s1539 + $0x7f] sm:$0xff]
      %v1590 = vld [vmem:[%s1539 + $0x97] sm:$0xff]
      %v1591 = vld [vmem:[%s1539 + $0xaf] sm:$0xff]
      %v1592 = vpack.c.bf16 %v1585, %v1584
      %v1593 = vpack.c.bf16 %v1587, %v1586
      %v1594 = vpack.c.bf16 %v1589, %v1588
      %v1595 = vpack.c.bf16 %v1591, %v1590
      %v1596 = vld [vmem:[%s1539 + $0x8] sm:$0xff]
      %v1597 = vld [vmem:[%s1539 + $0x20] sm:$0xff]
      %v1598 = vld [vmem:[%s1539 + $0x38] sm:$0xff]
      %v1599 = vld [vmem:[%s1539 + $0x50] sm:$0xff]
      %v1600 = vld [vmem:[%s1539 + $0x68] sm:$0xff]
      %v1601 = vld [vmem:[%s1539 + $0x80] sm:$0xff]
      %v1602 = vld [vmem:[%s1539 + $0x98] sm:$0xff]
      %v1603 = vld [vmem:[%s1539 + $0xb0] sm:$0xff]
      %v1604 = vpack.c.bf16 %v1597, %v1596
      %v1605 = vpack.c.bf16 %v1599, %v1598
      %v1606 = vpack.c.bf16 %v1601, %v1600
      %v1607 = vpack.c.bf16 %v1603, %v1602
      %v1608 = vld [vmem:[%s1539 + $0x9] sm:$0xff]
      %v1609 = vld [vmem:[%s1539 + $0x21] sm:$0xff]
      %v1610 = vld [vmem:[%s1539 + $0x39] sm:$0xff]
      %v1611 = vld [vmem:[%s1539 + $0x51] sm:$0xff]
      %v1612 = vld [vmem:[%s1539 + $0x69] sm:$0xff]
      %v1613 = vld [vmem:[%s1539 + $0x81] sm:$0xff]
      %v1614 = vld [vmem:[%s1539 + $0x99] sm:$0xff]
      %v1615 = vld [vmem:[%s1539 + $0xb1] sm:$0xff]
      %v1616 = vpack.c.bf16 %v1609, %v1608
      %v1617 = vpack.c.bf16 %v1611, %v1610
      %v1618 = vpack.c.bf16 %v1613, %v1612
      %v1619 = vpack.c.bf16 %v1615, %v1614
      %s1620 = scalar_lea.vmem [#allocation3], 48
      %v1621 = vld [vmem:[%s1620 + $0x7] sm:$0xff]
      %v1622 = vld [vmem:[%s1620 + $0x1f] sm:$0xff]
      %v1623 = vld [vmem:[%s1620 + $0x37] sm:$0xff]
      %v1624 = vld [vmem:[%s1620 + $0x4f] sm:$0xff]
      %v1625 = vld [vmem:[%s1620 + $0x67] sm:$0xff]
      %v1626 = vld [vmem:[%s1620 + $0x7f] sm:$0xff]
      %v1627 = vld [vmem:[%s1620 + $0x97] sm:$0xff]
      %v1628 = vld [vmem:[%s1620 + $0xaf] sm:$0xff]
      %v1629 = vpack.c.bf16 %v1622, %v1621
      %v1630 = vpack.c.bf16 %v1624, %v1623
      %v1631 = vpack.c.bf16 %v1626, %v1625
      %v1632 = vpack.c.bf16 %v1628, %v1627
      %v1633 = vld [vmem:[%s1620 + $0x8] sm:$0xff]
      %v1634 = vld [vmem:[%s1620 + $0x20] sm:$0xff]
      %v1635 = vld [vmem:[%s1620 + $0x38] sm:$0xff]
      %v1636 = vld [vmem:[%s1620 + $0x50] sm:$0xff]
      %v1637 = vld [vmem:[%s1620 + $0x68] sm:$0xff]
      %v1638 = vld [vmem:[%s1620 + $0x80] sm:$0xff]
      %v1639 = vld [vmem:[%s1620 + $0x98] sm:$0xff]
      %v1640 = vld [vmem:[%s1620 + $0xb0] sm:$0xff]
      %v1641 = vpack.c.bf16 %v1634, %v1633
      %v1642 = vpack.c.bf16 %v1636, %v1635
      %v1643 = vpack.c.bf16 %v1638, %v1637
      %v1644 = vpack.c.bf16 %v1640, %v1639
      %v1645 = vld [vmem:[%s1620 + $0x9] sm:$0xff]
      %v1646 = vld [vmem:[%s1620 + $0x21] sm:$0xff]
      %v1647 = vld [vmem:[%s1620 + $0x39] sm:$0xff]
      %v1648 = vld [vmem:[%s1620 + $0x51] sm:$0xff]
      %v1649 = vld [vmem:[%s1620 + $0x69] sm:$0xff]
      %v1650 = vld [vmem:[%s1620 + $0x81] sm:$0xff]
      %v1651 = vld [vmem:[%s1620 + $0x99] sm:$0xff]
      %v1652 = vld [vmem:[%s1620 + $0xb1] sm:$0xff]
      %v1653 = vpack.c.bf16 %v1646, %v1645
      %v1654 = vpack.c.bf16 %v1648, %v1647
      %v1655 = vpack.c.bf16 %v1650, %v1649
      %v1656 = vpack.c.bf16 %v1652, %v1651
      %1661 = vrot.lane.b32.xlu0 %v1568, 64
      %v1662 = vpop.permute.xlu0 %1661
      %1663 = vrot.lane.b32.xlu0 %v1569, 64
      %v1664 = vpop.permute.xlu0 %1663
      %1665 = vrot.lane.b32.xlu0 %v1570, 64
      %v1666 = vpop.permute.xlu0 %1665
      %1667 = vrot.lane.b32.xlu0 %v1571, 64
      %v1668 = vpop.permute.xlu0 %1667
      %1673 = vrot.lane.b32.xlu0 %v1592, 64
      %v1674 = vpop.permute.xlu0 %1673
      %1675 = vrot.lane.b32.xlu0 %v1593, 64
      %v1676 = vpop.permute.xlu0 %1675
      %1677 = vrot.lane.b32.xlu0 %v1594, 64
      %v1678 = vpop.permute.xlu0 %1677
      %1679 = vrot.lane.b32.xlu0 %v1595, 64
      %v1680 = vpop.permute.xlu0 %1679
      %1685 = vrot.lane.b32.xlu0 %v1616, 64
      %v1686 = vpop.permute.xlu0 %1685
      %1687 = vrot.lane.b32.xlu0 %v1617, 64
      %v1688 = vpop.permute.xlu0 %1687
      %1689 = vrot.lane.b32.xlu0 %v1618, 64
      %v1690 = vpop.permute.xlu0 %1689
      %1691 = vrot.lane.b32.xlu0 %v1619, 64
      %v1692 = vpop.permute.xlu0 %1691
      %1697 = vrot.lane.b32.xlu0 %v1641, 64
      %v1698 = vpop.permute.xlu0 %1697
      %1699 = vrot.lane.b32.xlu0 %v1642, 64
      %v1700 = vpop.permute.xlu0 %1699
      %1701 = vrot.lane.b32.xlu0 %v1643, 64
      %v1702 = vpop.permute.xlu0 %1701
      %1703 = vrot.lane.b32.xlu0 %v1644, 64
      %v1704 = vpop.permute.xlu0 %1703
      %v1707 = vsel %vm307, %v1556, %v1662
      %v1711 = vsel %vm307, %v1557, %v1664
      %v1715 = vsel %vm307, %v1558, %v1666
      %v1719 = vsel %vm307, %v1559, %v1668
      %v1723 = vsel %vm307, %v1580, %v1674
      %v1727 = vsel %vm307, %v1581, %v1676
      %v1731 = vsel %vm307, %v1582, %v1678
      %v1735 = vsel %vm307, %v1583, %v1680
      %v1739 = vsel %vm307, %v1604, %v1686
      %v1743 = vsel %vm307, %v1605, %v1688
      %v1747 = vsel %vm307, %v1606, %v1690
      %v1751 = vsel %vm307, %v1607, %v1692
      %v1755 = vsel %vm307, %v1629, %v1698
      %v1759 = vsel %vm307, %v1630, %v1700
      %v1763 = vsel %vm307, %v1631, %v1702
      %v1767 = vsel %vm307, %v1632, %v1704
      %v1769 = vld [vmem:[%s4] sm:$0xf]
      %v1770 = vld [vmem:[%s4 + $0x4] sm:$0xf]
      %v1771 = vld [vmem:[%s4 + $0x8] sm:$0xf]
      %v1772 = vld [vmem:[%s4 + $0xc] sm:$0xf]
      %v1773 = vld [vmem:[%s4 + $0x10] sm:$0xf]
      %v1774 = vld [vmem:[%s4 + $0x14] sm:$0xf]
      %v1775 = vld [vmem:[%s4 + $0x18] sm:$0xf]
      %v1776 = vld [vmem:[%s4 + $0x1c] sm:$0xf]
      %v1777 = vld [vmem:[%s4 + $0x20] sm:$0xf]
      %v1778 = vld [vmem:[%s4 + $0x24] sm:$0xf]
      %v1779 = vld [vmem:[%s4 + $0x28] sm:$0xf]
      %v1780 = vld [vmem:[%s4 + $0x2c] sm:$0xf]
      %v1781 = vld [vmem:[%s4 + $0x30] sm:$0xf]
      %v1782 = vld [vmem:[%s4 + $0x34] sm:$0xf]
      %v1783 = vld [vmem:[%s4 + $0x38] sm:$0xf]
      %v1784 = vld [vmem:[%s4 + $0x3c] sm:$0xf]
      %v1785 = vld [vmem:[%s4 + $0x40] sm:$0xf]
      %v1786 = vld [vmem:[%s4 + $0x44] sm:$0xf]
      %v1787 = vld [vmem:[%s4 + $0x48] sm:$0xf]
      %v1788 = vld [vmem:[%s4 + $0x4c] sm:$0xf]
      %v1789 = vld [vmem:[%s4 + $0x50] sm:$0xf]
      %v1790 = vld [vmem:[%s4 + $0x54] sm:$0xf]
      %v1791 = vld [vmem:[%s4 + $0x58] sm:$0xf]
      %v1792 = vld [vmem:[%s4 + $0x5c] sm:$0xf]
      %v1793 = vld [vmem:[%s4 + $0x60] sm:$0xf]
      %v1794 = vld [vmem:[%s4 + $0x64] sm:$0xf]
      %v1795 = vld [vmem:[%s4 + $0x68] sm:$0xf]
      %v1796 = vld [vmem:[%s4 + $0x6c] sm:$0xf]
      %v1797 = vld [vmem:[%s4 + $0x70] sm:$0xf]
      %v1798 = vld [vmem:[%s4 + $0x74] sm:$0xf]
      %v1799 = vld [vmem:[%s4 + $0x78] sm:$0xf]
      %v1800 = vld [vmem:[%s4 + $0x7c] sm:$0xf]
      %v1801 = vld [vmem:[%s4 + $0x80] sm:$0xf]
      %v1802 = vld [vmem:[%s4 + $0x84] sm:$0xf]
      %v1803 = vld [vmem:[%s4 + $0x88] sm:$0xf]
      %v1804 = vld [vmem:[%s4 + $0x8c] sm:$0xf]
      %v1805 = vld [vmem:[%s4 + $0x90] sm:$0xf]
      %v1806 = vld [vmem:[%s4 + $0x94] sm:$0xf]
      %v1807 = vld [vmem:[%s4 + $0x98] sm:$0xf]
      %v1808 = vld [vmem:[%s4 + $0x9c] sm:$0xf]
      %v1809 = vld [vmem:[%s4 + $0xa0] sm:$0xf]
      %v1810 = vld [vmem:[%s4 + $0xa4] sm:$0xf]
      %v1811 = vld [vmem:[%s4 + $0xa8] sm:$0xf]
      %v1812 = vld [vmem:[%s4 + $0xac] sm:$0xf]
      %v1813 = vld [vmem:[%s4 + $0xb0] sm:$0xf]
      %v1814 = vld [vmem:[%s4 + $0xb4] sm:$0xf]
      %v1815 = vld [vmem:[%s4 + $0xb8] sm:$0xf]
      %v1816 = vld [vmem:[%s4 + $0xbc] sm:$0xf]
      %v1817 = vld [vmem:[%s4 + $0xc0] sm:$0xf]
      %v1818 = vld [vmem:[%s4 + $0xc4] sm:$0xf]
      %v1819 = vld [vmem:[%s4 + $0xc8] sm:$0xf]
      %v1820 = vld [vmem:[%s4 + $0xcc] sm:$0xf]
      %v1821 = vld [vmem:[%s4 + $0xd0] sm:$0xf]
      %v1822 = vld [vmem:[%s4 + $0xd4] sm:$0xf]
      %v1823 = vld [vmem:[%s4 + $0xd8] sm:$0xf]
      %v1824 = vld [vmem:[%s4 + $0xdc] sm:$0xf]
      %v1825 = vld [vmem:[%s4 + $0xe0] sm:$0xf]
      %v1826 = vld [vmem:[%s4 + $0xe4] sm:$0xf]
      %v1827 = vld [vmem:[%s4 + $0xe8] sm:$0xf]
      %v1828 = vld [vmem:[%s4 + $0xec] sm:$0xf]
      %v1829 = vld [vmem:[%s4 + $0xf0] sm:$0xf]
      %v1830 = vld [vmem:[%s4 + $0xf4] sm:$0xf]
      %v1831 = vld [vmem:[%s4 + $0xf8] sm:$0xf]
      %v1832 = vld [vmem:[%s4 + $0xfc] sm:$0xf]
      %v1833 = vld [vmem:[%s4 + $0x100] sm:$0xf]
      %v1834 = vld [vmem:[%s4 + $0x104] sm:$0xf]
      %v1835 = vld [vmem:[%s4 + $0x108] sm:$0xf]
      %v1836 = vld [vmem:[%s4 + $0x10c] sm:$0xf]
      %v1837 = vld [vmem:[%s4 + $0x110] sm:$0xf]
      %v1838 = vld [vmem:[%s4 + $0x114] sm:$0xf]
      %v1839 = vld [vmem:[%s4 + $0x118] sm:$0xf]
      %v1840 = vld [vmem:[%s4 + $0x11c] sm:$0xf]
      %v1841 = vld [vmem:[%s5] sm:$0x1]
      %v1843 = vlaneseq
      %v1844 = vshrl.u32 %v1843, 7
      %v1845 = vsub.s32 0, %v1844
      %v1846 = vrot.slane %v1841, %v1845
      %v1920 = vunpack.c.l.b16 %v1769
      %v1921 = vunpack.c.l.b16 %v1770
      %v1922 = vunpack.c.l.b16 %v1771
      %v1923 = vunpack.c.l.b16 %v1772
      %v1924 = vunpack.c.l.b16 %v1773
      %v1925 = vunpack.c.l.b16 %v1774
      %v1926 = vunpack.c.l.b16 %v1775
      %v1927 = vunpack.c.l.b16 %v1776
      %v1928 = vunpack.c.l.b16 %v1777
      %v1929 = vunpack.c.l.b16 %v1778
      %v1930 = vunpack.c.l.b16 %v1779
      %v1931 = vunpack.c.l.b16 %v1780
      %v1932 = vunpack.c.l.b16 %v1781
      %v1933 = vunpack.c.l.b16 %v1782
      %v1934 = vunpack.c.l.b16 %v1783
      %v1935 = vunpack.c.l.b16 %v1784
      %v1936 = vunpack.c.l.b16 %v1785
      %v1937 = vunpack.c.l.b16 %v1786
      %v1938 = vunpack.c.l.b16 %v1787
      %v1939 = vunpack.c.l.b16 %v1788
      %v1940 = vunpack.c.l.b16 %v1789
      %v1941 = vunpack.c.l.b16 %v1790
      %v1942 = vunpack.c.l.b16 %v1791
      %v1943 = vunpack.c.l.b16 %v1792
      %v1944 = vunpack.c.l.b16 %v1793
      %v1945 = vunpack.c.l.b16 %v1794
      %v1946 = vunpack.c.l.b16 %v1795
      %v1947 = vunpack.c.l.b16 %v1796
      %v1948 = vunpack.c.l.b16 %v1797
      %v1949 = vunpack.c.l.b16 %v1798
      %v1950 = vunpack.c.l.b16 %v1799
      %v1951 = vunpack.c.l.b16 %v1800
      %v1952 = vunpack.c.l.b16 %v1801
      %v1953 = vunpack.c.l.b16 %v1802
      %v1954 = vunpack.c.l.b16 %v1803
      %v1955 = vunpack.c.l.b16 %v1804
      %v1956 = vunpack.c.l.b16 %v1805
      %v1957 = vunpack.c.l.b16 %v1806
      %v1958 = vunpack.c.l.b16 %v1807
      %v1959 = vunpack.c.l.b16 %v1808
      %v1960 = vunpack.c.l.b16 %v1809
      %v1961 = vunpack.c.l.b16 %v1810
      %v1962 = vunpack.c.l.b16 %v1811
      %v1963 = vunpack.c.l.b16 %v1812
      %v1964 = vunpack.c.l.b16 %v1813
      %v1965 = vunpack.c.l.b16 %v1814
      %v1966 = vunpack.c.l.b16 %v1815
      %v1967 = vunpack.c.l.b16 %v1816
      %v1968 = vunpack.c.l.b16 %v1817
      %v1969 = vunpack.c.l.b16 %v1818
      %v1970 = vunpack.c.l.b16 %v1819
      %v1971 = vunpack.c.l.b16 %v1820
      %v1972 = vunpack.c.l.b16 %v1821
      %v1973 = vunpack.c.l.b16 %v1822
      %v1974 = vunpack.c.l.b16 %v1823
      %v1975 = vunpack.c.l.b16 %v1824
      %v1976 = vunpack.c.l.b16 %v1825
      %v1977 = vunpack.c.l.b16 %v1826
      %v1978 = vunpack.c.l.b16 %v1827
      %v1979 = vunpack.c.l.b16 %v1828
      %v1980 = vunpack.c.l.b16 %v1829
      %v1981 = vunpack.c.l.b16 %v1830
      %v1982 = vunpack.c.l.b16 %v1831
      %v1983 = vunpack.c.l.b16 %v1832
      %v1984 = vunpack.c.l.b16 %v1833
      %v1985 = vunpack.c.l.b16 %v1834
      %v1986 = vunpack.c.l.b16 %v1835
      %v1987 = vunpack.c.l.b16 %v1836
      %v1988 = vunpack.c.l.b16 %v1837
      %v1989 = vunpack.c.l.b16 %v1838
      %v1990 = vunpack.c.l.b16 %v1839
      %v1991 = vunpack.c.l.b16 %v1840
      %v1992 = vpack.c.b16 %v1921, %v1920
      %v1993 = vpack.c.b16 %v1923, %v1922
      %v1994 = vpack.c.b16 %v1925, %v1924
      %v1995 = vpack.c.b16 %v1927, %v1926
      %v1996 = vpack.c.b16 %v1929, %v1928
      %v1997 = vpack.c.b16 %v1931, %v1930
      %v1998 = vpack.c.b16 %v1933, %v1932
      %v1999 = vpack.c.b16 %v1935, %v1934
      %v2000 = vpack.c.b16 %v1937, %v1936
      %v2001 = vpack.c.b16 %v1939, %v1938
      %v2002 = vpack.c.b16 %v1941, %v1940
      %v2003 = vpack.c.b16 %v1943, %v1942
      %v2004 = vpack.c.b16 %v1945, %v1944
      %v2005 = vpack.c.b16 %v1947, %v1946
      %v2006 = vpack.c.b16 %v1949, %v1948
      %v2007 = vpack.c.b16 %v1951, %v1950
      %v2008 = vpack.c.b16 %v1953, %v1952
      %v2009 = vpack.c.b16 %v1955, %v1954
      %v2010 = vpack.c.b16 %v1957, %v1956
      %v2011 = vpack.c.b16 %v1959, %v1958
      %v2012 = vpack.c.b16 %v1961, %v1960
      %v2013 = vpack.c.b16 %v1963, %v1962
      %v2014 = vpack.c.b16 %v1965, %v1964
      %v2015 = vpack.c.b16 %v1967, %v1966
      %v2016 = vpack.c.b16 %v1969, %v1968
      %v2017 = vpack.c.b16 %v1971, %v1970
      %v2018 = vpack.c.b16 %v1973, %v1972
      %v2019 = vpack.c.b16 %v1975, %v1974
      %v2020 = vpack.c.b16 %v1977, %v1976
      %v2021 = vpack.c.b16 %v1979, %v1978
      %v2022 = vpack.c.b16 %v1981, %v1980
      %v2023 = vpack.c.b16 %v1983, %v1982
      %v2024 = vpack.c.b16 %v1985, %v1984
      %v2025 = vpack.c.b16 %v1987, %v1986
      %v2026 = vpack.c.b16 %v1989, %v1988
      %v2027 = vpack.c.b16 %v1991, %v1990
      %v2065 = vsel %vm307, %v1653, 0
      %v2068 = vsel %vm307, %v1654, 0
      %v2071 = vsel %vm307, %v1655, 0
      %v2074 = vsel %vm307, %v1656, 0
      %2076 = vmatprep.subr.bf16.mxu0 0
      %2077 = vmatpush1.bf16.msra.mxu0 %v1999
      %2078 = vmatprep.subr.bf16.mxu0 0
      %2079 = vmatpush1.bf16.msra.mxu0 %v1998
      %2080 = vmatprep.subr.bf16.mxu0 0
      %2081 = vmatpush1.bf16.msra.mxu0 %v1997
      %2082 = vmatprep.subr.bf16.mxu0 0
      %2083 = vmatpush1.bf16.msra.mxu0 %v1996
      %2084 = vmatprep.subr.bf16.mxu0 0
      %2085 = vmatpush1.bf16.msra.mxu0 %v1995
      %2086 = vmatprep.subr.bf16.mxu0 0
      %2087 = vmatpush1.bf16.msra.mxu0 %v1994
      %2088 = vmatprep.subr.bf16.mxu0 0
      %2089 = vmatpush1.bf16.msra.mxu0 %v1993
      %2090 = vmatprep.subr.bf16.mxu0 0
      %2091 = vmatpush1.bf16.msra.mxu0 %v1992
      %2092 = vmatprep.subr.bf16.mxu0 0
      %2093 = vmatpush2.bf16.msra.mxu0 %v2007
      %2094 = vmatprep.subr.bf16.mxu0 0
      %2095 = vmatpush2.bf16.msra.mxu0 %v2006
      %2096 = vmatprep.subr.bf16.mxu0 0
      %2097 = vmatpush2.bf16.msra.mxu0 %v2005
      %2098 = vmatprep.subr.bf16.mxu0 0
      %2099 = vmatpush2.bf16.msra.mxu0 %v2004
      %2100 = vmatprep.subr.bf16.mxu0 0
      %2101 = vmatpush2.bf16.msra.mxu0 %v2003
      %2102 = vmatprep.subr.bf16.mxu0 0
      %2103 = vmatpush2.bf16.msra.mxu0 %v2002
      %2104 = vmatprep.subr.bf16.mxu0 0
      %2105 = vmatpush2.bf16.msra.mxu0 %v2001
      %2106 = vmatprep.subr.bf16.mxu0 0
      %2107 = vmatpush2.bf16.msra.mxu0 %v2000
      %2108 = vmatprep.mubr.bf16.mxu0 %v1723
      %2109 = vmatmul.mubr.bf16.gmra.mxu0 %v1707
      %v2110 = vpop.f32.mrf.mxu0
      %v2111 = vadd.f32 %v1846, %v2110
      %v2112 = vpop.f32.mrf.mxu0
      %v2113 = vpop.f32.mrf.mxu0
      %v2114 = vadd.f32 %v1846, %v2113
      %v2115 = vpop.f32.mrf.mxu0
      %2116 = vmatprep.mubr.bf16.mxu0 %v1727
      %2117 = vmatmul.mubr.bf16.gmra.mxu0 %v1711
      %v2118 = vpop.f32.mrf.mxu0
      %v2119 = vadd.f32 %v1846, %v2118
      %v2120 = vpop.f32.mrf.mxu0
      %v2121 = vpop.f32.mrf.mxu0
      %v2122 = vadd.f32 %v1846, %v2121
      %v2123 = vpop.f32.mrf.mxu0
      %2124 = vmatprep.mubr.bf16.mxu0 %v1731
      %2125 = vmatmul.mubr.bf16.gmra.mxu0 %v1715
      %v2126 = vpop.f32.mrf.mxu0
      %v2127 = vadd.f32 %v1846, %v2126
      %v2128 = vpop.f32.mrf.mxu0
      %v2129 = vpop.f32.mrf.mxu0
      %v2130 = vadd.f32 %v1846, %v2129
      %v2131 = vpop.f32.mrf.mxu0
      %2132 = vmatprep.mubr.bf16.mxu0 %v1735
      %2133 = vmatmul.mubr.bf16.gmra.mxu0 %v1719
      %v2134 = vpop.f32.mrf.mxu0
      %v2135 = vadd.f32 %v1846, %v2134
      %v2136 = vpop.f32.mrf.mxu0
      %v2137 = vpop.f32.mrf.mxu0
      %v2138 = vadd.f32 %v1846, %v2137
      %v2139 = vpop.f32.mrf.mxu0
      %2140 = vdwg.mxu0
      %2141 = vmatprep.subr.bf16.mxu0 0
      %2142 = vmatpush1.bf16.msra.mxu0 %v2015
      %2143 = vmatprep.subr.bf16.mxu0 0
      %2144 = vmatpush1.bf16.msra.mxu0 %v2014
      %2145 = vmatprep.subr.bf16.mxu0 0
      %2146 = vmatpush1.bf16.msra.mxu0 %v2013
      %2147 = vmatprep.subr.bf16.mxu0 0
      %2148 = vmatpush1.bf16.msra.mxu0 %v2012
      %2149 = vmatprep.subr.bf16.mxu0 0
      %2150 = vmatpush1.bf16.msra.mxu0 %v2011
      %2151 = vmatprep.subr.bf16.mxu0 0
      %2152 = vmatpush1.bf16.msra.mxu0 %v2010
      %2153 = vmatprep.subr.bf16.mxu0 0
      %2154 = vmatpush1.bf16.msra.mxu0 %v2009
      %2155 = vmatprep.subr.bf16.mxu0 0
      %2156 = vmatpush1.bf16.msra.mxu0 %v2008
      %2157 = vmatprep.subr.bf16.mxu0 0
      %2158 = vmatpush2.bf16.msra.mxu0 %v2023
      %2159 = vmatprep.subr.bf16.mxu0 0
      %2160 = vmatpush2.bf16.msra.mxu0 %v2022
      %2161 = vmatprep.subr.bf16.mxu0 0
      %2162 = vmatpush2.bf16.msra.mxu0 %v2021
      %2163 = vmatprep.subr.bf16.mxu0 0
      %2164 = vmatpush2.bf16.msra.mxu0 %v2020
      %2165 = vmatprep.subr.bf16.mxu0 0
      %2166 = vmatpush2.bf16.msra.mxu0 %v2019
      %2167 = vmatprep.subr.bf16.mxu0 0
      %2168 = vmatpush2.bf16.msra.mxu0 %v2018
      %2169 = vmatprep.subr.bf16.mxu0 0
      %2170 = vmatpush2.bf16.msra.mxu0 %v2017
      %2171 = vmatprep.subr.bf16.mxu0 0
      %2172 = vmatpush2.bf16.msra.mxu0 %v2016
      %2173 = vmatprep.mubr.bf16.mxu0 %v1755
      %2174 = vmatmul.mubr.bf16.gmra.mxu0 %v1739
      %v2175 = vpop.f32.mrf.mxu0
      %v2176 = vadd.f32 %v2111, %v2175
      %v2177 = vpop.f32.mrf.mxu0
      %v2178 = vpop.f32.mrf.mxu0
      %v2179 = vadd.f32 %v2114, %v2178
      %v2180 = vpop.f32.mrf.mxu0
      %2181 = vmatprep.mubr.bf16.mxu0 %v1759
      %2182 = vmatmul.mubr.bf16.gmra.mxu0 %v1743
      %v2183 = vpop.f32.mrf.mxu0
      %v2184 = vadd.f32 %v2119, %v2183
      %v2185 = vpop.f32.mrf.mxu0
      %v2186 = vpop.f32.mrf.mxu0
      %v2187 = vadd.f32 %v2122, %v2186
      %v2188 = vpop.f32.mrf.mxu0
      %2189 = vmatprep.mubr.bf16.mxu0 %v1763
      %2190 = vmatmul.mubr.bf16.gmra.mxu0 %v1747
      %v2191 = vpop.f32.mrf.mxu0
      %v2192 = vadd.f32 %v2127, %v2191
      %v2193 = vpop.f32.mrf.mxu0
      %v2194 = vpop.f32.mrf.mxu0
      %v2195 = vadd.f32 %v2130, %v2194
      %v2196 = vpop.f32.mrf.mxu0
      %2197 = vmatprep.mubr.bf16.mxu0 %v1767
      %2198 = vmatmul.mubr.bf16.gmra.mxu0 %v1751
      %v2199 = vpop.f32.mrf.mxu0
      %v2200 = vadd.f32 %v2135, %v2199
      %v2201 = vpop.f32.mrf.mxu0
      %v2202 = vpop.f32.mrf.mxu0
      %v2203 = vadd.f32 %v2138, %v2202
      %v2204 = vpop.f32.mrf.mxu0
      %2205 = vdwg.mxu0
      %2206 = vmatprep.subr.bf16.mxu0 0
      %2207 = vmatpush1.bf16.msra.mxu0 0
      %2208 = vmatprep.subr.bf16.mxu0 0
      %2209 = vmatpush1.bf16.msra.mxu0 0
      %2210 = vmatprep.subr.bf16.mxu0 0
      %2211 = vmatpush1.bf16.msra.mxu0 0
      %2212 = vmatprep.subr.bf16.mxu0 0
      %2213 = vmatpush1.bf16.msra.mxu0 0
      %2214 = vmatprep.subr.bf16.mxu0 0
      %2215 = vmatpush1.bf16.msra.mxu0 %v2027
      %2216 = vmatprep.subr.bf16.mxu0 0
      %2217 = vmatpush1.bf16.msra.mxu0 %v2026
      %2218 = vmatprep.subr.bf16.mxu0 0
      %2219 = vmatpush1.bf16.msra.mxu0 %v2025
      %2220 = vmatprep.subr.bf16.mxu0 0
      %2221 = vmatpush1.bf16.msra.mxu0 %v2024
      %2222 = vmatprep.subr.bf16.mxu0 0
      %2223 = vmatpush2.bf16.msra.mxu0 0
      %2224 = vmatprep.subr.bf16.mxu0 0
      %2225 = vmatpush2.bf16.msra.mxu0 0
      %2226 = vmatprep.subr.bf16.mxu0 0
      %2227 = vmatpush2.bf16.msra.mxu0 0
      %2228 = vmatprep.subr.bf16.mxu0 0
      %2229 = vmatpush2.bf16.msra.mxu0 0
      %2230 = vmatprep.subr.bf16.mxu0 0
      %2231 = vmatpush2.bf16.msra.mxu0 0
      %2232 = vmatprep.subr.bf16.mxu0 0
      %2233 = vmatpush2.bf16.msra.mxu0 0
      %2234 = vmatprep.subr.bf16.mxu0 0
      %2235 = vmatpush2.bf16.msra.mxu0 0
      %2236 = vmatprep.subr.bf16.mxu0 0
      %2237 = vmatpush2.bf16.msra.mxu0 0
      %2238 = vmatprep.mubr.bf16.mxu0 0
      %2239 = vmatmul.mubr.bf16.gmra.mxu0 %v2065
      %v2240 = vpop.f32.mrf.mxu0
      %v2241 = vadd.f32 %v2176, %v2240
      %v2242 = vpop.f32.mrf.mxu0
      %v2243 = vpop.f32.mrf.mxu0
      %v2244 = vadd.f32 %v2179, %v2243
      %v2245 = vpop.f32.mrf.mxu0
      %2246 = vmatprep.mubr.bf16.mxu0 0
      %2247 = vmatmul.mubr.bf16.gmra.mxu0 %v2068
      %v2248 = vpop.f32.mrf.mxu0
      %v2249 = vadd.f32 %v2184, %v2248
      %v2250 = vpop.f32.mrf.mxu0
      %v2251 = vpop.f32.mrf.mxu0
      %v2252 = vadd.f32 %v2187, %v2251
      %v2253 = vpop.f32.mrf.mxu0
      %2254 = vmatprep.mubr.bf16.mxu0 0
      %2255 = vmatmul.mubr.bf16.gmra.mxu0 %v2071
      %v2256 = vpop.f32.mrf.mxu0
      %v2257 = vadd.f32 %v2192, %v2256
      %v2258 = vpop.f32.mrf.mxu0
      %v2259 = vpop.f32.mrf.mxu0
      %v2260 = vadd.f32 %v2195, %v2259
      %v2261 = vpop.f32.mrf.mxu0
      %2262 = vmatprep.mubr.bf16.mxu0 0
      %2263 = vmatmul.mubr.bf16.gmra.mxu0 %v2074
      %v2264 = vpop.f32.mrf.mxu0
      %v2265 = vadd.f32 %v2200, %v2264
      %v2266 = vpop.f32.mrf.mxu0
      %v2267 = vpop.f32.mrf.mxu0
      %v2268 = vadd.f32 %v2203, %v2267
      %v2269 = vpop.f32.mrf.mxu0
      %2270 = vdwg.mxu0
      %v2271 = vmax.f32 %v2241, 0.0
      %v2272 = vmax.f32 %v2244, 0.0
      %v2273 = vmax.f32 %v2249, 0.0
      %v2274 = vmax.f32 %v2252, 0.0
      %v2275 = vmax.f32 %v2257, 0.0
      %v2276 = vmax.f32 %v2260, 0.0
      %v2277 = vmax.f32 %v2265, 0.0
      %v2278 = vmax.f32 %v2268, 0.0
      %2279 = vst.msk [vmem:[%s1539 + $0x8] sm:$0xff] %vm307, %v2271
      %2280 = vst.msk [vmem:[%s1539 + $0x20] sm:$0xff] %vm307, %v2272
      %2281 = vst.msk [vmem:[%s1539 + $0x38] sm:$0xff] %vm307, %v2273
      %2282 = vst.msk [vmem:[%s1539 + $0x50] sm:$0xff] %vm307, %v2274
      %2283 = vst.msk [vmem:[%s1539 + $0x68] sm:$0xff] %vm307, %v2275
      %2284 = vst.msk [vmem:[%s1539 + $0x80] sm:$0xff] %vm307, %v2276
      %2285 = vst.msk [vmem:[%s1539 + $0x98] sm:$0xff] %vm307, %v2277
      %2286 = vst.msk [vmem:[%s1539 + $0xb0] sm:$0xff] %vm307, %v2278
      %v2287 = vld [vmem:[#allocation3 + $0x7] sm:$0xff]
      %v2288 = vld [vmem:[#allocation3 + $0x1f] sm:$0xff]
      %v2289 = vld [vmem:[#allocation3 + $0x37] sm:$0xff]
      %v2290 = vld [vmem:[#allocation3 + $0x4f] sm:$0xff]
      %v2291 = vld [vmem:[#allocation3 + $0x67] sm:$0xff]
      %v2292 = vld [vmem:[#allocation3 + $0x7f] sm:$0xff]
      %v2293 = vld [vmem:[#allocation3 + $0x97] sm:$0xff]
      %v2294 = vld [vmem:[#allocation3 + $0xaf] sm:$0xff]
      %v2295 = vpack.c.bf16 %v2288, %v2287
      %v2296 = vpack.c.bf16 %v2290, %v2289
      %v2297 = vpack.c.bf16 %v2292, %v2291
      %v2298 = vpack.c.bf16 %v2294, %v2293
      %v2299 = vld [vmem:[#allocation3 + $0x8] sm:$0xff]
      %v2300 = vld [vmem:[#allocation3 + $0x20] sm:$0xff]
      %v2301 = vld [vmem:[#allocation3 + $0x38] sm:$0xff]
      %v2302 = vld [vmem:[#allocation3 + $0x50] sm:$0xff]
      %v2303 = vld [vmem:[#allocation3 + $0x68] sm:$0xff]
      %v2304 = vld [vmem:[#allocation3 + $0x80] sm:$0xff]
      %v2305 = vld [vmem:[#allocation3 + $0x98] sm:$0xff]
      %v2306 = vld [vmem:[#allocation3 + $0xb0] sm:$0xff]
      %v2307 = vpack.c.bf16 %v2300, %v2299
      %v2308 = vpack.c.bf16 %v2302, %v2301
      %v2309 = vpack.c.bf16 %v2304, %v2303
      %v2310 = vpack.c.bf16 %v2306, %v2305
      %v2311 = vld [vmem:[#allocation3 + $0x9] sm:$0xff]
      %v2312 = vld [vmem:[#allocation3 + $0x21] sm:$0xff]
      %v2313 = vld [vmem:[#allocation3 + $0x39] sm:$0xff]
      %v2314 = vld [vmem:[#allocation3 + $0x51] sm:$0xff]
      %v2315 = vld [vmem:[#allocation3 + $0x69] sm:$0xff]
      %v2316 = vld [vmem:[#allocation3 + $0x81] sm:$0xff]
      %v2317 = vld [vmem:[#allocation3 + $0x99] sm:$0xff]
      %v2318 = vld [vmem:[#allocation3 + $0xb1] sm:$0xff]
      %v2319 = vpack.c.bf16 %v2312, %v2311
      %v2320 = vpack.c.bf16 %v2314, %v2313
      %v2321 = vpack.c.bf16 %v2316, %v2315
      %v2322 = vpack.c.bf16 %v2318, %v2317
      %v2323 = vld [vmem:[%s1539 + $0x7] sm:$0xff]
      %v2324 = vld [vmem:[%s1539 + $0x1f] sm:$0xff]
      %v2325 = vld [vmem:[%s1539 + $0x37] sm:$0xff]
      %v2326 = vld [vmem:[%s1539 + $0x4f] sm:$0xff]
      %v2327 = vld [vmem:[%s1539 + $0x67] sm:$0xff]
      %v2328 = vld [vmem:[%s1539 + $0x7f] sm:$0xff]
      %v2329 = vld [vmem:[%s1539 + $0x97] sm:$0xff]
      %v2330 = vld [vmem:[%s1539 + $0xaf] sm:$0xff]
      %v2331 = vpack.c.bf16 %v2324, %v2323
      %v2332 = vpack.c.bf16 %v2326, %v2325
      %v2333 = vpack.c.bf16 %v2328, %v2327
      %v2334 = vpack.c.bf16 %v2330, %v2329
      %v2335 = vld [vmem:[%s1539 + $0x8] sm:$0xff]
      %v2336 = vld [vmem:[%s1539 + $0x20] sm:$0xff]
      %v2337 = vld [vmem:[%s1539 + $0x38] sm:$0xff]
      %v2338 = vld [vmem:[%s1539 + $0x50] sm:$0xff]
      %v2339 = vld [vmem:[%s1539 + $0x68] sm:$0xff]
      %v2340 = vld [vmem:[%s1539 + $0x80] sm:$0xff]
      %v2341 = vld [vmem:[%s1539 + $0x98] sm:$0xff]
      %v2342 = vld [vmem:[%s1539 + $0xb0] sm:$0xff]
      %v2343 = vpack.c.bf16 %v2336, %v2335
      %v2344 = vpack.c.bf16 %v2338, %v2337
      %v2345 = vpack.c.bf16 %v2340, %v2339
      %v2346 = vpack.c.bf16 %v2342, %v2341
      %v2347 = vld [vmem:[%s1539 + $0x9] sm:$0xff]
      %v2348 = vld [vmem:[%s1539 + $0x21] sm:$0xff]
      %v2349 = vld [vmem:[%s1539 + $0x39] sm:$0xff]
      %v2350 = vld [vmem:[%s1539 + $0x51] sm:$0xff]
      %v2351 = vld [vmem:[%s1539 + $0x69] sm:$0xff]
      %v2352 = vld [vmem:[%s1539 + $0x81] sm:$0xff]
      %v2353 = vld [vmem:[%s1539 + $0x99] sm:$0xff]
      %v2354 = vld [vmem:[%s1539 + $0xb1] sm:$0xff]
      %v2355 = vpack.c.bf16 %v2348, %v2347
      %v2356 = vpack.c.bf16 %v2350, %v2349
      %v2357 = vpack.c.bf16 %v2352, %v2351
      %v2358 = vpack.c.bf16 %v2354, %v2353
      %v2359 = vld [vmem:[%s1620 + $0x7] sm:$0xff]
      %v2360 = vld [vmem:[%s1620 + $0x1f] sm:$0xff]
      %v2361 = vld [vmem:[%s1620 + $0x37] sm:$0xff]
      %v2362 = vld [vmem:[%s1620 + $0x4f] sm:$0xff]
      %v2363 = vld [vmem:[%s1620 + $0x67] sm:$0xff]
      %v2364 = vld [vmem:[%s1620 + $0x7f] sm:$0xff]
      %v2365 = vld [vmem:[%s1620 + $0x97] sm:$0xff]
      %v2366 = vld [vmem:[%s1620 + $0xaf] sm:$0xff]
      %v2367 = vpack.c.bf16 %v2360, %v2359
      %v2368 = vpack.c.bf16 %v2362, %v2361
      %v2369 = vpack.c.bf16 %v2364, %v2363
      %v2370 = vpack.c.bf16 %v2366, %v2365
      %v2371 = vld [vmem:[%s1620 + $0x8] sm:$0xff]
      %v2372 = vld [vmem:[%s1620 + $0x20] sm:$0xff]
      %v2373 = vld [vmem:[%s1620 + $0x38] sm:$0xff]
      %v2374 = vld [vmem:[%s1620 + $0x50] sm:$0xff]
      %v2375 = vld [vmem:[%s1620 + $0x68] sm:$0xff]
      %v2376 = vld [vmem:[%s1620 + $0x80] sm:$0xff]
      %v2377 = vld [vmem:[%s1620 + $0x98] sm:$0xff]
      %v2378 = vld [vmem:[%s1620 + $0xb0] sm:$0xff]
      %v2379 = vpack.c.bf16 %v2372, %v2371
      %v2380 = vpack.c.bf16 %v2374, %v2373
      %v2381 = vpack.c.bf16 %v2376, %v2375
      %v2382 = vpack.c.bf16 %v2378, %v2377
      %v2383 = vld [vmem:[%s1620 + $0x9] sm:$0xff]
      %v2384 = vld [vmem:[%s1620 + $0x21] sm:$0xff]
      %v2385 = vld [vmem:[%s1620 + $0x39] sm:$0xff]
      %v2386 = vld [vmem:[%s1620 + $0x51] sm:$0xff]
      %v2387 = vld [vmem:[%s1620 + $0x69] sm:$0xff]
      %v2388 = vld [vmem:[%s1620 + $0x81] sm:$0xff]
      %v2389 = vld [vmem:[%s1620 + $0x99] sm:$0xff]
      %v2390 = vld [vmem:[%s1620 + $0xb1] sm:$0xff]
      %v2391 = vpack.c.bf16 %v2384, %v2383
      %v2392 = vpack.c.bf16 %v2386, %v2385
      %v2393 = vpack.c.bf16 %v2388, %v2387
      %v2394 = vpack.c.bf16 %v2390, %v2389
      %2399 = vrot.lane.b32.xlu0 %v2307, 64
      %v2400 = vpop.permute.xlu0 %2399
      %2401 = vrot.lane.b32.xlu0 %v2308, 64
      %v2402 = vpop.permute.xlu0 %2401
      %2403 = vrot.lane.b32.xlu0 %v2309, 64
      %v2404 = vpop.permute.xlu0 %2403
      %2405 = vrot.lane.b32.xlu0 %v2310, 64
      %v2406 = vpop.permute.xlu0 %2405
      %2411 = vrot.lane.b32.xlu0 %v2331, 64
      %v2412 = vpop.permute.xlu0 %2411
      %2413 = vrot.lane.b32.xlu0 %v2332, 64
      %v2414 = vpop.permute.xlu0 %2413
      %2415 = vrot.lane.b32.xlu0 %v2333, 64
      %v2416 = vpop.permute.xlu0 %2415
      %2417 = vrot.lane.b32.xlu0 %v2334, 64
      %v2418 = vpop.permute.xlu0 %2417
      %2423 = vrot.lane.b32.xlu0 %v2355, 64
      %v2424 = vpop.permute.xlu0 %2423
      %2425 = vrot.lane.b32.xlu0 %v2356, 64
      %v2426 = vpop.permute.xlu0 %2425
      %2427 = vrot.lane.b32.xlu0 %v2357, 64
      %v2428 = vpop.permute.xlu0 %2427
      %2429 = vrot.lane.b32.xlu0 %v2358, 64
      %v2430 = vpop.permute.xlu0 %2429
      %2435 = vrot.lane.b32.xlu0 %v2379, 64
      %v2436 = vpop.permute.xlu0 %2435
      %2437 = vrot.lane.b32.xlu0 %v2380, 64
      %v2438 = vpop.permute.xlu0 %2437
      %2439 = vrot.lane.b32.xlu0 %v2381, 64
      %v2440 = vpop.permute.xlu0 %2439
      %2441 = vrot.lane.b32.xlu0 %v2382, 64
      %v2442 = vpop.permute.xlu0 %2441
      %v2445 = vsel %vm307, %v2295, %v2400
      %v2449 = vsel %vm307, %v2296, %v2402
      %v2453 = vsel %vm307, %v2297, %v2404
      %v2457 = vsel %vm307, %v2298, %v2406
      %v2461 = vsel %vm307, %v2319, %v2412
      %v2465 = vsel %vm307, %v2320, %v2414
      %v2469 = vsel %vm307, %v2321, %v2416
      %v2473 = vsel %vm307, %v2322, %v2418
      %v2477 = vsel %vm307, %v2343, %v2424
      %v2481 = vsel %vm307, %v2344, %v2426
      %v2485 = vsel %vm307, %v2345, %v2428
      %v2489 = vsel %vm307, %v2346, %v2430
      %v2493 = vsel %vm307, %v2367, %v2436
      %v2497 = vsel %vm307, %v2368, %v2438
      %v2501 = vsel %vm307, %v2369, %v2440
      %v2505 = vsel %vm307, %v2370, %v2442
      %s2507 = scalar_lea.vmem %s4, 288
      %v2508 = vld [vmem:[%s2507] sm:$0xf]
      %v2509 = vld [vmem:[%s2507 + $0x4] sm:$0xf]
      %v2510 = vld [vmem:[%s2507 + $0x8] sm:$0xf]
      %v2511 = vld [vmem:[%s2507 + $0xc] sm:$0xf]
      %v2512 = vld [vmem:[%s2507 + $0x10] sm:$0xf]
      %v2513 = vld [vmem:[%s2507 + $0x14] sm:$0xf]
      %v2514 = vld [vmem:[%s2507 + $0x18] sm:$0xf]
      %v2515 = vld [vmem:[%s2507 + $0x1c] sm:$0xf]
      %v2516 = vld [vmem:[%s2507 + $0x20] sm:$0xf]
      %v2517 = vld [vmem:[%s2507 + $0x24] sm:$0xf]
      %v2518 = vld [vmem:[%s2507 + $0x28] sm:$0xf]
      %v2519 = vld [vmem:[%s2507 + $0x2c] sm:$0xf]
      %v2520 = vld [vmem:[%s2507 + $0x30] sm:$0xf]
      %v2521 = vld [vmem:[%s2507 + $0x34] sm:$0xf]
      %v2522 = vld [vmem:[%s2507 + $0x38] sm:$0xf]
      %v2523 = vld [vmem:[%s2507 + $0x3c] sm:$0xf]
      %v2524 = vld [vmem:[%s2507 + $0x40] sm:$0xf]
      %v2525 = vld [vmem:[%s2507 + $0x44] sm:$0xf]
      %v2526 = vld [vmem:[%s2507 + $0x48] sm:$0xf]
      %v2527 = vld [vmem:[%s2507 + $0x4c] sm:$0xf]
      %v2528 = vld [vmem:[%s2507 + $0x50] sm:$0xf]
      %v2529 = vld [vmem:[%s2507 + $0x54] sm:$0xf]
      %v2530 = vld [vmem:[%s2507 + $0x58] sm:$0xf]
      %v2531 = vld [vmem:[%s2507 + $0x5c] sm:$0xf]
      %v2532 = vld [vmem:[%s2507 + $0x60] sm:$0xf]
      %v2533 = vld [vmem:[%s2507 + $0x64] sm:$0xf]
      %v2534 = vld [vmem:[%s2507 + $0x68] sm:$0xf]
      %v2535 = vld [vmem:[%s2507 + $0x6c] sm:$0xf]
      %v2536 = vld [vmem:[%s2507 + $0x70] sm:$0xf]
      %v2537 = vld [vmem:[%s2507 + $0x74] sm:$0xf]
      %v2538 = vld [vmem:[%s2507 + $0x78] sm:$0xf]
      %v2539 = vld [vmem:[%s2507 + $0x7c] sm:$0xf]
      %v2540 = vld [vmem:[%s2507 + $0x80] sm:$0xf]
      %v2541 = vld [vmem:[%s2507 + $0x84] sm:$0xf]
      %v2542 = vld [vmem:[%s2507 + $0x88] sm:$0xf]
      %v2543 = vld [vmem:[%s2507 + $0x8c] sm:$0xf]
      %v2544 = vld [vmem:[%s2507 + $0x90] sm:$0xf]
      %v2545 = vld [vmem:[%s2507 + $0x94] sm:$0xf]
      %v2546 = vld [vmem:[%s2507 + $0x98] sm:$0xf]
      %v2547 = vld [vmem:[%s2507 + $0x9c] sm:$0xf]
      %v2548 = vld [vmem:[%s2507 + $0xa0] sm:$0xf]
      %v2549 = vld [vmem:[%s2507 + $0xa4] sm:$0xf]
      %v2550 = vld [vmem:[%s2507 + $0xa8] sm:$0xf]
      %v2551 = vld [vmem:[%s2507 + $0xac] sm:$0xf]
      %v2552 = vld [vmem:[%s2507 + $0xb0] sm:$0xf]
      %v2553 = vld [vmem:[%s2507 + $0xb4] sm:$0xf]
      %v2554 = vld [vmem:[%s2507 + $0xb8] sm:$0xf]
      %v2555 = vld [vmem:[%s2507 + $0xbc] sm:$0xf]
      %v2556 = vld [vmem:[%s2507 + $0xc0] sm:$0xf]
      %v2557 = vld [vmem:[%s2507 + $0xc4] sm:$0xf]
      %v2558 = vld [vmem:[%s2507 + $0xc8] sm:$0xf]
      %v2559 = vld [vmem:[%s2507 + $0xcc] sm:$0xf]
      %v2560 = vld [vmem:[%s2507 + $0xd0] sm:$0xf]
      %v2561 = vld [vmem:[%s2507 + $0xd4] sm:$0xf]
      %v2562 = vld [vmem:[%s2507 + $0xd8] sm:$0xf]
      %v2563 = vld [vmem:[%s2507 + $0xdc] sm:$0xf]
      %v2564 = vld [vmem:[%s2507 + $0xe0] sm:$0xf]
      %v2565 = vld [vmem:[%s2507 + $0xe4] sm:$0xf]
      %v2566 = vld [vmem:[%s2507 + $0xe8] sm:$0xf]
      %v2567 = vld [vmem:[%s2507 + $0xec] sm:$0xf]
      %v2568 = vld [vmem:[%s2507 + $0xf0] sm:$0xf]
      %v2569 = vld [vmem:[%s2507 + $0xf4] sm:$0xf]
      %v2570 = vld [vmem:[%s2507 + $0xf8] sm:$0xf]
      %v2571 = vld [vmem:[%s2507 + $0xfc] sm:$0xf]
      %v2572 = vld [vmem:[%s2507 + $0x100] sm:$0xf]
      %v2573 = vld [vmem:[%s2507 + $0x104] sm:$0xf]
      %v2574 = vld [vmem:[%s2507 + $0x108] sm:$0xf]
      %v2575 = vld [vmem:[%s2507 + $0x10c] sm:$0xf]
      %v2576 = vld [vmem:[%s2507 + $0x110] sm:$0xf]
      %v2577 = vld [vmem:[%s2507 + $0x114] sm:$0xf]
      %v2578 = vld [vmem:[%s2507 + $0x118] sm:$0xf]
      %v2579 = vld [vmem:[%s2507 + $0x11c] sm:$0xf]
      %s2580 = scalar_lea.vmem %s5, 1
      %v2581 = vld [vmem:[%s2580] sm:$0x1]
      %v2583 = vlaneseq
      %v2584 = vshrl.u32 %v2583, 7
      %v2585 = vsub.s32 0, %v2584
      %v2586 = vrot.slane %v2581, %v2585
      %v2660 = vunpack.c.l.b16 %v2508
      %v2661 = vunpack.c.l.b16 %v2509
      %v2662 = vunpack.c.l.b16 %v2510
      %v2663 = vunpack.c.l.b16 %v2511
      %v2664 = vunpack.c.l.b16 %v2512
      %v2665 = vunpack.c.l.b16 %v2513
      %v2666 = vunpack.c.l.b16 %v2514
      %v2667 = vunpack.c.l.b16 %v2515
      %v2668 = vunpack.c.l.b16 %v2516
      %v2669 = vunpack.c.l.b16 %v2517
      %v2670 = vunpack.c.l.b16 %v2518
      %v2671 = vunpack.c.l.b16 %v2519
      %v2672 = vunpack.c.l.b16 %v2520
      %v2673 = vunpack.c.l.b16 %v2521
      %v2674 = vunpack.c.l.b16 %v2522
      %v2675 = vunpack.c.l.b16 %v2523
      %v2676 = vunpack.c.l.b16 %v2524
      %v2677 = vunpack.c.l.b16 %v2525
      %v2678 = vunpack.c.l.b16 %v2526
      %v2679 = vunpack.c.l.b16 %v2527
      %v2680 = vunpack.c.l.b16 %v2528
      %v2681 = vunpack.c.l.b16 %v2529
      %v2682 = vunpack.c.l.b16 %v2530
      %v2683 = vunpack.c.l.b16 %v2531
      %v2684 = vunpack.c.l.b16 %v2532
      %v2685 = vunpack.c.l.b16 %v2533
      %v2686 = vunpack.c.l.b16 %v2534
      %v2687 = vunpack.c.l.b16 %v2535
      %v2688 = vunpack.c.l.b16 %v2536
      %v2689 = vunpack.c.l.b16 %v2537
      %v2690 = vunpack.c.l.b16 %v2538
      %v2691 = vunpack.c.l.b16 %v2539
      %v2692 = vunpack.c.l.b16 %v2540
      %v2693 = vunpack.c.l.b16 %v2541
      %v2694 = vunpack.c.l.b16 %v2542
      %v2695 = vunpack.c.l.b16 %v2543
      %v2696 = vunpack.c.l.b16 %v2544
      %v2697 = vunpack.c.l.b16 %v2545
      %v2698 = vunpack.c.l.b16 %v2546
      %v2699 = vunpack.c.l.b16 %v2547
      %v2700 = vunpack.c.l.b16 %v2548
      %v2701 = vunpack.c.l.b16 %v2549
      %v2702 = vunpack.c.l.b16 %v2550
      %v2703 = vunpack.c.l.b16 %v2551
      %v2704 = vunpack.c.l.b16 %v2552
      %v2705 = vunpack.c.l.b16 %v2553
      %v2706 = vunpack.c.l.b16 %v2554
      %v2707 = vunpack.c.l.b16 %v2555
      %v2708 = vunpack.c.l.b16 %v2556
      %v2709 = vunpack.c.l.b16 %v2557
      %v2710 = vunpack.c.l.b16 %v2558
      %v2711 = vunpack.c.l.b16 %v2559
      %v2712 = vunpack.c.l.b16 %v2560
      %v2713 = vunpack.c.l.b16 %v2561
      %v2714 = vunpack.c.l.b16 %v2562
      %v2715 = vunpack.c.l.b16 %v2563
      %v2716 = vunpack.c.l.b16 %v2564
      %v2717 = vunpack.c.l.b16 %v2565
      %v2718 = vunpack.c.l.b16 %v2566
      %v2719 = vunpack.c.l.b16 %v2567
      %v2720 = vunpack.c.l.b16 %v2568
      %v2721 = vunpack.c.l.b16 %v2569
      %v2722 = vunpack.c.l.b16 %v2570
      %v2723 = vunpack.c.l.b16 %v2571
      %v2724 = vunpack.c.l.b16 %v2572
      %v2725 = vunpack.c.l.b16 %v2573
      %v2726 = vunpack.c.l.b16 %v2574
      %v2727 = vunpack.c.l.b16 %v2575
      %v2728 = vunpack.c.l.b16 %v2576
      %v2729 = vunpack.c.l.b16 %v2577
      %v2730 = vunpack.c.l.b16 %v2578
      %v2731 = vunpack.c.l.b16 %v2579
      %v2732 = vpack.c.b16 %v2661, %v2660
      %v2733 = vpack.c.b16 %v2663, %v2662
      %v2734 = vpack.c.b16 %v2665, %v2664
      %v2735 = vpack.c.b16 %v2667, %v2666
      %v2736 = vpack.c.b16 %v2669, %v2668
      %v2737 = vpack.c.b16 %v2671, %v2670
      %v2738 = vpack.c.b16 %v2673, %v2672
      %v2739 = vpack.c.b16 %v2675, %v2674
      %v2740 = vpack.c.b16 %v2677, %v2676
      %v2741 = vpack.c.b16 %v2679, %v2678
      %v2742 = vpack.c.b16 %v2681, %v2680
      %v2743 = vpack.c.b16 %v2683, %v2682
      %v2744 = vpack.c.b16 %v2685, %v2684
      %v2745 = vpack.c.b16 %v2687, %v2686
      %v2746 = vpack.c.b16 %v2689, %v2688
      %v2747 = vpack.c.b16 %v2691, %v2690
      %v2748 = vpack.c.b16 %v2693, %v2692
      %v2749 = vpack.c.b16 %v2695, %v2694
      %v2750 = vpack.c.b16 %v2697, %v2696
      %v2751 = vpack.c.b16 %v2699, %v2698
      %v2752 = vpack.c.b16 %v2701, %v2700
      %v2753 = vpack.c.b16 %v2703, %v2702
      %v2754 = vpack.c.b16 %v2705, %v2704
      %v2755 = vpack.c.b16 %v2707, %v2706
      %v2756 = vpack.c.b16 %v2709, %v2708
      %v2757 = vpack.c.b16 %v2711, %v2710
      %v2758 = vpack.c.b16 %v2713, %v2712
      %v2759 = vpack.c.b16 %v2715, %v2714
      %v2760 = vpack.c.b16 %v2717, %v2716
      %v2761 = vpack.c.b16 %v2719, %v2718
      %v2762 = vpack.c.b16 %v2721, %v2720
      %v2763 = vpack.c.b16 %v2723, %v2722
      %v2764 = vpack.c.b16 %v2725, %v2724
      %v2765 = vpack.c.b16 %v2727, %v2726
      %v2766 = vpack.c.b16 %v2729, %v2728
      %v2767 = vpack.c.b16 %v2731, %v2730
      %v2805 = vsel %vm307, %v2391, 0
      %v2808 = vsel %vm307, %v2392, 0
      %v2811 = vsel %vm307, %v2393, 0
      %v2814 = vsel %vm307, %v2394, 0
      %2816 = vmatprep.subr.bf16.mxu0 0
      %2817 = vmatpush1.bf16.msra.mxu0 %v2739
      %2818 = vmatprep.subr.bf16.mxu0 0
      %2819 = vmatpush1.bf16.msra.mxu0 %v2738
      %2820 = vmatprep.subr.bf16.mxu0 0
      %2821 = vmatpush1.bf16.msra.mxu0 %v2737
      %2822 = vmatprep.subr.bf16.mxu0 0
      %2823 = vmatpush1.bf16.msra.mxu0 %v2736
      %2824 = vmatprep.subr.bf16.mxu0 0
      %2825 = vmatpush1.bf16.msra.mxu0 %v2735
      %2826 = vmatprep.subr.bf16.mxu0 0
      %2827 = vmatpush1.bf16.msra.mxu0 %v2734
      %2828 = vmatprep.subr.bf16.mxu0 0
      %2829 = vmatpush1.bf16.msra.mxu0 %v2733
      %2830 = vmatprep.subr.bf16.mxu0 0
      %2831 = vmatpush1.bf16.msra.mxu0 %v2732
      %2832 = vmatprep.subr.bf16.mxu0 0
      %2833 = vmatpush2.bf16.msra.mxu0 %v2747
      %2834 = vmatprep.subr.bf16.mxu0 0
      %2835 = vmatpush2.bf16.msra.mxu0 %v2746
      %2836 = vmatprep.subr.bf16.mxu0 0
      %2837 = vmatpush2.bf16.msra.mxu0 %v2745
      %2838 = vmatprep.subr.bf16.mxu0 0
      %2839 = vmatpush2.bf16.msra.mxu0 %v2744
      %2840 = vmatprep.subr.bf16.mxu0 0
      %2841 = vmatpush2.bf16.msra.mxu0 %v2743
      %2842 = vmatprep.subr.bf16.mxu0 0
      %2843 = vmatpush2.bf16.msra.mxu0 %v2742
      %2844 = vmatprep.subr.bf16.mxu0 0
      %2845 = vmatpush2.bf16.msra.mxu0 %v2741
      %2846 = vmatprep.subr.bf16.mxu0 0
      %2847 = vmatpush2.bf16.msra.mxu0 %v2740
      %2848 = vmatprep.mubr.bf16.mxu0 %v2461
      %2849 = vmatmul.mubr.bf16.gmra.mxu0 %v2445
      %v2850 = vpop.f32.mrf.mxu0
      %v2851 = vadd.f32 %v2586, %v2850
      %v2852 = vpop.f32.mrf.mxu0
      %v2853 = vpop.f32.mrf.mxu0
      %v2854 = vadd.f32 %v2586, %v2853
      %v2855 = vpop.f32.mrf.mxu0
      %2856 = vmatprep.mubr.bf16.mxu0 %v2465
      %2857 = vmatmul.mubr.bf16.gmra.mxu0 %v2449
      %v2858 = vpop.f32.mrf.mxu0
      %v2859 = vadd.f32 %v2586, %v2858
      %v2860 = vpop.f32.mrf.mxu0
      %v2861 = vpop.f32.mrf.mxu0
      %v2862 = vadd.f32 %v2586, %v2861
      %v2863 = vpop.f32.mrf.mxu0
      %2864 = vmatprep.mubr.bf16.mxu0 %v2469
      %2865 = vmatmul.mubr.bf16.gmra.mxu0 %v2453
      %v2866 = vpop.f32.mrf.mxu0
      %v2867 = vadd.f32 %v2586, %v2866
      %v2868 = vpop.f32.mrf.mxu0
      %v2869 = vpop.f32.mrf.mxu0
      %v2870 = vadd.f32 %v2586, %v2869
      %v2871 = vpop.f32.mrf.mxu0
      %2872 = vmatprep.mubr.bf16.mxu0 %v2473
      %2873 = vmatmul.mubr.bf16.gmra.mxu0 %v2457
      %v2874 = vpop.f32.mrf.mxu0
      %v2875 = vadd.f32 %v2586, %v2874
      %v2876 = vpop.f32.mrf.mxu0
      %v2877 = vpop.f32.mrf.mxu0
      %v2878 = vadd.f32 %v2586, %v2877
      %v2879 = vpop.f32.mrf.mxu0
      %2880 = vdwg.mxu0
      %2881 = vmatprep.subr.bf16.mxu0 0
      %2882 = vmatpush1.bf16.msra.mxu0 %v2755
      %2883 = vmatprep.subr.bf16.mxu0 0
      %2884 = vmatpush1.bf16.msra.mxu0 %v2754
      %2885 = vmatprep.subr.bf16.mxu0 0
      %2886 = vmatpush1.bf16.msra.mxu0 %v2753
      %2887 = vmatprep.subr.bf16.mxu0 0
      %2888 = vmatpush1.bf16.msra.mxu0 %v2752
      %2889 = vmatprep.subr.bf16.mxu0 0
      %2890 = vmatpush1.bf16.msra.mxu0 %v2751
      %2891 = vmatprep.subr.bf16.mxu0 0
      %2892 = vmatpush1.bf16.msra.mxu0 %v2750
      %2893 = vmatprep.subr.bf16.mxu0 0
      %2894 = vmatpush1.bf16.msra.mxu0 %v2749
      %2895 = vmatprep.subr.bf16.mxu0 0
      %2896 = vmatpush1.bf16.msra.mxu0 %v2748
      %2897 = vmatprep.subr.bf16.mxu0 0
      %2898 = vmatpush2.bf16.msra.mxu0 %v2763
      %2899 = vmatprep.subr.bf16.mxu0 0
      %2900 = vmatpush2.bf16.msra.mxu0 %v2762
      %2901 = vmatprep.subr.bf16.mxu0 0
      %2902 = vmatpush2.bf16.msra.mxu0 %v2761
      %2903 = vmatprep.subr.bf16.mxu0 0
      %2904 = vmatpush2.bf16.msra.mxu0 %v2760
      %2905 = vmatprep.subr.bf16.mxu0 0
      %2906 = vmatpush2.bf16.msra.mxu0 %v2759
      %2907 = vmatprep.subr.bf16.mxu0 0
      %2908 = vmatpush2.bf16.msra.mxu0 %v2758
      %2909 = vmatprep.subr.bf16.mxu0 0
      %2910 = vmatpush2.bf16.msra.mxu0 %v2757
      %2911 = vmatprep.subr.bf16.mxu0 0
      %2912 = vmatpush2.bf16.msra.mxu0 %v2756
      %2913 = vmatprep.mubr.bf16.mxu0 %v2493
      %2914 = vmatmul.mubr.bf16.gmra.mxu0 %v2477
      %v2915 = vpop.f32.mrf.mxu0
      %v2916 = vadd.f32 %v2851, %v2915
      %v2917 = vpop.f32.mrf.mxu0
      %v2918 = vpop.f32.mrf.mxu0
      %v2919 = vadd.f32 %v2854, %v2918
      %v2920 = vpop.f32.mrf.mxu0
      %2921 = vmatprep.mubr.bf16.mxu0 %v2497
      %2922 = vmatmul.mubr.bf16.gmra.mxu0 %v2481
      %v2923 = vpop.f32.mrf.mxu0
      %v2924 = vadd.f32 %v2859, %v2923
      %v2925 = vpop.f32.mrf.mxu0
      %v2926 = vpop.f32.mrf.mxu0
      %v2927 = vadd.f32 %v2862, %v2926
      %v2928 = vpop.f32.mrf.mxu0
      %2929 = vmatprep.mubr.bf16.mxu0 %v2501
      %2930 = vmatmul.mubr.bf16.gmra.mxu0 %v2485
      %v2931 = vpop.f32.mrf.mxu0
      %v2932 = vadd.f32 %v2867, %v2931
      %v2933 = vpop.f32.mrf.mxu0
      %v2934 = vpop.f32.mrf.mxu0
      %v2935 = vadd.f32 %v2870, %v2934
      %v2936 = vpop.f32.mrf.mxu0
      %2937 = vmatprep.mubr.bf16.mxu0 %v2505
      %2938 = vmatmul.mubr.bf16.gmra.mxu0 %v2489
      %v2939 = vpop.f32.mrf.mxu0
      %v2940 = vadd.f32 %v2875, %v2939
      %v2941 = vpop.f32.mrf.mxu0
      %v2942 = vpop.f32.mrf.mxu0
      %v2943 = vadd.f32 %v2878, %v2942
      %v2944 = vpop.f32.mrf.mxu0
      %2945 = vdwg.mxu0
      %2946 = vmatprep.subr.bf16.mxu0 0
      %2947 = vmatpush1.bf16.msra.mxu0 0
      %2948 = vmatprep.subr.bf16.mxu0 0
      %2949 = vmatpush1.bf16.msra.mxu0 0
      %2950 = vmatprep.subr.bf16.mxu0 0
      %2951 = vmatpush1.bf16.msra.mxu0 0
      %2952 = vmatprep.subr.bf16.mxu0 0
      %2953 = vmatpush1.bf16.msra.mxu0 0
      %2954 = vmatprep.subr.bf16.mxu0 0
      %2955 = vmatpush1.bf16.msra.mxu0 %v2767
      %2956 = vmatprep.subr.bf16.mxu0 0
      %2957 = vmatpush1.bf16.msra.mxu0 %v2766
      %2958 = vmatprep.subr.bf16.mxu0 0
      %2959 = vmatpush1.bf16.msra.mxu0 %v2765
      %2960 = vmatprep.subr.bf16.mxu0 0
      %2961 = vmatpush1.bf16.msra.mxu0 %v2764
      %2962 = vmatprep.subr.bf16.mxu0 0
      %2963 = vmatpush2.bf16.msra.mxu0 0
      %2964 = vmatprep.subr.bf16.mxu0 0
      %2965 = vmatpush2.bf16.msra.mxu0 0
      %2966 = vmatprep.subr.bf16.mxu0 0
      %2967 = vmatpush2.bf16.msra.mxu0 0
      %2968 = vmatprep.subr.bf16.mxu0 0
      %2969 = vmatpush2.bf16.msra.mxu0 0
      %2970 = vmatprep.subr.bf16.mxu0 0
      %2971 = vmatpush2.bf16.msra.mxu0 0
      %2972 = vmatprep.subr.bf16.mxu0 0
      %2973 = vmatpush2.bf16.msra.mxu0 0
      %2974 = vmatprep.subr.bf16.mxu0 0
      %2975 = vmatpush2.bf16.msra.mxu0 0
      %2976 = vmatprep.subr.bf16.mxu0 0
      %2977 = vmatpush2.bf16.msra.mxu0 0
      %2978 = vmatprep.mubr.bf16.mxu0 0
      %2979 = vmatmul.mubr.bf16.gmra.mxu0 %v2805
      %v2980 = vpop.f32.mrf.mxu0
      %v2981 = vadd.f32 %v2916, %v2980
      %v2982 = vpop.f32.mrf.mxu0
      %v2983 = vpop.f32.mrf.mxu0
      %v2984 = vadd.f32 %v2919, %v2983
      %v2985 = vpop.f32.mrf.mxu0
      %2986 = vmatprep.mubr.bf16.mxu0 0
      %2987 = vmatmul.mubr.bf16.gmra.mxu0 %v2808
      %v2988 = vpop.f32.mrf.mxu0
      %v2989 = vadd.f32 %v2924, %v2988
      %v2990 = vpop.f32.mrf.mxu0
      %v2991 = vpop.f32.mrf.mxu0
      %v2992 = vadd.f32 %v2927, %v2991
      %v2993 = vpop.f32.mrf.mxu0
      %2994 = vmatprep.mubr.bf16.mxu0 0
      %2995 = vmatmul.mubr.bf16.gmra.mxu0 %v2811
      %v2996 = vpop.f32.mrf.mxu0
      %v2997 = vadd.f32 %v2932, %v2996
      %v2998 = vpop.f32.mrf.mxu0
      %v2999 = vpop.f32.mrf.mxu0
      %v3000 = vadd.f32 %v2935, %v2999
      %v3001 = vpop.f32.mrf.mxu0
      %3002 = vmatprep.mubr.bf16.mxu0 0
      %3003 = vmatmul.mubr.bf16.gmra.mxu0 %v2814
      %v3004 = vpop.f32.mrf.mxu0
      %v3005 = vadd.f32 %v2940, %v3004
      %v3006 = vpop.f32.mrf.mxu0
      %v3007 = vpop.f32.mrf.mxu0
      %v3008 = vadd.f32 %v2943, %v3007
      %v3009 = vpop.f32.mrf.mxu0
      %3010 = vdwg.mxu0
      %v3011 = vadd.f32 %v2981, %v1509
      %v3012 = vadd.f32 %v2984, %v1512
      %v3013 = vadd.f32 %v2989, %v1517
      %v3014 = vadd.f32 %v2992, %v1520
      %v3015 = vadd.f32 %v2997, %v1525
      %v3016 = vadd.f32 %v3000, %v1528
      %v3017 = vadd.f32 %v3005, %v1533
      %v3018 = vadd.f32 %v3008, %v1536
      %v3019 = vmax.f32 %v3011, 0.0
      %v3020 = vmax.f32 %v3012, 0.0
      %v3021 = vmax.f32 %v3013, 0.0
      %v3022 = vmax.f32 %v3014, 0.0
      %v3023 = vmax.f32 %v3015, 0.0
      %v3024 = vmax.f32 %v3016, 0.0
      %v3025 = vmax.f32 %v3017, 0.0
      %v3026 = vmax.f32 %v3018, 0.0
      %3027 = vst.msk [vmem:[%s1539 + $0x8] sm:$0xff] %vm307, %v3019
      %3028 = vst.msk [vmem:[%s1539 + $0x20] sm:$0xff] %vm307, %v3020
      %3029 = vst.msk [vmem:[%s1539 + $0x38] sm:$0xff] %vm307, %v3021
      %3030 = vst.msk [vmem:[%s1539 + $0x50] sm:$0xff] %vm307, %v3022
      %3031 = vst.msk [vmem:[%s1539 + $0x68] sm:$0xff] %vm307, %v3023
      %3032 = vst.msk [vmem:[%s1539 + $0x80] sm:$0xff] %vm307, %v3024
      %3033 = vst.msk [vmem:[%s1539 + $0x98] sm:$0xff] %vm307, %v3025
      %3034 = vst.msk [vmem:[%s1539 + $0xb0] sm:$0xff] %vm307, %v3026
      %v3035 = vld [vmem:[#allocation3 + $0x7] sm:$0xff]
      %v3036 = vld [vmem:[#allocation3 + $0x1f] sm:$0xff]
      %v3037 = vld [vmem:[#allocation3 + $0x37] sm:$0xff]
      %v3038 = vld [vmem:[#allocation3 + $0x4f] sm:$0xff]
      %v3039 = vld [vmem:[#allocation3 + $0x67] sm:$0xff]
      %v3040 = vld [vmem:[#allocation3 + $0x7f] sm:$0xff]
      %v3041 = vld [vmem:[#allocation3 + $0x97] sm:$0xff]
      %v3042 = vld [vmem:[#allocation3 + $0xaf] sm:$0xff]
      %v3043 = vpack.c.bf16 %v3036, %v3035
      %v3044 = vpack.c.bf16 %v3038, %v3037
      %v3045 = vpack.c.bf16 %v3040, %v3039
      %v3046 = vpack.c.bf16 %v3042, %v3041
      %v3047 = vld [vmem:[#allocation3 + $0x8] sm:$0xff]
      %v3048 = vld [vmem:[#allocation3 + $0x20] sm:$0xff]
      %v3049 = vld [vmem:[#allocation3 + $0x38] sm:$0xff]
      %v3050 = vld [vmem:[#allocation3 + $0x50] sm:$0xff]
      %v3051 = vld [vmem:[#allocation3 + $0x68] sm:$0xff]
      %v3052 = vld [vmem:[#allocation3 + $0x80] sm:$0xff]
      %v3053 = vld [vmem:[#allocation3 + $0x98] sm:$0xff]
      %v3054 = vld [vmem:[#allocation3 + $0xb0] sm:$0xff]
      %v3055 = vpack.c.bf16 %v3048, %v3047
      %v3056 = vpack.c.bf16 %v3050, %v3049
      %v3057 = vpack.c.bf16 %v3052, %v3051
      %v3058 = vpack.c.bf16 %v3054, %v3053
      %v3059 = vld [vmem:[#allocation3 + $0x9] sm:$0xff]
      %v3060 = vld [vmem:[#allocation3 + $0x21] sm:$0xff]
      %v3061 = vld [vmem:[#allocation3 + $0x39] sm:$0xff]
      %v3062 = vld [vmem:[#allocation3 + $0x51] sm:$0xff]
      %v3063 = vld [vmem:[#allocation3 + $0x69] sm:$0xff]
      %v3064 = vld [vmem:[#allocation3 + $0x81] sm:$0xff]
      %v3065 = vld [vmem:[#allocation3 + $0x99] sm:$0xff]
      %v3066 = vld [vmem:[#allocation3 + $0xb1] sm:$0xff]
      %v3067 = vpack.c.bf16 %v3060, %v3059
      %v3068 = vpack.c.bf16 %v3062, %v3061
      %v3069 = vpack.c.bf16 %v3064, %v3063
      %v3070 = vpack.c.bf16 %v3066, %v3065
      %v3071 = vld [vmem:[%s1539 + $0x7] sm:$0xff]
      %v3072 = vld [vmem:[%s1539 + $0x1f] sm:$0xff]
      %v3073 = vld [vmem:[%s1539 + $0x37] sm:$0xff]
      %v3074 = vld [vmem:[%s1539 + $0x4f] sm:$0xff]
      %v3075 = vld [vmem:[%s1539 + $0x67] sm:$0xff]
      %v3076 = vld [vmem:[%s1539 + $0x7f] sm:$0xff]
      %v3077 = vld [vmem:[%s1539 + $0x97] sm:$0xff]
      %v3078 = vld [vmem:[%s1539 + $0xaf] sm:$0xff]
      %v3079 = vpack.c.bf16 %v3072, %v3071
      %v3080 = vpack.c.bf16 %v3074, %v3073
      %v3081 = vpack.c.bf16 %v3076, %v3075
      %v3082 = vpack.c.bf16 %v3078, %v3077
      %v3083 = vld [vmem:[%s1539 + $0x8] sm:$0xff]
      %v3084 = vld [vmem:[%s1539 + $0x20] sm:$0xff]
      %v3085 = vld [vmem:[%s1539 + $0x38] sm:$0xff]
      %v3086 = vld [vmem:[%s1539 + $0x50] sm:$0xff]
      %v3087 = vld [vmem:[%s1539 + $0x68] sm:$0xff]
      %v3088 = vld [vmem:[%s1539 + $0x80] sm:$0xff]
      %v3089 = vld [vmem:[%s1539 + $0x98] sm:$0xff]
      %v3090 = vld [vmem:[%s1539 + $0xb0] sm:$0xff]
      %v3091 = vpack.c.bf16 %v3084, %v3083
      %v3092 = vpack.c.bf16 %v3086, %v3085
      %v3093 = vpack.c.bf16 %v3088, %v3087
      %v3094 = vpack.c.bf16 %v3090, %v3089
      %v3095 = vld [vmem:[%s1539 + $0x9] sm:$0xff]
      %v3096 = vld [vmem:[%s1539 + $0x21] sm:$0xff]
      %v3097 = vld [vmem:[%s1539 + $0x39] sm:$0xff]
      %v3098 = vld [vmem:[%s1539 + $0x51] sm:$0xff]
      %v3099 = vld [vmem:[%s1539 + $0x69] sm:$0xff]
      %v3100 = vld [vmem:[%s1539 + $0x81] sm:$0xff]
      %v3101 = vld [vmem:[%s1539 + $0x99] sm:$0xff]
      %v3102 = vld [vmem:[%s1539 + $0xb1] sm:$0xff]
      %v3103 = vpack.c.bf16 %v3096, %v3095
      %v3104 = vpack.c.bf16 %v3098, %v3097
      %v3105 = vpack.c.bf16 %v3100, %v3099
      %v3106 = vpack.c.bf16 %v3102, %v3101
      %v3107 = vld [vmem:[%s1620 + $0x7] sm:$0xff]
      %v3108 = vld [vmem:[%s1620 + $0x1f] sm:$0xff]
      %v3109 = vld [vmem:[%s1620 + $0x37] sm:$0xff]
      %v3110 = vld [vmem:[%s1620 + $0x4f] sm:$0xff]
      %v3111 = vld [vmem:[%s1620 + $0x67] sm:$0xff]
      %v3112 = vld [vmem:[%s1620 + $0x7f] sm:$0xff]
      %v3113 = vld [vmem:[%s1620 + $0x97] sm:$0xff]
      %v3114 = vld [vmem:[%s1620 + $0xaf] sm:$0xff]
      %v3115 = vpack.c.bf16 %v3108, %v3107
      %v3116 = vpack.c.bf16 %v3110, %v3109
      %v3117 = vpack.c.bf16 %v3112, %v3111
      %v3118 = vpack.c.bf16 %v3114, %v3113
      %v3119 = vld [vmem:[%s1620 + $0x8] sm:$0xff]
      %v3120 = vld [vmem:[%s1620 + $0x20] sm:$0xff]
      %v3121 = vld [vmem:[%s1620 + $0x38] sm:$0xff]
      %v3122 = vld [vmem:[%s1620 + $0x50] sm:$0xff]
      %v3123 = vld [vmem:[%s1620 + $0x68] sm:$0xff]
      %v3124 = vld [vmem:[%s1620 + $0x80] sm:$0xff]
      %v3125 = vld [vmem:[%s1620 + $0x98] sm:$0xff]
      %v3126 = vld [vmem:[%s1620 + $0xb0] sm:$0xff]
      %v3127 = vpack.c.bf16 %v3120, %v3119
      %v3128 = vpack.c.bf16 %v3122, %v3121
      %v3129 = vpack.c.bf16 %v3124, %v3123
      %v3130 = vpack.c.bf16 %v3126, %v3125
      %v3131 = vld [vmem:[%s1620 + $0x9] sm:$0xff]
      %v3132 = vld [vmem:[%s1620 + $0x21] sm:$0xff]
      %v3133 = vld [vmem:[%s1620 + $0x39] sm:$0xff]
      %v3134 = vld [vmem:[%s1620 + $0x51] sm:$0xff]
      %v3135 = vld [vmem:[%s1620 + $0x69] sm:$0xff]
      %v3136 = vld [vmem:[%s1620 + $0x81] sm:$0xff]
      %v3137 = vld [vmem:[%s1620 + $0x99] sm:$0xff]
      %v3138 = vld [vmem:[%s1620 + $0xb1] sm:$0xff]
      %v3139 = vpack.c.bf16 %v3132, %v3131
      %v3140 = vpack.c.bf16 %v3134, %v3133
      %v3141 = vpack.c.bf16 %v3136, %v3135
      %v3142 = vpack.c.bf16 %v3138, %v3137
      %3147 = vrot.lane.b32.xlu0 %v3055, 64
      %v3148 = vpop.permute.xlu0 %3147
      %3149 = vrot.lane.b32.xlu0 %v3056, 64
      %v3150 = vpop.permute.xlu0 %3149
      %3151 = vrot.lane.b32.xlu0 %v3057, 64
      %v3152 = vpop.permute.xlu0 %3151
      %3153 = vrot.lane.b32.xlu0 %v3058, 64
      %v3154 = vpop.permute.xlu0 %3153
      %3159 = vrot.lane.b32.xlu0 %v3079, 64
      %v3160 = vpop.permute.xlu0 %3159
      %3161 = vrot.lane.b32.xlu0 %v3080, 64
      %v3162 = vpop.permute.xlu0 %3161
      %3163 = vrot.lane.b32.xlu0 %v3081, 64
      %v3164 = vpop.permute.xlu0 %3163
      %3165 = vrot.lane.b32.xlu0 %v3082, 64
      %v3166 = vpop.permute.xlu0 %3165
      %3171 = vrot.lane.b32.xlu0 %v3103, 64
      %v3172 = vpop.permute.xlu0 %3171
      %3173 = vrot.lane.b32.xlu0 %v3104, 64
      %v3174 = vpop.permute.xlu0 %3173
      %3175 = vrot.lane.b32.xlu0 %v3105, 64
      %v3176 = vpop.permute.xlu0 %3175
      %3177 = vrot.lane.b32.xlu0 %v3106, 64
      %v3178 = vpop.permute.xlu0 %3177
      %3183 = vrot.lane.b32.xlu0 %v3127, 64
      %v3184 = vpop.permute.xlu0 %3183
      %3185 = vrot.lane.b32.xlu0 %v3128, 64
      %v3186 = vpop.permute.xlu0 %3185
      %3187 = vrot.lane.b32.xlu0 %v3129, 64
      %v3188 = vpop.permute.xlu0 %3187
      %3189 = vrot.lane.b32.xlu0 %v3130, 64
      %v3190 = vpop.permute.xlu0 %3189
      %v3193 = vsel %vm307, %v3043, %v3148
      %v3197 = vsel %vm307, %v3044, %v3150
      %v3201 = vsel %vm307, %v3045, %v3152
      %v3205 = vsel %vm307, %v3046, %v3154
      %v3209 = vsel %vm307, %v3067, %v3160
      %v3213 = vsel %vm307, %v3068, %v3162
      %v3217 = vsel %vm307, %v3069, %v3164
      %v3221 = vsel %vm307, %v3070, %v3166
      %v3225 = vsel %vm307, %v3091, %v3172
      %v3229 = vsel %vm307, %v3092, %v3174
      %v3233 = vsel %vm307, %v3093, %v3176
      %v3237 = vsel %vm307, %v3094, %v3178
      %v3241 = vsel %vm307, %v3115, %v3184
      %v3245 = vsel %vm307, %v3116, %v3186
      %v3249 = vsel %vm307, %v3117, %v3188
      %v3253 = vsel %vm307, %v3118, %v3190
      %s3255 = scalar_lea.vmem %s4, 576
      %v3256 = vld [vmem:[%s3255] sm:$0xf]
      %v3257 = vld [vmem:[%s3255 + $0x4] sm:$0xf]
      %v3258 = vld [vmem:[%s3255 + $0x8] sm:$0xf]
      %v3259 = vld [vmem:[%s3255 + $0xc] sm:$0xf]
      %v3260 = vld [vmem:[%s3255 + $0x10] sm:$0xf]
      %v3261 = vld [vmem:[%s3255 + $0x14] sm:$0xf]
      %v3262 = vld [vmem:[%s3255 + $0x18] sm:$0xf]
      %v3263 = vld [vmem:[%s3255 + $0x1c] sm:$0xf]
      %v3264 = vld [vmem:[%s3255 + $0x20] sm:$0xf]
      %v3265 = vld [vmem:[%s3255 + $0x24] sm:$0xf]
      %v3266 = vld [vmem:[%s3255 + $0x28] sm:$0xf]
      %v3267 = vld [vmem:[%s3255 + $0x2c] sm:$0xf]
      %v3268 = vld [vmem:[%s3255 + $0x30] sm:$0xf]
      %v3269 = vld [vmem:[%s3255 + $0x34] sm:$0xf]
      %v3270 = vld [vmem:[%s3255 + $0x38] sm:$0xf]
      %v3271 = vld [vmem:[%s3255 + $0x3c] sm:$0xf]
      %v3272 = vld [vmem:[%s3255 + $0x40] sm:$0xf]
      %v3273 = vld [vmem:[%s3255 + $0x44] sm:$0xf]
      %v3274 = vld [vmem:[%s3255 + $0x48] sm:$0xf]
      %v3275 = vld [vmem:[%s3255 + $0x4c] sm:$0xf]
      %v3276 = vld [vmem:[%s3255 + $0x50] sm:$0xf]
      %v3277 = vld [vmem:[%s3255 + $0x54] sm:$0xf]
      %v3278 = vld [vmem:[%s3255 + $0x58] sm:$0xf]
      %v3279 = vld [vmem:[%s3255 + $0x5c] sm:$0xf]
      %v3280 = vld [vmem:[%s3255 + $0x60] sm:$0xf]
      %v3281 = vld [vmem:[%s3255 + $0x64] sm:$0xf]
      %v3282 = vld [vmem:[%s3255 + $0x68] sm:$0xf]
      %v3283 = vld [vmem:[%s3255 + $0x6c] sm:$0xf]
      %v3284 = vld [vmem:[%s3255 + $0x70] sm:$0xf]
      %v3285 = vld [vmem:[%s3255 + $0x74] sm:$0xf]
      %v3286 = vld [vmem:[%s3255 + $0x78] sm:$0xf]
      %v3287 = vld [vmem:[%s3255 + $0x7c] sm:$0xf]
      %v3288 = vld [vmem:[%s3255 + $0x80] sm:$0xf]
      %v3289 = vld [vmem:[%s3255 + $0x84] sm:$0xf]
      %v3290 = vld [vmem:[%s3255 + $0x88] sm:$0xf]
      %v3291 = vld [vmem:[%s3255 + $0x8c] sm:$0xf]
      %v3292 = vld [vmem:[%s3255 + $0x90] sm:$0xf]
      %v3293 = vld [vmem:[%s3255 + $0x94] sm:$0xf]
      %v3294 = vld [vmem:[%s3255 + $0x98] sm:$0xf]
      %v3295 = vld [vmem:[%s3255 + $0x9c] sm:$0xf]
      %v3296 = vld [vmem:[%s3255 + $0xa0] sm:$0xf]
      %v3297 = vld [vmem:[%s3255 + $0xa4] sm:$0xf]
      %v3298 = vld [vmem:[%s3255 + $0xa8] sm:$0xf]
      %v3299 = vld [vmem:[%s3255 + $0xac] sm:$0xf]
      %v3300 = vld [vmem:[%s3255 + $0xb0] sm:$0xf]
      %v3301 = vld [vmem:[%s3255 + $0xb4] sm:$0xf]
      %v3302 = vld [vmem:[%s3255 + $0xb8] sm:$0xf]
      %v3303 = vld [vmem:[%s3255 + $0xbc] sm:$0xf]
      %v3304 = vld [vmem:[%s3255 + $0xc0] sm:$0xf]
      %v3305 = vld [vmem:[%s3255 + $0xc4] sm:$0xf]
      %v3306 = vld [vmem:[%s3255 + $0xc8] sm:$0xf]
      %v3307 = vld [vmem:[%s3255 + $0xcc] sm:$0xf]
      %v3308 = vld [vmem:[%s3255 + $0xd0] sm:$0xf]
      %v3309 = vld [vmem:[%s3255 + $0xd4] sm:$0xf]
      %v3310 = vld [vmem:[%s3255 + $0xd8] sm:$0xf]
      %v3311 = vld [vmem:[%s3255 + $0xdc] sm:$0xf]
      %v3312 = vld [vmem:[%s3255 + $0xe0] sm:$0xf]
      %v3313 = vld [vmem:[%s3255 + $0xe4] sm:$0xf]
      %v3314 = vld [vmem:[%s3255 + $0xe8] sm:$0xf]
      %v3315 = vld [vmem:[%s3255 + $0xec] sm:$0xf]
      %v3316 = vld [vmem:[%s3255 + $0xf0] sm:$0xf]
      %v3317 = vld [vmem:[%s3255 + $0xf4] sm:$0xf]
      %v3318 = vld [vmem:[%s3255 + $0xf8] sm:$0xf]
      %v3319 = vld [vmem:[%s3255 + $0xfc] sm:$0xf]
      %v3320 = vld [vmem:[%s3255 + $0x100] sm:$0xf]
      %v3321 = vld [vmem:[%s3255 + $0x104] sm:$0xf]
      %v3322 = vld [vmem:[%s3255 + $0x108] sm:$0xf]
      %v3323 = vld [vmem:[%s3255 + $0x10c] sm:$0xf]
      %v3324 = vld [vmem:[%s3255 + $0x110] sm:$0xf]
      %v3325 = vld [vmem:[%s3255 + $0x114] sm:$0xf]
      %v3326 = vld [vmem:[%s3255 + $0x118] sm:$0xf]
      %v3327 = vld [vmem:[%s3255 + $0x11c] sm:$0xf]
      %s3328 = scalar_lea.vmem %s5, 2
      %v3329 = vld [vmem:[%s3328] sm:$0x1]
      %v3331 = vlaneseq
      %v3332 = vshrl.u32 %v3331, 7
      %v3333 = vsub.s32 0, %v3332
      %v3334 = vrot.slane %v3329, %v3333
      %v3408 = vunpack.c.l.b16 %v3256
      %v3409 = vunpack.c.l.b16 %v3257
      %v3410 = vunpack.c.l.b16 %v3258
      %v3411 = vunpack.c.l.b16 %v3259
      %v3412 = vunpack.c.l.b16 %v3260
      %v3413 = vunpack.c.l.b16 %v3261
      %v3414 = vunpack.c.l.b16 %v3262
      %v3415 = vunpack.c.l.b16 %v3263
      %v3416 = vunpack.c.l.b16 %v3264
      %v3417 = vunpack.c.l.b16 %v3265
      %v3418 = vunpack.c.l.b16 %v3266
      %v3419 = vunpack.c.l.b16 %v3267
      %v3420 = vunpack.c.l.b16 %v3268
      %v3421 = vunpack.c.l.b16 %v3269
      %v3422 = vunpack.c.l.b16 %v3270
      %v3423 = vunpack.c.l.b16 %v3271
      %v3424 = vunpack.c.l.b16 %v3272
      %v3425 = vunpack.c.l.b16 %v3273
      %v3426 = vunpack.c.l.b16 %v3274
      %v3427 = vunpack.c.l.b16 %v3275
      %v3428 = vunpack.c.l.b16 %v3276
      %v3429 = vunpack.c.l.b16 %v3277
      %v3430 = vunpack.c.l.b16 %v3278
      %v3431 = vunpack.c.l.b16 %v3279
      %v3432 = vunpack.c.l.b16 %v3280
      %v3433 = vunpack.c.l.b16 %v3281
      %v3434 = vunpack.c.l.b16 %v3282
      %v3435 = vunpack.c.l.b16 %v3283
      %v3436 = vunpack.c.l.b16 %v3284
      %v3437 = vunpack.c.l.b16 %v3285
      %v3438 = vunpack.c.l.b16 %v3286
      %v3439 = vunpack.c.l.b16 %v3287
      %v3440 = vunpack.c.l.b16 %v3288
      %v3441 = vunpack.c.l.b16 %v3289
      %v3442 = vunpack.c.l.b16 %v3290
      %v3443 = vunpack.c.l.b16 %v3291
      %v3444 = vunpack.c.l.b16 %v3292
      %v3445 = vunpack.c.l.b16 %v3293
      %v3446 = vunpack.c.l.b16 %v3294
      %v3447 = vunpack.c.l.b16 %v3295
      %v3448 = vunpack.c.l.b16 %v3296
      %v3449 = vunpack.c.l.b16 %v3297
      %v3450 = vunpack.c.l.b16 %v3298
      %v3451 = vunpack.c.l.b16 %v3299
      %v3452 = vunpack.c.l.b16 %v3300
      %v3453 = vunpack.c.l.b16 %v3301
      %v3454 = vunpack.c.l.b16 %v3302
      %v3455 = vunpack.c.l.b16 %v3303
      %v3456 = vunpack.c.l.b16 %v3304
      %v3457 = vunpack.c.l.b16 %v3305
      %v3458 = vunpack.c.l.b16 %v3306
      %v3459 = vunpack.c.l.b16 %v3307
      %v3460 = vunpack.c.l.b16 %v3308
      %v3461 = vunpack.c.l.b16 %v3309
      %v3462 = vunpack.c.l.b16 %v3310
      %v3463 = vunpack.c.l.b16 %v3311
      %v3464 = vunpack.c.l.b16 %v3312
      %v3465 = vunpack.c.l.b16 %v3313
      %v3466 = vunpack.c.l.b16 %v3314
      %v3467 = vunpack.c.l.b16 %v3315
      %v3468 = vunpack.c.l.b16 %v3316
      %v3469 = vunpack.c.l.b16 %v3317
      %v3470 = vunpack.c.l.b16 %v3318
      %v3471 = vunpack.c.l.b16 %v3319
      %v3472 = vunpack.c.l.b16 %v3320
      %v3473 = vunpack.c.l.b16 %v3321
      %v3474 = vunpack.c.l.b16 %v3322
      %v3475 = vunpack.c.l.b16 %v3323
      %v3476 = vunpack.c.l.b16 %v3324
      %v3477 = vunpack.c.l.b16 %v3325
      %v3478 = vunpack.c.l.b16 %v3326
      %v3479 = vunpack.c.l.b16 %v3327
      %v3480 = vpack.c.b16 %v3409, %v3408
      %v3481 = vpack.c.b16 %v3411, %v3410
      %v3482 = vpack.c.b16 %v3413, %v3412
      %v3483 = vpack.c.b16 %v3415, %v3414
      %v3484 = vpack.c.b16 %v3417, %v3416
      %v3485 = vpack.c.b16 %v3419, %v3418
      %v3486 = vpack.c.b16 %v3421, %v3420
      %v3487 = vpack.c.b16 %v3423, %v3422
      %v3488 = vpack.c.b16 %v3425, %v3424
      %v3489 = vpack.c.b16 %v3427, %v3426
      %v3490 = vpack.c.b16 %v3429, %v3428
      %v3491 = vpack.c.b16 %v3431, %v3430
      %v3492 = vpack.c.b16 %v3433, %v3432
      %v3493 = vpack.c.b16 %v3435, %v3434
      %v3494 = vpack.c.b16 %v3437, %v3436
      %v3495 = vpack.c.b16 %v3439, %v3438
      %v3496 = vpack.c.b16 %v3441, %v3440
      %v3497 = vpack.c.b16 %v3443, %v3442
      %v3498 = vpack.c.b16 %v3445, %v3444
      %v3499 = vpack.c.b16 %v3447, %v3446
      %v3500 = vpack.c.b16 %v3449, %v3448
      %v3501 = vpack.c.b16 %v3451, %v3450
      %v3502 = vpack.c.b16 %v3453, %v3452
      %v3503 = vpack.c.b16 %v3455, %v3454
      %v3504 = vpack.c.b16 %v3457, %v3456
      %v3505 = vpack.c.b16 %v3459, %v3458
      %v3506 = vpack.c.b16 %v3461, %v3460
      %v3507 = vpack.c.b16 %v3463, %v3462
      %v3508 = vpack.c.b16 %v3465, %v3464
      %v3509 = vpack.c.b16 %v3467, %v3466
      %v3510 = vpack.c.b16 %v3469, %v3468
      %v3511 = vpack.c.b16 %v3471, %v3470
      %v3512 = vpack.c.b16 %v3473, %v3472
      %v3513 = vpack.c.b16 %v3475, %v3474
      %v3514 = vpack.c.b16 %v3477, %v3476
      %v3515 = vpack.c.b16 %v3479, %v3478
      %v3553 = vsel %vm307, %v3139, 0
      %v3556 = vsel %vm307, %v3140, 0
      %v3559 = vsel %vm307, %v3141, 0
      %v3562 = vsel %vm307, %v3142, 0
      %3564 = vmatprep.subr.bf16.mxu0 0
      %3565 = vmatpush1.bf16.msra.mxu0 %v3487
      %3566 = vmatprep.subr.bf16.mxu0 0
      %3567 = vmatpush1.bf16.msra.mxu0 %v3486
      %3568 = vmatprep.subr.bf16.mxu0 0
      %3569 = vmatpush1.bf16.msra.mxu0 %v3485
      %3570 = vmatprep.subr.bf16.mxu0 0
      %3571 = vmatpush1.bf16.msra.mxu0 %v3484
      %3572 = vmatprep.subr.bf16.mxu0 0
      %3573 = vmatpush1.bf16.msra.mxu0 %v3483
      %3574 = vmatprep.subr.bf16.mxu0 0
      %3575 = vmatpush1.bf16.msra.mxu0 %v3482
      %3576 = vmatprep.subr.bf16.mxu0 0
      %3577 = vmatpush1.bf16.msra.mxu0 %v3481
      %3578 = vmatprep.subr.bf16.mxu0 0
      %3579 = vmatpush1.bf16.msra.mxu0 %v3480
      %3580 = vmatprep.subr.bf16.mxu0 0
      %3581 = vmatpush2.bf16.msra.mxu0 %v3495
      %3582 = vmatprep.subr.bf16.mxu0 0
      %3583 = vmatpush2.bf16.msra.mxu0 %v3494
      %3584 = vmatprep.subr.bf16.mxu0 0
      %3585 = vmatpush2.bf16.msra.mxu0 %v3493
      %3586 = vmatprep.subr.bf16.mxu0 0
      %3587 = vmatpush2.bf16.msra.mxu0 %v3492
      %3588 = vmatprep.subr.bf16.mxu0 0
      %3589 = vmatpush2.bf16.msra.mxu0 %v3491
      %3590 = vmatprep.subr.bf16.mxu0 0
      %3591 = vmatpush2.bf16.msra.mxu0 %v3490
      %3592 = vmatprep.subr.bf16.mxu0 0
      %3593 = vmatpush2.bf16.msra.mxu0 %v3489
      %3594 = vmatprep.subr.bf16.mxu0 0
      %3595 = vmatpush2.bf16.msra.mxu0 %v3488
      %3596 = vmatprep.mubr.bf16.mxu0 %v3209
      %3597 = vmatmul.mubr.bf16.gmra.mxu0 %v3193
      %v3598 = vpop.f32.mrf.mxu0
      %v3599 = vadd.f32 %v3334, %v3598
      %v3600 = vpop.f32.mrf.mxu0
      %v3601 = vpop.f32.mrf.mxu0
      %v3602 = vadd.f32 %v3334, %v3601
      %v3603 = vpop.f32.mrf.mxu0
      %3604 = vmatprep.mubr.bf16.mxu0 %v3213
      %3605 = vmatmul.mubr.bf16.gmra.mxu0 %v3197
      %v3606 = vpop.f32.mrf.mxu0
      %v3607 = vadd.f32 %v3334, %v3606
      %v3608 = vpop.f32.mrf.mxu0
      %v3609 = vpop.f32.mrf.mxu0
      %v3610 = vadd.f32 %v3334, %v3609
      %v3611 = vpop.f32.mrf.mxu0
      %3612 = vmatprep.mubr.bf16.mxu0 %v3217
      %3613 = vmatmul.mubr.bf16.gmra.mxu0 %v3201
      %v3614 = vpop.f32.mrf.mxu0
      %v3615 = vadd.f32 %v3334, %v3614
      %v3616 = vpop.f32.mrf.mxu0
      %v3617 = vpop.f32.mrf.mxu0
      %v3618 = vadd.f32 %v3334, %v3617
      %v3619 = vpop.f32.mrf.mxu0
      %3620 = vmatprep.mubr.bf16.mxu0 %v3221
      %3621 = vmatmul.mubr.bf16.gmra.mxu0 %v3205
      %v3622 = vpop.f32.mrf.mxu0
      %v3623 = vadd.f32 %v3334, %v3622
      %v3624 = vpop.f32.mrf.mxu0
      %v3625 = vpop.f32.mrf.mxu0
      %v3626 = vadd.f32 %v3334, %v3625
      %v3627 = vpop.f32.mrf.mxu0
      %3628 = vdwg.mxu0
      %3629 = vmatprep.subr.bf16.mxu0 0
      %3630 = vmatpush1.bf16.msra.mxu0 %v3503
      %3631 = vmatprep.subr.bf16.mxu0 0
      %3632 = vmatpush1.bf16.msra.mxu0 %v3502
      %3633 = vmatprep.subr.bf16.mxu0 0
      %3634 = vmatpush1.bf16.msra.mxu0 %v3501
      %3635 = vmatprep.subr.bf16.mxu0 0
      %3636 = vmatpush1.bf16.msra.mxu0 %v3500
      %3637 = vmatprep.subr.bf16.mxu0 0
      %3638 = vmatpush1.bf16.msra.mxu0 %v3499
      %3639 = vmatprep.subr.bf16.mxu0 0
      %3640 = vmatpush1.bf16.msra.mxu0 %v3498
      %3641 = vmatprep.subr.bf16.mxu0 0
      %3642 = vmatpush1.bf16.msra.mxu0 %v3497
      %3643 = vmatprep.subr.bf16.mxu0 0
      %3644 = vmatpush1.bf16.msra.mxu0 %v3496
      %3645 = vmatprep.subr.bf16.mxu0 0
      %3646 = vmatpush2.bf16.msra.mxu0 %v3511
      %3647 = vmatprep.subr.bf16.mxu0 0
      %3648 = vmatpush2.bf16.msra.mxu0 %v3510
      %3649 = vmatprep.subr.bf16.mxu0 0
      %3650 = vmatpush2.bf16.msra.mxu0 %v3509
      %3651 = vmatprep.subr.bf16.mxu0 0
      %3652 = vmatpush2.bf16.msra.mxu0 %v3508
      %3653 = vmatprep.subr.bf16.mxu0 0
      %3654 = vmatpush2.bf16.msra.mxu0 %v3507
      %3655 = vmatprep.subr.bf16.mxu0 0
      %3656 = vmatpush2.bf16.msra.mxu0 %v3506
      %3657 = vmatprep.subr.bf16.mxu0 0
      %3658 = vmatpush2.bf16.msra.mxu0 %v3505
      %3659 = vmatprep.subr.bf16.mxu0 0
      %3660 = vmatpush2.bf16.msra.mxu0 %v3504
      %3661 = vmatprep.mubr.bf16.mxu0 %v3241
      %3662 = vmatmul.mubr.bf16.gmra.mxu0 %v3225
      %v3663 = vpop.f32.mrf.mxu0
      %v3664 = vadd.f32 %v3599, %v3663
      %v3665 = vpop.f32.mrf.mxu0
      %v3666 = vpop.f32.mrf.mxu0
      %v3667 = vadd.f32 %v3602, %v3666
      %v3668 = vpop.f32.mrf.mxu0
      %3669 = vmatprep.mubr.bf16.mxu0 %v3245
      %3670 = vmatmul.mubr.bf16.gmra.mxu0 %v3229
      %v3671 = vpop.f32.mrf.mxu0
      %v3672 = vadd.f32 %v3607, %v3671
      %v3673 = vpop.f32.mrf.mxu0
      %v3674 = vpop.f32.mrf.mxu0
      %v3675 = vadd.f32 %v3610, %v3674
      %v3676 = vpop.f32.mrf.mxu0
      %3677 = vmatprep.mubr.bf16.mxu0 %v3249
      %3678 = vmatmul.mubr.bf16.gmra.mxu0 %v3233
      %v3679 = vpop.f32.mrf.mxu0
      %v3680 = vadd.f32 %v3615, %v3679
      %v3681 = vpop.f32.mrf.mxu0
      %v3682 = vpop.f32.mrf.mxu0
      %v3683 = vadd.f32 %v3618, %v3682
      %v3684 = vpop.f32.mrf.mxu0
      %3685 = vmatprep.mubr.bf16.mxu0 %v3253
      %3686 = vmatmul.mubr.bf16.gmra.mxu0 %v3237
      %v3687 = vpop.f32.mrf.mxu0
      %v3688 = vadd.f32 %v3623, %v3687
      %v3689 = vpop.f32.mrf.mxu0
      %v3690 = vpop.f32.mrf.mxu0
      %v3691 = vadd.f32 %v3626, %v3690
      %v3692 = vpop.f32.mrf.mxu0
      %3693 = vdwg.mxu0
      %3694 = vmatprep.subr.bf16.mxu0 0
      %3695 = vmatpush1.bf16.msra.mxu0 0
      %3696 = vmatprep.subr.bf16.mxu0 0
      %3697 = vmatpush1.bf16.msra.mxu0 0
      %3698 = vmatprep.subr.bf16.mxu0 0
      %3699 = vmatpush1.bf16.msra.mxu0 0
      %3700 = vmatprep.subr.bf16.mxu0 0
      %3701 = vmatpush1.bf16.msra.mxu0 0
      %3702 = vmatprep.subr.bf16.mxu0 0
      %3703 = vmatpush1.bf16.msra.mxu0 %v3515
      %3704 = vmatprep.subr.bf16.mxu0 0
      %3705 = vmatpush1.bf16.msra.mxu0 %v3514
      %3706 = vmatprep.subr.bf16.mxu0 0
      %3707 = vmatpush1.bf16.msra.mxu0 %v3513
      %3708 = vmatprep.subr.bf16.mxu0 0
      %3709 = vmatpush1.bf16.msra.mxu0 %v3512
      %3710 = vmatprep.subr.bf16.mxu0 0
      %3711 = vmatpush2.bf16.msra.mxu0 0
      %3712 = vmatprep.subr.bf16.mxu0 0
      %3713 = vmatpush2.bf16.msra.mxu0 0
      %3714 = vmatprep.subr.bf16.mxu0 0
      %3715 = vmatpush2.bf16.msra.mxu0 0
      %3716 = vmatprep.subr.bf16.mxu0 0
      %3717 = vmatpush2.bf16.msra.mxu0 0
      %3718 = vmatprep.subr.bf16.mxu0 0
      %3719 = vmatpush2.bf16.msra.mxu0 0
      %3720 = vmatprep.subr.bf16.mxu0 0
      %3721 = vmatpush2.bf16.msra.mxu0 0
      %3722 = vmatprep.subr.bf16.mxu0 0
      %3723 = vmatpush2.bf16.msra.mxu0 0
      %3724 = vmatprep.subr.bf16.mxu0 0
      %3725 = vmatpush2.bf16.msra.mxu0 0
      %3726 = vmatprep.mubr.bf16.mxu0 0
      %3727 = vmatmul.mubr.bf16.gmra.mxu0 %v3553
      %v3728 = vpop.f32.mrf.mxu0
      %v3729 = vadd.f32 %v3664, %v3728
      %v3730 = vpop.f32.mrf.mxu0
      %v3731 = vpop.f32.mrf.mxu0
      %v3732 = vadd.f32 %v3667, %v3731
      %v3733 = vpop.f32.mrf.mxu0
      %3734 = vmatprep.mubr.bf16.mxu0 0
      %3735 = vmatmul.mubr.bf16.gmra.mxu0 %v3556
      %v3736 = vpop.f32.mrf.mxu0
      %v3737 = vadd.f32 %v3672, %v3736
      %v3738 = vpop.f32.mrf.mxu0
      %v3739 = vpop.f32.mrf.mxu0
      %v3740 = vadd.f32 %v3675, %v3739
      %v3741 = vpop.f32.mrf.mxu0
      %3742 = vmatprep.mubr.bf16.mxu0 0
      %3743 = vmatmul.mubr.bf16.gmra.mxu0 %v3559
      %v3744 = vpop.f32.mrf.mxu0
      %v3745 = vadd.f32 %v3680, %v3744
      %v3746 = vpop.f32.mrf.mxu0
      %v3747 = vpop.f32.mrf.mxu0
      %v3748 = vadd.f32 %v3683, %v3747
      %v3749 = vpop.f32.mrf.mxu0
      %3750 = vmatprep.mubr.bf16.mxu0 0
      %3751 = vmatmul.mubr.bf16.gmra.mxu0 %v3562
      %v3752 = vpop.f32.mrf.mxu0
      %v3753 = vadd.f32 %v3688, %v3752
      %v3754 = vpop.f32.mrf.mxu0
      %v3755 = vpop.f32.mrf.mxu0
      %v3756 = vadd.f32 %v3691, %v3755
      %v3757 = vpop.f32.mrf.mxu0
      %3758 = vdwg.mxu0
      %v3759 = vmax.f32 %v3729, 0.0
      %v3760 = vmax.f32 %v3732, 0.0
      %v3761 = vmax.f32 %v3737, 0.0
      %v3762 = vmax.f32 %v3740, 0.0
      %v3763 = vmax.f32 %v3745, 0.0
      %v3764 = vmax.f32 %v3748, 0.0
      %v3765 = vmax.f32 %v3753, 0.0
      %v3766 = vmax.f32 %v3756, 0.0
      %3767 = vst.msk [vmem:[%s1539 + $0x8] sm:$0xff] %vm307, %v3759
      %3768 = vst.msk [vmem:[%s1539 + $0x20] sm:$0xff] %vm307, %v3760
      %3769 = vst.msk [vmem:[%s1539 + $0x38] sm:$0xff] %vm307, %v3761
      %3770 = vst.msk [vmem:[%s1539 + $0x50] sm:$0xff] %vm307, %v3762
      %3771 = vst.msk [vmem:[%s1539 + $0x68] sm:$0xff] %vm307, %v3763
      %3772 = vst.msk [vmem:[%s1539 + $0x80] sm:$0xff] %vm307, %v3764
      %3773 = vst.msk [vmem:[%s1539 + $0x98] sm:$0xff] %vm307, %v3765
      %3774 = vst.msk [vmem:[%s1539 + $0xb0] sm:$0xff] %vm307, %v3766
      %v3775 = vld [vmem:[#allocation3 + $0x7] sm:$0xff]
      %v3776 = vld [vmem:[#allocation3 + $0x1f] sm:$0xff]
      %v3777 = vld [vmem:[#allocation3 + $0x37] sm:$0xff]
      %v3778 = vld [vmem:[#allocation3 + $0x4f] sm:$0xff]
      %v3779 = vld [vmem:[#allocation3 + $0x67] sm:$0xff]
      %v3780 = vld [vmem:[#allocation3 + $0x7f] sm:$0xff]
      %v3781 = vld [vmem:[#allocation3 + $0x97] sm:$0xff]
      %v3782 = vld [vmem:[#allocation3 + $0xaf] sm:$0xff]
      %v3783 = vpack.c.bf16 %v3776, %v3775
      %v3784 = vpack.c.bf16 %v3778, %v3777
      %v3785 = vpack.c.bf16 %v3780, %v3779
      %v3786 = vpack.c.bf16 %v3782, %v3781
      %v3787 = vld [vmem:[#allocation3 + $0x8] sm:$0xff]
      %v3788 = vld [vmem:[#allocation3 + $0x20] sm:$0xff]
      %v3789 = vld [vmem:[#allocation3 + $0x38] sm:$0xff]
      %v3790 = vld [vmem:[#allocation3 + $0x50] sm:$0xff]
      %v3791 = vld [vmem:[#allocation3 + $0x68] sm:$0xff]
      %v3792 = vld [vmem:[#allocation3 + $0x80] sm:$0xff]
      %v3793 = vld [vmem:[#allocation3 + $0x98] sm:$0xff]
      %v3794 = vld [vmem:[#allocation3 + $0xb0] sm:$0xff]
      %v3795 = vpack.c.bf16 %v3788, %v3787
      %v3796 = vpack.c.bf16 %v3790, %v3789
      %v3797 = vpack.c.bf16 %v3792, %v3791
      %v3798 = vpack.c.bf16 %v3794, %v3793
      %v3799 = vld [vmem:[#allocation3 + $0x9] sm:$0xff]
      %v3800 = vld [vmem:[#allocation3 + $0x21] sm:$0xff]
      %v3801 = vld [vmem:[#allocation3 + $0x39] sm:$0xff]
      %v3802 = vld [vmem:[#allocation3 + $0x51] sm:$0xff]
      %v3803 = vld [vmem:[#allocation3 + $0x69] sm:$0xff]
      %v3804 = vld [vmem:[#allocation3 + $0x81] sm:$0xff]
      %v3805 = vld [vmem:[#allocation3 + $0x99] sm:$0xff]
      %v3806 = vld [vmem:[#allocation3 + $0xb1] sm:$0xff]
      %v3807 = vpack.c.bf16 %v3800, %v3799
      %v3808 = vpack.c.bf16 %v3802, %v3801
      %v3809 = vpack.c.bf16 %v3804, %v3803
      %v3810 = vpack.c.bf16 %v3806, %v3805
      %v3811 = vld [vmem:[%s1539 + $0x7] sm:$0xff]
      %v3812 = vld [vmem:[%s1539 + $0x1f] sm:$0xff]
      %v3813 = vld [vmem:[%s1539 + $0x37] sm:$0xff]
      %v3814 = vld [vmem:[%s1539 + $0x4f] sm:$0xff]
      %v3815 = vld [vmem:[%s1539 + $0x67] sm:$0xff]
      %v3816 = vld [vmem:[%s1539 + $0x7f] sm:$0xff]
      %v3817 = vld [vmem:[%s1539 + $0x97] sm:$0xff]
      %v3818 = vld [vmem:[%s1539 + $0xaf] sm:$0xff]
      %v3819 = vpack.c.bf16 %v3812, %v3811
      %v3820 = vpack.c.bf16 %v3814, %v3813
      %v3821 = vpack.c.bf16 %v3816, %v3815
      %v3822 = vpack.c.bf16 %v3818, %v3817
      %v3823 = vld [vmem:[%s1539 + $0x8] sm:$0xff]
      %v3824 = vld [vmem:[%s1539 + $0x20] sm:$0xff]
      %v3825 = vld [vmem:[%s1539 + $0x38] sm:$0xff]
      %v3826 = vld [vmem:[%s1539 + $0x50] sm:$0xff]
      %v3827 = vld [vmem:[%s1539 + $0x68] sm:$0xff]
      %v3828 = vld [vmem:[%s1539 + $0x80] sm:$0xff]
      %v3829 = vld [vmem:[%s1539 + $0x98] sm:$0xff]
      %v3830 = vld [vmem:[%s1539 + $0xb0] sm:$0xff]
      %v3831 = vpack.c.bf16 %v3824, %v3823
      %v3832 = vpack.c.bf16 %v3826, %v3825
      %v3833 = vpack.c.bf16 %v3828, %v3827
      %v3834 = vpack.c.bf16 %v3830, %v3829
      %v3835 = vld [vmem:[%s1539 + $0x9] sm:$0xff]
      %v3836 = vld [vmem:[%s1539 + $0x21] sm:$0xff]
      %v3837 = vld [vmem:[%s1539 + $0x39] sm:$0xff]
      %v3838 = vld [vmem:[%s1539 + $0x51] sm:$0xff]
      %v3839 = vld [vmem:[%s1539 + $0x69] sm:$0xff]
      %v3840 = vld [vmem:[%s1539 + $0x81] sm:$0xff]
      %v3841 = vld [vmem:[%s1539 + $0x99] sm:$0xff]
      %v3842 = vld [vmem:[%s1539 + $0xb1] sm:$0xff]
      %v3843 = vpack.c.bf16 %v3836, %v3835
      %v3844 = vpack.c.bf16 %v3838, %v3837
      %v3845 = vpack.c.bf16 %v3840, %v3839
      %v3846 = vpack.c.bf16 %v3842, %v3841
      %v3847 = vld [vmem:[%s1620 + $0x7] sm:$0xff]
      %v3848 = vld [vmem:[%s1620 + $0x1f] sm:$0xff]
      %v3849 = vld [vmem:[%s1620 + $0x37] sm:$0xff]
      %v3850 = vld [vmem:[%s1620 + $0x4f] sm:$0xff]
      %v3851 = vld [vmem:[%s1620 + $0x67] sm:$0xff]
      %v3852 = vld [vmem:[%s1620 + $0x7f] sm:$0xff]
      %v3853 = vld [vmem:[%s1620 + $0x97] sm:$0xff]
      %v3854 = vld [vmem:[%s1620 + $0xaf] sm:$0xff]
      %v3855 = vpack.c.bf16 %v3848, %v3847
      %v3856 = vpack.c.bf16 %v3850, %v3849
      %v3857 = vpack.c.bf16 %v3852, %v3851
      %v3858 = vpack.c.bf16 %v3854, %v3853
      %v3859 = vld [vmem:[%s1620 + $0x8] sm:$0xff]
      %v3860 = vld [vmem:[%s1620 + $0x20] sm:$0xff]
      %v3861 = vld [vmem:[%s1620 + $0x38] sm:$0xff]
      %v3862 = vld [vmem:[%s1620 + $0x50] sm:$0xff]
      %v3863 = vld [vmem:[%s1620 + $0x68] sm:$0xff]
      %v3864 = vld [vmem:[%s1620 + $0x80] sm:$0xff]
      %v3865 = vld [vmem:[%s1620 + $0x98] sm:$0xff]
      %v3866 = vld [vmem:[%s1620 + $0xb0] sm:$0xff]
      %v3867 = vpack.c.bf16 %v3860, %v3859
      %v3868 = vpack.c.bf16 %v3862, %v3861
      %v3869 = vpack.c.bf16 %v3864, %v3863
      %v3870 = vpack.c.bf16 %v3866, %v3865
      %v3871 = vld [vmem:[%s1620 + $0x9] sm:$0xff]
      %v3872 = vld [vmem:[%s1620 + $0x21] sm:$0xff]
      %v3873 = vld [vmem:[%s1620 + $0x39] sm:$0xff]
      %v3874 = vld [vmem:[%s1620 + $0x51] sm:$0xff]
      %v3875 = vld [vmem:[%s1620 + $0x69] sm:$0xff]
      %v3876 = vld [vmem:[%s1620 + $0x81] sm:$0xff]
      %v3877 = vld [vmem:[%s1620 + $0x99] sm:$0xff]
      %v3878 = vld [vmem:[%s1620 + $0xb1] sm:$0xff]
      %v3879 = vpack.c.bf16 %v3872, %v3871
      %v3880 = vpack.c.bf16 %v3874, %v3873
      %v3881 = vpack.c.bf16 %v3876, %v3875
      %v3882 = vpack.c.bf16 %v3878, %v3877
      %3887 = vrot.lane.b32.xlu0 %v3795, 64
      %v3888 = vpop.permute.xlu0 %3887
      %3889 = vrot.lane.b32.xlu0 %v3796, 64
      %v3890 = vpop.permute.xlu0 %3889
      %3891 = vrot.lane.b32.xlu0 %v3797, 64
      %v3892 = vpop.permute.xlu0 %3891
      %3893 = vrot.lane.b32.xlu0 %v3798, 64
      %v3894 = vpop.permute.xlu0 %3893
      %3899 = vrot.lane.b32.xlu0 %v3819, 64
      %v3900 = vpop.permute.xlu0 %3899
      %3901 = vrot.lane.b32.xlu0 %v3820, 64
      %v3902 = vpop.permute.xlu0 %3901
      %3903 = vrot.lane.b32.xlu0 %v3821, 64
      %v3904 = vpop.permute.xlu0 %3903
      %3905 = vrot.lane.b32.xlu0 %v3822, 64
      %v3906 = vpop.permute.xlu0 %3905
      %3911 = vrot.lane.b32.xlu0 %v3843, 64
      %v3912 = vpop.permute.xlu0 %3911
      %3913 = vrot.lane.b32.xlu0 %v3844, 64
      %v3914 = vpop.permute.xlu0 %3913
      %3915 = vrot.lane.b32.xlu0 %v3845, 64
      %v3916 = vpop.permute.xlu0 %3915
      %3917 = vrot.lane.b32.xlu0 %v3846, 64
      %v3918 = vpop.permute.xlu0 %3917
      %3923 = vrot.lane.b32.xlu0 %v3867, 64
      %v3924 = vpop.permute.xlu0 %3923
      %3925 = vrot.lane.b32.xlu0 %v3868, 64
      %v3926 = vpop.permute.xlu0 %3925
      %3927 = vrot.lane.b32.xlu0 %v3869, 64
      %v3928 = vpop.permute.xlu0 %3927
      %3929 = vrot.lane.b32.xlu0 %v3870, 64
      %v3930 = vpop.permute.xlu0 %3929
      %v3933 = vsel %vm307, %v3783, %v3888
      %v3937 = vsel %vm307, %v3784, %v3890
      %v3941 = vsel %vm307, %v3785, %v3892
      %v3945 = vsel %vm307, %v3786, %v3894
      %v3949 = vsel %vm307, %v3807, %v3900
      %v3953 = vsel %vm307, %v3808, %v3902
      %v3957 = vsel %vm307, %v3809, %v3904
      %v3961 = vsel %vm307, %v3810, %v3906
      %v3965 = vsel %vm307, %v3831, %v3912
      %v3969 = vsel %vm307, %v3832, %v3914
      %v3973 = vsel %vm307, %v3833, %v3916
      %v3977 = vsel %vm307, %v3834, %v3918
      %v3981 = vsel %vm307, %v3855, %v3924
      %v3985 = vsel %vm307, %v3856, %v3926
      %v3989 = vsel %vm307, %v3857, %v3928
      %v3993 = vsel %vm307, %v3858, %v3930
      %s3995 = scalar_lea.vmem %s4, 864
      %v3996 = vld [vmem:[%s3995] sm:$0xf]
      %v3997 = vld [vmem:[%s3995 + $0x4] sm:$0xf]
      %v3998 = vld [vmem:[%s3995 + $0x8] sm:$0xf]
      %v3999 = vld [vmem:[%s3995 + $0xc] sm:$0xf]
      %v4000 = vld [vmem:[%s3995 + $0x10] sm:$0xf]
      %v4001 = vld [vmem:[%s3995 + $0x14] sm:$0xf]
      %v4002 = vld [vmem:[%s3995 + $0x18] sm:$0xf]
      %v4003 = vld [vmem:[%s3995 + $0x1c] sm:$0xf]
      %v4004 = vld [vmem:[%s3995 + $0x20] sm:$0xf]
      %v4005 = vld [vmem:[%s3995 + $0x24] sm:$0xf]
      %v4006 = vld [vmem:[%s3995 + $0x28] sm:$0xf]
      %v4007 = vld [vmem:[%s3995 + $0x2c] sm:$0xf]
      %v4008 = vld [vmem:[%s3995 + $0x30] sm:$0xf]
      %v4009 = vld [vmem:[%s3995 + $0x34] sm:$0xf]
      %v4010 = vld [vmem:[%s3995 + $0x38] sm:$0xf]
      %v4011 = vld [vmem:[%s3995 + $0x3c] sm:$0xf]
      %v4012 = vld [vmem:[%s3995 + $0x40] sm:$0xf]
      %v4013 = vld [vmem:[%s3995 + $0x44] sm:$0xf]
      %v4014 = vld [vmem:[%s3995 + $0x48] sm:$0xf]
      %v4015 = vld [vmem:[%s3995 + $0x4c] sm:$0xf]
      %v4016 = vld [vmem:[%s3995 + $0x50] sm:$0xf]
      %v4017 = vld [vmem:[%s3995 + $0x54] sm:$0xf]
      %v4018 = vld [vmem:[%s3995 + $0x58] sm:$0xf]
      %v4019 = vld [vmem:[%s3995 + $0x5c] sm:$0xf]
      %v4020 = vld [vmem:[%s3995 + $0x60] sm:$0xf]
      %v4021 = vld [vmem:[%s3995 + $0x64] sm:$0xf]
      %v4022 = vld [vmem:[%s3995 + $0x68] sm:$0xf]
      %v4023 = vld [vmem:[%s3995 + $0x6c] sm:$0xf]
      %v4024 = vld [vmem:[%s3995 + $0x70] sm:$0xf]
      %v4025 = vld [vmem:[%s3995 + $0x74] sm:$0xf]
      %v4026 = vld [vmem:[%s3995 + $0x78] sm:$0xf]
      %v4027 = vld [vmem:[%s3995 + $0x7c] sm:$0xf]
      %v4028 = vld [vmem:[%s3995 + $0x80] sm:$0xf]
      %v4029 = vld [vmem:[%s3995 + $0x84] sm:$0xf]
      %v4030 = vld [vmem:[%s3995 + $0x88] sm:$0xf]
      %v4031 = vld [vmem:[%s3995 + $0x8c] sm:$0xf]
      %v4032 = vld [vmem:[%s3995 + $0x90] sm:$0xf]
      %v4033 = vld [vmem:[%s3995 + $0x94] sm:$0xf]
      %v4034 = vld [vmem:[%s3995 + $0x98] sm:$0xf]
      %v4035 = vld [vmem:[%s3995 + $0x9c] sm:$0xf]
      %v4036 = vld [vmem:[%s3995 + $0xa0] sm:$0xf]
      %v4037 = vld [vmem:[%s3995 + $0xa4] sm:$0xf]
      %v4038 = vld [vmem:[%s3995 + $0xa8] sm:$0xf]
      %v4039 = vld [vmem:[%s3995 + $0xac] sm:$0xf]
      %v4040 = vld [vmem:[%s3995 + $0xb0] sm:$0xf]
      %v4041 = vld [vmem:[%s3995 + $0xb4] sm:$0xf]
      %v4042 = vld [vmem:[%s3995 + $0xb8] sm:$0xf]
      %v4043 = vld [vmem:[%s3995 + $0xbc] sm:$0xf]
      %v4044 = vld [vmem:[%s3995 + $0xc0] sm:$0xf]
      %v4045 = vld [vmem:[%s3995 + $0xc4] sm:$0xf]
      %v4046 = vld [vmem:[%s3995 + $0xc8] sm:$0xf]
      %v4047 = vld [vmem:[%s3995 + $0xcc] sm:$0xf]
      %v4048 = vld [vmem:[%s3995 + $0xd0] sm:$0xf]
      %v4049 = vld [vmem:[%s3995 + $0xd4] sm:$0xf]
      %v4050 = vld [vmem:[%s3995 + $0xd8] sm:$0xf]
      %v4051 = vld [vmem:[%s3995 + $0xdc] sm:$0xf]
      %v4052 = vld [vmem:[%s3995 + $0xe0] sm:$0xf]
      %v4053 = vld [vmem:[%s3995 + $0xe4] sm:$0xf]
      %v4054 = vld [vmem:[%s3995 + $0xe8] sm:$0xf]
      %v4055 = vld [vmem:[%s3995 + $0xec] sm:$0xf]
      %v4056 = vld [vmem:[%s3995 + $0xf0] sm:$0xf]
      %v4057 = vld [vmem:[%s3995 + $0xf4] sm:$0xf]
      %v4058 = vld [vmem:[%s3995 + $0xf8] sm:$0xf]
      %v4059 = vld [vmem:[%s3995 + $0xfc] sm:$0xf]
      %v4060 = vld [vmem:[%s3995 + $0x100] sm:$0xf]
      %v4061 = vld [vmem:[%s3995 + $0x104] sm:$0xf]
      %v4062 = vld [vmem:[%s3995 + $0x108] sm:$0xf]
      %v4063 = vld [vmem:[%s3995 + $0x10c] sm:$0xf]
      %v4064 = vld [vmem:[%s3995 + $0x110] sm:$0xf]
      %v4065 = vld [vmem:[%s3995 + $0x114] sm:$0xf]
      %v4066 = vld [vmem:[%s3995 + $0x118] sm:$0xf]
      %v4067 = vld [vmem:[%s3995 + $0x11c] sm:$0xf]
      %s4068 = scalar_lea.vmem %s5, 3
      %v4069 = vld [vmem:[%s4068] sm:$0x1]
      %v4071 = vlaneseq
      %v4072 = vshrl.u32 %v4071, 7
      %v4073 = vsub.s32 0, %v4072
      %v4074 = vrot.slane %v4069, %v4073
      %v4148 = vunpack.c.l.b16 %v3996
      %v4149 = vunpack.c.l.b16 %v3997
      %v4150 = vunpack.c.l.b16 %v3998
      %v4151 = vunpack.c.l.b16 %v3999
      %v4152 = vunpack.c.l.b16 %v4000
      %v4153 = vunpack.c.l.b16 %v4001
      %v4154 = vunpack.c.l.b16 %v4002
      %v4155 = vunpack.c.l.b16 %v4003
      %v4156 = vunpack.c.l.b16 %v4004
      %v4157 = vunpack.c.l.b16 %v4005
      %v4158 = vunpack.c.l.b16 %v4006
      %v4159 = vunpack.c.l.b16 %v4007
      %v4160 = vunpack.c.l.b16 %v4008
      %v4161 = vunpack.c.l.b16 %v4009
      %v4162 = vunpack.c.l.b16 %v4010
      %v4163 = vunpack.c.l.b16 %v4011
      %v4164 = vunpack.c.l.b16 %v4012
      %v4165 = vunpack.c.l.b16 %v4013
      %v4166 = vunpack.c.l.b16 %v4014
      %v4167 = vunpack.c.l.b16 %v4015
      %v4168 = vunpack.c.l.b16 %v4016
      %v4169 = vunpack.c.l.b16 %v4017
      %v4170 = vunpack.c.l.b16 %v4018
      %v4171 = vunpack.c.l.b16 %v4019
      %v4172 = vunpack.c.l.b16 %v4020
      %v4173 = vunpack.c.l.b16 %v4021
      %v4174 = vunpack.c.l.b16 %v4022
      %v4175 = vunpack.c.l.b16 %v4023
      %v4176 = vunpack.c.l.b16 %v4024
      %v4177 = vunpack.c.l.b16 %v4025
      %v4178 = vunpack.c.l.b16 %v4026
      %v4179 = vunpack.c.l.b16 %v4027
      %v4180 = vunpack.c.l.b16 %v4028
      %v4181 = vunpack.c.l.b16 %v4029
      %v4182 = vunpack.c.l.b16 %v4030
      %v4183 = vunpack.c.l.b16 %v4031
      %v4184 = vunpack.c.l.b16 %v4032
      %v4185 = vunpack.c.l.b16 %v4033
      %v4186 = vunpack.c.l.b16 %v4034
      %v4187 = vunpack.c.l.b16 %v4035
      %v4188 = vunpack.c.l.b16 %v4036
      %v4189 = vunpack.c.l.b16 %v4037
      %v4190 = vunpack.c.l.b16 %v4038
      %v4191 = vunpack.c.l.b16 %v4039
      %v4192 = vunpack.c.l.b16 %v4040
      %v4193 = vunpack.c.l.b16 %v4041
      %v4194 = vunpack.c.l.b16 %v4042
      %v4195 = vunpack.c.l.b16 %v4043
      %v4196 = vunpack.c.l.b16 %v4044
      %v4197 = vunpack.c.l.b16 %v4045
      %v4198 = vunpack.c.l.b16 %v4046
      %v4199 = vunpack.c.l.b16 %v4047
      %v4200 = vunpack.c.l.b16 %v4048
      %v4201 = vunpack.c.l.b16 %v4049
      %v4202 = vunpack.c.l.b16 %v4050
      %v4203 = vunpack.c.l.b16 %v4051
      %v4204 = vunpack.c.l.b16 %v4052
      %v4205 = vunpack.c.l.b16 %v4053
      %v4206 = vunpack.c.l.b16 %v4054
      %v4207 = vunpack.c.l.b16 %v4055
      %v4208 = vunpack.c.l.b16 %v4056
      %v4209 = vunpack.c.l.b16 %v4057
      %v4210 = vunpack.c.l.b16 %v4058
      %v4211 = vunpack.c.l.b16 %v4059
      %v4212 = vunpack.c.l.b16 %v4060
      %v4213 = vunpack.c.l.b16 %v4061
      %v4214 = vunpack.c.l.b16 %v4062
      %v4215 = vunpack.c.l.b16 %v4063
      %v4216 = vunpack.c.l.b16 %v4064
      %v4217 = vunpack.c.l.b16 %v4065
      %v4218 = vunpack.c.l.b16 %v4066
      %v4219 = vunpack.c.l.b16 %v4067
      %v4220 = vpack.c.b16 %v4149, %v4148
      %v4221 = vpack.c.b16 %v4151, %v4150
      %v4222 = vpack.c.b16 %v4153, %v4152
      %v4223 = vpack.c.b16 %v4155, %v4154
      %v4224 = vpack.c.b16 %v4157, %v4156
      %v4225 = vpack.c.b16 %v4159, %v4158
      %v4226 = vpack.c.b16 %v4161, %v4160
      %v4227 = vpack.c.b16 %v4163, %v4162
      %v4228 = vpack.c.b16 %v4165, %v4164
      %v4229 = vpack.c.b16 %v4167, %v4166
      %v4230 = vpack.c.b16 %v4169, %v4168
      %v4231 = vpack.c.b16 %v4171, %v4170
      %v4232 = vpack.c.b16 %v4173, %v4172
      %v4233 = vpack.c.b16 %v4175, %v4174
      %v4234 = vpack.c.b16 %v4177, %v4176
      %v4235 = vpack.c.b16 %v4179, %v4178
      %v4236 = vpack.c.b16 %v4181, %v4180
      %v4237 = vpack.c.b16 %v4183, %v4182
      %v4238 = vpack.c.b16 %v4185, %v4184
      %v4239 = vpack.c.b16 %v4187, %v4186
      %v4240 = vpack.c.b16 %v4189, %v4188
      %v4241 = vpack.c.b16 %v4191, %v4190
      %v4242 = vpack.c.b16 %v4193, %v4192
      %v4243 = vpack.c.b16 %v4195, %v4194
      %v4244 = vpack.c.b16 %v4197, %v4196
      %v4245 = vpack.c.b16 %v4199, %v4198
      %v4246 = vpack.c.b16 %v4201, %v4200
      %v4247 = vpack.c.b16 %v4203, %v4202
      %v4248 = vpack.c.b16 %v4205, %v4204
      %v4249 = vpack.c.b16 %v4207, %v4206
      %v4250 = vpack.c.b16 %v4209, %v4208
      %v4251 = vpack.c.b16 %v4211, %v4210
      %v4252 = vpack.c.b16 %v4213, %v4212
      %v4253 = vpack.c.b16 %v4215, %v4214
      %v4254 = vpack.c.b16 %v4217, %v4216
      %v4255 = vpack.c.b16 %v4219, %v4218
      %v4293 = vsel %vm307, %v3879, 0
      %v4296 = vsel %vm307, %v3880, 0
      %v4299 = vsel %vm307, %v3881, 0
      %v4302 = vsel %vm307, %v3882, 0
      %4304 = vmatprep.subr.bf16.mxu0 0
      %4305 = vmatpush1.bf16.msra.mxu0 %v4227
      %4306 = vmatprep.subr.bf16.mxu0 0
      %4307 = vmatpush1.bf16.msra.mxu0 %v4226
      %4308 = vmatprep.subr.bf16.mxu0 0
      %4309 = vmatpush1.bf16.msra.mxu0 %v4225
      %4310 = vmatprep.subr.bf16.mxu0 0
      %4311 = vmatpush1.bf16.msra.mxu0 %v4224
      %4312 = vmatprep.subr.bf16.mxu0 0
      %4313 = vmatpush1.bf16.msra.mxu0 %v4223
      %4314 = vmatprep.subr.bf16.mxu0 0
      %4315 = vmatpush1.bf16.msra.mxu0 %v4222
      %4316 = vmatprep.subr.bf16.mxu0 0
      %4317 = vmatpush1.bf16.msra.mxu0 %v4221
      %4318 = vmatprep.subr.bf16.mxu0 0
      %4319 = vmatpush1.bf16.msra.mxu0 %v4220
      %4320 = vmatprep.subr.bf16.mxu0 0
      %4321 = vmatpush2.bf16.msra.mxu0 %v4235
      %4322 = vmatprep.subr.bf16.mxu0 0
      %4323 = vmatpush2.bf16.msra.mxu0 %v4234
      %4324 = vmatprep.subr.bf16.mxu0 0
      %4325 = vmatpush2.bf16.msra.mxu0 %v4233
      %4326 = vmatprep.subr.bf16.mxu0 0
      %4327 = vmatpush2.bf16.msra.mxu0 %v4232
      %4328 = vmatprep.subr.bf16.mxu0 0
      %4329 = vmatpush2.bf16.msra.mxu0 %v4231
      %4330 = vmatprep.subr.bf16.mxu0 0
      %4331 = vmatpush2.bf16.msra.mxu0 %v4230
      %4332 = vmatprep.subr.bf16.mxu0 0
      %4333 = vmatpush2.bf16.msra.mxu0 %v4229
      %4334 = vmatprep.subr.bf16.mxu0 0
      %4335 = vmatpush2.bf16.msra.mxu0 %v4228
      %4336 = vmatprep.mubr.bf16.mxu0 %v3949
      %4337 = vmatmul.mubr.bf16.gmra.mxu0 %v3933
      %v4338 = vpop.f32.mrf.mxu0
      %v4339 = vadd.f32 %v4074, %v4338
      %v4340 = vpop.f32.mrf.mxu0
      %v4341 = vpop.f32.mrf.mxu0
      %v4342 = vadd.f32 %v4074, %v4341
      %v4343 = vpop.f32.mrf.mxu0
      %4344 = vmatprep.mubr.bf16.mxu0 %v3953
      %4345 = vmatmul.mubr.bf16.gmra.mxu0 %v3937
      %v4346 = vpop.f32.mrf.mxu0
      %v4347 = vadd.f32 %v4074, %v4346
      %v4348 = vpop.f32.mrf.mxu0
      %v4349 = vpop.f32.mrf.mxu0
      %v4350 = vadd.f32 %v4074, %v4349
      %v4351 = vpop.f32.mrf.mxu0
      %4352 = vmatprep.mubr.bf16.mxu0 %v3957
      %4353 = vmatmul.mubr.bf16.gmra.mxu0 %v3941
      %v4354 = vpop.f32.mrf.mxu0
      %v4355 = vadd.f32 %v4074, %v4354
      %v4356 = vpop.f32.mrf.mxu0
      %v4357 = vpop.f32.mrf.mxu0
      %v4358 = vadd.f32 %v4074, %v4357
      %v4359 = vpop.f32.mrf.mxu0
      %4360 = vmatprep.mubr.bf16.mxu0 %v3961
      %4361 = vmatmul.mubr.bf16.gmra.mxu0 %v3945
      %v4362 = vpop.f32.mrf.mxu0
      %v4363 = vadd.f32 %v4074, %v4362
      %v4364 = vpop.f32.mrf.mxu0
      %v4365 = vpop.f32.mrf.mxu0
      %v4366 = vadd.f32 %v4074, %v4365
      %v4367 = vpop.f32.mrf.mxu0
      %4368 = vdwg.mxu0
      %4369 = vmatprep.subr.bf16.mxu0 0
      %4370 = vmatpush1.bf16.msra.mxu0 %v4243
      %4371 = vmatprep.subr.bf16.mxu0 0
      %4372 = vmatpush1.bf16.msra.mxu0 %v4242
      %4373 = vmatprep.subr.bf16.mxu0 0
      %4374 = vmatpush1.bf16.msra.mxu0 %v4241
      %4375 = vmatprep.subr.bf16.mxu0 0
      %4376 = vmatpush1.bf16.msra.mxu0 %v4240
      %4377 = vmatprep.subr.bf16.mxu0 0
      %4378 = vmatpush1.bf16.msra.mxu0 %v4239
      %4379 = vmatprep.subr.bf16.mxu0 0
      %4380 = vmatpush1.bf16.msra.mxu0 %v4238
      %4381 = vmatprep.subr.bf16.mxu0 0
      %4382 = vmatpush1.bf16.msra.mxu0 %v4237
      %4383 = vmatprep.subr.bf16.mxu0 0
      %4384 = vmatpush1.bf16.msra.mxu0 %v4236
      %4385 = vmatprep.subr.bf16.mxu0 0
      %4386 = vmatpush2.bf16.msra.mxu0 %v4251
      %4387 = vmatprep.subr.bf16.mxu0 0
      %4388 = vmatpush2.bf16.msra.mxu0 %v4250
      %4389 = vmatprep.subr.bf16.mxu0 0
      %4390 = vmatpush2.bf16.msra.mxu0 %v4249
      %4391 = vmatprep.subr.bf16.mxu0 0
      %4392 = vmatpush2.bf16.msra.mxu0 %v4248
      %4393 = vmatprep.subr.bf16.mxu0 0
      %4394 = vmatpush2.bf16.msra.mxu0 %v4247
      %4395 = vmatprep.subr.bf16.mxu0 0
      %4396 = vmatpush2.bf16.msra.mxu0 %v4246
      %4397 = vmatprep.subr.bf16.mxu0 0
      %4398 = vmatpush2.bf16.msra.mxu0 %v4245
      %4399 = vmatprep.subr.bf16.mxu0 0
      %4400 = vmatpush2.bf16.msra.mxu0 %v4244
      %4401 = vmatprep.mubr.bf16.mxu0 %v3981
      %4402 = vmatmul.mubr.bf16.gmra.mxu0 %v3965
      %v4403 = vpop.f32.mrf.mxu0
      %v4404 = vadd.f32 %v4339, %v4403
      %v4405 = vpop.f32.mrf.mxu0
      %v4406 = vpop.f32.mrf.mxu0
      %v4407 = vadd.f32 %v4342, %v4406
      %v4408 = vpop.f32.mrf.mxu0
      %4409 = vmatprep.mubr.bf16.mxu0 %v3985
      %4410 = vmatmul.mubr.bf16.gmra.mxu0 %v3969
      %v4411 = vpop.f32.mrf.mxu0
      %v4412 = vadd.f32 %v4347, %v4411
      %v4413 = vpop.f32.mrf.mxu0
      %v4414 = vpop.f32.mrf.mxu0
      %v4415 = vadd.f32 %v4350, %v4414
      %v4416 = vpop.f32.mrf.mxu0
      %4417 = vmatprep.mubr.bf16.mxu0 %v3989
      %4418 = vmatmul.mubr.bf16.gmra.mxu0 %v3973
      %v4419 = vpop.f32.mrf.mxu0
      %v4420 = vadd.f32 %v4355, %v4419
      %v4421 = vpop.f32.mrf.mxu0
      %v4422 = vpop.f32.mrf.mxu0
      %v4423 = vadd.f32 %v4358, %v4422
      %v4424 = vpop.f32.mrf.mxu0
      %4425 = vmatprep.mubr.bf16.mxu0 %v3993
      %4426 = vmatmul.mubr.bf16.gmra.mxu0 %v3977
      %v4427 = vpop.f32.mrf.mxu0
      %v4428 = vadd.f32 %v4363, %v4427
      %v4429 = vpop.f32.mrf.mxu0
      %v4430 = vpop.f32.mrf.mxu0
      %v4431 = vadd.f32 %v4366, %v4430
      %v4432 = vpop.f32.mrf.mxu0
      %4433 = vdwg.mxu0
      %4434 = vmatprep.subr.bf16.mxu0 0
      %4435 = vmatpush1.bf16.msra.mxu0 0
      %4436 = vmatprep.subr.bf16.mxu0 0
      %4437 = vmatpush1.bf16.msra.mxu0 0
      %4438 = vmatprep.subr.bf16.mxu0 0
      %4439 = vmatpush1.bf16.msra.mxu0 0
      %4440 = vmatprep.subr.bf16.mxu0 0
      %4441 = vmatpush1.bf16.msra.mxu0 0
      %4442 = vmatprep.subr.bf16.mxu0 0
      %4443 = vmatpush1.bf16.msra.mxu0 %v4255
      %4444 = vmatprep.subr.bf16.mxu0 0
      %4445 = vmatpush1.bf16.msra.mxu0 %v4254
      %4446 = vmatprep.subr.bf16.mxu0 0
      %4447 = vmatpush1.bf16.msra.mxu0 %v4253
      %4448 = vmatprep.subr.bf16.mxu0 0
      %4449 = vmatpush1.bf16.msra.mxu0 %v4252
      %4450 = vmatprep.subr.bf16.mxu0 0
      %4451 = vmatpush2.bf16.msra.mxu0 0
      %4452 = vmatprep.subr.bf16.mxu0 0
      %4453 = vmatpush2.bf16.msra.mxu0 0
      %4454 = vmatprep.subr.bf16.mxu0 0
      %4455 = vmatpush2.bf16.msra.mxu0 0
      %4456 = vmatprep.subr.bf16.mxu0 0
      %4457 = vmatpush2.bf16.msra.mxu0 0
      %4458 = vmatprep.subr.bf16.mxu0 0
      %4459 = vmatpush2.bf16.msra.mxu0 0
      %4460 = vmatprep.subr.bf16.mxu0 0
      %4461 = vmatpush2.bf16.msra.mxu0 0
      %4462 = vmatprep.subr.bf16.mxu0 0
      %4463 = vmatpush2.bf16.msra.mxu0 0
      %4464 = vmatprep.subr.bf16.mxu0 0
      %4465 = vmatpush2.bf16.msra.mxu0 0
      %4466 = vmatprep.mubr.bf16.mxu0 0
      %4467 = vmatmul.mubr.bf16.gmra.mxu0 %v4293
      %v4468 = vpop.f32.mrf.mxu0
      %v4469 = vadd.f32 %v4404, %v4468
      %v4470 = vpop.f32.mrf.mxu0
      %v4471 = vpop.f32.mrf.mxu0
      %v4472 = vadd.f32 %v4407, %v4471
      %v4473 = vpop.f32.mrf.mxu0
      %4474 = vmatprep.mubr.bf16.mxu0 0
      %4475 = vmatmul.mubr.bf16.gmra.mxu0 %v4296
      %v4476 = vpop.f32.mrf.mxu0
      %v4477 = vadd.f32 %v4412, %v4476
      %v4478 = vpop.f32.mrf.mxu0
      %v4479 = vpop.f32.mrf.mxu0
      %v4480 = vadd.f32 %v4415, %v4479
      %v4481 = vpop.f32.mrf.mxu0
      %4482 = vmatprep.mubr.bf16.mxu0 0
      %4483 = vmatmul.mubr.bf16.gmra.mxu0 %v4299
      %v4484 = vpop.f32.mrf.mxu0
      %v4485 = vadd.f32 %v4420, %v4484
      %v4486 = vpop.f32.mrf.mxu0
      %v4487 = vpop.f32.mrf.mxu0
      %v4488 = vadd.f32 %v4423, %v4487
      %v4489 = vpop.f32.mrf.mxu0
      %4490 = vmatprep.mubr.bf16.mxu0 0
      %4491 = vmatmul.mubr.bf16.gmra.mxu0 %v4302
      %v4492 = vpop.f32.mrf.mxu0
      %v4493 = vadd.f32 %v4428, %v4492
      %v4494 = vpop.f32.mrf.mxu0
      %v4495 = vpop.f32.mrf.mxu0
      %v4496 = vadd.f32 %v4431, %v4495
      %v4497 = vpop.f32.mrf.mxu0
      %4498 = vdwg.mxu0
      %v4499 = vadd.f32 %v4469, %v3019
      %v4500 = vadd.f32 %v4472, %v3020
      %v4501 = vadd.f32 %v4477, %v3021
      %v4502 = vadd.f32 %v4480, %v3022
      %v4503 = vadd.f32 %v4485, %v3023
      %v4504 = vadd.f32 %v4488, %v3024
      %v4505 = vadd.f32 %v4493, %v3025
      %v4506 = vadd.f32 %v4496, %v3026
      %v4507 = vmax.f32 %v4499, 0.0
      %v4508 = vmax.f32 %v4500, 0.0
      %v4509 = vmax.f32 %v4501, 0.0
      %v4510 = vmax.f32 %v4502, 0.0
      %v4511 = vmax.f32 %v4503, 0.0
      %v4512 = vmax.f32 %v4504, 0.0
      %v4513 = vmax.f32 %v4505, 0.0
      %v4514 = vmax.f32 %v4506, 0.0
      %4515 = vst.msk [vmem:[%s1539 + $0x8] sm:$0xff] %vm307, %v4507
      %4516 = vst.msk [vmem:[%s1539 + $0x20] sm:$0xff] %vm307, %v4508
      %4517 = vst.msk [vmem:[%s1539 + $0x38] sm:$0xff] %vm307, %v4509
      %4518 = vst.msk [vmem:[%s1539 + $0x50] sm:$0xff] %vm307, %v4510
      %4519 = vst.msk [vmem:[%s1539 + $0x68] sm:$0xff] %vm307, %v4511
      %4520 = vst.msk [vmem:[%s1539 + $0x80] sm:$0xff] %vm307, %v4512
      %4521 = vst.msk [vmem:[%s1539 + $0x98] sm:$0xff] %vm307, %v4513
      %4522 = vst.msk [vmem:[%s1539 + $0xb0] sm:$0xff] %vm307, %v4514
      %v4523 = vld [vmem:[#allocation3 + $0x7] sm:$0xff]
      %v4524 = vld [vmem:[#allocation3 + $0x1f] sm:$0xff]
      %v4525 = vld [vmem:[#allocation3 + $0x37] sm:$0xff]
      %v4526 = vld [vmem:[#allocation3 + $0x4f] sm:$0xff]
      %v4527 = vld [vmem:[#allocation3 + $0x67] sm:$0xff]
      %v4528 = vld [vmem:[#allocation3 + $0x7f] sm:$0xff]
      %v4529 = vld [vmem:[#allocation3 + $0x97] sm:$0xff]
      %v4530 = vld [vmem:[#allocation3 + $0xaf] sm:$0xff]
      %v4531 = vpack.c.bf16 %v4524, %v4523
      %v4532 = vpack.c.bf16 %v4526, %v4525
      %v4533 = vpack.c.bf16 %v4528, %v4527
      %v4534 = vpack.c.bf16 %v4530, %v4529
      %v4535 = vld [vmem:[#allocation3 + $0x8] sm:$0xff]
      %v4536 = vld [vmem:[#allocation3 + $0x20] sm:$0xff]
      %v4537 = vld [vmem:[#allocation3 + $0x38] sm:$0xff]
      %v4538 = vld [vmem:[#allocation3 + $0x50] sm:$0xff]
      %v4539 = vld [vmem:[#allocation3 + $0x68] sm:$0xff]
      %v4540 = vld [vmem:[#allocation3 + $0x80] sm:$0xff]
      %v4541 = vld [vmem:[#allocation3 + $0x98] sm:$0xff]
      %v4542 = vld [vmem:[#allocation3 + $0xb0] sm:$0xff]
      %v4543 = vpack.c.bf16 %v4536, %v4535
      %v4544 = vpack.c.bf16 %v4538, %v4537
      %v4545 = vpack.c.bf16 %v4540, %v4539
      %v4546 = vpack.c.bf16 %v4542, %v4541
      %v4547 = vld [vmem:[#allocation3 + $0x9] sm:$0xff]
      %v4548 = vld [vmem:[#allocation3 + $0x21] sm:$0xff]
      %v4549 = vld [vmem:[#allocation3 + $0x39] sm:$0xff]
      %v4550 = vld [vmem:[#allocation3 + $0x51] sm:$0xff]
      %v4551 = vld [vmem:[#allocation3 + $0x69] sm:$0xff]
      %v4552 = vld [vmem:[#allocation3 + $0x81] sm:$0xff]
      %v4553 = vld [vmem:[#allocation3 + $0x99] sm:$0xff]
      %v4554 = vld [vmem:[#allocation3 + $0xb1] sm:$0xff]
      %v4555 = vpack.c.bf16 %v4548, %v4547
      %v4556 = vpack.c.bf16 %v4550, %v4549
      %v4557 = vpack.c.bf16 %v4552, %v4551
      %v4558 = vpack.c.bf16 %v4554, %v4553
      %v4559 = vld [vmem:[%s1539 + $0x7] sm:$0xff]
      %v4560 = vld [vmem:[%s1539 + $0x1f] sm:$0xff]
      %v4561 = vld [vmem:[%s1539 + $0x37] sm:$0xff]
      %v4562 = vld [vmem:[%s1539 + $0x4f] sm:$0xff]
      %v4563 = vld [vmem:[%s1539 + $0x67] sm:$0xff]
      %v4564 = vld [vmem:[%s1539 + $0x7f] sm:$0xff]
      %v4565 = vld [vmem:[%s1539 + $0x97] sm:$0xff]
      %v4566 = vld [vmem:[%s1539 + $0xaf] sm:$0xff]
      %v4567 = vpack.c.bf16 %v4560, %v4559
      %v4568 = vpack.c.bf16 %v4562, %v4561
      %v4569 = vpack.c.bf16 %v4564, %v4563
      %v4570 = vpack.c.bf16 %v4566, %v4565
      %v4571 = vld [vmem:[%s1539 + $0x8] sm:$0xff]
      %v4572 = vld [vmem:[%s1539 + $0x20] sm:$0xff]
      %v4573 = vld [vmem:[%s1539 + $0x38] sm:$0xff]
      %v4574 = vld [vmem:[%s1539 + $0x50] sm:$0xff]
      %v4575 = vld [vmem:[%s1539 + $0x68] sm:$0xff]
      %v4576 = vld [vmem:[%s1539 + $0x80] sm:$0xff]
      %v4577 = vld [vmem:[%s1539 + $0x98] sm:$0xff]
      %v4578 = vld [vmem:[%s1539 + $0xb0] sm:$0xff]
      %v4579 = vpack.c.bf16 %v4572, %v4571
      %v4580 = vpack.c.bf16 %v4574, %v4573
      %v4581 = vpack.c.bf16 %v4576, %v4575
      %v4582 = vpack.c.bf16 %v4578, %v4577
      %v4583 = vld [vmem:[%s1539 + $0x9] sm:$0xff]
      %v4584 = vld [vmem:[%s1539 + $0x21] sm:$0xff]
      %v4585 = vld [vmem:[%s1539 + $0x39] sm:$0xff]
      %v4586 = vld [vmem:[%s1539 + $0x51] sm:$0xff]
      %v4587 = vld [vmem:[%s1539 + $0x69] sm:$0xff]
      %v4588 = vld [vmem:[%s1539 + $0x81] sm:$0xff]
      %v4589 = vld [vmem:[%s1539 + $0x99] sm:$0xff]
      %v4590 = vld [vmem:[%s1539 + $0xb1] sm:$0xff]
      %v4591 = vpack.c.bf16 %v4584, %v4583
      %v4592 = vpack.c.bf16 %v4586, %v4585
      %v4593 = vpack.c.bf16 %v4588, %v4587
      %v4594 = vpack.c.bf16 %v4590, %v4589
      %v4595 = vld [vmem:[%s1620 + $0x7] sm:$0xff]
      %v4596 = vld [vmem:[%s1620 + $0x1f] sm:$0xff]
      %v4597 = vld [vmem:[%s1620 + $0x37] sm:$0xff]
      %v4598 = vld [vmem:[%s1620 + $0x4f] sm:$0xff]
      %v4599 = vld [vmem:[%s1620 + $0x67] sm:$0xff]
      %v4600 = vld [vmem:[%s1620 + $0x7f] sm:$0xff]
      %v4601 = vld [vmem:[%s1620 + $0x97] sm:$0xff]
      %v4602 = vld [vmem:[%s1620 + $0xaf] sm:$0xff]
      %v4603 = vpack.c.bf16 %v4596, %v4595
      %v4604 = vpack.c.bf16 %v4598, %v4597
      %v4605 = vpack.c.bf16 %v4600, %v4599
      %v4606 = vpack.c.bf16 %v4602, %v4601
      %v4607 = vld [vmem:[%s1620 + $0x8] sm:$0xff]
      %v4608 = vld [vmem:[%s1620 + $0x20] sm:$0xff]
      %v4609 = vld [vmem:[%s1620 + $0x38] sm:$0xff]
      %v4610 = vld [vmem:[%s1620 + $0x50] sm:$0xff]
      %v4611 = vld [vmem:[%s1620 + $0x68] sm:$0xff]
      %v4612 = vld [vmem:[%s1620 + $0x80] sm:$0xff]
      %v4613 = vld [vmem:[%s1620 + $0x98] sm:$0xff]
      %v4614 = vld [vmem:[%s1620 + $0xb0] sm:$0xff]
      %v4615 = vpack.c.bf16 %v4608, %v4607
      %v4616 = vpack.c.bf16 %v4610, %v4609
      %v4617 = vpack.c.bf16 %v4612, %v4611
      %v4618 = vpack.c.bf16 %v4614, %v4613
      %v4619 = vld [vmem:[%s1620 + $0x9] sm:$0xff]
      %v4620 = vld [vmem:[%s1620 + $0x21] sm:$0xff]
      %v4621 = vld [vmem:[%s1620 + $0x39] sm:$0xff]
      %v4622 = vld [vmem:[%s1620 + $0x51] sm:$0xff]
      %v4623 = vld [vmem:[%s1620 + $0x69] sm:$0xff]
      %v4624 = vld [vmem:[%s1620 + $0x81] sm:$0xff]
      %v4625 = vld [vmem:[%s1620 + $0x99] sm:$0xff]
      %v4626 = vld [vmem:[%s1620 + $0xb1] sm:$0xff]
      %v4627 = vpack.c.bf16 %v4620, %v4619
      %v4628 = vpack.c.bf16 %v4622, %v4621
      %v4629 = vpack.c.bf16 %v4624, %v4623
      %v4630 = vpack.c.bf16 %v4626, %v4625
      %4635 = vrot.lane.b32.xlu0 %v4543, 64
      %v4636 = vpop.permute.xlu0 %4635
      %4637 = vrot.lane.b32.xlu0 %v4544, 64
      %v4638 = vpop.permute.xlu0 %4637
      %4639 = vrot.lane.b32.xlu0 %v4545, 64
      %v4640 = vpop.permute.xlu0 %4639
      %4641 = vrot.lane.b32.xlu0 %v4546, 64
      %v4642 = vpop.permute.xlu0 %4641
      %4647 = vrot.lane.b32.xlu0 %v4567, 64
      %v4648 = vpop.permute.xlu0 %4647
      %4649 = vrot.lane.b32.xlu0 %v4568, 64
      %v4650 = vpop.permute.xlu0 %4649
      %4651 = vrot.lane.b32.xlu0 %v4569, 64
      %v4652 = vpop.permute.xlu0 %4651
      %4653 = vrot.lane.b32.xlu0 %v4570, 64
      %v4654 = vpop.permute.xlu0 %4653
      %4659 = vrot.lane.b32.xlu0 %v4591, 64
      %v4660 = vpop.permute.xlu0 %4659
      %4661 = vrot.lane.b32.xlu0 %v4592, 64
      %v4662 = vpop.permute.xlu0 %4661
      %4663 = vrot.lane.b32.xlu0 %v4593, 64
      %v4664 = vpop.permute.xlu0 %4663
      %4665 = vrot.lane.b32.xlu0 %v4594, 64
      %v4666 = vpop.permute.xlu0 %4665
      %4671 = vrot.lane.b32.xlu0 %v4615, 64
      %v4672 = vpop.permute.xlu0 %4671
      %4673 = vrot.lane.b32.xlu0 %v4616, 64
      %v4674 = vpop.permute.xlu0 %4673
      %4675 = vrot.lane.b32.xlu0 %v4617, 64
      %v4676 = vpop.permute.xlu0 %4675
      %4677 = vrot.lane.b32.xlu0 %v4618, 64
      %v4678 = vpop.permute.xlu0 %4677
      %v4681 = vsel %vm307, %v4531, %v4636
      %v4685 = vsel %vm307, %v4532, %v4638
      %v4689 = vsel %vm307, %v4533, %v4640
      %v4693 = vsel %vm307, %v4534, %v4642
      %v4697 = vsel %vm307, %v4555, %v4648
      %v4701 = vsel %vm307, %v4556, %v4650
      %v4705 = vsel %vm307, %v4557, %v4652
      %v4709 = vsel %vm307, %v4558, %v4654
      %v4713 = vsel %vm307, %v4579, %v4660
      %v4717 = vsel %vm307, %v4580, %v4662
      %v4721 = vsel %vm307, %v4581, %v4664
      %v4725 = vsel %vm307, %v4582, %v4666
      %v4729 = vsel %vm307, %v4603, %v4672
      %v4733 = vsel %vm307, %v4604, %v4674
      %v4737 = vsel %vm307, %v4605, %v4676
      %v4741 = vsel %vm307, %v4606, %v4678
      %s4743 = scalar_lea.vmem %s4, 1152
      %v4744 = vld [vmem:[%s4743] sm:$0xf]
      %v4745 = vld [vmem:[%s4743 + $0x4] sm:$0xf]
      %v4746 = vld [vmem:[%s4743 + $0x8] sm:$0xf]
      %v4747 = vld [vmem:[%s4743 + $0xc] sm:$0xf]
      %v4748 = vld [vmem:[%s4743 + $0x10] sm:$0xf]
      %v4749 = vld [vmem:[%s4743 + $0x14] sm:$0xf]
      %v4750 = vld [vmem:[%s4743 + $0x18] sm:$0xf]
      %v4751 = vld [vmem:[%s4743 + $0x1c] sm:$0xf]
      %v4752 = vld [vmem:[%s4743 + $0x20] sm:$0xf]
      %v4753 = vld [vmem:[%s4743 + $0x24] sm:$0xf]
      %v4754 = vld [vmem:[%s4743 + $0x28] sm:$0xf]
      %v4755 = vld [vmem:[%s4743 + $0x2c] sm:$0xf]
      %v4756 = vld [vmem:[%s4743 + $0x30] sm:$0xf]
      %v4757 = vld [vmem:[%s4743 + $0x34] sm:$0xf]
      %v4758 = vld [vmem:[%s4743 + $0x38] sm:$0xf]
      %v4759 = vld [vmem:[%s4743 + $0x3c] sm:$0xf]
      %v4760 = vld [vmem:[%s4743 + $0x40] sm:$0xf]
      %v4761 = vld [vmem:[%s4743 + $0x44] sm:$0xf]
      %v4762 = vld [vmem:[%s4743 + $0x48] sm:$0xf]
      %v4763 = vld [vmem:[%s4743 + $0x4c] sm:$0xf]
      %v4764 = vld [vmem:[%s4743 + $0x50] sm:$0xf]
      %v4765 = vld [vmem:[%s4743 + $0x54] sm:$0xf]
      %v4766 = vld [vmem:[%s4743 + $0x58] sm:$0xf]
      %v4767 = vld [vmem:[%s4743 + $0x5c] sm:$0xf]
      %v4768 = vld [vmem:[%s4743 + $0x60] sm:$0xf]
      %v4769 = vld [vmem:[%s4743 + $0x64] sm:$0xf]
      %v4770 = vld [vmem:[%s4743 + $0x68] sm:$0xf]
      %v4771 = vld [vmem:[%s4743 + $0x6c] sm:$0xf]
      %v4772 = vld [vmem:[%s4743 + $0x70] sm:$0xf]
      %v4773 = vld [vmem:[%s4743 + $0x74] sm:$0xf]
      %v4774 = vld [vmem:[%s4743 + $0x78] sm:$0xf]
      %v4775 = vld [vmem:[%s4743 + $0x7c] sm:$0xf]
      %v4776 = vld [vmem:[%s4743 + $0x80] sm:$0xf]
      %v4777 = vld [vmem:[%s4743 + $0x84] sm:$0xf]
      %v4778 = vld [vmem:[%s4743 + $0x88] sm:$0xf]
      %v4779 = vld [vmem:[%s4743 + $0x8c] sm:$0xf]
      %v4780 = vld [vmem:[%s4743 + $0x90] sm:$0xf]
      %v4781 = vld [vmem:[%s4743 + $0x94] sm:$0xf]
      %v4782 = vld [vmem:[%s4743 + $0x98] sm:$0xf]
      %v4783 = vld [vmem:[%s4743 + $0x9c] sm:$0xf]
      %v4784 = vld [vmem:[%s4743 + $0xa0] sm:$0xf]
      %v4785 = vld [vmem:[%s4743 + $0xa4] sm:$0xf]
      %v4786 = vld [vmem:[%s4743 + $0xa8] sm:$0xf]
      %v4787 = vld [vmem:[%s4743 + $0xac] sm:$0xf]
      %v4788 = vld [vmem:[%s4743 + $0xb0] sm:$0xf]
      %v4789 = vld [vmem:[%s4743 + $0xb4] sm:$0xf]
      %v4790 = vld [vmem:[%s4743 + $0xb8] sm:$0xf]
      %v4791 = vld [vmem:[%s4743 + $0xbc] sm:$0xf]
      %v4792 = vld [vmem:[%s4743 + $0xc0] sm:$0xf]
      %v4793 = vld [vmem:[%s4743 + $0xc4] sm:$0xf]
      %v4794 = vld [vmem:[%s4743 + $0xc8] sm:$0xf]
      %v4795 = vld [vmem:[%s4743 + $0xcc] sm:$0xf]
      %v4796 = vld [vmem:[%s4743 + $0xd0] sm:$0xf]
      %v4797 = vld [vmem:[%s4743 + $0xd4] sm:$0xf]
      %v4798 = vld [vmem:[%s4743 + $0xd8] sm:$0xf]
      %v4799 = vld [vmem:[%s4743 + $0xdc] sm:$0xf]
      %v4800 = vld [vmem:[%s4743 + $0xe0] sm:$0xf]
      %v4801 = vld [vmem:[%s4743 + $0xe4] sm:$0xf]
      %v4802 = vld [vmem:[%s4743 + $0xe8] sm:$0xf]
      %v4803 = vld [vmem:[%s4743 + $0xec] sm:$0xf]
      %v4804 = vld [vmem:[%s4743 + $0xf0] sm:$0xf]
      %v4805 = vld [vmem:[%s4743 + $0xf4] sm:$0xf]
      %v4806 = vld [vmem:[%s4743 + $0xf8] sm:$0xf]
      %v4807 = vld [vmem:[%s4743 + $0xfc] sm:$0xf]
      %v4808 = vld [vmem:[%s4743 + $0x100] sm:$0xf]
      %v4809 = vld [vmem:[%s4743 + $0x104] sm:$0xf]
      %v4810 = vld [vmem:[%s4743 + $0x108] sm:$0xf]
      %v4811 = vld [vmem:[%s4743 + $0x10c] sm:$0xf]
      %v4812 = vld [vmem:[%s4743 + $0x110] sm:$0xf]
      %v4813 = vld [vmem:[%s4743 + $0x114] sm:$0xf]
      %v4814 = vld [vmem:[%s4743 + $0x118] sm:$0xf]
      %v4815 = vld [vmem:[%s4743 + $0x11c] sm:$0xf]
      %s4816 = scalar_lea.vmem %s5, 4
      %v4817 = vld [vmem:[%s4816] sm:$0x1]
      %v4819 = vlaneseq
      %v4820 = vshrl.u32 %v4819, 7
      %v4821 = vsub.s32 0, %v4820
      %v4822 = vrot.slane %v4817, %v4821
      %v4896 = vunpack.c.l.b16 %v4744
      %v4897 = vunpack.c.l.b16 %v4745
      %v4898 = vunpack.c.l.b16 %v4746
      %v4899 = vunpack.c.l.b16 %v4747
      %v4900 = vunpack.c.l.b16 %v4748
      %v4901 = vunpack.c.l.b16 %v4749
      %v4902 = vunpack.c.l.b16 %v4750
      %v4903 = vunpack.c.l.b16 %v4751
      %v4904 = vunpack.c.l.b16 %v4752
      %v4905 = vunpack.c.l.b16 %v4753
      %v4906 = vunpack.c.l.b16 %v4754
      %v4907 = vunpack.c.l.b16 %v4755
      %v4908 = vunpack.c.l.b16 %v4756
      %v4909 = vunpack.c.l.b16 %v4757
      %v4910 = vunpack.c.l.b16 %v4758
      %v4911 = vunpack.c.l.b16 %v4759
      %v4912 = vunpack.c.l.b16 %v4760
      %v4913 = vunpack.c.l.b16 %v4761
      %v4914 = vunpack.c.l.b16 %v4762
      %v4915 = vunpack.c.l.b16 %v4763
      %v4916 = vunpack.c.l.b16 %v4764
      %v4917 = vunpack.c.l.b16 %v4765
      %v4918 = vunpack.c.l.b16 %v4766
      %v4919 = vunpack.c.l.b16 %v4767
      %v4920 = vunpack.c.l.b16 %v4768
      %v4921 = vunpack.c.l.b16 %v4769
      %v4922 = vunpack.c.l.b16 %v4770
      %v4923 = vunpack.c.l.b16 %v4771
      %v4924 = vunpack.c.l.b16 %v4772
      %v4925 = vunpack.c.l.b16 %v4773
      %v4926 = vunpack.c.l.b16 %v4774
      %v4927 = vunpack.c.l.b16 %v4775
      %v4928 = vunpack.c.l.b16 %v4776
      %v4929 = vunpack.c.l.b16 %v4777
      %v4930 = vunpack.c.l.b16 %v4778
      %v4931 = vunpack.c.l.b16 %v4779
      %v4932 = vunpack.c.l.b16 %v4780
      %v4933 = vunpack.c.l.b16 %v4781
      %v4934 = vunpack.c.l.b16 %v4782
      %v4935 = vunpack.c.l.b16 %v4783
      %v4936 = vunpack.c.l.b16 %v4784
      %v4937 = vunpack.c.l.b16 %v4785
      %v4938 = vunpack.c.l.b16 %v4786
      %v4939 = vunpack.c.l.b16 %v4787
      %v4940 = vunpack.c.l.b16 %v4788
      %v4941 = vunpack.c.l.b16 %v4789
      %v4942 = vunpack.c.l.b16 %v4790
      %v4943 = vunpack.c.l.b16 %v4791
      %v4944 = vunpack.c.l.b16 %v4792
      %v4945 = vunpack.c.l.b16 %v4793
      %v4946 = vunpack.c.l.b16 %v4794
      %v4947 = vunpack.c.l.b16 %v4795
      %v4948 = vunpack.c.l.b16 %v4796
      %v4949 = vunpack.c.l.b16 %v4797
      %v4950 = vunpack.c.l.b16 %v4798
      %v4951 = vunpack.c.l.b16 %v4799
      %v4952 = vunpack.c.l.b16 %v4800
      %v4953 = vunpack.c.l.b16 %v4801
      %v4954 = vunpack.c.l.b16 %v4802
      %v4955 = vunpack.c.l.b16 %v4803
      %v4956 = vunpack.c.l.b16 %v4804
      %v4957 = vunpack.c.l.b16 %v4805
      %v4958 = vunpack.c.l.b16 %v4806
      %v4959 = vunpack.c.l.b16 %v4807
      %v4960 = vunpack.c.l.b16 %v4808
      %v4961 = vunpack.c.l.b16 %v4809
      %v4962 = vunpack.c.l.b16 %v4810
      %v4963 = vunpack.c.l.b16 %v4811
      %v4964 = vunpack.c.l.b16 %v4812
      %v4965 = vunpack.c.l.b16 %v4813
      %v4966 = vunpack.c.l.b16 %v4814
      %v4967 = vunpack.c.l.b16 %v4815
      %v4968 = vpack.c.b16 %v4897, %v4896
      %v4969 = vpack.c.b16 %v4899, %v4898
      %v4970 = vpack.c.b16 %v4901, %v4900
      %v4971 = vpack.c.b16 %v4903, %v4902
      %v4972 = vpack.c.b16 %v4905, %v4904
      %v4973 = vpack.c.b16 %v4907, %v4906
      %v4974 = vpack.c.b16 %v4909, %v4908
      %v4975 = vpack.c.b16 %v4911, %v4910
      %v4976 = vpack.c.b16 %v4913, %v4912
      %v4977 = vpack.c.b16 %v4915, %v4914
      %v4978 = vpack.c.b16 %v4917, %v4916
      %v4979 = vpack.c.b16 %v4919, %v4918
      %v4980 = vpack.c.b16 %v4921, %v4920
      %v4981 = vpack.c.b16 %v4923, %v4922
      %v4982 = vpack.c.b16 %v4925, %v4924
      %v4983 = vpack.c.b16 %v4927, %v4926
      %v4984 = vpack.c.b16 %v4929, %v4928
      %v4985 = vpack.c.b16 %v4931, %v4930
      %v4986 = vpack.c.b16 %v4933, %v4932
      %v4987 = vpack.c.b16 %v4935, %v4934
      %v4988 = vpack.c.b16 %v4937, %v4936
      %v4989 = vpack.c.b16 %v4939, %v4938
      %v4990 = vpack.c.b16 %v4941, %v4940
      %v4991 = vpack.c.b16 %v4943, %v4942
      %v4992 = vpack.c.b16 %v4945, %v4944
      %v4993 = vpack.c.b16 %v4947, %v4946
      %v4994 = vpack.c.b16 %v4949, %v4948
      %v4995 = vpack.c.b16 %v4951, %v4950
      %v4996 = vpack.c.b16 %v4953, %v4952
      %v4997 = vpack.c.b16 %v4955, %v4954
      %v4998 = vpack.c.b16 %v4957, %v4956
      %v4999 = vpack.c.b16 %v4959, %v4958
      %v5000 = vpack.c.b16 %v4961, %v4960
      %v5001 = vpack.c.b16 %v4963, %v4962
      %v5002 = vpack.c.b16 %v4965, %v4964
      %v5003 = vpack.c.b16 %v4967, %v4966
      %v5041 = vsel %vm307, %v4627, 0
      %v5044 = vsel %vm307, %v4628, 0
      %v5047 = vsel %vm307, %v4629, 0
      %v5050 = vsel %vm307, %v4630, 0
      %5052 = vmatprep.subr.bf16.mxu0 0
      %5053 = vmatpush1.bf16.msra.mxu0 %v4975
      %5054 = vmatprep.subr.bf16.mxu0 0
      %5055 = vmatpush1.bf16.msra.mxu0 %v4974
      %5056 = vmatprep.subr.bf16.mxu0 0
      %5057 = vmatpush1.bf16.msra.mxu0 %v4973
      %5058 = vmatprep.subr.bf16.mxu0 0
      %5059 = vmatpush1.bf16.msra.mxu0 %v4972
      %5060 = vmatprep.subr.bf16.mxu0 0
      %5061 = vmatpush1.bf16.msra.mxu0 %v4971
      %5062 = vmatprep.subr.bf16.mxu0 0
      %5063 = vmatpush1.bf16.msra.mxu0 %v4970
      %5064 = vmatprep.subr.bf16.mxu0 0
      %5065 = vmatpush1.bf16.msra.mxu0 %v4969
      %5066 = vmatprep.subr.bf16.mxu0 0
      %5067 = vmatpush1.bf16.msra.mxu0 %v4968
      %5068 = vmatprep.subr.bf16.mxu0 0
      %5069 = vmatpush2.bf16.msra.mxu0 %v4983
      %5070 = vmatprep.subr.bf16.mxu0 0
      %5071 = vmatpush2.bf16.msra.mxu0 %v4982
      %5072 = vmatprep.subr.bf16.mxu0 0
      %5073 = vmatpush2.bf16.msra.mxu0 %v4981
      %5074 = vmatprep.subr.bf16.mxu0 0
      %5075 = vmatpush2.bf16.msra.mxu0 %v4980
      %5076 = vmatprep.subr.bf16.mxu0 0
      %5077 = vmatpush2.bf16.msra.mxu0 %v4979
      %5078 = vmatprep.subr.bf16.mxu0 0
      %5079 = vmatpush2.bf16.msra.mxu0 %v4978
      %5080 = vmatprep.subr.bf16.mxu0 0
      %5081 = vmatpush2.bf16.msra.mxu0 %v4977
      %5082 = vmatprep.subr.bf16.mxu0 0
      %5083 = vmatpush2.bf16.msra.mxu0 %v4976
      %5084 = vmatprep.mubr.bf16.mxu0 %v4697
      %5085 = vmatmul.mubr.bf16.gmra.mxu0 %v4681
      %v5086 = vpop.f32.mrf.mxu0
      %v5087 = vadd.f32 %v4822, %v5086
      %v5088 = vpop.f32.mrf.mxu0
      %v5089 = vpop.f32.mrf.mxu0
      %v5090 = vadd.f32 %v4822, %v5089
      %v5091 = vpop.f32.mrf.mxu0
      %5092 = vmatprep.mubr.bf16.mxu0 %v4701
      %5093 = vmatmul.mubr.bf16.gmra.mxu0 %v4685
      %v5094 = vpop.f32.mrf.mxu0
      %v5095 = vadd.f32 %v4822, %v5094
      %v5096 = vpop.f32.mrf.mxu0
      %v5097 = vpop.f32.mrf.mxu0
      %v5098 = vadd.f32 %v4822, %v5097
      %v5099 = vpop.f32.mrf.mxu0
      %5100 = vmatprep.mubr.bf16.mxu0 %v4705
      %5101 = vmatmul.mubr.bf16.gmra.mxu0 %v4689
      %v5102 = vpop.f32.mrf.mxu0
      %v5103 = vadd.f32 %v4822, %v5102
      %v5104 = vpop.f32.mrf.mxu0
      %v5105 = vpop.f32.mrf.mxu0
      %v5106 = vadd.f32 %v4822, %v5105
      %v5107 = vpop.f32.mrf.mxu0
      %5108 = vmatprep.mubr.bf16.mxu0 %v4709
      %5109 = vmatmul.mubr.bf16.gmra.mxu0 %v4693
      %v5110 = vpop.f32.mrf.mxu0
      %v5111 = vadd.f32 %v4822, %v5110
      %v5112 = vpop.f32.mrf.mxu0
      %v5113 = vpop.f32.mrf.mxu0
      %v5114 = vadd.f32 %v4822, %v5113
      %v5115 = vpop.f32.mrf.mxu0
      %5116 = vdwg.mxu0
      %5117 = vmatprep.subr.bf16.mxu0 0
      %5118 = vmatpush1.bf16.msra.mxu0 %v4991
      %5119 = vmatprep.subr.bf16.mxu0 0
      %5120 = vmatpush1.bf16.msra.mxu0 %v4990
      %5121 = vmatprep.subr.bf16.mxu0 0
      %5122 = vmatpush1.bf16.msra.mxu0 %v4989
      %5123 = vmatprep.subr.bf16.mxu0 0
      %5124 = vmatpush1.bf16.msra.mxu0 %v4988
      %5125 = vmatprep.subr.bf16.mxu0 0
      %5126 = vmatpush1.bf16.msra.mxu0 %v4987
      %5127 = vmatprep.subr.bf16.mxu0 0
      %5128 = vmatpush1.bf16.msra.mxu0 %v4986
      %5129 = vmatprep.subr.bf16.mxu0 0
      %5130 = vmatpush1.bf16.msra.mxu0 %v4985
      %5131 = vmatprep.subr.bf16.mxu0 0
      %5132 = vmatpush1.bf16.msra.mxu0 %v4984
      %5133 = vmatprep.subr.bf16.mxu0 0
      %5134 = vmatpush2.bf16.msra.mxu0 %v4999
      %5135 = vmatprep.subr.bf16.mxu0 0
      %5136 = vmatpush2.bf16.msra.mxu0 %v4998
      %5137 = vmatprep.subr.bf16.mxu0 0
      %5138 = vmatpush2.bf16.msra.mxu0 %v4997
      %5139 = vmatprep.subr.bf16.mxu0 0
      %5140 = vmatpush2.bf16.msra.mxu0 %v4996
      %5141 = vmatprep.subr.bf16.mxu0 0
      %5142 = vmatpush2.bf16.msra.mxu0 %v4995
      %5143 = vmatprep.subr.bf16.mxu0 0
      %5144 = vmatpush2.bf16.msra.mxu0 %v4994
      %5145 = vmatprep.subr.bf16.mxu0 0
      %5146 = vmatpush2.bf16.msra.mxu0 %v4993
      %5147 = vmatprep.subr.bf16.mxu0 0
      %5148 = vmatpush2.bf16.msra.mxu0 %v4992
      %5149 = vmatprep.mubr.bf16.mxu0 %v4729
      %5150 = vmatmul.mubr.bf16.gmra.mxu0 %v4713
      %v5151 = vpop.f32.mrf.mxu0
      %v5152 = vadd.f32 %v5087, %v5151
      %v5153 = vpop.f32.mrf.mxu0
      %v5154 = vpop.f32.mrf.mxu0
      %v5155 = vadd.f32 %v5090, %v5154
      %v5156 = vpop.f32.mrf.mxu0
      %5157 = vmatprep.mubr.bf16.mxu0 %v4733
      %5158 = vmatmul.mubr.bf16.gmra.mxu0 %v4717
      %v5159 = vpop.f32.mrf.mxu0
      %v5160 = vadd.f32 %v5095, %v5159
      %v5161 = vpop.f32.mrf.mxu0
      %v5162 = vpop.f32.mrf.mxu0
      %v5163 = vadd.f32 %v5098, %v5162
      %v5164 = vpop.f32.mrf.mxu0
      %5165 = vmatprep.mubr.bf16.mxu0 %v4737
      %5166 = vmatmul.mubr.bf16.gmra.mxu0 %v4721
      %v5167 = vpop.f32.mrf.mxu0
      %v5168 = vadd.f32 %v5103, %v5167
      %v5169 = vpop.f32.mrf.mxu0
      %v5170 = vpop.f32.mrf.mxu0
      %v5171 = vadd.f32 %v5106, %v5170
      %v5172 = vpop.f32.mrf.mxu0
      %5173 = vmatprep.mubr.bf16.mxu0 %v4741
      %5174 = vmatmul.mubr.bf16.gmra.mxu0 %v4725
      %v5175 = vpop.f32.mrf.mxu0
      %v5176 = vadd.f32 %v5111, %v5175
      %v5177 = vpop.f32.mrf.mxu0
      %v5178 = vpop.f32.mrf.mxu0
      %v5179 = vadd.f32 %v5114, %v5178
      %v5180 = vpop.f32.mrf.mxu0
      %5181 = vdwg.mxu0
      %5182 = vmatprep.subr.bf16.mxu0 0
      %5183 = vmatpush1.bf16.msra.mxu0 0
      %5184 = vmatprep.subr.bf16.mxu0 0
      %5185 = vmatpush1.bf16.msra.mxu0 0
      %5186 = vmatprep.subr.bf16.mxu0 0
      %5187 = vmatpush1.bf16.msra.mxu0 0
      %5188 = vmatprep.subr.bf16.mxu0 0
      %5189 = vmatpush1.bf16.msra.mxu0 0
      %5190 = vmatprep.subr.bf16.mxu0 0
      %5191 = vmatpush1.bf16.msra.mxu0 %v5003
      %5192 = vmatprep.subr.bf16.mxu0 0
      %5193 = vmatpush1.bf16.msra.mxu0 %v5002
      %5194 = vmatprep.subr.bf16.mxu0 0
      %5195 = vmatpush1.bf16.msra.mxu0 %v5001
      %5196 = vmatprep.subr.bf16.mxu0 0
      %5197 = vmatpush1.bf16.msra.mxu0 %v5000
      %5198 = vmatprep.subr.bf16.mxu0 0
      %5199 = vmatpush2.bf16.msra.mxu0 0
      %5200 = vmatprep.subr.bf16.mxu0 0
      %5201 = vmatpush2.bf16.msra.mxu0 0
      %5202 = vmatprep.subr.bf16.mxu0 0
      %5203 = vmatpush2.bf16.msra.mxu0 0
      %5204 = vmatprep.subr.bf16.mxu0 0
      %5205 = vmatpush2.bf16.msra.mxu0 0
      %5206 = vmatprep.subr.bf16.mxu0 0
      %5207 = vmatpush2.bf16.msra.mxu0 0
      %5208 = vmatprep.subr.bf16.mxu0 0
      %5209 = vmatpush2.bf16.msra.mxu0 0
      %5210 = vmatprep.subr.bf16.mxu0 0
      %5211 = vmatpush2.bf16.msra.mxu0 0
      %5212 = vmatprep.subr.bf16.mxu0 0
      %5213 = vmatpush2.bf16.msra.mxu0 0
      %5214 = vmatprep.mubr.bf16.mxu0 0
      %5215 = vmatmul.mubr.bf16.gmra.mxu0 %v5041
      %v5216 = vpop.f32.mrf.mxu0
      %v5217 = vadd.f32 %v5152, %v5216
      %v5218 = vpop.f32.mrf.mxu0
      %v5219 = vpop.f32.mrf.mxu0
      %v5220 = vadd.f32 %v5155, %v5219
      %v5221 = vpop.f32.mrf.mxu0
      %5222 = vmatprep.mubr.bf16.mxu0 0
      %5223 = vmatmul.mubr.bf16.gmra.mxu0 %v5044
      %v5224 = vpop.f32.mrf.mxu0
      %v5225 = vadd.f32 %v5160, %v5224
      %v5226 = vpop.f32.mrf.mxu0
      %v5227 = vpop.f32.mrf.mxu0
      %v5228 = vadd.f32 %v5163, %v5227
      %v5229 = vpop.f32.mrf.mxu0
      %5230 = vmatprep.mubr.bf16.mxu0 0
      %5231 = vmatmul.mubr.bf16.gmra.mxu0 %v5047
      %v5232 = vpop.f32.mrf.mxu0
      %v5233 = vadd.f32 %v5168, %v5232
      %v5234 = vpop.f32.mrf.mxu0
      %v5235 = vpop.f32.mrf.mxu0
      %v5236 = vadd.f32 %v5171, %v5235
      %v5237 = vpop.f32.mrf.mxu0
      %5238 = vmatprep.mubr.bf16.mxu0 0
      %5239 = vmatmul.mubr.bf16.gmra.mxu0 %v5050
      %v5240 = vpop.f32.mrf.mxu0
      %v5241 = vadd.f32 %v5176, %v5240
      %v5242 = vpop.f32.mrf.mxu0
      %v5243 = vpop.f32.mrf.mxu0
      %v5244 = vadd.f32 %v5179, %v5243
      %v5245 = vpop.f32.mrf.mxu0
      %5246 = vdwg.mxu0
      %v5247 = vmax.f32 %v5217, 0.0
      %v5248 = vmax.f32 %v5220, 0.0
      %v5249 = vmax.f32 %v5225, 0.0
      %v5250 = vmax.f32 %v5228, 0.0
      %v5251 = vmax.f32 %v5233, 0.0
      %v5252 = vmax.f32 %v5236, 0.0
      %v5253 = vmax.f32 %v5241, 0.0
      %v5254 = vmax.f32 %v5244, 0.0
      %5255 = vst.msk [vmem:[%s1539 + $0x8] sm:$0xff] %vm307, %v5247
      %5256 = vst.msk [vmem:[%s1539 + $0x20] sm:$0xff] %vm307, %v5248
      %5257 = vst.msk [vmem:[%s1539 + $0x38] sm:$0xff] %vm307, %v5249
      %5258 = vst.msk [vmem:[%s1539 + $0x50] sm:$0xff] %vm307, %v5250
      %5259 = vst.msk [vmem:[%s1539 + $0x68] sm:$0xff] %vm307, %v5251
      %5260 = vst.msk [vmem:[%s1539 + $0x80] sm:$0xff] %vm307, %v5252
      %5261 = vst.msk [vmem:[%s1539 + $0x98] sm:$0xff] %vm307, %v5253
      %5262 = vst.msk [vmem:[%s1539 + $0xb0] sm:$0xff] %vm307, %v5254
      %s5263 = scalar_lea.vmem [#allocation4], 24
      %5264 = vst.msk [vmem:[%s5263 + $0x8] sm:$0xff] %vm307, %v4507
      %5265 = vst.msk [vmem:[%s5263 + $0x20] sm:$0xff] %vm307, %v4508
      %5266 = vst.msk [vmem:[%s5263 + $0x38] sm:$0xff] %vm307, %v4509
      %5267 = vst.msk [vmem:[%s5263 + $0x50] sm:$0xff] %vm307, %v4510
      %5268 = vst.msk [vmem:[%s5263 + $0x68] sm:$0xff] %vm307, %v4511
      %5269 = vst.msk [vmem:[%s5263 + $0x80] sm:$0xff] %vm307, %v4512
      %5270 = vst.msk [vmem:[%s5263 + $0x98] sm:$0xff] %vm307, %v4513
      %5271 = vst.msk [vmem:[%s5263 + $0xb0] sm:$0xff] %vm307, %v4514
      %v5272 = vld [vmem:[#allocation3 + $0x7] sm:$0xff]
      %v5273 = vld [vmem:[#allocation3 + $0x1f] sm:$0xff]
      %v5274 = vld [vmem:[#allocation3 + $0x37] sm:$0xff]
      %v5275 = vld [vmem:[#allocation3 + $0x4f] sm:$0xff]
      %v5276 = vld [vmem:[#allocation3 + $0x67] sm:$0xff]
      %v5277 = vld [vmem:[#allocation3 + $0x7f] sm:$0xff]
      %v5278 = vld [vmem:[#allocation3 + $0x97] sm:$0xff]
      %v5279 = vld [vmem:[#allocation3 + $0xaf] sm:$0xff]
      %v5280 = vpack.c.bf16 %v5273, %v5272
      %v5281 = vpack.c.bf16 %v5275, %v5274
      %v5282 = vpack.c.bf16 %v5277, %v5276
      %v5283 = vpack.c.bf16 %v5279, %v5278
      %v5284 = vld [vmem:[#allocation3 + $0x8] sm:$0xff]
      %v5285 = vld [vmem:[#allocation3 + $0x20] sm:$0xff]
      %v5286 = vld [vmem:[#allocation3 + $0x38] sm:$0xff]
      %v5287 = vld [vmem:[#allocation3 + $0x50] sm:$0xff]
      %v5288 = vld [vmem:[#allocation3 + $0x68] sm:$0xff]
      %v5289 = vld [vmem:[#allocation3 + $0x80] sm:$0xff]
      %v5290 = vld [vmem:[#allocation3 + $0x98] sm:$0xff]
      %v5291 = vld [vmem:[#allocation3 + $0xb0] sm:$0xff]
      %v5292 = vpack.c.bf16 %v5285, %v5284
      %v5293 = vpack.c.bf16 %v5287, %v5286
      %v5294 = vpack.c.bf16 %v5289, %v5288
      %v5295 = vpack.c.bf16 %v5291, %v5290
      %v5296 = vld [vmem:[#allocation3 + $0x9] sm:$0xff]
      %v5297 = vld [vmem:[#allocation3 + $0x21] sm:$0xff]
      %v5298 = vld [vmem:[#allocation3 + $0x39] sm:$0xff]
      %v5299 = vld [vmem:[#allocation3 + $0x51] sm:$0xff]
      %v5300 = vld [vmem:[#allocation3 + $0x69] sm:$0xff]
      %v5301 = vld [vmem:[#allocation3 + $0x81] sm:$0xff]
      %v5302 = vld [vmem:[#allocation3 + $0x99] sm:$0xff]
      %v5303 = vld [vmem:[#allocation3 + $0xb1] sm:$0xff]
      %v5304 = vpack.c.bf16 %v5297, %v5296
      %v5305 = vpack.c.bf16 %v5299, %v5298
      %v5306 = vpack.c.bf16 %v5301, %v5300
      %v5307 = vpack.c.bf16 %v5303, %v5302
      %v5308 = vld [vmem:[%s1539 + $0x7] sm:$0xff]
      %v5309 = vld [vmem:[%s1539 + $0x1f] sm:$0xff]
      %v5310 = vld [vmem:[%s1539 + $0x37] sm:$0xff]
      %v5311 = vld [vmem:[%s1539 + $0x4f] sm:$0xff]
      %v5312 = vld [vmem:[%s1539 + $0x67] sm:$0xff]
      %v5313 = vld [vmem:[%s1539 + $0x7f] sm:$0xff]
      %v5314 = vld [vmem:[%s1539 + $0x97] sm:$0xff]
      %v5315 = vld [vmem:[%s1539 + $0xaf] sm:$0xff]
      %v5316 = vpack.c.bf16 %v5309, %v5308
      %v5317 = vpack.c.bf16 %v5311, %v5310
      %v5318 = vpack.c.bf16 %v5313, %v5312
      %v5319 = vpack.c.bf16 %v5315, %v5314
      %v5320 = vld [vmem:[%s1539 + $0x8] sm:$0xff]
      %v5321 = vld [vmem:[%s1539 + $0x20] sm:$0xff]
      %v5322 = vld [vmem:[%s1539 + $0x38] sm:$0xff]
      %v5323 = vld [vmem:[%s1539 + $0x50] sm:$0xff]
      %v5324 = vld [vmem:[%s1539 + $0x68] sm:$0xff]
      %v5325 = vld [vmem:[%s1539 + $0x80] sm:$0xff]
      %v5326 = vld [vmem:[%s1539 + $0x98] sm:$0xff]
      %v5327 = vld [vmem:[%s1539 + $0xb0] sm:$0xff]
      %v5328 = vpack.c.bf16 %v5321, %v5320
      %v5329 = vpack.c.bf16 %v5323, %v5322
      %v5330 = vpack.c.bf16 %v5325, %v5324
      %v5331 = vpack.c.bf16 %v5327, %v5326
      %v5332 = vld [vmem:[%s1539 + $0x9] sm:$0xff]
      %v5333 = vld [vmem:[%s1539 + $0x21] sm:$0xff]
      %v5334 = vld [vmem:[%s1539 + $0x39] sm:$0xff]
      %v5335 = vld [vmem:[%s1539 + $0x51] sm:$0xff]
      %v5336 = vld [vmem:[%s1539 + $0x69] sm:$0xff]
      %v5337 = vld [vmem:[%s1539 + $0x81] sm:$0xff]
      %v5338 = vld [vmem:[%s1539 + $0x99] sm:$0xff]
      %v5339 = vld [vmem:[%s1539 + $0xb1] sm:$0xff]
      %v5340 = vpack.c.bf16 %v5333, %v5332
      %v5341 = vpack.c.bf16 %v5335, %v5334
      %v5342 = vpack.c.bf16 %v5337, %v5336
      %v5343 = vpack.c.bf16 %v5339, %v5338
      %v5344 = vld [vmem:[%s1620 + $0x7] sm:$0xff]
      %v5345 = vld [vmem:[%s1620 + $0x1f] sm:$0xff]
      %v5346 = vld [vmem:[%s1620 + $0x37] sm:$0xff]
      %v5347 = vld [vmem:[%s1620 + $0x4f] sm:$0xff]
      %v5348 = vld [vmem:[%s1620 + $0x67] sm:$0xff]
      %v5349 = vld [vmem:[%s1620 + $0x7f] sm:$0xff]
      %v5350 = vld [vmem:[%s1620 + $0x97] sm:$0xff]
      %v5351 = vld [vmem:[%s1620 + $0xaf] sm:$0xff]
      %v5352 = vpack.c.bf16 %v5345, %v5344
      %v5353 = vpack.c.bf16 %v5347, %v5346
      %v5354 = vpack.c.bf16 %v5349, %v5348
      %v5355 = vpack.c.bf16 %v5351, %v5350
      %v5356 = vld [vmem:[%s1620 + $0x8] sm:$0xff]
      %v5357 = vld [vmem:[%s1620 + $0x20] sm:$0xff]
      %v5358 = vld [vmem:[%s1620 + $0x38] sm:$0xff]
      %v5359 = vld [vmem:[%s1620 + $0x50] sm:$0xff]
      %v5360 = vld [vmem:[%s1620 + $0x68] sm:$0xff]
      %v5361 = vld [vmem:[%s1620 + $0x80] sm:$0xff]
      %v5362 = vld [vmem:[%s1620 + $0x98] sm:$0xff]
      %v5363 = vld [vmem:[%s1620 + $0xb0] sm:$0xff]
      %v5364 = vpack.c.bf16 %v5357, %v5356
      %v5365 = vpack.c.bf16 %v5359, %v5358
      %v5366 = vpack.c.bf16 %v5361, %v5360
      %v5367 = vpack.c.bf16 %v5363, %v5362
      %v5368 = vld [vmem:[%s1620 + $0x9] sm:$0xff]
      %v5369 = vld [vmem:[%s1620 + $0x21] sm:$0xff]
      %v5370 = vld [vmem:[%s1620 + $0x39] sm:$0xff]
      %v5371 = vld [vmem:[%s1620 + $0x51] sm:$0xff]
      %v5372 = vld [vmem:[%s1620 + $0x69] sm:$0xff]
      %v5373 = vld [vmem:[%s1620 + $0x81] sm:$0xff]
      %v5374 = vld [vmem:[%s1620 + $0x99] sm:$0xff]
      %v5375 = vld [vmem:[%s1620 + $0xb1] sm:$0xff]
      %v5376 = vpack.c.bf16 %v5369, %v5368
      %v5377 = vpack.c.bf16 %v5371, %v5370
      %v5378 = vpack.c.bf16 %v5373, %v5372
      %v5379 = vpack.c.bf16 %v5375, %v5374
      %v5380 = vld [vmem:[#allocation4 + $0x7] sm:$0xff]
      %v5381 = vld [vmem:[#allocation4 + $0x1f] sm:$0xff]
      %v5382 = vld [vmem:[#allocation4 + $0x37] sm:$0xff]
      %v5383 = vld [vmem:[#allocation4 + $0x4f] sm:$0xff]
      %v5384 = vld [vmem:[#allocation4 + $0x67] sm:$0xff]
      %v5385 = vld [vmem:[#allocation4 + $0x7f] sm:$0xff]
      %v5386 = vld [vmem:[#allocation4 + $0x97] sm:$0xff]
      %v5387 = vld [vmem:[#allocation4 + $0xaf] sm:$0xff]
      %v5388 = vpack.c.bf16 %v5381, %v5380
      %v5389 = vpack.c.bf16 %v5383, %v5382
      %v5390 = vpack.c.bf16 %v5385, %v5384
      %v5391 = vpack.c.bf16 %v5387, %v5386
      %v5392 = vld [vmem:[#allocation4 + $0x8] sm:$0xff]
      %v5393 = vld [vmem:[#allocation4 + $0x20] sm:$0xff]
      %v5394 = vld [vmem:[#allocation4 + $0x38] sm:$0xff]
      %v5395 = vld [vmem:[#allocation4 + $0x50] sm:$0xff]
      %v5396 = vld [vmem:[#allocation4 + $0x68] sm:$0xff]
      %v5397 = vld [vmem:[#allocation4 + $0x80] sm:$0xff]
      %v5398 = vld [vmem:[#allocation4 + $0x98] sm:$0xff]
      %v5399 = vld [vmem:[#allocation4 + $0xb0] sm:$0xff]
      %v5400 = vpack.c.bf16 %v5393, %v5392
      %v5401 = vpack.c.bf16 %v5395, %v5394
      %v5402 = vpack.c.bf16 %v5397, %v5396
      %v5403 = vpack.c.bf16 %v5399, %v5398
      %v5404 = vld [vmem:[#allocation4 + $0x9] sm:$0xff]
      %v5405 = vld [vmem:[#allocation4 + $0x21] sm:$0xff]
      %v5406 = vld [vmem:[#allocation4 + $0x39] sm:$0xff]
      %v5407 = vld [vmem:[#allocation4 + $0x51] sm:$0xff]
      %v5408 = vld [vmem:[#allocation4 + $0x69] sm:$0xff]
      %v5409 = vld [vmem:[#allocation4 + $0x81] sm:$0xff]
      %v5410 = vld [vmem:[#allocation4 + $0x99] sm:$0xff]
      %v5411 = vld [vmem:[#allocation4 + $0xb1] sm:$0xff]
      %v5412 = vpack.c.bf16 %v5405, %v5404
      %v5413 = vpack.c.bf16 %v5407, %v5406
      %v5414 = vpack.c.bf16 %v5409, %v5408
      %v5415 = vpack.c.bf16 %v5411, %v5410
      %v5416 = vld [vmem:[%s5263 + $0x7] sm:$0xff]
      %v5417 = vld [vmem:[%s5263 + $0x1f] sm:$0xff]
      %v5418 = vld [vmem:[%s5263 + $0x37] sm:$0xff]
      %v5419 = vld [vmem:[%s5263 + $0x4f] sm:$0xff]
      %v5420 = vld [vmem:[%s5263 + $0x67] sm:$0xff]
      %v5421 = vld [vmem:[%s5263 + $0x7f] sm:$0xff]
      %v5422 = vld [vmem:[%s5263 + $0x97] sm:$0xff]
      %v5423 = vld [vmem:[%s5263 + $0xaf] sm:$0xff]
      %v5424 = vpack.c.bf16 %v5417, %v5416
      %v5425 = vpack.c.bf16 %v5419, %v5418
      %v5426 = vpack.c.bf16 %v5421, %v5420
      %v5427 = vpack.c.bf16 %v5423, %v5422
      %v5428 = vld [vmem:[%s5263 + $0x8] sm:$0xff]
      %v5429 = vld [vmem:[%s5263 + $0x20] sm:$0xff]
      %v5430 = vld [vmem:[%s5263 + $0x38] sm:$0xff]
      %v5431 = vld [vmem:[%s5263 + $0x50] sm:$0xff]
      %v5432 = vld [vmem:[%s5263 + $0x68] sm:$0xff]
      %v5433 = vld [vmem:[%s5263 + $0x80] sm:$0xff]
      %v5434 = vld [vmem:[%s5263 + $0x98] sm:$0xff]
      %v5435 = vld [vmem:[%s5263 + $0xb0] sm:$0xff]
      %v5436 = vpack.c.bf16 %v5429, %v5428
      %v5437 = vpack.c.bf16 %v5431, %v5430
      %v5438 = vpack.c.bf16 %v5433, %v5432
      %v5439 = vpack.c.bf16 %v5435, %v5434
      %v5440 = vld [vmem:[%s5263 + $0x9] sm:$0xff]
      %v5441 = vld [vmem:[%s5263 + $0x21] sm:$0xff]
      %v5442 = vld [vmem:[%s5263 + $0x39] sm:$0xff]
      %v5443 = vld [vmem:[%s5263 + $0x51] sm:$0xff]
      %v5444 = vld [vmem:[%s5263 + $0x69] sm:$0xff]
      %v5445 = vld [vmem:[%s5263 + $0x81] sm:$0xff]
      %v5446 = vld [vmem:[%s5263 + $0x99] sm:$0xff]
      %v5447 = vld [vmem:[%s5263 + $0xb1] sm:$0xff]
      %v5448 = vpack.c.bf16 %v5441, %v5440
      %v5449 = vpack.c.bf16 %v5443, %v5442
      %v5450 = vpack.c.bf16 %v5445, %v5444
      %v5451 = vpack.c.bf16 %v5447, %v5446
      %s5452 = scalar_lea.vmem [#allocation4], 48
      %v5453 = vld [vmem:[%s5452 + $0x7] sm:$0xff]
      %v5454 = vld [vmem:[%s5452 + $0x1f] sm:$0xff]
      %v5455 = vld [vmem:[%s5452 + $0x37] sm:$0xff]
      %v5456 = vld [vmem:[%s5452 + $0x4f] sm:$0xff]
      %v5457 = vld [vmem:[%s5452 + $0x67] sm:$0xff]
      %v5458 = vld [vmem:[%s5452 + $0x7f] sm:$0xff]
      %v5459 = vld [vmem:[%s5452 + $0x97] sm:$0xff]
      %v5460 = vld [vmem:[%s5452 + $0xaf] sm:$0xff]
      %v5461 = vpack.c.bf16 %v5454, %v5453
      %v5462 = vpack.c.bf16 %v5456, %v5455
      %v5463 = vpack.c.bf16 %v5458, %v5457
      %v5464 = vpack.c.bf16 %v5460, %v5459
      %v5465 = vld [vmem:[%s5452 + $0x8] sm:$0xff]
      %v5466 = vld [vmem:[%s5452 + $0x20] sm:$0xff]
      %v5467 = vld [vmem:[%s5452 + $0x38] sm:$0xff]
      %v5468 = vld [vmem:[%s5452 + $0x50] sm:$0xff]
      %v5469 = vld [vmem:[%s5452 + $0x68] sm:$0xff]
      %v5470 = vld [vmem:[%s5452 + $0x80] sm:$0xff]
      %v5471 = vld [vmem:[%s5452 + $0x98] sm:$0xff]
      %v5472 = vld [vmem:[%s5452 + $0xb0] sm:$0xff]
      %v5473 = vpack.c.bf16 %v5466, %v5465
      %v5474 = vpack.c.bf16 %v5468, %v5467
      %v5475 = vpack.c.bf16 %v5470, %v5469
      %v5476 = vpack.c.bf16 %v5472, %v5471
      %v5477 = vld [vmem:[%s5452 + $0x9] sm:$0xff]
      %v5478 = vld [vmem:[%s5452 + $0x21] sm:$0xff]
      %v5479 = vld [vmem:[%s5452 + $0x39] sm:$0xff]
      %v5480 = vld [vmem:[%s5452 + $0x51] sm:$0xff]
      %v5481 = vld [vmem:[%s5452 + $0x69] sm:$0xff]
      %v5482 = vld [vmem:[%s5452 + $0x81] sm:$0xff]
      %v5483 = vld [vmem:[%s5452 + $0x99] sm:$0xff]
      %v5484 = vld [vmem:[%s5452 + $0xb1] sm:$0xff]
      %v5485 = vpack.c.bf16 %v5478, %v5477
      %v5486 = vpack.c.bf16 %v5480, %v5479
      %v5487 = vpack.c.bf16 %v5482, %v5481
      %v5488 = vpack.c.bf16 %v5484, %v5483
      %5493 = vrot.lane.b32.xlu0 %v5292, 64
      %v5494 = vpop.permute.xlu0 %5493
      %5495 = vrot.lane.b32.xlu0 %v5293, 64
      %v5496 = vpop.permute.xlu0 %5495
      %5497 = vrot.lane.b32.xlu0 %v5294, 64
      %v5498 = vpop.permute.xlu0 %5497
      %5499 = vrot.lane.b32.xlu0 %v5295, 64
      %v5500 = vpop.permute.xlu0 %5499
      %5505 = vrot.lane.b32.xlu0 %v5316, 64
      %v5506 = vpop.permute.xlu0 %5505
      %5507 = vrot.lane.b32.xlu0 %v5317, 64
      %v5508 = vpop.permute.xlu0 %5507
      %5509 = vrot.lane.b32.xlu0 %v5318, 64
      %v5510 = vpop.permute.xlu0 %5509
      %5511 = vrot.lane.b32.xlu0 %v5319, 64
      %v5512 = vpop.permute.xlu0 %5511
      %5517 = vrot.lane.b32.xlu0 %v5340, 64
      %v5518 = vpop.permute.xlu0 %5517
      %5519 = vrot.lane.b32.xlu0 %v5341, 64
      %v5520 = vpop.permute.xlu0 %5519
      %5521 = vrot.lane.b32.xlu0 %v5342, 64
      %v5522 = vpop.permute.xlu0 %5521
      %5523 = vrot.lane.b32.xlu0 %v5343, 64
      %v5524 = vpop.permute.xlu0 %5523
      %5529 = vrot.lane.b32.xlu0 %v5364, 64
      %v5530 = vpop.permute.xlu0 %5529
      %5531 = vrot.lane.b32.xlu0 %v5365, 64
      %v5532 = vpop.permute.xlu0 %5531
      %5533 = vrot.lane.b32.xlu0 %v5366, 64
      %v5534 = vpop.permute.xlu0 %5533
      %5535 = vrot.lane.b32.xlu0 %v5367, 64
      %v5536 = vpop.permute.xlu0 %5535
      %5541 = vrot.lane.b32.xlu0 %v5388, 64
      %v5542 = vpop.permute.xlu0 %5541
      %5543 = vrot.lane.b32.xlu0 %v5389, 64
      %v5544 = vpop.permute.xlu0 %5543
      %5545 = vrot.lane.b32.xlu0 %v5390, 64
      %v5546 = vpop.permute.xlu0 %5545
      %5547 = vrot.lane.b32.xlu0 %v5391, 64
      %v5548 = vpop.permute.xlu0 %5547
      %5553 = vrot.lane.b32.xlu0 %v5412, 64
      %v5554 = vpop.permute.xlu0 %5553
      %5555 = vrot.lane.b32.xlu0 %v5413, 64
      %v5556 = vpop.permute.xlu0 %5555
      %5557 = vrot.lane.b32.xlu0 %v5414, 64
      %v5558 = vpop.permute.xlu0 %5557
      %5559 = vrot.lane.b32.xlu0 %v5415, 64
      %v5560 = vpop.permute.xlu0 %5559
      %5565 = vrot.lane.b32.xlu0 %v5436, 64
      %v5566 = vpop.permute.xlu0 %5565
      %5567 = vrot.lane.b32.xlu0 %v5437, 64
      %v5568 = vpop.permute.xlu0 %5567
      %5569 = vrot.lane.b32.xlu0 %v5438, 64
      %v5570 = vpop.permute.xlu0 %5569
      %5571 = vrot.lane.b32.xlu0 %v5439, 64
      %v5572 = vpop.permute.xlu0 %5571
      %5577 = vrot.lane.b32.xlu0 %v5461, 64
      %v5578 = vpop.permute.xlu0 %5577
      %5579 = vrot.lane.b32.xlu0 %v5462, 64
      %v5580 = vpop.permute.xlu0 %5579
      %5581 = vrot.lane.b32.xlu0 %v5463, 64
      %v5582 = vpop.permute.xlu0 %5581
      %5583 = vrot.lane.b32.xlu0 %v5464, 64
      %v5584 = vpop.permute.xlu0 %5583
      %v5587 = vsel %vm307, %v5280, %v5494
      %v5591 = vsel %vm307, %v5281, %v5496
      %v5595 = vsel %vm307, %v5282, %v5498
      %v5599 = vsel %vm307, %v5283, %v5500
      %v5603 = vsel %vm307, %v5304, %v5506
      %v5607 = vsel %vm307, %v5305, %v5508
      %v5611 = vsel %vm307, %v5306, %v5510
      %v5615 = vsel %vm307, %v5307, %v5512
      %v5619 = vsel %vm307, %v5328, %v5518
      %v5623 = vsel %vm307, %v5329, %v5520
      %v5627 = vsel %vm307, %v5330, %v5522
      %v5631 = vsel %vm307, %v5331, %v5524
      %v5635 = vsel %vm307, %v5352, %v5530
      %v5639 = vsel %vm307, %v5353, %v5532
      %v5643 = vsel %vm307, %v5354, %v5534
      %v5647 = vsel %vm307, %v5355, %v5536
      %v5651 = vsel %vm307, %v5376, %v5542
      %v5655 = vsel %vm307, %v5377, %v5544
      %v5659 = vsel %vm307, %v5378, %v5546
      %v5663 = vsel %vm307, %v5379, %v5548
      %v5667 = vsel %vm307, %v5400, %v5554
      %v5671 = vsel %vm307, %v5401, %v5556
      %v5675 = vsel %vm307, %v5402, %v5558
      %v5679 = vsel %vm307, %v5403, %v5560
      %v5683 = vsel %vm307, %v5424, %v5566
      %v5687 = vsel %vm307, %v5425, %v5568
      %v5691 = vsel %vm307, %v5426, %v5570
      %v5695 = vsel %vm307, %v5427, %v5572
      %v5699 = vsel %vm307, %v5448, %v5578
      %v5703 = vsel %vm307, %v5449, %v5580
      %v5707 = vsel %vm307, %v5450, %v5582
      %v5711 = vsel %vm307, %v5451, %v5584
      %5717 = vrot.lane.b32.xlu0 %v5485, 64
      %v5718 = vpop.permute.xlu0 %5717
      %5719 = vrot.lane.b32.xlu0 %v5486, 64
      %v5720 = vpop.permute.xlu0 %5719
      %5721 = vrot.lane.b32.xlu0 %v5487, 64
      %v5722 = vpop.permute.xlu0 %5721
      %5723 = vrot.lane.b32.xlu0 %v5488, 64
      %v5724 = vpop.permute.xlu0 %5723
      %v5727 = vsel %vm307, %v5473, %v5718
      %v5731 = vsel %vm307, %v5474, %v5720
      %v5735 = vsel %vm307, %v5475, %v5722
      %v5739 = vsel %vm307, %v5476, %v5724
      %v5741 = vld [vmem:[%s6] sm:$0xf]
      %v5742 = vld [vmem:[%s6 + $0x4] sm:$0xf]
      %v5743 = vld [vmem:[%s6 + $0x8] sm:$0xf]
      %v5744 = vld [vmem:[%s6 + $0xc] sm:$0xf]
      %v5745 = vld [vmem:[%s6 + $0x10] sm:$0xf]
      %v5746 = vld [vmem:[%s6 + $0x14] sm:$0xf]
      %v5747 = vld [vmem:[%s6 + $0x18] sm:$0xf]
      %v5748 = vld [vmem:[%s6 + $0x1c] sm:$0xf]
      %v5749 = vld [vmem:[%s6 + $0x20] sm:$0xf]
      %v5750 = vld [vmem:[%s6 + $0x24] sm:$0xf]
      %v5751 = vld [vmem:[%s6 + $0x28] sm:$0xf]
      %v5752 = vld [vmem:[%s6 + $0x2c] sm:$0xf]
      %v5753 = vld [vmem:[%s6 + $0x30] sm:$0xf]
      %v5754 = vld [vmem:[%s6 + $0x34] sm:$0xf]
      %v5755 = vld [vmem:[%s6 + $0x38] sm:$0xf]
      %v5756 = vld [vmem:[%s6 + $0x3c] sm:$0xf]
      %v5757 = vld [vmem:[%s6 + $0x40] sm:$0xf]
      %v5758 = vld [vmem:[%s6 + $0x44] sm:$0xf]
      %v5759 = vld [vmem:[%s6 + $0x48] sm:$0xf]
      %v5760 = vld [vmem:[%s6 + $0x4c] sm:$0xf]
      %v5761 = vld [vmem:[%s6 + $0x50] sm:$0xf]
      %v5762 = vld [vmem:[%s6 + $0x54] sm:$0xf]
      %v5763 = vld [vmem:[%s6 + $0x58] sm:$0xf]
      %v5764 = vld [vmem:[%s6 + $0x5c] sm:$0xf]
      %v5765 = vld [vmem:[%s6 + $0x60] sm:$0xf]
      %v5766 = vld [vmem:[%s6 + $0x64] sm:$0xf]
      %v5767 = vld [vmem:[%s6 + $0x68] sm:$0xf]
      %v5768 = vld [vmem:[%s6 + $0x6c] sm:$0xf]
      %v5769 = vld [vmem:[%s6 + $0x70] sm:$0xf]
      %v5770 = vld [vmem:[%s6 + $0x74] sm:$0xf]
      %v5771 = vld [vmem:[%s6 + $0x78] sm:$0xf]
      %v5772 = vld [vmem:[%s6 + $0x7c] sm:$0xf]
      %v5773 = vld [vmem:[%s6 + $0x80] sm:$0xf]
      %v5774 = vld [vmem:[%s6 + $0x84] sm:$0xf]
      %v5775 = vld [vmem:[%s6 + $0x88] sm:$0xf]
      %v5776 = vld [vmem:[%s6 + $0x8c] sm:$0xf]
      %v5777 = vld [vmem:[%s6 + $0x90] sm:$0xf]
      %v5778 = vld [vmem:[%s6 + $0x94] sm:$0xf]
      %v5779 = vld [vmem:[%s6 + $0x98] sm:$0xf]
      %v5780 = vld [vmem:[%s6 + $0x9c] sm:$0xf]
      %v5781 = vld [vmem:[%s6 + $0xa0] sm:$0xf]
      %v5782 = vld [vmem:[%s6 + $0xa4] sm:$0xf]
      %v5783 = vld [vmem:[%s6 + $0xa8] sm:$0xf]
      %v5784 = vld [vmem:[%s6 + $0xac] sm:$0xf]
      %v5785 = vld [vmem:[%s6 + $0xb0] sm:$0xf]
      %v5786 = vld [vmem:[%s6 + $0xb4] sm:$0xf]
      %v5787 = vld [vmem:[%s6 + $0xb8] sm:$0xf]
      %v5788 = vld [vmem:[%s6 + $0xbc] sm:$0xf]
      %v5789 = vld [vmem:[%s6 + $0xc0] sm:$0xf]
      %v5790 = vld [vmem:[%s6 + $0xc4] sm:$0xf]
      %v5791 = vld [vmem:[%s6 + $0xc8] sm:$0xf]
      %v5792 = vld [vmem:[%s6 + $0xcc] sm:$0xf]
      %v5793 = vld [vmem:[%s6 + $0xd0] sm:$0xf]
      %v5794 = vld [vmem:[%s6 + $0xd4] sm:$0xf]
      %v5795 = vld [vmem:[%s6 + $0xd8] sm:$0xf]
      %v5796 = vld [vmem:[%s6 + $0xdc] sm:$0xf]
      %v5797 = vld [vmem:[%s6 + $0xe0] sm:$0xf]
      %v5798 = vld [vmem:[%s6 + $0xe4] sm:$0xf]
      %v5799 = vld [vmem:[%s6 + $0xe8] sm:$0xf]
      %v5800 = vld [vmem:[%s6 + $0xec] sm:$0xf]
      %v5801 = vld [vmem:[%s6 + $0xf0] sm:$0xf]
      %v5802 = vld [vmem:[%s6 + $0xf4] sm:$0xf]
      %v5803 = vld [vmem:[%s6 + $0xf8] sm:$0xf]
      %v5804 = vld [vmem:[%s6 + $0xfc] sm:$0xf]
      %v5805 = vld [vmem:[%s6 + $0x100] sm:$0xf]
      %v5806 = vld [vmem:[%s6 + $0x104] sm:$0xf]
      %v5807 = vld [vmem:[%s6 + $0x108] sm:$0xf]
      %v5808 = vld [vmem:[%s6 + $0x10c] sm:$0xf]
      %v5809 = vld [vmem:[%s6 + $0x110] sm:$0xf]
      %v5810 = vld [vmem:[%s6 + $0x114] sm:$0xf]
      %v5811 = vld [vmem:[%s6 + $0x118] sm:$0xf]
      %v5812 = vld [vmem:[%s6 + $0x11c] sm:$0xf]
      %v5813 = vld [vmem:[%s6 + $0x120] sm:$0xf]
      %v5814 = vld [vmem:[%s6 + $0x124] sm:$0xf]
      %v5815 = vld [vmem:[%s6 + $0x128] sm:$0xf]
      %v5816 = vld [vmem:[%s6 + $0x12c] sm:$0xf]
      %v5817 = vld [vmem:[%s6 + $0x130] sm:$0xf]
      %v5818 = vld [vmem:[%s6 + $0x134] sm:$0xf]
      %v5819 = vld [vmem:[%s6 + $0x138] sm:$0xf]
      %v5820 = vld [vmem:[%s6 + $0x13c] sm:$0xf]
      %v5821 = vld [vmem:[%s6 + $0x140] sm:$0xf]
      %v5822 = vld [vmem:[%s6 + $0x144] sm:$0xf]
      %v5823 = vld [vmem:[%s6 + $0x148] sm:$0xf]
      %v5824 = vld [vmem:[%s6 + $0x14c] sm:$0xf]
      %v5825 = vld [vmem:[%s6 + $0x150] sm:$0xf]
      %v5826 = vld [vmem:[%s6 + $0x154] sm:$0xf]
      %v5827 = vld [vmem:[%s6 + $0x158] sm:$0xf]
      %v5828 = vld [vmem:[%s6 + $0x15c] sm:$0xf]
      %v5829 = vld [vmem:[%s6 + $0x160] sm:$0xf]
      %v5830 = vld [vmem:[%s6 + $0x164] sm:$0xf]
      %v5831 = vld [vmem:[%s6 + $0x168] sm:$0xf]
      %v5832 = vld [vmem:[%s6 + $0x16c] sm:$0xf]
      %v5833 = vld [vmem:[%s6 + $0x170] sm:$0xf]
      %v5834 = vld [vmem:[%s6 + $0x174] sm:$0xf]
      %v5835 = vld [vmem:[%s6 + $0x178] sm:$0xf]
      %v5836 = vld [vmem:[%s6 + $0x17c] sm:$0xf]
      %v5837 = vld [vmem:[%s6 + $0x180] sm:$0xf]
      %v5838 = vld [vmem:[%s6 + $0x184] sm:$0xf]
      %v5839 = vld [vmem:[%s6 + $0x188] sm:$0xf]
      %v5840 = vld [vmem:[%s6 + $0x18c] sm:$0xf]
      %v5841 = vld [vmem:[%s6 + $0x190] sm:$0xf]
      %v5842 = vld [vmem:[%s6 + $0x194] sm:$0xf]
      %v5843 = vld [vmem:[%s6 + $0x198] sm:$0xf]
      %v5844 = vld [vmem:[%s6 + $0x19c] sm:$0xf]
      %v5845 = vld [vmem:[%s6 + $0x1a0] sm:$0xf]
      %v5846 = vld [vmem:[%s6 + $0x1a4] sm:$0xf]
      %v5847 = vld [vmem:[%s6 + $0x1a8] sm:$0xf]
      %v5848 = vld [vmem:[%s6 + $0x1ac] sm:$0xf]
      %v5849 = vld [vmem:[%s6 + $0x1b0] sm:$0xf]
      %v5850 = vld [vmem:[%s6 + $0x1b4] sm:$0xf]
      %v5851 = vld [vmem:[%s6 + $0x1b8] sm:$0xf]
      %v5852 = vld [vmem:[%s6 + $0x1bc] sm:$0xf]
      %v5853 = vld [vmem:[%s6 + $0x1c0] sm:$0xf]
      %v5854 = vld [vmem:[%s6 + $0x1c4] sm:$0xf]
      %v5855 = vld [vmem:[%s6 + $0x1c8] sm:$0xf]
      %v5856 = vld [vmem:[%s6 + $0x1cc] sm:$0xf]
      %v5857 = vld [vmem:[%s6 + $0x1d0] sm:$0xf]
      %v5858 = vld [vmem:[%s6 + $0x1d4] sm:$0xf]
      %v5859 = vld [vmem:[%s6 + $0x1d8] sm:$0xf]
      %v5860 = vld [vmem:[%s6 + $0x1dc] sm:$0xf]
      %v5861 = vld [vmem:[%s6 + $0x1e0] sm:$0xf]
      %v5862 = vld [vmem:[%s6 + $0x1e4] sm:$0xf]
      %v5863 = vld [vmem:[%s6 + $0x1e8] sm:$0xf]
      %v5864 = vld [vmem:[%s6 + $0x1ec] sm:$0xf]
      %v5865 = vld [vmem:[%s6 + $0x1f0] sm:$0xf]
      %v5866 = vld [vmem:[%s6 + $0x1f4] sm:$0xf]
      %v5867 = vld [vmem:[%s6 + $0x1f8] sm:$0xf]
      %v5868 = vld [vmem:[%s6 + $0x1fc] sm:$0xf]
      %v5869 = vld [vmem:[%s6 + $0x200] sm:$0xf]
      %v5870 = vld [vmem:[%s6 + $0x204] sm:$0xf]
      %v5871 = vld [vmem:[%s6 + $0x208] sm:$0xf]
      %v5872 = vld [vmem:[%s6 + $0x20c] sm:$0xf]
      %v5873 = vld [vmem:[%s6 + $0x210] sm:$0xf]
      %v5874 = vld [vmem:[%s6 + $0x214] sm:$0xf]
      %v5875 = vld [vmem:[%s6 + $0x218] sm:$0xf]
      %v5876 = vld [vmem:[%s6 + $0x21c] sm:$0xf]
      %v5877 = vld [vmem:[%s6 + $0x220] sm:$0xf]
      %v5878 = vld [vmem:[%s6 + $0x224] sm:$0xf]
      %v5879 = vld [vmem:[%s6 + $0x228] sm:$0xf]
      %v5880 = vld [vmem:[%s6 + $0x22c] sm:$0xf]
      %v5881 = vld [vmem:[%s6 + $0x230] sm:$0xf]
      %v5882 = vld [vmem:[%s6 + $0x234] sm:$0xf]
      %v5883 = vld [vmem:[%s6 + $0x238] sm:$0xf]
      %v5884 = vld [vmem:[%s6 + $0x23c] sm:$0xf]
      %v5885 = vld [vmem:[%s7] sm:$0x1]
      %v5887 = vlaneseq
      %v5888 = vshrl.u32 %v5887, 7
      %v5889 = vsub.s32 0, %v5888
      %v5890 = vrot.slane %v5885, %v5889
      %v6036 = vunpack.c.l.b16 %v5741
      %v6037 = vunpack.c.l.b16 %v5742
      %v6038 = vunpack.c.l.b16 %v5743
      %v6039 = vunpack.c.l.b16 %v5744
      %v6040 = vunpack.c.l.b16 %v5745
      %v6041 = vunpack.c.l.b16 %v5746
      %v6042 = vunpack.c.l.b16 %v5747
      %v6043 = vunpack.c.l.b16 %v5748
      %v6044 = vunpack.c.l.b16 %v5749
      %v6045 = vunpack.c.l.b16 %v5750
      %v6046 = vunpack.c.l.b16 %v5751
      %v6047 = vunpack.c.l.b16 %v5752
      %v6048 = vunpack.c.l.b16 %v5753
      %v6049 = vunpack.c.l.b16 %v5754
      %v6050 = vunpack.c.l.b16 %v5755
      %v6051 = vunpack.c.l.b16 %v5756
      %v6052 = vunpack.c.l.b16 %v5757
      %v6053 = vunpack.c.l.b16 %v5758
      %v6054 = vunpack.c.l.b16 %v5759
      %v6055 = vunpack.c.l.b16 %v5760
      %v6056 = vunpack.c.l.b16 %v5761
      %v6057 = vunpack.c.l.b16 %v5762
      %v6058 = vunpack.c.l.b16 %v5763
      %v6059 = vunpack.c.l.b16 %v5764
      %v6060 = vunpack.c.l.b16 %v5765
      %v6061 = vunpack.c.l.b16 %v5766
      %v6062 = vunpack.c.l.b16 %v5767
      %v6063 = vunpack.c.l.b16 %v5768
      %v6064 = vunpack.c.l.b16 %v5769
      %v6065 = vunpack.c.l.b16 %v5770
      %v6066 = vunpack.c.l.b16 %v5771
      %v6067 = vunpack.c.l.b16 %v5772
      %v6068 = vunpack.c.l.b16 %v5773
      %v6069 = vunpack.c.l.b16 %v5774
      %v6070 = vunpack.c.l.b16 %v5775
      %v6071 = vunpack.c.l.b16 %v5776
      %v6072 = vunpack.c.l.b16 %v5777
      %v6073 = vunpack.c.l.b16 %v5778
      %v6074 = vunpack.c.l.b16 %v5779
      %v6075 = vunpack.c.l.b16 %v5780
      %v6076 = vunpack.c.l.b16 %v5781
      %v6077 = vunpack.c.l.b16 %v5782
      %v6078 = vunpack.c.l.b16 %v5783
      %v6079 = vunpack.c.l.b16 %v5784
      %v6080 = vunpack.c.l.b16 %v5785
      %v6081 = vunpack.c.l.b16 %v5786
      %v6082 = vunpack.c.l.b16 %v5787
      %v6083 = vunpack.c.l.b16 %v5788
      %v6084 = vunpack.c.l.b16 %v5789
      %v6085 = vunpack.c.l.b16 %v5790
      %v6086 = vunpack.c.l.b16 %v5791
      %v6087 = vunpack.c.l.b16 %v5792
      %v6088 = vunpack.c.l.b16 %v5793
      %v6089 = vunpack.c.l.b16 %v5794
      %v6090 = vunpack.c.l.b16 %v5795
      %v6091 = vunpack.c.l.b16 %v5796
      %v6092 = vunpack.c.l.b16 %v5797
      %v6093 = vunpack.c.l.b16 %v5798
      %v6094 = vunpack.c.l.b16 %v5799
      %v6095 = vunpack.c.l.b16 %v5800
      %v6096 = vunpack.c.l.b16 %v5801
      %v6097 = vunpack.c.l.b16 %v5802
      %v6098 = vunpack.c.l.b16 %v5803
      %v6099 = vunpack.c.l.b16 %v5804
      %v6100 = vunpack.c.l.b16 %v5805
      %v6101 = vunpack.c.l.b16 %v5806
      %v6102 = vunpack.c.l.b16 %v5807
      %v6103 = vunpack.c.l.b16 %v5808
      %v6104 = vunpack.c.l.b16 %v5809
      %v6105 = vunpack.c.l.b16 %v5810
      %v6106 = vunpack.c.l.b16 %v5811
      %v6107 = vunpack.c.l.b16 %v5812
      %v6108 = vunpack.c.l.b16 %v5813
      %v6109 = vunpack.c.l.b16 %v5814
      %v6110 = vunpack.c.l.b16 %v5815
      %v6111 = vunpack.c.l.b16 %v5816
      %v6112 = vunpack.c.l.b16 %v5817
      %v6113 = vunpack.c.l.b16 %v5818
      %v6114 = vunpack.c.l.b16 %v5819
      %v6115 = vunpack.c.l.b16 %v5820
      %v6116 = vunpack.c.l.b16 %v5821
      %v6117 = vunpack.c.l.b16 %v5822
      %v6118 = vunpack.c.l.b16 %v5823
      %v6119 = vunpack.c.l.b16 %v5824
      %v6120 = vunpack.c.l.b16 %v5825
      %v6121 = vunpack.c.l.b16 %v5826
      %v6122 = vunpack.c.l.b16 %v5827
      %v6123 = vunpack.c.l.b16 %v5828
      %v6124 = vunpack.c.l.b16 %v5829
      %v6125 = vunpack.c.l.b16 %v5830
      %v6126 = vunpack.c.l.b16 %v5831
      %v6127 = vunpack.c.l.b16 %v5832
      %v6128 = vunpack.c.l.b16 %v5833
      %v6129 = vunpack.c.l.b16 %v5834
      %v6130 = vunpack.c.l.b16 %v5835
      %v6131 = vunpack.c.l.b16 %v5836
      %v6132 = vunpack.c.l.b16 %v5837
      %v6133 = vunpack.c.l.b16 %v5838
      %v6134 = vunpack.c.l.b16 %v5839
      %v6135 = vunpack.c.l.b16 %v5840
      %v6136 = vunpack.c.l.b16 %v5841
      %v6137 = vunpack.c.l.b16 %v5842
      %v6138 = vunpack.c.l.b16 %v5843
      %v6139 = vunpack.c.l.b16 %v5844
      %v6140 = vunpack.c.l.b16 %v5845
      %v6141 = vunpack.c.l.b16 %v5846
      %v6142 = vunpack.c.l.b16 %v5847
      %v6143 = vunpack.c.l.b16 %v5848
      %v6144 = vunpack.c.l.b16 %v5849
      %v6145 = vunpack.c.l.b16 %v5850
      %v6146 = vunpack.c.l.b16 %v5851
      %v6147 = vunpack.c.l.b16 %v5852
      %v6148 = vunpack.c.l.b16 %v5853
      %v6149 = vunpack.c.l.b16 %v5854
      %v6150 = vunpack.c.l.b16 %v5855
      %v6151 = vunpack.c.l.b16 %v5856
      %v6152 = vunpack.c.l.b16 %v5857
      %v6153 = vunpack.c.l.b16 %v5858
      %v6154 = vunpack.c.l.b16 %v5859
      %v6155 = vunpack.c.l.b16 %v5860
      %v6156 = vunpack.c.l.b16 %v5861
      %v6157 = vunpack.c.l.b16 %v5862
      %v6158 = vunpack.c.l.b16 %v5863
      %v6159 = vunpack.c.l.b16 %v5864
      %v6160 = vunpack.c.l.b16 %v5865
      %v6161 = vunpack.c.l.b16 %v5866
      %v6162 = vunpack.c.l.b16 %v5867
      %v6163 = vunpack.c.l.b16 %v5868
      %v6164 = vunpack.c.l.b16 %v5869
      %v6165 = vunpack.c.l.b16 %v5870
      %v6166 = vunpack.c.l.b16 %v5871
      %v6167 = vunpack.c.l.b16 %v5872
      %v6168 = vunpack.c.l.b16 %v5873
      %v6169 = vunpack.c.l.b16 %v5874
      %v6170 = vunpack.c.l.b16 %v5875
      %v6171 = vunpack.c.l.b16 %v5876
      %v6172 = vunpack.c.l.b16 %v5877
      %v6173 = vunpack.c.l.b16 %v5878
      %v6174 = vunpack.c.l.b16 %v5879
      %v6175 = vunpack.c.l.b16 %v5880
      %v6176 = vunpack.c.l.b16 %v5881
      %v6177 = vunpack.c.l.b16 %v5882
      %v6178 = vunpack.c.l.b16 %v5883
      %v6179 = vunpack.c.l.b16 %v5884
      %v6180 = vpack.c.b16 %v6037, %v6036
      %v6181 = vpack.c.b16 %v6039, %v6038
      %v6182 = vpack.c.b16 %v6041, %v6040
      %v6183 = vpack.c.b16 %v6043, %v6042
      %v6184 = vpack.c.b16 %v6045, %v6044
      %v6185 = vpack.c.b16 %v6047, %v6046
      %v6186 = vpack.c.b16 %v6049, %v6048
      %v6187 = vpack.c.b16 %v6051, %v6050
      %v6188 = vpack.c.b16 %v6053, %v6052
      %v6189 = vpack.c.b16 %v6055, %v6054
      %v6190 = vpack.c.b16 %v6057, %v6056
      %v6191 = vpack.c.b16 %v6059, %v6058
      %v6192 = vpack.c.b16 %v6061, %v6060
      %v6193 = vpack.c.b16 %v6063, %v6062
      %v6194 = vpack.c.b16 %v6065, %v6064
      %v6195 = vpack.c.b16 %v6067, %v6066
      %v6196 = vpack.c.b16 %v6069, %v6068
      %v6197 = vpack.c.b16 %v6071, %v6070
      %v6198 = vpack.c.b16 %v6073, %v6072
      %v6199 = vpack.c.b16 %v6075, %v6074
      %v6200 = vpack.c.b16 %v6077, %v6076
      %v6201 = vpack.c.b16 %v6079, %v6078
      %v6202 = vpack.c.b16 %v6081, %v6080
      %v6203 = vpack.c.b16 %v6083, %v6082
      %v6204 = vpack.c.b16 %v6085, %v6084
      %v6205 = vpack.c.b16 %v6087, %v6086
      %v6206 = vpack.c.b16 %v6089, %v6088
      %v6207 = vpack.c.b16 %v6091, %v6090
      %v6208 = vpack.c.b16 %v6093, %v6092
      %v6209 = vpack.c.b16 %v6095, %v6094
      %v6210 = vpack.c.b16 %v6097, %v6096
      %v6211 = vpack.c.b16 %v6099, %v6098
      %v6212 = vpack.c.b16 %v6101, %v6100
      %v6213 = vpack.c.b16 %v6103, %v6102
      %v6214 = vpack.c.b16 %v6105, %v6104
      %v6215 = vpack.c.b16 %v6107, %v6106
      %v6216 = vpack.c.b16 %v6109, %v6108
      %v6217 = vpack.c.b16 %v6111, %v6110
      %v6218 = vpack.c.b16 %v6113, %v6112
      %v6219 = vpack.c.b16 %v6115, %v6114
      %v6220 = vpack.c.b16 %v6117, %v6116
      %v6221 = vpack.c.b16 %v6119, %v6118
      %v6222 = vpack.c.b16 %v6121, %v6120
      %v6223 = vpack.c.b16 %v6123, %v6122
      %v6224 = vpack.c.b16 %v6125, %v6124
      %v6225 = vpack.c.b16 %v6127, %v6126
      %v6226 = vpack.c.b16 %v6129, %v6128
      %v6227 = vpack.c.b16 %v6131, %v6130
      %v6228 = vpack.c.b16 %v6133, %v6132
      %v6229 = vpack.c.b16 %v6135, %v6134
      %v6230 = vpack.c.b16 %v6137, %v6136
      %v6231 = vpack.c.b16 %v6139, %v6138
      %v6232 = vpack.c.b16 %v6141, %v6140
      %v6233 = vpack.c.b16 %v6143, %v6142
      %v6234 = vpack.c.b16 %v6145, %v6144
      %v6235 = vpack.c.b16 %v6147, %v6146
      %v6236 = vpack.c.b16 %v6149, %v6148
      %v6237 = vpack.c.b16 %v6151, %v6150
      %v6238 = vpack.c.b16 %v6153, %v6152
      %v6239 = vpack.c.b16 %v6155, %v6154
      %v6240 = vpack.c.b16 %v6157, %v6156
      %v6241 = vpack.c.b16 %v6159, %v6158
      %v6242 = vpack.c.b16 %v6161, %v6160
      %v6243 = vpack.c.b16 %v6163, %v6162
      %v6244 = vpack.c.b16 %v6165, %v6164
      %v6245 = vpack.c.b16 %v6167, %v6166
      %v6246 = vpack.c.b16 %v6169, %v6168
      %v6247 = vpack.c.b16 %v6171, %v6170
      %v6248 = vpack.c.b16 %v6173, %v6172
      %v6249 = vpack.c.b16 %v6175, %v6174
      %v6250 = vpack.c.b16 %v6177, %v6176
      %v6251 = vpack.c.b16 %v6179, %v6178
      %6324 = vmatprep.subr.bf16.mxu0 0
      %6325 = vmatpush1.bf16.msra.mxu0 %v6187
      %6326 = vmatprep.subr.bf16.mxu0 0
      %6327 = vmatpush1.bf16.msra.mxu0 %v6186
      %6328 = vmatprep.subr.bf16.mxu0 0
      %6329 = vmatpush1.bf16.msra.mxu0 %v6185
      %6330 = vmatprep.subr.bf16.mxu0 0
      %6331 = vmatpush1.bf16.msra.mxu0 %v6184
      %6332 = vmatprep.subr.bf16.mxu0 0
      %6333 = vmatpush1.bf16.msra.mxu0 %v6183
      %6334 = vmatprep.subr.bf16.mxu0 0
      %6335 = vmatpush1.bf16.msra.mxu0 %v6182
      %6336 = vmatprep.subr.bf16.mxu0 0
      %6337 = vmatpush1.bf16.msra.mxu0 %v6181
      %6338 = vmatprep.subr.bf16.mxu0 0
      %6339 = vmatpush1.bf16.msra.mxu0 %v6180
      %6340 = vmatprep.subr.bf16.mxu0 0
      %6341 = vmatpush2.bf16.msra.mxu0 %v6195
      %6342 = vmatprep.subr.bf16.mxu0 0
      %6343 = vmatpush2.bf16.msra.mxu0 %v6194
      %6344 = vmatprep.subr.bf16.mxu0 0
      %6345 = vmatpush2.bf16.msra.mxu0 %v6193
      %6346 = vmatprep.subr.bf16.mxu0 0
      %6347 = vmatpush2.bf16.msra.mxu0 %v6192
      %6348 = vmatprep.subr.bf16.mxu0 0
      %6349 = vmatpush2.bf16.msra.mxu0 %v6191
      %6350 = vmatprep.subr.bf16.mxu0 0
      %6351 = vmatpush2.bf16.msra.mxu0 %v6190
      %6352 = vmatprep.subr.bf16.mxu0 0
      %6353 = vmatpush2.bf16.msra.mxu0 %v6189
      %6354 = vmatprep.subr.bf16.mxu0 0
      %6355 = vmatpush2.bf16.msra.mxu0 %v6188
      %6356 = vmatprep.mubr.bf16.mxu0 %v5603
      %6357 = vmatmul.mubr.bf16.gmra.mxu0 %v5587
      %v6358 = vpop.f32.mrf.mxu0
      %v6359 = vadd.f32 %v5890, %v6358
      %v6360 = vpop.f32.mrf.mxu0
      %v6361 = vpop.f32.mrf.mxu0
      %v6362 = vadd.f32 %v5890, %v6361
      %v6363 = vpop.f32.mrf.mxu0
      %6364 = vmatprep.mubr.bf16.mxu0 %v5607
      %6365 = vmatmul.mubr.bf16.gmra.mxu0 %v5591
      %v6366 = vpop.f32.mrf.mxu0
      %v6367 = vadd.f32 %v5890, %v6366
      %v6368 = vpop.f32.mrf.mxu0
      %v6369 = vpop.f32.mrf.mxu0
      %v6370 = vadd.f32 %v5890, %v6369
      %v6371 = vpop.f32.mrf.mxu0
      %6372 = vmatprep.mubr.bf16.mxu0 %v5611
      %6373 = vmatmul.mubr.bf16.gmra.mxu0 %v5595
      %v6374 = vpop.f32.mrf.mxu0
      %v6375 = vadd.f32 %v5890, %v6374
      %v6376 = vpop.f32.mrf.mxu0
      %v6377 = vpop.f32.mrf.mxu0
      %v6378 = vadd.f32 %v5890, %v6377
      %v6379 = vpop.f32.mrf.mxu0
      %6380 = vmatprep.mubr.bf16.mxu0 %v5615
      %6381 = vmatmul.mubr.bf16.gmra.mxu0 %v5599
      %v6382 = vpop.f32.mrf.mxu0
      %v6383 = vadd.f32 %v5890, %v6382
      %v6384 = vpop.f32.mrf.mxu0
      %v6385 = vpop.f32.mrf.mxu0
      %v6386 = vadd.f32 %v5890, %v6385
      %v6387 = vpop.f32.mrf.mxu0
      %6388 = vdwg.mxu0
      %6389 = vmatprep.subr.bf16.mxu0 0
      %6390 = vmatpush1.bf16.msra.mxu0 %v6203
      %6391 = vmatprep.subr.bf16.mxu0 0
      %6392 = vmatpush1.bf16.msra.mxu0 %v6202
      %6393 = vmatprep.subr.bf16.mxu0 0
      %6394 = vmatpush1.bf16.msra.mxu0 %v6201
      %6395 = vmatprep.subr.bf16.mxu0 0
      %6396 = vmatpush1.bf16.msra.mxu0 %v6200
      %6397 = vmatprep.subr.bf16.mxu0 0
      %6398 = vmatpush1.bf16.msra.mxu0 %v6199
      %6399 = vmatprep.subr.bf16.mxu0 0
      %6400 = vmatpush1.bf16.msra.mxu0 %v6198
      %6401 = vmatprep.subr.bf16.mxu0 0
      %6402 = vmatpush1.bf16.msra.mxu0 %v6197
      %6403 = vmatprep.subr.bf16.mxu0 0
      %6404 = vmatpush1.bf16.msra.mxu0 %v6196
      %6405 = vmatprep.subr.bf16.mxu0 0
      %6406 = vmatpush2.bf16.msra.mxu0 %v6211
      %6407 = vmatprep.subr.bf16.mxu0 0
      %6408 = vmatpush2.bf16.msra.mxu0 %v6210
      %6409 = vmatprep.subr.bf16.mxu0 0
      %6410 = vmatpush2.bf16.msra.mxu0 %v6209
      %6411 = vmatprep.subr.bf16.mxu0 0
      %6412 = vmatpush2.bf16.msra.mxu0 %v6208
      %6413 = vmatprep.subr.bf16.mxu0 0
      %6414 = vmatpush2.bf16.msra.mxu0 %v6207
      %6415 = vmatprep.subr.bf16.mxu0 0
      %6416 = vmatpush2.bf16.msra.mxu0 %v6206
      %6417 = vmatprep.subr.bf16.mxu0 0
      %6418 = vmatpush2.bf16.msra.mxu0 %v6205
      %6419 = vmatprep.subr.bf16.mxu0 0
      %6420 = vmatpush2.bf16.msra.mxu0 %v6204
      %6421 = vmatprep.mubr.bf16.mxu0 %v5635
      %6422 = vmatmul.mubr.bf16.gmra.mxu0 %v5619
      %v6423 = vpop.f32.mrf.mxu0
      %v6424 = vadd.f32 %v6359, %v6423
      %v6425 = vpop.f32.mrf.mxu0
      %v6426 = vpop.f32.mrf.mxu0
      %v6427 = vadd.f32 %v6362, %v6426
      %v6428 = vpop.f32.mrf.mxu0
      %6429 = vmatprep.mubr.bf16.mxu0 %v5639
      %6430 = vmatmul.mubr.bf16.gmra.mxu0 %v5623
      %v6431 = vpop.f32.mrf.mxu0
      %v6432 = vadd.f32 %v6367, %v6431
      %v6433 = vpop.f32.mrf.mxu0
      %v6434 = vpop.f32.mrf.mxu0
      %v6435 = vadd.f32 %v6370, %v6434
      %v6436 = vpop.f32.mrf.mxu0
      %6437 = vmatprep.mubr.bf16.mxu0 %v5643
      %6438 = vmatmul.mubr.bf16.gmra.mxu0 %v5627
      %v6439 = vpop.f32.mrf.mxu0
      %v6440 = vadd.f32 %v6375, %v6439
      %v6441 = vpop.f32.mrf.mxu0
      %v6442 = vpop.f32.mrf.mxu0
      %v6443 = vadd.f32 %v6378, %v6442
      %v6444 = vpop.f32.mrf.mxu0
      %6445 = vmatprep.mubr.bf16.mxu0 %v5647
      %6446 = vmatmul.mubr.bf16.gmra.mxu0 %v5631
      %v6447 = vpop.f32.mrf.mxu0
      %v6448 = vadd.f32 %v6383, %v6447
      %v6449 = vpop.f32.mrf.mxu0
      %v6450 = vpop.f32.mrf.mxu0
      %v6451 = vadd.f32 %v6386, %v6450
      %v6452 = vpop.f32.mrf.mxu0
      %6453 = vdwg.mxu0
      %6454 = vmatprep.subr.bf16.mxu0 0
      %6455 = vmatpush1.bf16.msra.mxu0 %v6219
      %6456 = vmatprep.subr.bf16.mxu0 0
      %6457 = vmatpush1.bf16.msra.mxu0 %v6218
      %6458 = vmatprep.subr.bf16.mxu0 0
      %6459 = vmatpush1.bf16.msra.mxu0 %v6217
      %6460 = vmatprep.subr.bf16.mxu0 0
      %6461 = vmatpush1.bf16.msra.mxu0 %v6216
      %6462 = vmatprep.subr.bf16.mxu0 0
      %6463 = vmatpush1.bf16.msra.mxu0 %v6215
      %6464 = vmatprep.subr.bf16.mxu0 0
      %6465 = vmatpush1.bf16.msra.mxu0 %v6214
      %6466 = vmatprep.subr.bf16.mxu0 0
      %6467 = vmatpush1.bf16.msra.mxu0 %v6213
      %6468 = vmatprep.subr.bf16.mxu0 0
      %6469 = vmatpush1.bf16.msra.mxu0 %v6212
      %6470 = vmatprep.subr.bf16.mxu0 0
      %6471 = vmatpush2.bf16.msra.mxu0 %v6227
      %6472 = vmatprep.subr.bf16.mxu0 0
      %6473 = vmatpush2.bf16.msra.mxu0 %v6226
      %6474 = vmatprep.subr.bf16.mxu0 0
      %6475 = vmatpush2.bf16.msra.mxu0 %v6225
      %6476 = vmatprep.subr.bf16.mxu0 0
      %6477 = vmatpush2.bf16.msra.mxu0 %v6224
      %6478 = vmatprep.subr.bf16.mxu0 0
      %6479 = vmatpush2.bf16.msra.mxu0 %v6223
      %6480 = vmatprep.subr.bf16.mxu0 0
      %6481 = vmatpush2.bf16.msra.mxu0 %v6222
      %6482 = vmatprep.subr.bf16.mxu0 0
      %6483 = vmatpush2.bf16.msra.mxu0 %v6221
      %6484 = vmatprep.subr.bf16.mxu0 0
      %6485 = vmatpush2.bf16.msra.mxu0 %v6220
      %6486 = vmatprep.mubr.bf16.mxu0 %v5667
      %6487 = vmatmul.mubr.bf16.gmra.mxu0 %v5651
      %v6488 = vpop.f32.mrf.mxu0
      %v6489 = vadd.f32 %v6424, %v6488
      %v6490 = vpop.f32.mrf.mxu0
      %v6491 = vpop.f32.mrf.mxu0
      %v6492 = vadd.f32 %v6427, %v6491
      %v6493 = vpop.f32.mrf.mxu0
      %6494 = vmatprep.mubr.bf16.mxu0 %v5671
      %6495 = vmatmul.mubr.bf16.gmra.mxu0 %v5655
      %v6496 = vpop.f32.mrf.mxu0
      %v6497 = vadd.f32 %v6432, %v6496
      %v6498 = vpop.f32.mrf.mxu0
      %v6499 = vpop.f32.mrf.mxu0
      %v6500 = vadd.f32 %v6435, %v6499
      %v6501 = vpop.f32.mrf.mxu0
      %6502 = vmatprep.mubr.bf16.mxu0 %v5675
      %6503 = vmatmul.mubr.bf16.gmra.mxu0 %v5659
      %v6504 = vpop.f32.mrf.mxu0
      %v6505 = vadd.f32 %v6440, %v6504
      %v6506 = vpop.f32.mrf.mxu0
      %v6507 = vpop.f32.mrf.mxu0
      %v6508 = vadd.f32 %v6443, %v6507
      %v6509 = vpop.f32.mrf.mxu0
      %6510 = vmatprep.mubr.bf16.mxu0 %v5679
      %6511 = vmatmul.mubr.bf16.gmra.mxu0 %v5663
      %v6512 = vpop.f32.mrf.mxu0
      %v6513 = vadd.f32 %v6448, %v6512
      %v6514 = vpop.f32.mrf.mxu0
      %v6515 = vpop.f32.mrf.mxu0
      %v6516 = vadd.f32 %v6451, %v6515
      %v6517 = vpop.f32.mrf.mxu0
      %6518 = vdwg.mxu0
      %6519 = vmatprep.subr.bf16.mxu0 0
      %6520 = vmatpush1.bf16.msra.mxu0 %v6235
      %6521 = vmatprep.subr.bf16.mxu0 0
      %6522 = vmatpush1.bf16.msra.mxu0 %v6234
      %6523 = vmatprep.subr.bf16.mxu0 0
      %6524 = vmatpush1.bf16.msra.mxu0 %v6233
      %6525 = vmatprep.subr.bf16.mxu0 0
      %6526 = vmatpush1.bf16.msra.mxu0 %v6232
      %6527 = vmatprep.subr.bf16.mxu0 0
      %6528 = vmatpush1.bf16.msra.mxu0 %v6231
      %6529 = vmatprep.subr.bf16.mxu0 0
      %6530 = vmatpush1.bf16.msra.mxu0 %v6230
      %6531 = vmatprep.subr.bf16.mxu0 0
      %6532 = vmatpush1.bf16.msra.mxu0 %v6229
      %6533 = vmatprep.subr.bf16.mxu0 0
      %6534 = vmatpush1.bf16.msra.mxu0 %v6228
      %6535 = vmatprep.subr.bf16.mxu0 0
      %6536 = vmatpush2.bf16.msra.mxu0 %v6243
      %6537 = vmatprep.subr.bf16.mxu0 0
      %6538 = vmatpush2.bf16.msra.mxu0 %v6242
      %6539 = vmatprep.subr.bf16.mxu0 0
      %6540 = vmatpush2.bf16.msra.mxu0 %v6241
      %6541 = vmatprep.subr.bf16.mxu0 0
      %6542 = vmatpush2.bf16.msra.mxu0 %v6240
      %6543 = vmatprep.subr.bf16.mxu0 0
      %6544 = vmatpush2.bf16.msra.mxu0 %v6239
      %6545 = vmatprep.subr.bf16.mxu0 0
      %6546 = vmatpush2.bf16.msra.mxu0 %v6238
      %6547 = vmatprep.subr.bf16.mxu0 0
      %6548 = vmatpush2.bf16.msra.mxu0 %v6237
      %6549 = vmatprep.subr.bf16.mxu0 0
      %6550 = vmatpush2.bf16.msra.mxu0 %v6236
      %6551 = vmatprep.mubr.bf16.mxu0 %v5699
      %6552 = vmatmul.mubr.bf16.gmra.mxu0 %v5683
      %v6553 = vpop.f32.mrf.mxu0
      %v6554 = vadd.f32 %v6489, %v6553
      %v6555 = vpop.f32.mrf.mxu0
      %v6556 = vpop.f32.mrf.mxu0
      %v6557 = vadd.f32 %v6492, %v6556
      %v6558 = vpop.f32.mrf.mxu0
      %6559 = vmatprep.mubr.bf16.mxu0 %v5703
      %6560 = vmatmul.mubr.bf16.gmra.mxu0 %v5687
      %v6561 = vpop.f32.mrf.mxu0
      %v6562 = vadd.f32 %v6497, %v6561
      %v6563 = vpop.f32.mrf.mxu0
      %v6564 = vpop.f32.mrf.mxu0
      %v6565 = vadd.f32 %v6500, %v6564
      %v6566 = vpop.f32.mrf.mxu0
      %6567 = vmatprep.mubr.bf16.mxu0 %v5707
      %6568 = vmatmul.mubr.bf16.gmra.mxu0 %v5691
      %v6569 = vpop.f32.mrf.mxu0
      %v6570 = vadd.f32 %v6505, %v6569
      %v6571 = vpop.f32.mrf.mxu0
      %v6572 = vpop.f32.mrf.mxu0
      %v6573 = vadd.f32 %v6508, %v6572
      %v6574 = vpop.f32.mrf.mxu0
      %6575 = vmatprep.mubr.bf16.mxu0 %v5711
      %6576 = vmatmul.mubr.bf16.gmra.mxu0 %v5695
      %v6577 = vpop.f32.mrf.mxu0
      %v6578 = vadd.f32 %v6513, %v6577
      %v6579 = vpop.f32.mrf.mxu0
      %v6580 = vpop.f32.mrf.mxu0
      %v6581 = vadd.f32 %v6516, %v6580
      %v6582 = vpop.f32.mrf.mxu0
      %6583 = vdwg.mxu0
      %6584 = vmatprep.subr.bf16.mxu0 0
      %6585 = vmatpush1.bf16.msra.mxu0 %v6251
      %6586 = vmatprep.subr.bf16.mxu0 0
      %6587 = vmatpush1.bf16.msra.mxu0 %v6250
      %6588 = vmatprep.subr.bf16.mxu0 0
      %6589 = vmatpush1.bf16.msra.mxu0 %v6249
      %6590 = vmatprep.subr.bf16.mxu0 0
      %6591 = vmatpush1.bf16.msra.mxu0 %v6248
      %6592 = vmatprep.subr.bf16.mxu0 0
      %6593 = vmatpush1.bf16.msra.mxu0 %v6247
      %6594 = vmatprep.subr.bf16.mxu0 0
      %6595 = vmatpush1.bf16.msra.mxu0 %v6246
      %6596 = vmatprep.subr.bf16.mxu0 0
      %6597 = vmatpush1.bf16.msra.mxu0 %v6245
      %6598 = vmatprep.subr.bf16.mxu0 0
      %6599 = vmatpush1.bf16.msra.mxu0 %v6244
      %6600 = vmatprep.subr.bf16.mxu0 0
      %6601 = vmatpush2.bf16.msra.mxu0 0
      %6602 = vmatprep.subr.bf16.mxu0 0
      %6603 = vmatpush2.bf16.msra.mxu0 0
      %6604 = vmatprep.subr.bf16.mxu0 0
      %6605 = vmatpush2.bf16.msra.mxu0 0
      %6606 = vmatprep.subr.bf16.mxu0 0
      %6607 = vmatpush2.bf16.msra.mxu0 0
      %6608 = vmatprep.subr.bf16.mxu0 0
      %6609 = vmatpush2.bf16.msra.mxu0 0
      %6610 = vmatprep.subr.bf16.mxu0 0
      %6611 = vmatpush2.bf16.msra.mxu0 0
      %6612 = vmatprep.subr.bf16.mxu0 0
      %6613 = vmatpush2.bf16.msra.mxu0 0
      %6614 = vmatprep.subr.bf16.mxu0 0
      %6615 = vmatpush2.bf16.msra.mxu0 0
      %6616 = vmatprep.mubr.bf16.mxu0 0
      %6617 = vmatmul.mubr.bf16.gmra.mxu0 %v5727
      %v6618 = vpop.f32.mrf.mxu0
      %v6619 = vadd.f32 %v6554, %v6618
      %v6620 = vpop.f32.mrf.mxu0
      %v6621 = vpop.f32.mrf.mxu0
      %v6622 = vadd.f32 %v6557, %v6621
      %v6623 = vpop.f32.mrf.mxu0
      %6624 = vmatprep.mubr.bf16.mxu0 0
      %6625 = vmatmul.mubr.bf16.gmra.mxu0 %v5731
      %v6626 = vpop.f32.mrf.mxu0
      %v6627 = vadd.f32 %v6562, %v6626
      %v6628 = vpop.f32.mrf.mxu0
      %v6629 = vpop.f32.mrf.mxu0
      %v6630 = vadd.f32 %v6565, %v6629
      %v6631 = vpop.f32.mrf.mxu0
      %6632 = vmatprep.mubr.bf16.mxu0 0
      %6633 = vmatmul.mubr.bf16.gmra.mxu0 %v5735
      %v6634 = vpop.f32.mrf.mxu0
      %v6635 = vadd.f32 %v6570, %v6634
      %v6636 = vpop.f32.mrf.mxu0
      %v6637 = vpop.f32.mrf.mxu0
      %v6638 = vadd.f32 %v6573, %v6637
      %v6639 = vpop.f32.mrf.mxu0
      %6640 = vmatprep.mubr.bf16.mxu0 0
      %6641 = vmatmul.mubr.bf16.gmra.mxu0 %v5739
      %v6642 = vpop.f32.mrf.mxu0
      %v6643 = vadd.f32 %v6578, %v6642
      %v6644 = vpop.f32.mrf.mxu0
      %v6645 = vpop.f32.mrf.mxu0
      %v6646 = vadd.f32 %v6581, %v6645
      %v6647 = vpop.f32.mrf.mxu0
      %6648 = vdwg.mxu0
      %6649 = vst [vmem:[%s305] sm:$0xff] %v6619
      %6650 = vst [vmem:[%s305 + $0x8] sm:$0xff] %v6622
      %6651 = vst [vmem:[%s305 + $0x10] sm:$0xff] %v6627
      %6652 = vst [vmem:[%s305 + $0x18] sm:$0xff] %v6630
      %6653 = vst [vmem:[%s305 + $0x20] sm:$0xff] %v6635
      %6654 = vst [vmem:[%s305 + $0x28] sm:$0xff] %v6638
      %6655 = vst [vmem:[%s305 + $0x30] sm:$0xff] %v6643
      %6656 = vst [vmem:[%s305 + $0x38] sm:$0xff] %v6646
      %p6657 = scmp.lt.s32.totalorder %s19, 1
      %s6658 = scalar_select %p6657, %s19, 1
      %s6659 = smul.addr %s6658, 8
      %s6660 = smul.addr %s6659, 8
      %s6661 = scalar_lea.vmem %s8, %s6660
      // Predicated region
      $region53: #{mynet32_fused_forward.1} parent=51 // pred_check
        %p6662 = pneg %p210
      $region54: #{mynet32_fused_forward.1} parent=51 // pred_check_branch
        %6664 = sbr.rel (%p6662) target = $region56
      $region55: #{mynet32_fused_forward.1} parent=51 // pred_region
        _
      $region56: #{mynet32_fused_forward.1} parent=51 // pred_fallthru
        _
    $region52: #{mynet32_fused_forward.1} parent=5 // pred_fallthru
      _
    %p6665 = scmp.le.s32.totalorder 2, %s14
    // Predicated region
    $region57: #{mynet32_fused_forward.1} parent=5 // pred_check
      %p6666 = pneg %p6665
    $region58: #{mynet32_fused_forward.1} parent=5 // pred_check_branch
      %6668 = sbr.rel (%p6666) target = $region60
    $region59: #{mynet32_fused_forward.1} parent=5 // pred_region
      %s6669 = ssub.s32 %s14, 2
      // Predicated region
      $region61: #{mynet32_fused_forward.1} parent=59 // pred_check
        %p6670 = pneg %p216
      $region62: #{mynet32_fused_forward.1} parent=59 // pred_check_branch
        %6672 = sbr.rel (%p6670) target = $region64
      $region63: #{mynet32_fused_forward.1} parent=59 // pred_region
        %p6673 = scmp.lt.s32.totalorder %s20, 1
        %s6674 = scalar_select %p6673, %s20, 1
        %s6675 = smul.addr %s6674, 8
        %s6676 = smul.addr %s6675, 8
        %s6677 = scalar_lea.vmem %s8, %s6676
      $region64: #{mynet32_fused_forward.1} parent=59 // pred_fallthru
        _
    $region60: #{mynet32_fused_forward.1} parent=5 // pred_fallthru
      _
  $region6: #{mynet32_fused_forward.1} parent=0 // loop_footer
    %s18 = sadd.s32 1, %s14
  $region7: #{mynet32_fused_forward.1} parent=0 // loop_footer_branch
    %13 = sbr.rel target = $region3
  $region8: #{mynet32_fused_forward.1} parent=0 // loop_exit
    _

</llo_original>
